<compile_context>
chip_gen: v5e
topology: v5e:2x2
jax: 0.10.0
libtpu: 0.0.40
codegen_flags: <defaults>
</compile_context>

<pallas_src>
import jax
import jax.numpy as jnp
from jax import lax
from jax.experimental import pallas as pl
from jax.experimental.pallas import tpu as pltpu
from jax.flatten_util import ravel_pytree

# ----------------------------- configuration --------------------------------
B = 8                 # batch
C_IN = 3              # image channels
IMG = 32              # image size (small, synthetic)
PATCH = 16            # patch size -> 4 patches
N_PATCH = (IMG // PATCH) ** 2
VISION_WIDTH = 256
TEXT_WIDTH = 256
EMBED_DIM = 128
SEQ_LEN = 16
VOCAB = 128
ENTRIES = 50          # codebook entries (as in the module)
CODE_PAD = 64         # codebook padded to a clean lane width
QUEUE_SIZE = 120      # small queue
MOMENTUM = 0.995
QUERY_THRESHOLD = 0.1
ANS_THRESHOLD = 0.1

# Invariants: the queue enqueue uses lax.dynamic_update_slice (which clamps,
# not wraps) — correct only because QUEUE_SIZE % B == 0, so ptr+B never exceeds
# QUEUE_SIZE.  B + QUEUE_SIZE == 128 keeps the sim matrices lane-dense.
assert QUEUE_SIZE % B == 0 and B + QUEUE_SIZE == 128


def _vmem():
    return pl.BlockSpec(memory_space=pltpu.MemorySpace.VMEM)


def _smem():
    return pl.BlockSpec(memory_space=pltpu.MemorySpace.SMEM)


# ------------------------------- kernels -------------------------------------
# --- (1) single flat EMA kernel over all momentum parameters -----------------
def _ema_kernel(pm_ref, p_ref, o_ref):
    o_ref[...] = pm_ref[...] * MOMENTUM + p_ref[...] * (1.0 - MOMENTUM)


def pallas_ema_tree(mparams, params_subset):
    flat_m, unravel = ravel_pytree(mparams)
    flat_p, _ = ravel_pytree(params_subset)
    n = flat_m.shape[0]
    n_pad = ((n + 1023) // 1024) * 1024          # multiple of 8*128 -> full vregs
    pm = jnp.pad(flat_m, (0, n_pad - n)).reshape(n_pad // 128, 128)
    pp = jnp.pad(flat_p, (0, n_pad - n)).reshape(n_pad // 128, 128)
    out = pl.pallas_call(
        _ema_kernel,
        out_shape=jax.ShapeDtypeStruct(pm.shape, jnp.float32),
        in_specs=[_vmem(), _vmem()],
        out_specs=_vmem(),
    )(pm, pp)
    return unravel(out.reshape(-1)[:n])


# --- (2) fused encoder matmuls (main + momentum, vision + text) ---------------
def _encoders_kernel(xp_ref, wp_ref, bp_ref, xt_ref, wt_ref, bt_ref,
                     op_ref, ot_ref):
    op_ref[...] = (jnp.dot(xp_ref[...], wp_ref[...],
                           preferred_element_type=jnp.float32) + bp_ref[...])
    ot_ref[...] = jnp.tanh(
        jnp.dot(xt_ref[...], wt_ref[...],
                preferred_element_type=jnp.float32) + bt_ref[...])


def pallas_encoders(x_patch, wp, bp, x_text, wt, bt):
    return pl.pallas_call(
        _encoders_kernel,
        out_shape=(jax.ShapeDtypeStruct((x_patch.shape[0], wp.shape[1]), jnp.float32),
                   jax.ShapeDtypeStruct((x_text.shape[0], wt.shape[1]), jnp.float32)),
        in_specs=[_vmem()] * 6,
        out_specs=(_vmem(), _vmem()),
    )(x_patch, wp, bp.reshape(1, -1), x_text, wt, bt.reshape(1, -1))


# --- (3) fused head: proj+normalize, ITA loss, Jaccard loss -------------------
def _head_kernel(temp_ref, xv_ref, xt_ref, wvp_ref, bvp_ref, wtp_ref, btp_ref,
                 iq_ref, tq_ref, tgt_s_ref, tgt_q_ref, code_ref, cmask_ref,
                 loss_ref, vm_ref, lm_ref):
    E = EMBED_DIM

    def l2norm(y):
        nrm = jnp.sqrt(jnp.sum(y * y, axis=-1, keepdims=True))
        return y / jnp.maximum(nrm, 1e-12)

    # One 256-wide matmul per modality: rows [:B] are the main branch, rows
    # [B:] the momentum branch; columns [:E] use the main proj weights,
    # columns [E:] the momentum proj weights.
    yv = jnp.dot(xv_ref[...], wvp_ref[...],
                 preferred_element_type=jnp.float32) + bvp_ref[...]
    yt = jnp.dot(xt_ref[...], wtp_ref[...],
                 preferred_element_type=jnp.float32) + btp_ref[...]
    v_embed = l2norm(yv[:B, :E])
    v_embed_m = l2norm(yv[B:, E:])
    l_embed = l2norm(yt[:B, :E])
    l_embed_m = l2norm(yt[B:, E:])

    # ---- ITA loss: sim against [current momentum batch | queue] ----
    inv_t = 1.0 / temp_ref[0]
    s1_i2t = jnp.dot(v_embed, l_embed_m.T,
                     preferred_element_type=jnp.float32) * inv_t      # (B, B)
    s2_i2t = jnp.dot(v_embed, tq_ref[...],
                     preferred_element_type=jnp.float32) * inv_t      # (B, Q)
    s1_t2i = jnp.dot(l_embed, v_embed_m.T,
                     preferred_element_type=jnp.float32) * inv_t
    s2_t2i = jnp.dot(l_embed, iq_ref[...],
                     preferred_element_type=jnp.float32) * inv_t

    tgt_s = tgt_s_ref[...]
    tgt_q = tgt_q_ref[...]

    def ce(s1, s2):
        m = jnp.maximum(jnp.max(s1, axis=1, keepdims=True),
                        jnp.max(s2, axis=1, keepdims=True))
        z1 = s1 - m
        z2 = s2 - m
        lse = jnp.log(jnp.sum(jnp.exp(z1), axis=1, keepdims=True)
                      + jnp.sum(jnp.exp(z2), axis=1, keepdims=True))
        per_row = -(jnp.sum((z1 - lse) * tgt_s, axis=1, keepdims=True)
                    + jnp.sum((z2 - lse) * tgt_q, axis=1, keepdims=True))  # (B, 1)
        return jnp.sum(per_row, axis=0, keepdims=True) / per_row.shape[0]  # (1, 1)

    loss_ita = (ce(s1_i2t, s2_i2t) + ce(s1_t2i, s2_t2i)) * 0.5

    # ---- Jaccard loss on pre-normalized / padded codebook ----
    code = code_ref[...]                       # (E, CODE_PAD), cols >= ENTRIES are 0
    cmask = cmask_ref[...]                     # (1, CODE_PAD)
    valid = cmask > 0.0
    v_sim = jnp.dot(v_embed, code, preferred_element_type=jnp.float32)   # (B, CODE_PAD)
    l_sim = jnp.dot(l_embed, code, preferred_element_type=jnp.float32)

    v_sim_q = jnp.where(v_sim < QUERY_THRESHOLD, 0.0, 1.0) * cmask
    l_sim_a = jnp.where(l_sim < ANS_THRESHOLD, 0.0, 1.0) * cmask

    def minmax_thresh(s, thr):
        mn = jnp.min(jnp.where(valid, s, 1e30), axis=-1, keepdims=True)
        mx = jnp.max(jnp.where(valid, s, -1e30), axis=-1, keepdims=True)
        sn = (s - mn) / jnp.maximum(mx - mn, 1e-12)   # eps guards mx == mn
        return jnp.where(sn < thr, 0.0, 1.0) * cmask

    l_sim_q = minmax_thresh(l_sim, QUERY_THRESHOLD)
    v_sim_a = minmax_thresh(v_sim, ANS_THRESHOLD)

    def jac_mean(pred, targ):
        inter = jnp.sum(pred * targ, axis=-1, keepdims=True)
        union = (jnp.sum(pred, axis=-1, keepdims=True)
                 + jnp.sum(targ, axis=-1, keepdims=True) - inter)
        jac = inter / (union + 1e-8)                                   # (B, 1)
        return jnp.sum(jac, axis=0, keepdims=True) / jac.shape[0]      # (1, 1)

    loss_jac = (jac_mean(v_sim_q, l_sim_a) + jac_mean(l_sim_q, v_sim_a)) * 0.5

    # ---- outputs: momentum embeddings (for queue) + packed loss row ----
    vm_ref[...] = v_embed_m
    lm_ref[...] = l_embed_m
    lane = lax.broadcasted_iota(jnp.int32, (1, 128), 1)
    loss_ref[...] = (jnp.where(lane == 0, loss_ita, 0.0)
                     + jnp.where(lane == 1, loss_jac, 0.0))


def pallas_head(temp, xv, xt, w_vp, b_vp, w_tp, b_tp, image_queue, text_queue,
                tgt_self, tgt_queue, code_nT, code_mask):
    return pl.pallas_call(
        _head_kernel,
        out_shape=(jax.ShapeDtypeStruct((1, 128), jnp.float32),
                   jax.ShapeDtypeStruct((B, EMBED_DIM), jnp.float32),
                   jax.ShapeDtypeStruct((B, EMBED_DIM), jnp.float32)),
        in_specs=[_smem()] + [_vmem()] * 12,
        out_specs=(_vmem(), _vmem(), _vmem()),
    )(temp.reshape(1), xv, xt, w_vp, b_vp.reshape(1, -1), w_tp, b_tp.reshape(1, -1),
      image_queue, text_queue, tgt_self, tgt_queue, code_nT, code_mask)


# --------------------------- encoder glue (JAX) -------------------------------
# TODO(synk): full ViT / BERT transformer stacks are external submodules
# (create_vit / BertModel); they are replaced with deterministic synthetic
# encoders whose hot matmuls run in the fused Pallas "encoders" kernel.
def unfold_patches(image):
    b, c, h, w = image.shape
    ph, pw = h // PATCH, w // PATCH
    x = image.reshape(b, c, ph, PATCH, pw, PATCH)
    x = x.transpose(0, 2, 4, 1, 3, 5).reshape(b, ph * pw, c * PATCH * PATCH)
    return x


def embed_tokens(input_ids, attention_mask, txt):
    # TODO(synk): string tokenizer (init_tokenizer) has no JAX equivalent;
    # token-embedding gather + pos add + mask stay in XLA (fused by the compiler).
    x = txt["tok_emb"][input_ids] + txt["pos_emb"][None, :, :]
    return x * attention_mask[..., None].astype(jnp.float32)


def vit_finish(tokens, vis_p):
    # CLS token pools the projected patches so the image actually drives the loss.
    cls = (jnp.broadcast_to(vis_p["cls"], (tokens.shape[0], 1, VISION_WIDTH))
           + jnp.mean(tokens, axis=1, keepdims=True))
    return jnp.concatenate([cls, tokens], axis=1) + vis_p["pos"]


def _momentum_subset(params):
    return {
        "vis": params["vis"],
        "txt": params["txt"],
        "vision_proj_w": params["vision_proj_w"],
        "vision_proj_b": params["vision_proj_b"],
        "text_proj_w": params["text_proj_w"],
        "text_proj_b": params["text_proj_b"],
    }


# ------------------------------- forward --------------------------------------
@jax.jit
def blip_retrieval_forward(params, mparams, buffers, image, input_ids,
                           attention_mask, idx):
    # temp.clamp_(0.001, 0.5)
    temp = jnp.clip(params["temp"], 0.001, 0.5)

    # momentum (EMA) parameter update — single flat Pallas kernel
    mparams_new = pallas_ema_tree(mparams, _momentum_subset(params))

    # ---------------- fused encoder matmuls (1 pallas_call) ----------------
    # Patch embedding: LHS is identical for main/momentum -> fuse weights on N.
    xp = unfold_patches(image).reshape(B * N_PATCH, -1)                 # (32, 768)
    wp_f = jnp.concatenate([params["vis"]["patch_w"],
                            mparams_new["vis"]["patch_w"]], axis=1)     # (768, 512)
    bp_f = jnp.concatenate([params["vis"]["patch_b"],
                            mparams_new["vis"]["patch_b"]], axis=0)
    # Text encoder: embeddings are EMA'd, so LHS differs -> batch-stack + fuse N.
    xt_main = embed_tokens(input_ids, attention_mask,
                           params["txt"]).reshape(B * SEQ_LEN, TEXT_WIDTH)
    xt_mom = embed_tokens(input_ids, attention_mask,
                          mparams_new["txt"]).reshape(B * SEQ_LEN, TEXT_WIDTH)
    xt = jnp.concatenate([xt_main, xt_mom], axis=0)                     # (256, 256)
    wt_f = jnp.concatenate([params["txt"]["enc_w"],
                            mparams_new["txt"]["enc_w"]], axis=1)       # (256, 512)
    bt_f = jnp.concatenate([params["txt"]["enc_b"],
                            mparams_new["txt"]["enc_b"]], axis=0)

    patch_y, text_y = pallas_encoders(xp, wp_f, bp_f, xt, wt_f, bt_f)

    patch_main = patch_y[:, :VISION_WIDTH].reshape(B, N_PATCH, VISION_WIDTH)
    patch_mom = patch_y[:, VISION_WIDTH:].reshape(B, N_PATCH, VISION_WIDTH)
    BS = B * SEQ_LEN
    text_main = text_y[:BS, :TEXT_WIDTH].reshape(B, SEQ_LEN, TEXT_WIDTH)
    text_mom = text_y[BS:, TEXT_WIDTH:].reshape(B, SEQ_LEN, TEXT_WIDTH)

    image_embeds = vit_finish(patch_main, params["vis"])
    image_embeds_m = vit_finish(patch_mom, mparams_new["vis"])

    # ---------------- fused head (1 pallas_call) ----------------
    cls_v = image_embeds[:, 0, :]
    cls_vm = image_embeds_m[:, 0, :]
    cls_t = text_main[:, 0, :]
    cls_tm = text_mom[:, 0, :]
    xv_cls = jnp.concatenate([cls_v, cls_vm], axis=0)                   # (2B, 256)
    xt_cls = jnp.concatenate([cls_t, cls_tm], axis=0)

    w_vp = jnp.concatenate([params["vision_proj_w"],
                            mparams_new["vision_proj_w"]], axis=1)      # (256, 256)
    b_vp = jnp.concatenate([params["vision_proj_b"],
                            mparams_new["vision_proj_b"]], axis=0)
    w_tp = jnp.concatenate([params["text_proj_w"],
                            mparams_new["text_proj_w"]], axis=1)
    b_tp = jnp.concatenate([params["text_proj_b"],
                            mparams_new["text_proj_b"]], axis=0)

    # targets from idx and idx_queue (columns: [current batch | queue])
    idx_col = idx.reshape(-1, 1)
    idx_all = jnp.concatenate([idx_col.T, buffers["idx_queue"]], axis=1)
    pos_idx = (idx_col == idx_all).astype(jnp.float32)
    sim_targets = pos_idx / jnp.sum(pos_idx, axis=1, keepdims=True)     # (B, B+Q)
    tgt_self = sim_targets[:, :B]
    tgt_queue = sim_targets[:, B:]

    # pre-normalized, transposed, zero-padded codebook (+ validity mask)
    code = params["codebook"]
    code_n = code / jnp.maximum(jnp.linalg.norm(code, axis=-1, keepdims=True), 1e-12)
    code_nT = jnp.pad(code_n, ((0, CODE_PAD - ENTRIES), (0, 0))).T       # (128, 64)
    code_mask = jnp.pad(jnp.ones((1, ENTRIES), jnp.float32),
                        ((0, 0), (0, CODE_PAD - ENTRIES)))

    losses, v_embed_m, l_embed_m = pallas_head(
        temp, xv_cls, xt_cls, w_vp, b_vp, w_tp, b_tp,
        buffers["image_queue"], buffers["text_queue"],
        tgt_self, tgt_queue, code_nT, code_mask)

    loss_ita = losses[0, 0]
    loss_jaccard = losses[0, 1]

    # dequeue and enqueue (concat_all_gather is identity, single device).
    # QUEUE_SIZE % B == 0 guarantees ptr + B <= QUEUE_SIZE, so the clamping
    # semantics of dynamic_update_slice never kick in.
    ptr = buffers["ptr_queue"][0]
    image_queue = lax.dynamic_update_slice(buffers["image_queue"],
                                           v_embed_m.T, (0, ptr))
    text_queue = lax.dynamic_update_slice(buffers["text_queue"],
                                          l_embed_m.T, (0, ptr))
    idx_queue = lax.dynamic_update_slice(
        buffers["idx_queue"], idx_col.T.astype(buffers["idx_queue"].dtype), (0, ptr))
    new_ptr = (ptr + B) % QUEUE_SIZE
    new_buffers = {
        "image_queue": image_queue,
        "text_queue": text_queue,
        "idx_queue": idx_queue,
        "ptr_queue": new_ptr.reshape(1),
    }
    return loss_ita, loss_jaccard, mparams_new, new_buffers


# --------------------------- parameter init ------------------------------------
def init_params(key):
    ks = jax.random.split(key, 12)
    std = 0.02
    vis = {
        "patch_w": std * jax.random.normal(ks[0], (C_IN * PATCH * PATCH, VISION_WIDTH), jnp.float32),
        "patch_b": jnp.zeros((VISION_WIDTH,), jnp.float32),
        "cls": std * jax.random.normal(ks[1], (1, 1, VISION_WIDTH), jnp.float32),
        "pos": std * jax.random.normal(ks[2], (1, N_PATCH + 1, VISION_WIDTH), jnp.float32),
    }
    txt = {
        "tok_emb": std * jax.random.normal(ks[3], (VOCAB, TEXT_WIDTH), jnp.float32),
        "pos_emb": std * jax.random.normal(ks[4], (SEQ_LEN, TEXT_WIDTH), jnp.float32),
        "enc_w": std * jax.random.normal(ks[5], (TEXT_WIDTH, TEXT_WIDTH), jnp.float32),
        "enc_b": jnp.zeros((TEXT_WIDTH,), jnp.float32),
    }
    params = {
        "vis": vis,
        "txt": txt,
        "vision_proj_w": std * jax.random.normal(ks[6], (VISION_WIDTH, EMBED_DIM), jnp.float32),
        "vision_proj_b": jnp.zeros((EMBED_DIM,), jnp.float32),
        "text_proj_w": std * jax.random.normal(ks[7], (TEXT_WIDTH, EMBED_DIM), jnp.float32),
        "text_proj_b": jnp.zeros((EMBED_DIM,), jnp.float32),
        "codebook": jax.random.normal(ks[8], (ENTRIES, EMBED_DIM), jnp.float32),
        "temp": jnp.array(0.07, jnp.float32),
    }
    # copy_params(): momentum branch starts as an exact copy
    mparams = jax.tree_util.tree_map(lambda x: x, _momentum_subset(params))

    iq = jax.random.normal(ks[9], (EMBED_DIM, QUEUE_SIZE), jnp.float32)
    tq = jax.random.normal(ks[10], (EMBED_DIM, QUEUE_SIZE), jnp.float32)
    buffers = {
        "image_queue": iq / jnp.linalg.norm(iq, axis=0, keepdims=True),
        "text_queue": tq / jnp.linalg.norm(tq, axis=0, keepdims=True),
        "idx_queue": jnp.full((1, QUEUE_SIZE), -100, jnp.int32),
        "ptr_queue": jnp.zeros((1,), jnp.int32),
    }
    return params, mparams, buffers


# ------------------------------------ main --------------------------------------
if __name__ == "__main__":
    key = jax.random.PRNGKey(0)
    k_param, k_img, k_ids = jax.random.split(key, 3)

    params, mparams, buffers = init_params(k_param)

    image = jax.random.normal(k_img, (B, C_IN, IMG, IMG), jnp.float32)  # NCHW
    input_ids = jax.random.randint(k_ids, (B, SEQ_LEN), 0, VOCAB, jnp.int32)
    attention_mask = jnp.ones((B, SEQ_LEN), jnp.float32)
    idx = jnp.arange(B, dtype=jnp.int32)

    loss_ita, loss_jaccard, mparams_new, new_buffers = blip_retrieval_forward(
        params, mparams, buffers, image, input_ids, attention_mask, idx)

    jax.block_until_ready((loss_ita, loss_jaccard, mparams_new, new_buffers))
    assert bool(jnp.isfinite(loss_ita)) and bool(jnp.isfinite(loss_jaccard))
    print("KERNEL_OK")
</pallas_src>

<mosaic_0001>
module attributes {stable_mosaic.version = 11 : i64} {
  func.func @_ema_kernel(%arg0: memref<2872x128xf32, #tpu.memory_space<vmem>>, %arg1: memref<2872x128xf32, #tpu.memory_space<vmem>>, %arg2: memref<2872x128xf32, #tpu.memory_space<vmem>>) attributes {dimension_semantics = [], scalar_prefetch = 0 : i64, scratch_operands = 0 : i64, tpu.core_type = #tpu.core_type<tc>} {
    %c0 = arith.constant 0 : index
    %c0_0 = arith.constant 0 : index
    %0 = vector.load %arg0[%c0, %c0_0] : memref<2872x128xf32, #tpu.memory_space<vmem>>, vector<2872x128xf32>
    %cst = arith.constant 9.950000e-01 : f32
    %1 = vector.broadcast %cst : f32 to vector<2872x128xf32>
    %2 = arith.mulf %0, %1 : vector<2872x128xf32>
    %c0_1 = arith.constant 0 : index
    %c0_2 = arith.constant 0 : index
    %3 = vector.load %arg1[%c0_1, %c0_2] : memref<2872x128xf32, #tpu.memory_space<vmem>>, vector<2872x128xf32>
    %cst_3 = arith.constant 5.000000e-03 : f32
    %4 = vector.broadcast %cst_3 : f32 to vector<2872x128xf32>
    %5 = arith.mulf %3, %4 : vector<2872x128xf32>
    %6 = arith.addf %2, %5 : vector<2872x128xf32>
    %c0_4 = arith.constant 0 : index
    %c0_5 = arith.constant 0 : index
    %7 = vector.load %arg2[%c0_4, %c0_5] : memref<2872x128xf32, #tpu.memory_space<vmem>>, vector<2872x128xf32>
    tpu.vector_store %arg2[%c0_4, %c0_5], %6 {strides = array<i32>} : memref<2872x128xf32, #tpu.memory_space<vmem>>, vector<2872x128xf32>,
    return
  }
}

module attributes {stable_mosaic.version = 11 : i64} {
  func.func @_encoders_kernel(%arg0: memref<32x768xf32, #tpu.memory_space<vmem>>, %arg1: memref<768x512xf32, #tpu.memory_space<vmem>>, %arg2: memref<1x512xf32, #tpu.memory_space<vmem>>, %arg3: memref<256x256xf32, #tpu.memory_space<vmem>>, %arg4: memref<256x512xf32, #tpu.memory_space<vmem>>, %arg5: memref<1x512xf32, #tpu.memory_space<vmem>>, %arg6: memref<32x512xf32, #tpu.memory_space<vmem>>, %arg7: memref<256x512xf32, #tpu.memory_space<vmem>>) attributes {dimension_semantics = [], scalar_prefetch = 0 : i64, scratch_operands = 0 : i64, tpu.core_type = #tpu.core_type<tc>} {
    %c0 = arith.constant 0 : index
    %c0_0 = arith.constant 0 : index
    %0 = vector.load %arg0[%c0, %c0_0] : memref<32x768xf32, #tpu.memory_space<vmem>>, vector<32x768xf32>
    %c0_1 = arith.constant 0 : index
    %c0_2 = arith.constant 0 : index
    %1 = vector.load %arg1[%c0_1, %c0_2] : memref<768x512xf32, #tpu.memory_space<vmem>>, vector<768x512xf32>
    %cst = arith.constant dense<0.000000e+00> : vector<32x512xf32>
    %2 = tpu.matmul %0, %1, %cst {dimension_numbers = #tpu.dot_dimension_numbers<[1], [0], [0], [1], [0, 0, 1, 1], [], []>} : vector<32x768xf32>, vector<768x512xf32>, vector<32x512xf32> -> vector<32x512xf32>
    %c0_3 = arith.constant 0 : index
    %c0_4 = arith.constant 0 : index
    %3 = vector.load %arg2[%c0_3, %c0_4] : memref<1x512xf32, #tpu.memory_space<vmem>>, vector<1x512xf32>
    %4 = vector.broadcast %3 : vector<1x512xf32> to vector<32x512xf32>
    %5 = arith.addf %2, %4 : vector<32x512xf32>
    %c0_5 = arith.constant 0 : index
    %c0_6 = arith.constant 0 : index
    %6 = vector.load %arg6[%c0_5, %c0_6] : memref<32x512xf32, #tpu.memory_space<vmem>>, vector<32x512xf32>
    tpu.vector_store %arg6[%c0_5, %c0_6], %5 {strides = array<i32>} : memref<32x512xf32, #tpu.memory_space<vmem>>, vector<32x512xf32>,
    %c0_7 = arith.constant 0 : index
    %c0_8 = arith.constant 0 : index
    %7 = vector.load %arg3[%c0_7, %c0_8] : memref<256x256xf32, #tpu.memory_space<vmem>>, vector<256x256xf32>
    %c0_9 = arith.constant 0 : index
    %c0_10 = arith.constant 0 : index
    %8 = vector.load %arg4[%c0_9, %c0_10] : memref<256x512xf32, #tpu.memory_space<vmem>>, vector<256x512xf32>
    %cst_11 = arith.constant dense<0.000000e+00> : vector<256x512xf32>
    %9 = tpu.matmul %7, %8, %cst_11 {dimension_numbers = #tpu.dot_dimension_numbers<[1], [0], [0], [1], [0, 0, 1, 1], [], []>} : vector<256x256xf32>, vector<256x512xf32>, vector<256x512xf32> -> vector<256x512xf32>
    %c0_12 = arith.constant 0 : index
    %c0_13 = arith.constant 0 : index
    %10 = vector.load %arg5[%c0_12, %c0_13] : memref<1x512xf32, #tpu.memory_space<vmem>>, vector<1x512xf32>
    %11 = vector.broadcast %10 : vector<1x512xf32> to vector<256x512xf32>
    %12 = arith.addf %9, %11 : vector<256x512xf32>
    %13 = math.tanh %12 : vector<256x512xf32>
    %c0_14 = arith.constant 0 : index
    %c0_15 = arith.constant 0 : index
    %14 = vector.load %arg7[%c0_14, %c0_15] : memref<256x512xf32, #tpu.memory_space<vmem>>, vector<256x512xf32>
    tpu.vector_store %arg7[%c0_14, %c0_15], %13 {strides = array<i32>} : memref<256x512xf32, #tpu.memory_space<vmem>>, vector<256x512xf32>,
    return
  }
}

module attributes {stable_mosaic.version = 11 : i64} {
  func.func @_head_kernel(%arg0: memref<1xf32, #tpu.memory_space<smem>>, %arg1: memref<16x256xf32, #tpu.memory_space<vmem>>, %arg2: memref<16x256xf32, #tpu.memory_space<vmem>>, %arg3: memref<256x256xf32, #tpu.memory_space<vmem>>, %arg4: memref<1x256xf32, #tpu.memory_space<vmem>>, %arg5: memref<256x256xf32, #tpu.memory_space<vmem>>, %arg6: memref<1x256xf32, #tpu.memory_space<vmem>>, %arg7: memref<128x120xf32, #tpu.memory_space<vmem>>, %arg8: memref<128x120xf32, #tpu.memory_space<vmem>>, %arg9: memref<8x8xf32, #tpu.memory_space<vmem>>, %arg10: memref<8x120xf32, #tpu.memory_space<vmem>>, %arg11: memref<128x64xf32, #tpu.memory_space<vmem>>, %arg12: memref<1x64xf32, #tpu.memory_space<vmem>>, %arg13: memref<1x128xf32, #tpu.memory_space<vmem>>, %arg14: memref<8x128xf32, #tpu.memory_space<vmem>>, %arg15: memref<8x128xf32, #tpu.memory_space<vmem>>) attributes {dimension_semantics = [], scalar_prefetch = 0 : i64, scratch_operands = 0 : i64, tpu.core_type = #tpu.core_type<tc>} {
    %c0 = arith.constant 0 : index
    %c0_0 = arith.constant 0 : index
    %0 = vector.load %arg1[%c0, %c0_0] : memref<16x256xf32, #tpu.memory_space<vmem>>, vector<16x256xf32>
    %c0_1 = arith.constant 0 : index
    %c0_2 = arith.constant 0 : index
    %1 = vector.load %arg3[%c0_1, %c0_2] : memref<256x256xf32, #tpu.memory_space<vmem>>, vector<256x256xf32>
    %cst = arith.constant dense<0.000000e+00> : vector<16x256xf32>
    %2 = tpu.matmul %0, %1, %cst {dimension_numbers = #tpu.dot_dimension_numbers<[1], [0], [0], [1], [0, 0, 1, 1], [], []>} : vector<16x256xf32>, vector<256x256xf32>, vector<16x256xf32> -> vector<16x256xf32>
    %c0_3 = arith.constant 0 : index
    %c0_4 = arith.constant 0 : index
    %3 = vector.load %arg4[%c0_3, %c0_4] : memref<1x256xf32, #tpu.memory_space<vmem>>, vector<1x256xf32>
    %4 = vector.broadcast %3 : vector<1x256xf32> to vector<16x256xf32>
    %5 = arith.addf %2, %4 : vector<16x256xf32>
    %c0_5 = arith.constant 0 : index
    %c0_6 = arith.constant 0 : index
    %6 = vector.load %arg2[%c0_5, %c0_6] : memref<16x256xf32, #tpu.memory_space<vmem>>, vector<16x256xf32>
    %c0_7 = arith.constant 0 : index
    %c0_8 = arith.constant 0 : index
    %7 = vector.load %arg5[%c0_7, %c0_8] : memref<256x256xf32, #tpu.memory_space<vmem>>, vector<256x256xf32>
    %cst_9 = arith.constant dense<0.000000e+00> : vector<16x256xf32>
    %8 = tpu.matmul %6, %7, %cst_9 {dimension_numbers = #tpu.dot_dimension_numbers<[1], [0], [0], [1], [0, 0, 1, 1], [], []>} : vector<16x256xf32>, vector<256x256xf32>, vector<16x256xf32> -> vector<16x256xf32>
    %c0_10 = arith.constant 0 : index
    %c0_11 = arith.constant 0 : index
    %9 = vector.load %arg6[%c0_10, %c0_11] : memref<1x256xf32, #tpu.memory_space<vmem>>, vector<1x256xf32>
    %10 = vector.broadcast %9 : vector<1x256xf32> to vector<16x256xf32>
    %11 = arith.addf %8, %10 : vector<16x256xf32>
    %12 = vector.extract_strided_slice %5 {offsets = [0, 0], sizes = [8, 128], strides = [1, 1]} : vector<16x256xf32> to vector<8x128xf32>
    %13 = arith.mulf %12, %12 : vector<8x128xf32>
    %cst_12 = arith.constant dense<0.000000e+00> : vector<8xf32>
    %14 = vector.multi_reduction <add>, %13, %cst_12 [1] : vector<8x128xf32> to vector<8xf32>
    %15 = vector.shape_cast %14 : vector<8xf32> to vector<8x1xf32>
    %16 = math.sqrt %15 : vector<8x1xf32>
    %cst_13 = arith.constant 9.99999996E-13 : f32
    %17 = vector.broadcast %cst_13 : f32 to vector<8x1xf32>
    %18 = arith.maximumf %16, %17 : vector<8x1xf32>
    %19 = vector.broadcast %18 : vector<8x1xf32> to vector<8x128xf32>
    %20 = arith.divf %12, %19 : vector<8x128xf32>
    %21 = vector.extract_strided_slice %5 {offsets = [8, 128], sizes = [8, 128], strides = [1, 1]} : vector<16x256xf32> to vector<8x128xf32>
    %22 = arith.mulf %21, %21 : vector<8x128xf32>
    %cst_14 = arith.constant dense<0.000000e+00> : vector<8xf32>
    %23 = vector.multi_reduction <add>, %22, %cst_14 [1] : vector<8x128xf32> to vector<8xf32>
    %24 = vector.shape_cast %23 : vector<8xf32> to vector<8x1xf32>
    %25 = math.sqrt %24 : vector<8x1xf32>
    %cst_15 = arith.constant 9.99999996E-13 : f32
    %26 = vector.broadcast %cst_15 : f32 to vector<8x1xf32>
    %27 = arith.maximumf %25, %26 : vector<8x1xf32>
    %28 = vector.broadcast %27 : vector<8x1xf32> to vector<8x128xf32>
    %29 = arith.divf %21, %28 : vector<8x128xf32>
    %30 = vector.extract_strided_slice %11 {offsets = [0, 0], sizes = [8, 128], strides = [1, 1]} : vector<16x256xf32> to vector<8x128xf32>
    %31 = arith.mulf %30, %30 : vector<8x128xf32>
    %cst_16 = arith.constant dense<0.000000e+00> : vector<8xf32>
    %32 = vector.multi_reduction <add>, %31, %cst_16 [1] : vector<8x128xf32> to vector<8xf32>
    %33 = vector.shape_cast %32 : vector<8xf32> to vector<8x1xf32>
    %34 = math.sqrt %33 : vector<8x1xf32>
    %cst_17 = arith.constant 9.99999996E-13 : f32
    %35 = vector.broadcast %cst_17 : f32 to vector<8x1xf32>
    %36 = arith.maximumf %34, %35 : vector<8x1xf32>
    %37 = vector.broadcast %36 : vector<8x1xf32> to vector<8x128xf32>
    %38 = arith.divf %30, %37 : vector<8x128xf32>
    %39 = vector.extract_strided_slice %11 {offsets = [8, 128], sizes = [8, 128], strides = [1, 1]} : vector<16x256xf32> to vector<8x128xf32>
    %40 = arith.mulf %39, %39 : vector<8x128xf32>
    %cst_18 = arith.constant dense<0.000000e+00> : vector<8xf32>
    %41 = vector.multi_reduction <add>, %40, %cst_18 [1] : vector<8x128xf32> to vector<8xf32>
    %42 = vector.shape_cast %41 : vector<8xf32> to vector<8x1xf32>
    %43 = math.sqrt %42 : vector<8x1xf32>
    %cst_19 = arith.constant 9.99999996E-13 : f32
    %44 = vector.broadcast %cst_19 : f32 to vector<8x1xf32>
    %45 = arith.maximumf %43, %44 : vector<8x1xf32>
    %46 = vector.broadcast %45 : vector<8x1xf32> to vector<8x128xf32>
    %47 = arith.divf %39, %46 : vector<8x128xf32>
    %c0_20 = arith.constant 0 : index
    %48 = memref.load %arg0[%c0_20] : memref<1xf32, #tpu.memory_space<smem>>
    %cst_21 = arith.constant 1.000000e+00 : f32
    %49 = arith.divf %cst_21, %48 : f32
    %50 = tpu.transpose %47, [1, 0] : vector<8x128xf32> -> vector<128x8xf32>
    %cst_22 = arith.constant dense<0.000000e+00> : vector<8x8xf32>
    %51 = tpu.matmul %20, %50, %cst_22 {dimension_numbers = #tpu.dot_dimension_numbers<[1], [0], [0], [1], [0, 0, 1, 1], [], []>} : vector<8x128xf32>, vector<128x8xf32>, vector<8x8xf32> -> vector<8x8xf32>
    %52 = vector.broadcast %49 : f32 to vector<8x8xf32>
    %53 = arith.mulf %51, %52 : vector<8x8xf32>
    %c0_23 = arith.constant 0 : index
    %c0_24 = arith.constant 0 : index
    %54 = vector.load %arg8[%c0_23, %c0_24] : memref<128x120xf32, #tpu.memory_space<vmem>>, vector<128x120xf32>
    %cst_25 = arith.constant dense<0.000000e+00> : vector<8x120xf32>
    %55 = tpu.matmul %20, %54, %cst_25 {dimension_numbers = #tpu.dot_dimension_numbers<[1], [0], [0], [1], [0, 0, 1, 1], [], []>} : vector<8x128xf32>, vector<128x120xf32>, vector<8x120xf32> -> vector<8x120xf32>
    %56 = vector.broadcast %49 : f32 to vector<8x120xf32>
    %57 = arith.mulf %55, %56 : vector<8x120xf32>
    %58 = tpu.transpose %29, [1, 0] : vector<8x128xf32> -> vector<128x8xf32>
    %cst_26 = arith.constant dense<0.000000e+00> : vector<8x8xf32>
    %59 = tpu.matmul %38, %58, %cst_26 {dimension_numbers = #tpu.dot_dimension_numbers<[1], [0], [0], [1], [0, 0, 1, 1], [], []>} : vector<8x128xf32>, vector<128x8xf32>, vector<8x8xf32> -> vector<8x8xf32>
    %60 = vector.broadcast %49 : f32 to vector<8x8xf32>
    %61 = arith.mulf %59, %60 : vector<8x8xf32>
    %c0_27 = arith.constant 0 : index
    %c0_28 = arith.constant 0 : index
    %62 = vector.load %arg7[%c0_27, %c0_28] : memref<128x120xf32, #tpu.memory_space<vmem>>, vector<128x120xf32>
    %cst_29 = arith.constant dense<0.000000e+00> : vector<8x120xf32>
    %63 = tpu.matmul %38, %62, %cst_29 {dimension_numbers = #tpu.dot_dimension_numbers<[1], [0], [0], [1], [0, 0, 1, 1], [], []>} : vector<8x128xf32>, vector<128x120xf32>, vector<8x120xf32> -> vector<8x120xf32>
    %64 = vector.broadcast %49 : f32 to vector<8x120xf32>
    %65 = arith.mulf %63, %64 : vector<8x120xf32>
    %c0_30 = arith.constant 0 : index
    %c0_31 = arith.constant 0 : index
    %66 = vector.load %arg9[%c0_30, %c0_31] : memref<8x8xf32, #tpu.memory_space<vmem>>, vector<8x8xf32>
    %c0_32 = arith.constant 0 : index
    %c0_33 = arith.constant 0 : index
    %67 = vector.load %arg10[%c0_32, %c0_33] : memref<8x120xf32, #tpu.memory_space<vmem>>, vector<8x120xf32>
    %cst_34 = arith.constant dense<0xFF800000> : vector<8xf32>
    %68 = vector.multi_reduction <maximumf>, %53, %cst_34 [1] : vector<8x8xf32> to vector<8xf32>
    %69 = vector.shape_cast %68 : vector<8xf32> to vector<8x1xf32>
    %cst_35 = arith.constant dense<0xFF800000> : vector<8xf32>
    %70 = vector.multi_reduction <maximumf>, %57, %cst_35 [1] : vector<8x120xf32> to vector<8xf32>
    %71 = vector.shape_cast %70 : vector<8xf32> to vector<8x1xf32>
    %72 = arith.maximumf %69, %71 : vector<8x1xf32>
    %73 = vector.broadcast %72 : vector<8x1xf32> to vector<8x8xf32>
    %74 = arith.subf %53, %73 : vector<8x8xf32>
    %75 = vector.broadcast %72 : vector<8x1xf32> to vector<8x120xf32>
    %76 = arith.subf %57, %75 : vector<8x120xf32>
    %77 = math.exp %74 : vector<8x8xf32>
    %cst_36 = arith.constant dense<0.000000e+00> : vector<8xf32>
    %78 = vector.multi_reduction <add>, %77, %cst_36 [1] : vector<8x8xf32> to vector<8xf32>
    %79 = vector.shape_cast %78 : vector<8xf32> to vector<8x1xf32>
    %80 = math.exp %76 : vector<8x120xf32>
    %cst_37 = arith.constant dense<0.000000e+00> : vector<8xf32>
    %81 = vector.multi_reduction <add>, %80, %cst_37 [1] : vector<8x120xf32> to vector<8xf32>
    %82 = vector.shape_cast %81 : vector<8xf32> to vector<8x1xf32>
    %83 = arith.addf %79, %82 : vector<8x1xf32>
    %84 = math.log %83 : vector<8x1xf32>
    %85 = vector.broadcast %84 : vector<8x1xf32> to vector<8x8xf32>
    %86 = arith.subf %74, %85 : vector<8x8xf32>
    %87 = arith.mulf %86, %66 : vector<8x8xf32>
    %cst_38 = arith.constant dense<0.000000e+00> : vector<8xf32>
    %88 = vector.multi_reduction <add>, %87, %cst_38 [1] : vector<8x8xf32> to vector<8xf32>
    %89 = vector.shape_cast %88 : vector<8xf32> to vector<8x1xf32>
    %90 = vector.broadcast %84 : vector<8x1xf32> to vector<8x120xf32>
    %91 = arith.subf %76, %90 : vector<8x120xf32>
    %92 = arith.mulf %91, %67 : vector<8x120xf32>
    %cst_39 = arith.constant dense<0.000000e+00> : vector<8xf32>
    %93 = vector.multi_reduction <add>, %92, %cst_39 [1] : vector<8x120xf32> to vector<8xf32>
    %94 = vector.shape_cast %93 : vector<8xf32> to vector<8x1xf32>
    %95 = arith.addf %89, %94 : vector<8x1xf32>
    %cst_40 = arith.constant 0.000000e+00 : f32
    %96 = vector.broadcast %cst_40 : f32 to vector<8x1xf32>
    %97 = arith.subf %96, %95 : vector<8x1xf32>
    %cst_41 = arith.constant dense<0.000000e+00> : vector<1xf32>
    %98 = vector.multi_reduction <add>, %97, %cst_41 [0] : vector<8x1xf32> to vector<1xf32>
    %99 = vector.shape_cast %98 : vector<1xf32> to vector<1x1xf32>
    %cst_42 = arith.constant 8.000000e+00 : f32
    %100 = vector.broadcast %cst_42 : f32 to vector<1x1xf32>
    %101 = arith.divf %99, %100 : vector<1x1xf32>
    %cst_43 = arith.constant dense<0xFF800000> : vector<8xf32>
    %102 = vector.multi_reduction <maximumf>, %61, %cst_43 [1] : vector<8x8xf32> to vector<8xf32>
    %103 = vector.shape_cast %102 : vector<8xf32> to vector<8x1xf32>
    %cst_44 = arith.constant dense<0xFF800000> : vector<8xf32>
    %104 = vector.multi_reduction <maximumf>, %65, %cst_44 [1] : vector<8x120xf32> to vector<8xf32>
    %105 = vector.shape_cast %104 : vector<8xf32> to vector<8x1xf32>
    %106 = arith.maximumf %103, %105 : vector<8x1xf32>
    %107 = vector.broadcast %106 : vector<8x1xf32> to vector<8x8xf32>
    %108 = arith.subf %61, %107 : vector<8x8xf32>
    %109 = vector.broadcast %106 : vector<8x1xf32> to vector<8x120xf32>
    %110 = arith.subf %65, %109 : vector<8x120xf32>
    %111 = math.exp %108 : vector<8x8xf32>
    %cst_45 = arith.constant dense<0.000000e+00> : vector<8xf32>
    %112 = vector.multi_reduction <add>, %111, %cst_45 [1] : vector<8x8xf32> to vector<8xf32>
    %113 = vector.shape_cast %112 : vector<8xf32> to vector<8x1xf32>
    %114 = math.exp %110 : vector<8x120xf32>
    %cst_46 = arith.constant dense<0.000000e+00> : vector<8xf32>
    %115 = vector.multi_reduction <add>, %114, %cst_46 [1] : vector<8x120xf32> to vector<8xf32>
    %116 = vector.shape_cast %115 : vector<8xf32> to vector<8x1xf32>
    %117 = arith.addf %113, %116 : vector<8x1xf32>
    %118 = math.log %117 : vector<8x1xf32>
    %119 = vector.broadcast %118 : vector<8x1xf32> to vector<8x8xf32>
    %120 = arith.subf %108, %119 : vector<8x8xf32>
    %121 = arith.mulf %120, %66 : vector<8x8xf32>
    %cst_47 = arith.constant dense<0.000000e+00> : vector<8xf32>
    %122 = vector.multi_reduction <add>, %121, %cst_47 [1] : vector<8x8xf32> to vector<8xf32>
    %123 = vector.shape_cast %122 : vector<8xf32> to vector<8x1xf32>
    %124 = vector.broadcast %118 : vector<8x1xf32> to vector<8x120xf32>
    %125 = arith.subf %110, %124 : vector<8x120xf32>
    %126 = arith.mulf %125, %67 : vector<8x120xf32>
    %cst_48 = arith.constant dense<0.000000e+00> : vector<8xf32>
    %127 = vector.multi_reduction <add>, %126, %cst_48 [1] : vector<8x120xf32> to vector<8xf32>
    %128 = vector.shape_cast %127 : vector<8xf32> to vector<8x1xf32>
    %129 = arith.addf %123, %128 : vector<8x1xf32>
    %cst_49 = arith.constant 0.000000e+00 : f32
    %130 = vector.broadcast %cst_49 : f32 to vector<8x1xf32>
    %131 = arith.subf %130, %129 : vector<8x1xf32>
    %cst_50 = arith.constant dense<0.000000e+00> : vector<1xf32>
    %132 = vector.multi_reduction <add>, %131, %cst_50 [0] : vector<8x1xf32> to vector<1xf32>
    %133 = vector.shape_cast %132 : vector<1xf32> to vector<1x1xf32>
    %cst_51 = arith.constant 8.000000e+00 : f32
    %134 = vector.broadcast %cst_51 : f32 to vector<1x1xf32>
    %135 = arith.divf %133, %134 : vector<1x1xf32>
    %136 = arith.addf %101, %135 : vector<1x1xf32>
    %cst_52 = arith.constant 5.000000e-01 : f32
    %137 = vector.broadcast %cst_52 : f32 to vector<1x1xf32>
    %138 = arith.mulf %136, %137 : vector<1x1xf32>
    %c0_53 = arith.constant 0 : index
    %c0_54 = arith.constant 0 : index
    %139 = vector.load %arg11[%c0_53, %c0_54] : memref<128x64xf32, #tpu.memory_space<vmem>>, vector<128x64xf32>
    %c0_55 = arith.constant 0 : index
    %c0_56 = arith.constant 0 : index
    %140 = vector.load %arg12[%c0_55, %c0_56] : memref<1x64xf32, #tpu.memory_space<vmem>>, vector<1x64xf32>
    %cst_57 = arith.constant 0.000000e+00 : f32
    %141 = vector.broadcast %cst_57 : f32 to vector<1x64xf32>
    %142 = arith.cmpf ogt, %140, %141 : vector<1x64xf32>
    %cst_58 = arith.constant dense<0.000000e+00> : vector<8x64xf32>
    %143 = tpu.matmul %20, %139, %cst_58 {dimension_numbers = #tpu.dot_dimension_numbers<[1], [0], [0], [1], [0, 0, 1, 1], [], []>} : vector<8x128xf32>, vector<128x64xf32>, vector<8x64xf32> -> vector<8x64xf32>
    %cst_59 = arith.constant dense<0.000000e+00> : vector<8x64xf32>
    %144 = tpu.matmul %38, %139, %cst_59 {dimension_numbers = #tpu.dot_dimension_numbers<[1], [0], [0], [1], [0, 0, 1, 1], [], []>} : vector<8x128xf32>, vector<128x64xf32>, vector<8x64xf32> -> vector<8x64xf32>
    %cst_60 = arith.constant 1.000000e-01 : f32
    %145 = vector.broadcast %cst_60 : f32 to vector<8x64xf32>
    %146 = arith.cmpf olt, %143, %145 : vector<8x64xf32>
    %cst_61 = arith.constant 0.000000e+00 : f32
    %cst_62 = arith.constant 1.000000e+00 : f32
    %147 = vector.broadcast %cst_61 : f32 to vector<8x64xf32>
    %148 = vector.broadcast %cst_62 : f32 to vector<8x64xf32>
    %149 = arith.select %146, %147, %148 : vector<8x64xi1>, vector<8x64xf32>
    %150 = vector.broadcast %140 : vector<1x64xf32> to vector<8x64xf32>
    %151 = arith.mulf %149, %150 : vector<8x64xf32>
    %cst_63 = arith.constant 1.000000e-01 : f32
    %152 = vector.broadcast %cst_63 : f32 to vector<8x64xf32>
    %153 = arith.cmpf olt, %144, %152 : vector<8x64xf32>
    %cst_64 = arith.constant 0.000000e+00 : f32
    %cst_65 = arith.constant 1.000000e+00 : f32
    %154 = vector.broadcast %cst_64 : f32 to vector<8x64xf32>
    %155 = vector.broadcast %cst_65 : f32 to vector<8x64xf32>
    %156 = arith.select %153, %154, %155 : vector<8x64xi1>, vector<8x64xf32>
    %157 = vector.broadcast %140 : vector<1x64xf32> to vector<8x64xf32>
    %158 = arith.mulf %156, %157 : vector<8x64xf32>
    %cst_66 = arith.constant 1.000000e+30 : f32
    %159 = vector.shape_cast %142 : vector<1x64xi1> to vector<1x64xi1>
    %160 = vector.broadcast %159 : vector<1x64xi1> to vector<8x64xi1>
    %161 = vector.broadcast %cst_66 : f32 to vector<8x64xf32>
    %162 = arith.select %160, %144, %161 : vector<8x64xi1>, vector<8x64xf32>
    %cst_67 = arith.constant dense<0x7F800000> : vector<8xf32>
    %163 = vector.multi_reduction <minimumf>, %162, %cst_67 [1] : vector<8x64xf32> to vector<8xf32>
    %164 = vector.shape_cast %163 : vector<8xf32> to vector<8x1xf32>
    %cst_68 = arith.constant -1.000000e+30 : f32
    %165 = vector.shape_cast %142 : vector<1x64xi1> to vector<1x64xi1>
    %166 = vector.broadcast %165 : vector<1x64xi1> to vector<8x64xi1>
    %167 = vector.broadcast %cst_68 : f32 to vector<8x64xf32>
    %168 = arith.select %166, %144, %167 : vector<8x64xi1>, vector<8x64xf32>
    %cst_69 = arith.constant dense<0xFF800000> : vector<8xf32>
    %169 = vector.multi_reduction <maximumf>, %168, %cst_69 [1] : vector<8x64xf32> to vector<8xf32>
    %170 = vector.shape_cast %169 : vector<8xf32> to vector<8x1xf32>
    %171 = vector.broadcast %164 : vector<8x1xf32> to vector<8x64xf32>
    %172 = arith.subf %144, %171 : vector<8x64xf32>
    %173 = arith.subf %170, %164 : vector<8x1xf32>
    %cst_70 = arith.constant 9.99999996E-13 : f32
    %174 = vector.broadcast %cst_70 : f32 to vector<8x1xf32>
    %175 = arith.maximumf %173, %174 : vector<8x1xf32>
    %176 = vector.broadcast %175 : vector<8x1xf32> to vector<8x64xf32>
    %177 = arith.divf %172, %176 : vector<8x64xf32>
    %cst_71 = arith.constant 1.000000e-01 : f32
    %178 = vector.broadcast %cst_71 : f32 to vector<8x64xf32>
    %179 = arith.cmpf olt, %177, %178 : vector<8x64xf32>
    %cst_72 = arith.constant 0.000000e+00 : f32
    %cst_73 = arith.constant 1.000000e+00 : f32
    %180 = vector.broadcast %cst_72 : f32 to vector<8x64xf32>
    %181 = vector.broadcast %cst_73 : f32 to vector<8x64xf32>
    %182 = arith.select %179, %180, %181 : vector<8x64xi1>, vector<8x64xf32>
    %183 = vector.broadcast %140 : vector<1x64xf32> to vector<8x64xf32>
    %184 = arith.mulf %182, %183 : vector<8x64xf32>
    %cst_74 = arith.constant 1.000000e+30 : f32
    %185 = vector.shape_cast %142 : vector<1x64xi1> to vector<1x64xi1>
    %186 = vector.broadcast %185 : vector<1x64xi1> to vector<8x64xi1>
    %187 = vector.broadcast %cst_74 : f32 to vector<8x64xf32>
    %188 = arith.select %186, %143, %187 : vector<8x64xi1>, vector<8x64xf32>
    %cst_75 = arith.constant dense<0x7F800000> : vector<8xf32>
    %189 = vector.multi_reduction <minimumf>, %188, %cst_75 [1] : vector<8x64xf32> to vector<8xf32>
    %190 = vector.shape_cast %189 : vector<8xf32> to vector<8x1xf32>
    %cst_76 = arith.constant -1.000000e+30 : f32
    %191 = vector.shape_cast %142 : vector<1x64xi1> to vector<1x64xi1>
    %192 = vector.broadcast %191 : vector<1x64xi1> to vector<8x64xi1>
    %193 = vector.broadcast %cst_76 : f32 to vector<8x64xf32>
    %194 = arith.select %192, %143, %193 : vector<8x64xi1>, vector<8x64xf32>
    %cst_77 = arith.constant dense<0xFF800000> : vector<8xf32>
    %195 = vector.multi_reduction <maximumf>, %194, %cst_77 [1] : vector<8x64xf32> to vector<8xf32>
    %196 = vector.shape_cast %195 : vector<8xf32> to vector<8x1xf32>
    %197 = vector.broadcast %190 : vector<8x1xf32> to vector<8x64xf32>
    %198 = arith.subf %143, %197 : vector<8x64xf32>
    %199 = arith.subf %196, %190 : vector<8x1xf32>
    %cst_78 = arith.constant 9.99999996E-13 : f32
    %200 = vector.broadcast %cst_78 : f32 to vector<8x1xf32>
    %201 = arith.maximumf %199, %200 : vector<8x1xf32>
    %202 = vector.broadcast %201 : vector<8x1xf32> to vector<8x64xf32>
    %203 = arith.divf %198, %202 : vector<8x64xf32>
    %cst_79 = arith.constant 1.000000e-01 : f32
    %204 = vector.broadcast %cst_79 : f32 to vector<8x64xf32>
    %205 = arith.cmpf olt, %203, %204 : vector<8x64xf32>
    %cst_80 = arith.constant 0.000000e+00 : f32
    %cst_81 = arith.constant 1.000000e+00 : f32
    %206 = vector.broadcast %cst_80 : f32 to vector<8x64xf32>
    %207 = vector.broadcast %cst_81 : f32 to vector<8x64xf32>
    %208 = arith.select %205, %206, %207 : vector<8x64xi1>, vector<8x64xf32>
    %209 = vector.broadcast %140 : vector<1x64xf32> to vector<8x64xf32>
    %210 = arith.mulf %208, %209 : vector<8x64xf32>
    %211 = arith.mulf %151, %158 : vector<8x64xf32>
    %cst_82 = arith.constant dense<0.000000e+00> : vector<8xf32>
    %212 = vector.multi_reduction <add>, %211, %cst_82 [1] : vector<8x64xf32> to vector<8xf32>
    %213 = vector.shape_cast %212 : vector<8xf32> to vector<8x1xf32>
    %cst_83 = arith.constant dense<0.000000e+00> : vector<8xf32>
    %214 = vector.multi_reduction <add>, %151, %cst_83 [1] : vector<8x64xf32> to vector<8xf32>
    %215 = vector.shape_cast %214 : vector<8xf32> to vector<8x1xf32>
    %cst_84 = arith.constant dense<0.000000e+00> : vector<8xf32>
    %216 = vector.multi_reduction <add>, %158, %cst_84 [1] : vector<8x64xf32> to vector<8xf32>
    %217 = vector.shape_cast %216 : vector<8xf32> to vector<8x1xf32>
    %218 = arith.addf %215, %217 : vector<8x1xf32>
    %219 = arith.subf %218, %213 : vector<8x1xf32>
    %cst_85 = arith.constant 9.99999993E-9 : f32
    %220 = vector.broadcast %cst_85 : f32 to vector<8x1xf32>
    %221 = arith.addf %219, %220 : vector<8x1xf32>
    %222 = arith.divf %213, %221 : vector<8x1xf32>
    %cst_86 = arith.constant dense<0.000000e+00> : vector<1xf32>
    %223 = vector.multi_reduction <add>, %222, %cst_86 [0] : vector<8x1xf32> to vector<1xf32>
    %224 = vector.shape_cast %223 : vector<1xf32> to vector<1x1xf32>
    %cst_87 = arith.constant 8.000000e+00 : f32
    %225 = vector.broadcast %cst_87 : f32 to vector<1x1xf32>
    %226 = arith.divf %224, %225 : vector<1x1xf32>
    %227 = arith.mulf %184, %210 : vector<8x64xf32>
    %cst_88 = arith.constant dense<0.000000e+00> : vector<8xf32>
    %228 = vector.multi_reduction <add>, %227, %cst_88 [1] : vector<8x64xf32> to vector<8xf32>
    %229 = vector.shape_cast %228 : vector<8xf32> to vector<8x1xf32>
    %cst_89 = arith.constant dense<0.000000e+00> : vector<8xf32>
    %230 = vector.multi_reduction <add>, %184, %cst_89 [1] : vector<8x64xf32> to vector<8xf32>
    %231 = vector.shape_cast %230 : vector<8xf32> to vector<8x1xf32>
    %cst_90 = arith.constant dense<0.000000e+00> : vector<8xf32>
    %232 = vector.multi_reduction <add>, %210, %cst_90 [1] : vector<8x64xf32> to vector<8xf32>
    %233 = vector.shape_cast %232 : vector<8xf32> to vector<8x1xf32>
    %234 = arith.addf %231, %233 : vector<8x1xf32>
    %235 = arith.subf %234, %229 : vector<8x1xf32>
    %cst_91 = arith.constant 9.99999993E-9 : f32
    %236 = vector.broadcast %cst_91 : f32 to vector<8x1xf32>
    %237 = arith.addf %235, %236 : vector<8x1xf32>
    %238 = arith.divf %229, %237 : vector<8x1xf32>
    %cst_92 = arith.constant dense<0.000000e+00> : vector<1xf32>
    %239 = vector.multi_reduction <add>, %238, %cst_92 [0] : vector<8x1xf32> to vector<1xf32>
    %240 = vector.shape_cast %239 : vector<1xf32> to vector<1x1xf32>
    %cst_93 = arith.constant 8.000000e+00 : f32
    %241 = vector.broadcast %cst_93 : f32 to vector<1x1xf32>
    %242 = arith.divf %240, %241 : vector<1x1xf32>
    %243 = arith.addf %226, %242 : vector<1x1xf32>
    %cst_94 = arith.constant 5.000000e-01 : f32
    %244 = vector.broadcast %cst_94 : f32 to vector<1x1xf32>
    %245 = arith.mulf %243, %244 : vector<1x1xf32>
    %c0_95 = arith.constant 0 : index
    %c0_96 = arith.constant 0 : index
    %246 = vector.load %arg14[%c0_95, %c0_96] : memref<8x128xf32, #tpu.memory_space<vmem>>, vector<8x128xf32>
    tpu.vector_store %arg14[%c0_95, %c0_96], %29 {strides = array<i32>} : memref<8x128xf32, #tpu.memory_space<vmem>>, vector<8x128xf32>,
    %c0_97 = arith.constant 0 : index
    %c0_98 = arith.constant 0 : index
    %247 = vector.load %arg15[%c0_97, %c0_98] : memref<8x128xf32, #tpu.memory_space<vmem>>, vector<8x128xf32>
    tpu.vector_store %arg15[%c0_97, %c0_98], %47 {strides = array<i32>} : memref<8x128xf32, #tpu.memory_space<vmem>>, vector<8x128xf32>,
    %248 = tpu.iota {dimensions = array<i32: 1>} : vector<1x128xi32>
    %c0_i32 = arith.constant 0 : i32
    %249 = vector.broadcast %c0_i32 : i32 to vector<1x128xi32>
    %250 = arith.cmpi eq, %248, %249 : vector<1x128xi32>
    %cst_99 = arith.constant 0.000000e+00 : f32
    %251 = vector.shape_cast %138 : vector<1x1xf32> to vector<1x1xf32>
    %252 = vector.broadcast %251 : vector<1x1xf32> to vector<1x128xf32>
    %253 = vector.broadcast %cst_99 : f32 to vector<1x128xf32>
    %254 = arith.select %250, %252, %253 : vector<1x128xi1>, vector<1x128xf32>
    %c1_i32 = arith.constant 1 : i32
    %255 = vector.broadcast %c1_i32 : i32 to vector<1x128xi32>
    %256 = arith.cmpi eq, %248, %255 : vector<1x128xi32>
    %cst_100 = arith.constant 0.000000e+00 : f32
    %257 = vector.shape_cast %245 : vector<1x1xf32> to vector<1x1xf32>
    %258 = vector.broadcast %257 : vector<1x1xf32> to vector<1x128xf32>
    %259 = vector.broadcast %cst_100 : f32 to vector<1x128xf32>
    %260 = arith.select %256, %258, %259 : vector<1x128xi1>, vector<1x128xf32>
    %261 = arith.addf %254, %260 : vector<1x128xf32>
    %c0_101 = arith.constant 0 : index
    %c0_102 = arith.constant 0 : index
    %262 = vector.load %arg13[%c0_101, %c0_102] : memref<1x128xf32, #tpu.memory_space<vmem>>, vector<1x128xf32>
    tpu.vector_store %arg13[%c0_101, %c0_102], %261 {strides = array<i32>} : memref<1x128xf32, #tpu.memory_space<vmem>>, vector<1x128xf32>,
    return
  }
}

</mosaic_0001>

<llo_original>
// kernel: custom-call.1
$region0: #{custom-call.1}
  %s0 = inlined_call_operand.vmem [shape: f32[366848], index: 0, kind: output, shape index: {}]

// kernel: split.8
$region0: #{split.8}
  #allocation0 [shape = 'u32[2048]{0}', space=vmem, size = 0x2000, scoped, tag = 'scoped memory for split.8']
  #allocation1 [shape = 'u32[2048]{0}', space=vmem, size = 0x2000, scoped, tag = 'scoped memory for split.8']
  #allocation2 [shape = 'u32[2048]{0}', space=vmem, size = 0x2000, scoped, tag = 'scoped memory for split.8']
  #allocation3 [shape = 'u32[2048]{0}', space=vmem, size = 0x2000, scoped, tag = 'scoped memory for split.8']
  #allocation4 [shape = 'u32[2048]{0}', space=vmem, size = 0x2000, scoped, tag = 'scoped memory for split.8']
  #allocation5 [shape = 's32[1]{0}', space=sflag, size = 0x4, scoped, tag = 'scoped memory for split.8']
  %s0 = inlined_call_operand.vmem [shape: f32[366848], index: 0, kind: input, shape index: {}]
  %s1 = inlined_call_operand.vmem [shape: f32[128], index: 1, kind: output, shape index: {}]
  %s2 = scalar_lea.vmem %s0, 2608
  %s3 = scalar_lea.vmem %s0, 2608
  %s4 = scalar_lea.vmem %s0, 2608
  %v5 = vld [vmem:[%s4] sm:$0xff]
  %vm6 = vcmask 1040384
  %v7 = vsel %vm6, 0, %v5
  %v8 = vrot.slane %v7, 1
  %9 = vst [vmem:[%s1] sm:$0x1] %v8

// kernel: split.7
$region0: #{split.7}
  #allocation0 [shape = 'u32[2048]{0}', space=vmem, size = 0x2000, scoped, tag = 'scoped memory for split.7']
  #allocation1 [shape = 'u32[2048]{0}', space=vmem, size = 0x2000, scoped, tag = 'scoped memory for split.7']
  #allocation2 [shape = 'u32[2048]{0}', space=vmem, size = 0x2000, scoped, tag = 'scoped memory for split.7']
  #allocation3 [shape = 'u32[2048]{0}', space=vmem, size = 0x2000, scoped, tag = 'scoped memory for split.7']
  #allocation4 [shape = 'u32[2048]{0}', space=vmem, size = 0x2000, scoped, tag = 'scoped memory for split.7']
  #allocation5 [shape = 's32[1]{0}', space=sflag, size = 0x4, scoped, tag = 'scoped memory for split.7']
  %s0 = inlined_call_operand.vmem [shape: f32[366848], index: 0, kind: input, shape index: {}]
  %s1 = inlined_call_operand.vmem [shape: f32[1280], index: 1, kind: output, shape index: {}]
  %s2 = scalar_lea.vmem %s0, 2592
  %s3 = scalar_lea.vmem %s0, 2592
  %s4 = scalar_lea.vmem %s0, 2592
  %v5 = vld [vmem:[%s4] sm:$0xff]
  %s6 = scalar_lea.vmem %s4, 8
  %v7 = vld [vmem:[%s6] sm:$0xff]
  %vm8 = vcmask 1046528
  %v9 = vsel %vm8, %v7, %v5
  %v10 = vrot.slane %v9, 7
  %11 = vst [vmem:[%s1] sm:$0xff] %v10
  %s12 = scalar_lea.vmem %s4, 16
  %v13 = vld [vmem:[%s12] sm:$0xff]
  %vm14 = vcmask 1046528
  %v15 = vsel %vm14, %v13, %v7
  %v16 = vrot.slane %v15, 7
  %s17 = scalar_lea.vmem %s1, 8
  %18 = vst [vmem:[%s17] sm:$0xff] %v16

// kernel: split.3
$region0: #{split.3}
  #allocation0 [shape = 'u32[2048]{0}', space=vmem, size = 0x2000, scoped, tag = 'scoped memory for split.3']
  #allocation1 [shape = 'u32[2048]{0}', space=vmem, size = 0x2000, scoped, tag = 'scoped memory for split.3']
  #allocation2 [shape = 'u32[2048]{0}', space=vmem, size = 0x2000, scoped, tag = 'scoped memory for split.3']
  #allocation3 [shape = 'u32[2048]{0}', space=vmem, size = 0x2000, scoped, tag = 'scoped memory for split.3']
  #allocation4 [shape = 'u32[2048]{0}', space=vmem, size = 0x2000, scoped, tag = 'scoped memory for split.3']
  #allocation5 [shape = 's32[1]{0}', space=sflag, size = 0x4, scoped, tag = 'scoped memory for split.3']
  %s0 = inlined_call_operand.vmem [shape: f32[366848], index: 0, kind: input, shape index: {}]
  %s1 = inlined_call_operand.vmem [shape: f32[4096], index: 1, kind: output, shape index: {}]
  %s2 = scalar_lea.vmem %s0, 768
  %s3 = scalar_lea.vmem %s0, 768
  %s4 = scalar_lea.vmem %s0, 768
  %v5 = vld [vmem:[%s4] sm:$0xff]
  %s6 = scalar_lea.vmem %s4, 8
  %v7 = vld [vmem:[%s6] sm:$0xff]
  %vm8 = vcmask 1042432
  %v9 = vsel %vm8, %v7, %v5
  %v10 = vrot.slane %v9, 3
  %11 = vst [vmem:[%s1] sm:$0xff] %v10
  %s12 = scalar_lea.vmem %s4, 16
  %v13 = vld [vmem:[%s12] sm:$0xff]
  %vm14 = vcmask 1042432
  %v15 = vsel %vm14, %v13, %v7
  %v16 = vrot.slane %v15, 3
  %s17 = scalar_lea.vmem %s1, 8
  %18 = vst [vmem:[%s17] sm:$0xff] %v16
  %s19 = scalar_lea.vmem %s4, 24
  %v20 = vld [vmem:[%s19] sm:$0xff]
  %vm21 = vcmask 1042432
  %v22 = vsel %vm21, %v20, %v13
  %v23 = vrot.slane %v22, 3
  %s24 = scalar_lea.vmem %s1, 16
  %25 = vst [vmem:[%s24] sm:$0xff] %v23
  %s26 = scalar_lea.vmem %s4, 32
  %v27 = vld [vmem:[%s26] sm:$0xff]
  %vm28 = vcmask 1042432
  %v29 = vsel %vm28, %v27, %v20
  %v30 = vrot.slane %v29, 3
  %s31 = scalar_lea.vmem %s1, 24
  %32 = vst [vmem:[%s31] sm:$0xff] %v30

// kernel: split.2
$region0: #{split.2}
  #allocation0 [shape = 'u32[2048]{0}', space=vmem, size = 0x2000, scoped, tag = 'scoped memory for split.2']
  #allocation1 [shape = 'u32[2048]{0}', space=vmem, size = 0x2000, scoped, tag = 'scoped memory for split.2']
  #allocation2 [shape = 'u32[2048]{0}', space=vmem, size = 0x2000, scoped, tag = 'scoped memory for split.2']
  #allocation3 [shape = 'u32[2048]{0}', space=vmem, size = 0x2000, scoped, tag = 'scoped memory for split.2']
  #allocation4 [shape = 'u32[2048]{0}', space=vmem, size = 0x2000, scoped, tag = 'scoped memory for split.2']
  #allocation5 [shape = 's32[1]{0}', space=sflag, size = 0x4, scoped, tag = 'scoped memory for split.2']
  %s0 = inlined_call_operand.vmem [shape: f32[366848], index: 0, kind: input, shape index: {}]
  %s1 = inlined_call_operand.vmem [shape: f32[32768], index: 1, kind: output, shape index: {}]
  %s2 = scalar_lea.vmem %s0, 800
  %s3 = scalar_lea.vmem %s0, 800
  %s4 = scalar_lea.vmem %s0, 800
  %v5 = vld [vmem:[%s4] sm:$0xff]
  %s6 = scalar_lea.vmem %s4, 8
  %v7 = vld [vmem:[%s6] sm:$0xff]
  %vm8 = vcmask 1042432
  %v9 = vsel %vm8, %v7, %v5
  %v10 = vrot.slane %v9, 3
  %11 = vst [vmem:[%s1] sm:$0xff] %v10
  %s12 = scalar_lea.vmem %s4, 16
  %v13 = vld [vmem:[%s12] sm:$0xff]
  %vm14 = vcmask 1042432
  %v15 = vsel %vm14, %v13, %v7
  %v16 = vrot.slane %v15, 3
  %s17 = scalar_lea.vmem %s1, 8
  %18 = vst [vmem:[%s17] sm:$0xff] %v16
  %s19 = scalar_lea.vmem %s4, 24
  %v20 = vld [vmem:[%s19] sm:$0xff]
  %vm21 = vcmask 1042432
  %v22 = vsel %vm21, %v20, %v13
  %v23 = vrot.slane %v22, 3
  %s24 = scalar_lea.vmem %s1, 16
  %25 = vst [vmem:[%s24] sm:$0xff] %v23
  %s26 = scalar_lea.vmem %s4, 32
  %v27 = vld [vmem:[%s26] sm:$0xff]
  %vm28 = vcmask 1042432
  %v29 = vsel %vm28, %v27, %v20
  %v30 = vrot.slane %v29, 3
  %s31 = scalar_lea.vmem %s1, 24
  %32 = vst [vmem:[%s31] sm:$0xff] %v30
  %s33 = scalar_lea.vmem %s4, 40
  %v34 = vld [vmem:[%s33] sm:$0xff]
  %vm35 = vcmask 1042432
  %v36 = vsel %vm35, %v34, %v27
  %v37 = vrot.slane %v36, 3
  %s38 = scalar_lea.vmem %s1, 32
  %39 = vst [vmem:[%s38] sm:$0xff] %v37
  %s40 = scalar_lea.vmem %s4, 48
  %v41 = vld [vmem:[%s40] sm:$0xff]
  %vm42 = vcmask 1042432
  %v43 = vsel %vm42, %v41, %v34
  %v44 = vrot.slane %v43, 3
  %s45 = scalar_lea.vmem %s1, 40
  %46 = vst [vmem:[%s45] sm:$0xff] %v44
  %s47 = scalar_lea.vmem %s4, 56
  %v48 = vld [vmem:[%s47] sm:$0xff]
  %vm49 = vcmask 1042432
  %v50 = vsel %vm49, %v48, %v41
  %v51 = vrot.slane %v50, 3
  %s52 = scalar_lea.vmem %s1, 48
  %53 = vst [vmem:[%s52] sm:$0xff] %v51
  %s54 = scalar_lea.vmem %s4, 64
  %v55 = vld [vmem:[%s54] sm:$0xff]
  %vm56 = vcmask 1042432
  %v57 = vsel %vm56, %v55, %v48
  %v58 = vrot.slane %v57, 3
  %s59 = scalar_lea.vmem %s1, 56
  %60 = vst [vmem:[%s59] sm:$0xff] %v58
  %s61 = scalar_lea.vmem %s4, 72
  %v62 = vld [vmem:[%s61] sm:$0xff]
  %vm63 = vcmask 1042432
  %v64 = vsel %vm63, %v62, %v55
  %v65 = vrot.slane %v64, 3
  %s66 = scalar_lea.vmem %s1, 64
  %67 = vst [vmem:[%s66] sm:$0xff] %v65
  %s68 = scalar_lea.vmem %s4, 80
  %v69 = vld [vmem:[%s68] sm:$0xff]
  %vm70 = vcmask 1042432
  %v71 = vsel %vm70, %v69, %v62
  %v72 = vrot.slane %v71, 3
  %s73 = scalar_lea.vmem %s1, 72
  %74 = vst [vmem:[%s73] sm:$0xff] %v72
  %s75 = scalar_lea.vmem %s4, 88
  %v76 = vld [vmem:[%s75] sm:$0xff]
  %vm77 = vcmask 1042432
  %v78 = vsel %vm77, %v76, %v69
  %v79 = vrot.slane %v78, 3
  %s80 = scalar_lea.vmem %s1, 80
  %81 = vst [vmem:[%s80] sm:$0xff] %v79
  %s82 = scalar_lea.vmem %s4, 96
  %v83 = vld [vmem:[%s82] sm:$0xff]
  %vm84 = vcmask 1042432
  %v85 = vsel %vm84, %v83, %v76
  %v86 = vrot.slane %v85, 3
  %s87 = scalar_lea.vmem %s1, 88
  %88 = vst [vmem:[%s87] sm:$0xff] %v86
  %s89 = scalar_lea.vmem %s4, 104
  %v90 = vld [vmem:[%s89] sm:$0xff]
  %vm91 = vcmask 1042432
  %v92 = vsel %vm91, %v90, %v83
  %v93 = vrot.slane %v92, 3
  %s94 = scalar_lea.vmem %s1, 96
  %95 = vst [vmem:[%s94] sm:$0xff] %v93
  %s96 = scalar_lea.vmem %s4, 112
  %v97 = vld [vmem:[%s96] sm:$0xff]
  %vm98 = vcmask 1042432
  %v99 = vsel %vm98, %v97, %v90
  %v100 = vrot.slane %v99, 3
  %s101 = scalar_lea.vmem %s1, 104
  %102 = vst [vmem:[%s101] sm:$0xff] %v100
  %s103 = scalar_lea.vmem %s4, 120
  %v104 = vld [vmem:[%s103] sm:$0xff]
  %vm105 = vcmask 1042432
  %v106 = vsel %vm105, %v104, %v97
  %v107 = vrot.slane %v106, 3
  %s108 = scalar_lea.vmem %s1, 112
  %109 = vst [vmem:[%s108] sm:$0xff] %v107
  %s110 = scalar_lea.vmem %s4, 128
  %v111 = vld [vmem:[%s110] sm:$0xff]
  %vm112 = vcmask 1042432
  %v113 = vsel %vm112, %v111, %v104
  %v114 = vrot.slane %v113, 3
  %s115 = scalar_lea.vmem %s1, 120
  %116 = vst [vmem:[%s115] sm:$0xff] %v114
  %s117 = scalar_lea.vmem %s4, 136
  %v118 = vld [vmem:[%s117] sm:$0xff]
  %vm119 = vcmask 1042432
  %v120 = vsel %vm119, %v118, %v111
  %v121 = vrot.slane %v120, 3
  %s122 = scalar_lea.vmem %s1, 128
  %123 = vst [vmem:[%s122] sm:$0xff] %v121
  %s124 = scalar_lea.vmem %s4, 144
  %v125 = vld [vmem:[%s124] sm:$0xff]
  %vm126 = vcmask 1042432
  %v127 = vsel %vm126, %v125, %v118
  %v128 = vrot.slane %v127, 3
  %s129 = scalar_lea.vmem %s1, 136
  %130 = vst [vmem:[%s129] sm:$0xff] %v128
  %s131 = scalar_lea.vmem %s4, 152
  %v132 = vld [vmem:[%s131] sm:$0xff]
  %vm133 = vcmask 1042432
  %v134 = vsel %vm133, %v132, %v125
  %v135 = vrot.slane %v134, 3
  %s136 = scalar_lea.vmem %s1, 144
  %137 = vst [vmem:[%s136] sm:$0xff] %v135
  %s138 = scalar_lea.vmem %s4, 160
  %v139 = vld [vmem:[%s138] sm:$0xff]
  %vm140 = vcmask 1042432
  %v141 = vsel %vm140, %v139, %v132
  %v142 = vrot.slane %v141, 3
  %s143 = scalar_lea.vmem %s1, 152
  %144 = vst [vmem:[%s143] sm:$0xff] %v142
  %s145 = scalar_lea.vmem %s4, 168
  %v146 = vld [vmem:[%s145] sm:$0xff]
  %vm147 = vcmask 1042432
  %v148 = vsel %vm147, %v146, %v139
  %v149 = vrot.slane %v148, 3
  %s150 = scalar_lea.vmem %s1, 160
  %151 = vst [vmem:[%s150] sm:$0xff] %v149
  %s152 = scalar_lea.vmem %s4, 176
  %v153 = vld [vmem:[%s152] sm:$0xff]
  %vm154 = vcmask 1042432
  %v155 = vsel %vm154, %v153, %v146
  %v156 = vrot.slane %v155, 3
  %s157 = scalar_lea.vmem %s1, 168
  %158 = vst [vmem:[%s157] sm:$0xff] %v156
  %s159 = scalar_lea.vmem %s4, 184
  %v160 = vld [vmem:[%s159] sm:$0xff]
  %vm161 = vcmask 1042432
  %v162 = vsel %vm161, %v160, %v153
  %v163 = vrot.slane %v162, 3
  %s164 = scalar_lea.vmem %s1, 176
  %165 = vst [vmem:[%s164] sm:$0xff] %v163
  %s166 = scalar_lea.vmem %s4, 192
  %v167 = vld [vmem:[%s166] sm:$0xff]
  %vm168 = vcmask 1042432
  %v169 = vsel %vm168, %v167, %v160
  %v170 = vrot.slane %v169, 3
  %s171 = scalar_lea.vmem %s1, 184
  %172 = vst [vmem:[%s171] sm:$0xff] %v170
  %s173 = scalar_lea.vmem %s4, 200
  %v174 = vld [vmem:[%s173] sm:$0xff]
  %vm175 = vcmask 1042432
  %v176 = vsel %vm175, %v174, %v167
  %v177 = vrot.slane %v176, 3
  %s178 = scalar_lea.vmem %s1, 192
  %179 = vst [vmem:[%s178] sm:$0xff] %v177
  %s180 = scalar_lea.vmem %s4, 208
  %v181 = vld [vmem:[%s180] sm:$0xff]
  %vm182 = vcmask 1042432
  %v183 = vsel %vm182, %v181, %v174
  %v184 = vrot.slane %v183, 3
  %s185 = scalar_lea.vmem %s1, 200
  %186 = vst [vmem:[%s185] sm:$0xff] %v184
  %s187 = scalar_lea.vmem %s4, 216
  %v188 = vld [vmem:[%s187] sm:$0xff]
  %vm189 = vcmask 1042432
  %v190 = vsel %vm189, %v188, %v181
  %v191 = vrot.slane %v190, 3
  %s192 = scalar_lea.vmem %s1, 208
  %193 = vst [vmem:[%s192] sm:$0xff] %v191
  %s194 = scalar_lea.vmem %s4, 224
  %v195 = vld [vmem:[%s194] sm:$0xff]
  %vm196 = vcmask 1042432
  %v197 = vsel %vm196, %v195, %v188
  %v198 = vrot.slane %v197, 3
  %s199 = scalar_lea.vmem %s1, 216
  %200 = vst [vmem:[%s199] sm:$0xff] %v198
  %s201 = scalar_lea.vmem %s4, 232
  %v202 = vld [vmem:[%s201] sm:$0xff]
  %vm203 = vcmask 1042432
  %v204 = vsel %vm203, %v202, %v195
  %v205 = vrot.slane %v204, 3
  %s206 = scalar_lea.vmem %s1, 224
  %207 = vst [vmem:[%s206] sm:$0xff] %v205
  %s208 = scalar_lea.vmem %s4, 240
  %v209 = vld [vmem:[%s208] sm:$0xff]
  %vm210 = vcmask 1042432
  %v211 = vsel %vm210, %v209, %v202
  %v212 = vrot.slane %v211, 3
  %s213 = scalar_lea.vmem %s1, 232
  %214 = vst [vmem:[%s213] sm:$0xff] %v212
  %s215 = scalar_lea.vmem %s4, 248
  %v216 = vld [vmem:[%s215] sm:$0xff]
  %vm217 = vcmask 1042432
  %v218 = vsel %vm217, %v216, %v209
  %v219 = vrot.slane %v218, 3
  %s220 = scalar_lea.vmem %s1, 240
  %221 = vst [vmem:[%s220] sm:$0xff] %v219
  %s222 = scalar_lea.vmem %s4, 256
  %v223 = vld [vmem:[%s222] sm:$0xff]
  %vm224 = vcmask 1042432
  %v225 = vsel %vm224, %v223, %v216
  %v226 = vrot.slane %v225, 3
  %s227 = scalar_lea.vmem %s1, 248
  %228 = vst [vmem:[%s227] sm:$0xff] %v226

// kernel: split.4
$region0: #{split.4}
  #allocation0 [shape = 'u32[2048]{0}', space=vmem, size = 0x2000, scoped, tag = 'scoped memory for split.4']
  #allocation1 [shape = 'u32[2048]{0}', space=vmem, size = 0x2000, scoped, tag = 'scoped memory for split.4']
  #allocation2 [shape = 'u32[2048]{0}', space=vmem, size = 0x2000, scoped, tag = 'scoped memory for split.4']
  #allocation3 [shape = 'u32[2048]{0}', space=vmem, size = 0x2000, scoped, tag = 'scoped memory for split.4']
  #allocation4 [shape = 'u32[2048]{0}', space=vmem, size = 0x2000, scoped, tag = 'scoped memory for split.4']
  #allocation5 [shape = 's32[1]{0}', space=sflag, size = 0x4, scoped, tag = 'scoped memory for split.4']
  %s0 = inlined_call_operand.vmem [shape: f32[366848], index: 0, kind: input, shape index: {}]
  %s1 = inlined_call_operand.vmem [shape: f32[65536], index: 1, kind: output, shape index: {}]
  %s2 = scalar_lea.vmem %s0, 256
  %s3 = scalar_lea.vmem %s0, 256
  %s4 = scalar_lea.vmem %s0, 256
  %v5 = vld [vmem:[%s4] sm:$0xff]
  %s6 = scalar_lea.vmem %s4, 8
  %v7 = vld [vmem:[%s6] sm:$0xff]
  %vm8 = vcmask 1042432
  %v9 = vsel %vm8, %v7, %v5
  %v10 = vrot.slane %v9, 3
  %11 = vst [vmem:[%s1] sm:$0xff] %v10
  %s12 = scalar_lea.vmem %s4, 16
  %v13 = vld [vmem:[%s12] sm:$0xff]
  %vm14 = vcmask 1042432
  %v15 = vsel %vm14, %v13, %v7
  %v16 = vrot.slane %v15, 3
  %s17 = scalar_lea.vmem %s1, 8
  %18 = vst [vmem:[%s17] sm:$0xff] %v16
  %s19 = scalar_lea.vmem %s4, 24
  %v20 = vld [vmem:[%s19] sm:$0xff]
  %vm21 = vcmask 1042432
  %v22 = vsel %vm21, %v20, %v13
  %v23 = vrot.slane %v22, 3
  %s24 = scalar_lea.vmem %s1, 16
  %25 = vst [vmem:[%s24] sm:$0xff] %v23
  %s26 = scalar_lea.vmem %s4, 32
  %v27 = vld [vmem:[%s26] sm:$0xff]
  %vm28 = vcmask 1042432
  %v29 = vsel %vm28, %v27, %v20
  %v30 = vrot.slane %v29, 3
  %s31 = scalar_lea.vmem %s1, 24
  %32 = vst [vmem:[%s31] sm:$0xff] %v30
  %s33 = scalar_lea.vmem %s4, 40
  %v34 = vld [vmem:[%s33] sm:$0xff]
  %vm35 = vcmask 1042432
  %v36 = vsel %vm35, %v34, %v27
  %v37 = vrot.slane %v36, 3
  %s38 = scalar_lea.vmem %s1, 32
  %39 = vst [vmem:[%s38] sm:$0xff] %v37
  %s40 = scalar_lea.vmem %s4, 48
  %v41 = vld [vmem:[%s40] sm:$0xff]
  %vm42 = vcmask 1042432
  %v43 = vsel %vm42, %v41, %v34
  %v44 = vrot.slane %v43, 3
  %s45 = scalar_lea.vmem %s1, 40
  %46 = vst [vmem:[%s45] sm:$0xff] %v44
  %s47 = scalar_lea.vmem %s4, 56
  %v48 = vld [vmem:[%s47] sm:$0xff]
  %vm49 = vcmask 1042432
  %v50 = vsel %vm49, %v48, %v41
  %v51 = vrot.slane %v50, 3
  %s52 = scalar_lea.vmem %s1, 48
  %53 = vst [vmem:[%s52] sm:$0xff] %v51
  %s54 = scalar_lea.vmem %s4, 64
  %v55 = vld [vmem:[%s54] sm:$0xff]
  %vm56 = vcmask 1042432
  %v57 = vsel %vm56, %v55, %v48
  %v58 = vrot.slane %v57, 3
  %s59 = scalar_lea.vmem %s1, 56
  %60 = vst [vmem:[%s59] sm:$0xff] %v58
  %s61 = scalar_lea.vmem %s4, 72
  %v62 = vld [vmem:[%s61] sm:$0xff]
  %vm63 = vcmask 1042432
  %v64 = vsel %vm63, %v62, %v55
  %v65 = vrot.slane %v64, 3
  %s66 = scalar_lea.vmem %s1, 64
  %67 = vst [vmem:[%s66] sm:$0xff] %v65
  %s68 = scalar_lea.vmem %s4, 80
  %v69 = vld [vmem:[%s68] sm:$0xff]
  %vm70 = vcmask 1042432
  %v71 = vsel %vm70, %v69, %v62
  %v72 = vrot.slane %v71, 3
  %s73 = scalar_lea.vmem %s1, 72
  %74 = vst [vmem:[%s73] sm:$0xff] %v72
  %s75 = scalar_lea.vmem %s4, 88
  %v76 = vld [vmem:[%s75] sm:$0xff]
  %vm77 = vcmask 1042432
  %v78 = vsel %vm77, %v76, %v69
  %v79 = vrot.slane %v78, 3
  %s80 = scalar_lea.vmem %s1, 80
  %81 = vst [vmem:[%s80] sm:$0xff] %v79
  %s82 = scalar_lea.vmem %s4, 96
  %v83 = vld [vmem:[%s82] sm:$0xff]
  %vm84 = vcmask 1042432
  %v85 = vsel %vm84, %v83, %v76
  %v86 = vrot.slane %v85, 3
  %s87 = scalar_lea.vmem %s1, 88
  %88 = vst [vmem:[%s87] sm:$0xff] %v86
  %s89 = scalar_lea.vmem %s4, 104
  %v90 = vld [vmem:[%s89] sm:$0xff]
  %vm91 = vcmask 1042432
  %v92 = vsel %vm91, %v90, %v83
  %v93 = vrot.slane %v92, 3
  %s94 = scalar_lea.vmem %s1, 96
  %95 = vst [vmem:[%s94] sm:$0xff] %v93
  %s96 = scalar_lea.vmem %s4, 112
  %v97 = vld [vmem:[%s96] sm:$0xff]
  %vm98 = vcmask 1042432
  %v99 = vsel %vm98, %v97, %v90
  %v100 = vrot.slane %v99, 3
  %s101 = scalar_lea.vmem %s1, 104
  %102 = vst [vmem:[%s101] sm:$0xff] %v100
  %s103 = scalar_lea.vmem %s4, 120
  %v104 = vld [vmem:[%s103] sm:$0xff]
  %vm105 = vcmask 1042432
  %v106 = vsel %vm105, %v104, %v97
  %v107 = vrot.slane %v106, 3
  %s108 = scalar_lea.vmem %s1, 112
  %109 = vst [vmem:[%s108] sm:$0xff] %v107
  %s110 = scalar_lea.vmem %s4, 128
  %v111 = vld [vmem:[%s110] sm:$0xff]
  %vm112 = vcmask 1042432
  %v113 = vsel %vm112, %v111, %v104
  %v114 = vrot.slane %v113, 3
  %s115 = scalar_lea.vmem %s1, 120
  %116 = vst [vmem:[%s115] sm:$0xff] %v114
  %s117 = scalar_lea.vmem %s4, 136
  %v118 = vld [vmem:[%s117] sm:$0xff]
  %vm119 = vcmask 1042432
  %v120 = vsel %vm119, %v118, %v111
  %v121 = vrot.slane %v120, 3
  %s122 = scalar_lea.vmem %s1, 128
  %123 = vst [vmem:[%s122] sm:$0xff] %v121
  %s124 = scalar_lea.vmem %s4, 144
  %v125 = vld [vmem:[%s124] sm:$0xff]
  %vm126 = vcmask 1042432
  %v127 = vsel %vm126, %v125, %v118
  %v128 = vrot.slane %v127, 3
  %s129 = scalar_lea.vmem %s1, 136
  %130 = vst [vmem:[%s129] sm:$0xff] %v128
  %s131 = scalar_lea.vmem %s4, 152
  %v132 = vld [vmem:[%s131] sm:$0xff]
  %vm133 = vcmask 1042432
  %v134 = vsel %vm133, %v132, %v125
  %v135 = vrot.slane %v134, 3
  %s136 = scalar_lea.vmem %s1, 144
  %137 = vst [vmem:[%s136] sm:$0xff] %v135
  %s138 = scalar_lea.vmem %s4, 160
  %v139 = vld [vmem:[%s138] sm:$0xff]
  %vm140 = vcmask 1042432
  %v141 = vsel %vm140, %v139, %v132
  %v142 = vrot.slane %v141, 3
  %s143 = scalar_lea.vmem %s1, 152
  %144 = vst [vmem:[%s143] sm:$0xff] %v142
  %s145 = scalar_lea.vmem %s4, 168
  %v146 = vld [vmem:[%s145] sm:$0xff]
  %vm147 = vcmask 1042432
  %v148 = vsel %vm147, %v146, %v139
  %v149 = vrot.slane %v148, 3
  %s150 = scalar_lea.vmem %s1, 160
  %151 = vst [vmem:[%s150] sm:$0xff] %v149
  %s152 = scalar_lea.vmem %s4, 176
  %v153 = vld [vmem:[%s152] sm:$0xff]
  %vm154 = vcmask 1042432
  %v155 = vsel %vm154, %v153, %v146
  %v156 = vrot.slane %v155, 3
  %s157 = scalar_lea.vmem %s1, 168
  %158 = vst [vmem:[%s157] sm:$0xff] %v156
  %s159 = scalar_lea.vmem %s4, 184
  %v160 = vld [vmem:[%s159] sm:$0xff]
  %vm161 = vcmask 1042432
  %v162 = vsel %vm161, %v160, %v153
  %v163 = vrot.slane %v162, 3
  %s164 = scalar_lea.vmem %s1, 176
  %165 = vst [vmem:[%s164] sm:$0xff] %v163
  %s166 = scalar_lea.vmem %s4, 192
  %v167 = vld [vmem:[%s166] sm:$0xff]
  %vm168 = vcmask 1042432
  %v169 = vsel %vm168, %v167, %v160
  %v170 = vrot.slane %v169, 3
  %s171 = scalar_lea.vmem %s1, 184
  %172 = vst [vmem:[%s171] sm:$0xff] %v170
  %s173 = scalar_lea.vmem %s4, 200
  %v174 = vld [vmem:[%s173] sm:$0xff]
  %vm175 = vcmask 1042432
  %v176 = vsel %vm175, %v174, %v167
  %v177 = vrot.slane %v176, 3
  %s178 = scalar_lea.vmem %s1, 192
  %179 = vst [vmem:[%s178] sm:$0xff] %v177
  %s180 = scalar_lea.vmem %s4, 208
  %v181 = vld [vmem:[%s180] sm:$0xff]
  %vm182 = vcmask 1042432
  %v183 = vsel %vm182, %v181, %v174
  %v184 = vrot.slane %v183, 3
  %s185 = scalar_lea.vmem %s1, 200
  %186 = vst [vmem:[%s185] sm:$0xff] %v184
  %s187 = scalar_lea.vmem %s4, 216
  %v188 = vld [vmem:[%s187] sm:$0xff]
  %vm189 = vcmask 1042432
  %v190 = vsel %vm189, %v188, %v181
  %v191 = vrot.slane %v190, 3
  %s192 = scalar_lea.vmem %s1, 208
  %193 = vst [vmem:[%s192] sm:$0xff] %v191
  %s194 = scalar_lea.vmem %s4, 224
  %v195 = vld [vmem:[%s194] sm:$0xff]
  %vm196 = vcmask 1042432
  %v197 = vsel %vm196, %v195, %v188
  %v198 = vrot.slane %v197, 3
  %s199 = scalar_lea.vmem %s1, 216
  %200 = vst [vmem:[%s199] sm:$0xff] %v198
  %s201 = scalar_lea.vmem %s4, 232
  %v202 = vld [vmem:[%s201] sm:$0xff]
  %vm203 = vcmask 1042432
  %v204 = vsel %vm203, %v202, %v195
  %v205 = vrot.slane %v204, 3
  %s206 = scalar_lea.vmem %s1, 224
  %207 = vst [vmem:[%s206] sm:$0xff] %v205
  %s208 = scalar_lea.vmem %s4, 240
  %v209 = vld [vmem:[%s208] sm:$0xff]
  %vm210 = vcmask 1042432
  %v211 = vsel %vm210, %v209, %v202
  %v212 = vrot.slane %v211, 3
  %s213 = scalar_lea.vmem %s1, 232
  %214 = vst [vmem:[%s213] sm:$0xff] %v212
  %s215 = scalar_lea.vmem %s4, 248
  %v216 = vld [vmem:[%s215] sm:$0xff]
  %vm217 = vcmask 1042432
  %v218 = vsel %vm217, %v216, %v209
  %v219 = vrot.slane %v218, 3
  %s220 = scalar_lea.vmem %s1, 240
  %221 = vst [vmem:[%s220] sm:$0xff] %v219
  %s222 = scalar_lea.vmem %s4, 256
  %v223 = vld [vmem:[%s222] sm:$0xff]
  %vm224 = vcmask 1042432
  %v225 = vsel %vm224, %v223, %v216
  %v226 = vrot.slane %v225, 3
  %s227 = scalar_lea.vmem %s1, 248
  %228 = vst [vmem:[%s227] sm:$0xff] %v226
  %s229 = scalar_lea.vmem %s4, 264
  %v230 = vld [vmem:[%s229] sm:$0xff]
  %vm231 = vcmask 1042432
  %v232 = vsel %vm231, %v230, %v223
  %v233 = vrot.slane %v232, 3
  %s234 = scalar_lea.vmem %s1, 256
  %235 = vst [vmem:[%s234] sm:$0xff] %v233
  %s236 = scalar_lea.vmem %s4, 272
  %v237 = vld [vmem:[%s236] sm:$0xff]
  %vm238 = vcmask 1042432
  %v239 = vsel %vm238, %v237, %v230
  %v240 = vrot.slane %v239, 3
  %s241 = scalar_lea.vmem %s1, 264
  %242 = vst [vmem:[%s241] sm:$0xff] %v240
  %s243 = scalar_lea.vmem %s4, 280
  %v244 = vld [vmem:[%s243] sm:$0xff]
  %vm245 = vcmask 1042432
  %v246 = vsel %vm245, %v244, %v237
  %v247 = vrot.slane %v246, 3
  %s248 = scalar_lea.vmem %s1, 272
  %249 = vst [vmem:[%s248] sm:$0xff] %v247
  %s250 = scalar_lea.vmem %s4, 288
  %v251 = vld [vmem:[%s250] sm:$0xff]
  %vm252 = vcmask 1042432
  %v253 = vsel %vm252, %v251, %v244
  %v254 = vrot.slane %v253, 3
  %s255 = scalar_lea.vmem %s1, 280
  %256 = vst [vmem:[%s255] sm:$0xff] %v254
  %s257 = scalar_lea.vmem %s4, 296
  %v258 = vld [vmem:[%s257] sm:$0xff]
  %vm259 = vcmask 1042432
  %v260 = vsel %vm259, %v258, %v251
  %v261 = vrot.slane %v260, 3
  %s262 = scalar_lea.vmem %s1, 288
  %263 = vst [vmem:[%s262] sm:$0xff] %v261
  %s264 = scalar_lea.vmem %s4, 304
  %v265 = vld [vmem:[%s264] sm:$0xff]
  %vm266 = vcmask 1042432
  %v267 = vsel %vm266, %v265, %v258
  %v268 = vrot.slane %v267, 3
  %s269 = scalar_lea.vmem %s1, 296
  %270 = vst [vmem:[%s269] sm:$0xff] %v268
  %s271 = scalar_lea.vmem %s4, 312
  %v272 = vld [vmem:[%s271] sm:$0xff]
  %vm273 = vcmask 1042432
  %v274 = vsel %vm273, %v272, %v265
  %v275 = vrot.slane %v274, 3
  %s276 = scalar_lea.vmem %s1, 304
  %277 = vst [vmem:[%s276] sm:$0xff] %v275
  %s278 = scalar_lea.vmem %s4, 320
  %v279 = vld [vmem:[%s278] sm:$0xff]
  %vm280 = vcmask 1042432
  %v281 = vsel %vm280, %v279, %v272
  %v282 = vrot.slane %v281, 3
  %s283 = scalar_lea.vmem %s1, 312
  %284 = vst [vmem:[%s283] sm:$0xff] %v282
  %s285 = scalar_lea.vmem %s4, 328
  %v286 = vld [vmem:[%s285] sm:$0xff]
  %vm287 = vcmask 1042432
  %v288 = vsel %vm287, %v286, %v279
  %v289 = vrot.slane %v288, 3
  %s290 = scalar_lea.vmem %s1, 320
  %291 = vst [vmem:[%s290] sm:$0xff] %v289
  %s292 = scalar_lea.vmem %s4, 336
  %v293 = vld [vmem:[%s292] sm:$0xff]
  %vm294 = vcmask 1042432
  %v295 = vsel %vm294, %v293, %v286
  %v296 = vrot.slane %v295, 3
  %s297 = scalar_lea.vmem %s1, 328
  %298 = vst [vmem:[%s297] sm:$0xff] %v296
  %s299 = scalar_lea.vmem %s4, 344
  %v300 = vld [vmem:[%s299] sm:$0xff]
  %vm301 = vcmask 1042432
  %v302 = vsel %vm301, %v300, %v293
  %v303 = vrot.slane %v302, 3
  %s304 = scalar_lea.vmem %s1, 336
  %305 = vst [vmem:[%s304] sm:$0xff] %v303
  %s306 = scalar_lea.vmem %s4, 352
  %v307 = vld [vmem:[%s306] sm:$0xff]
  %vm308 = vcmask 1042432
  %v309 = vsel %vm308, %v307, %v300
  %v310 = vrot.slane %v309, 3
  %s311 = scalar_lea.vmem %s1, 344
  %312 = vst [vmem:[%s311] sm:$0xff] %v310
  %s313 = scalar_lea.vmem %s4, 360
  %v314 = vld [vmem:[%s313] sm:$0xff]
  %vm315 = vcmask 1042432
  %v316 = vsel %vm315, %v314, %v307
  %v317 = vrot.slane %v316, 3
  %s318 = scalar_lea.vmem %s1, 352
  %319 = vst [vmem:[%s318] sm:$0xff] %v317
  %s320 = scalar_lea.vmem %s4, 368
  %v321 = vld [vmem:[%s320] sm:$0xff]
  %vm322 = vcmask 1042432
  %v323 = vsel %vm322, %v321, %v314
  %v324 = vrot.slane %v323, 3
  %s325 = scalar_lea.vmem %s1, 360
  %326 = vst [vmem:[%s325] sm:$0xff] %v324
  %s327 = scalar_lea.vmem %s4, 376
  %v328 = vld [vmem:[%s327] sm:$0xff]
  %vm329 = vcmask 1042432
  %v330 = vsel %vm329, %v328, %v321
  %v331 = vrot.slane %v330, 3
  %s332 = scalar_lea.vmem %s1, 368
  %333 = vst [vmem:[%s332] sm:$0xff] %v331
  %s334 = scalar_lea.vmem %s4, 384
  %v335 = vld [vmem:[%s334] sm:$0xff]
  %vm336 = vcmask 1042432
  %v337 = vsel %vm336, %v335, %v328
  %v338 = vrot.slane %v337, 3
  %s339 = scalar_lea.vmem %s1, 376
  %340 = vst [vmem:[%s339] sm:$0xff] %v338
  %s341 = scalar_lea.vmem %s4, 392
  %v342 = vld [vmem:[%s341] sm:$0xff]
  %vm343 = vcmask 1042432
  %v344 = vsel %vm343, %v342, %v335
  %v345 = vrot.slane %v344, 3
  %s346 = scalar_lea.vmem %s1, 384
  %347 = vst [vmem:[%s346] sm:$0xff] %v345
  %s348 = scalar_lea.vmem %s4, 400
  %v349 = vld [vmem:[%s348] sm:$0xff]
  %vm350 = vcmask 1042432
  %v351 = vsel %vm350, %v349, %v342
  %v352 = vrot.slane %v351, 3
  %s353 = scalar_lea.vmem %s1, 392
  %354 = vst [vmem:[%s353] sm:$0xff] %v352
  %s355 = scalar_lea.vmem %s4, 408
  %v356 = vld [vmem:[%s355] sm:$0xff]
  %vm357 = vcmask 1042432
  %v358 = vsel %vm357, %v356, %v349
  %v359 = vrot.slane %v358, 3
  %s360 = scalar_lea.vmem %s1, 400
  %361 = vst [vmem:[%s360] sm:$0xff] %v359
  %s362 = scalar_lea.vmem %s4, 416
  %v363 = vld [vmem:[%s362] sm:$0xff]
  %vm364 = vcmask 1042432
  %v365 = vsel %vm364, %v363, %v356
  %v366 = vrot.slane %v365, 3
  %s367 = scalar_lea.vmem %s1, 408
  %368 = vst [vmem:[%s367] sm:$0xff] %v366
  %s369 = scalar_lea.vmem %s4, 424
  %v370 = vld [vmem:[%s369] sm:$0xff]
  %vm371 = vcmask 1042432
  %v372 = vsel %vm371, %v370, %v363
  %v373 = vrot.slane %v372, 3
  %s374 = scalar_lea.vmem %s1, 416
  %375 = vst [vmem:[%s374] sm:$0xff] %v373
  %s376 = scalar_lea.vmem %s4, 432
  %v377 = vld [vmem:[%s376] sm:$0xff]
  %vm378 = vcmask 1042432
  %v379 = vsel %vm378, %v377, %v370
  %v380 = vrot.slane %v379, 3
  %s381 = scalar_lea.vmem %s1, 424
  %382 = vst [vmem:[%s381] sm:$0xff] %v380
  %s383 = scalar_lea.vmem %s4, 440
  %v384 = vld [vmem:[%s383] sm:$0xff]
  %vm385 = vcmask 1042432
  %v386 = vsel %vm385, %v384, %v377
  %v387 = vrot.slane %v386, 3
  %s388 = scalar_lea.vmem %s1, 432
  %389 = vst [vmem:[%s388] sm:$0xff] %v387
  %s390 = scalar_lea.vmem %s4, 448
  %v391 = vld [vmem:[%s390] sm:$0xff]
  %vm392 = vcmask 1042432
  %v393 = vsel %vm392, %v391, %v384
  %v394 = vrot.slane %v393, 3
  %s395 = scalar_lea.vmem %s1, 440
  %396 = vst [vmem:[%s395] sm:$0xff] %v394
  %s397 = scalar_lea.vmem %s4, 456
  %v398 = vld [vmem:[%s397] sm:$0xff]
  %vm399 = vcmask 1042432
  %v400 = vsel %vm399, %v398, %v391
  %v401 = vrot.slane %v400, 3
  %s402 = scalar_lea.vmem %s1, 448
  %403 = vst [vmem:[%s402] sm:$0xff] %v401
  %s404 = scalar_lea.vmem %s4, 464
  %v405 = vld [vmem:[%s404] sm:$0xff]
  %vm406 = vcmask 1042432
  %v407 = vsel %vm406, %v405, %v398
  %v408 = vrot.slane %v407, 3
  %s409 = scalar_lea.vmem %s1, 456
  %410 = vst [vmem:[%s409] sm:$0xff] %v408
  %s411 = scalar_lea.vmem %s4, 472
  %v412 = vld [vmem:[%s411] sm:$0xff]
  %vm413 = vcmask 1042432
  %v414 = vsel %vm413, %v412, %v405
  %v415 = vrot.slane %v414, 3
  %s416 = scalar_lea.vmem %s1, 464
  %417 = vst [vmem:[%s416] sm:$0xff] %v415
  %s418 = scalar_lea.vmem %s4, 480
  %v419 = vld [vmem:[%s418] sm:$0xff]
  %vm420 = vcmask 1042432
  %v421 = vsel %vm420, %v419, %v412
  %v422 = vrot.slane %v421, 3
  %s423 = scalar_lea.vmem %s1, 472
  %424 = vst [vmem:[%s423] sm:$0xff] %v422
  %s425 = scalar_lea.vmem %s4, 488
  %v426 = vld [vmem:[%s425] sm:$0xff]
  %vm427 = vcmask 1042432
  %v428 = vsel %vm427, %v426, %v419
  %v429 = vrot.slane %v428, 3
  %s430 = scalar_lea.vmem %s1, 480
  %431 = vst [vmem:[%s430] sm:$0xff] %v429
  %s432 = scalar_lea.vmem %s4, 496
  %v433 = vld [vmem:[%s432] sm:$0xff]
  %vm434 = vcmask 1042432
  %v435 = vsel %vm434, %v433, %v426
  %v436 = vrot.slane %v435, 3
  %s437 = scalar_lea.vmem %s1, 488
  %438 = vst [vmem:[%s437] sm:$0xff] %v436
  %s439 = scalar_lea.vmem %s4, 504
  %v440 = vld [vmem:[%s439] sm:$0xff]
  %vm441 = vcmask 1042432
  %v442 = vsel %vm441, %v440, %v433
  %v443 = vrot.slane %v442, 3
  %s444 = scalar_lea.vmem %s1, 496
  %445 = vst [vmem:[%s444] sm:$0xff] %v443
  %s446 = scalar_lea.vmem %s4, 512
  %v447 = vld [vmem:[%s446] sm:$0xff]
  %vm448 = vcmask 1042432
  %v449 = vsel %vm448, %v447, %v440
  %v450 = vrot.slane %v449, 3
  %s451 = scalar_lea.vmem %s1, 504
  %452 = vst [vmem:[%s451] sm:$0xff] %v450

// kernel: split.0
$region0: #{split.0}
  #allocation0 [shape = 'u32[2048]{0}', space=vmem, size = 0x2000, scoped, tag = 'scoped memory for split.0']
  #allocation1 [shape = 'u32[2048]{0}', space=vmem, size = 0x2000, scoped, tag = 'scoped memory for split.0']
  #allocation2 [shape = 'u32[2048]{0}', space=vmem, size = 0x2000, scoped, tag = 'scoped memory for split.0']
  #allocation3 [shape = 'u32[2048]{0}', space=vmem, size = 0x2000, scoped, tag = 'scoped memory for split.0']
  #allocation4 [shape = 'u32[2048]{0}', space=vmem, size = 0x2000, scoped, tag = 'scoped memory for split.0']
  #allocation5 [shape = 's32[1]{0}', space=sflag, size = 0x4, scoped, tag = 'scoped memory for split.0']
  %s0 = inlined_call_operand.vmem [shape: f32[366848], index: 0, kind: input, shape index: {}]
  %s1 = inlined_call_operand.vmem [shape: f32[196608], index: 1, kind: output, shape index: {}]
  %s2 = scalar_lea.vmem %s0, 1056
  %s3 = scalar_lea.vmem %s0, 1056
  %s4 = scalar_lea.vmem %s0, 1056
  %v5 = vld [vmem:[%s4] sm:$0xff]
  %s6 = scalar_lea.vmem %s4, 8
  %v7 = vld [vmem:[%s6] sm:$0xff]
  %vm8 = vcmask 1046528
  %v9 = vsel %vm8, %v7, %v5
  %v10 = vrot.slane %v9, 7
  %11 = vst [vmem:[%s1] sm:$0xff] %v10
  %s12 = scalar_lea.vmem %s4, 16
  %v13 = vld [vmem:[%s12] sm:$0xff]
  %vm14 = vcmask 1046528
  %v15 = vsel %vm14, %v13, %v7
  %v16 = vrot.slane %v15, 7
  %s17 = scalar_lea.vmem %s1, 8
  %18 = vst [vmem:[%s17] sm:$0xff] %v16
  %s19 = scalar_lea.vmem %s4, 24
  %v20 = vld [vmem:[%s19] sm:$0xff]
  %vm21 = vcmask 1046528
  %v22 = vsel %vm21, %v20, %v13
  %v23 = vrot.slane %v22, 7
  %s24 = scalar_lea.vmem %s1, 16
  %25 = vst [vmem:[%s24] sm:$0xff] %v23
  %s26 = scalar_lea.vmem %s4, 32
  %v27 = vld [vmem:[%s26] sm:$0xff]
  %vm28 = vcmask 1046528
  %v29 = vsel %vm28, %v27, %v20
  %v30 = vrot.slane %v29, 7
  %s31 = scalar_lea.vmem %s1, 24
  %32 = vst [vmem:[%s31] sm:$0xff] %v30
  %s33 = scalar_lea.vmem %s4, 40
  %v34 = vld [vmem:[%s33] sm:$0xff]
  %vm35 = vcmask 1046528
  %v36 = vsel %vm35, %v34, %v27
  %v37 = vrot.slane %v36, 7
  %s38 = scalar_lea.vmem %s1, 32
  %39 = vst [vmem:[%s38] sm:$0xff] %v37
  %s40 = scalar_lea.vmem %s4, 48
  %v41 = vld [vmem:[%s40] sm:$0xff]
  %vm42 = vcmask 1046528
  %v43 = vsel %vm42, %v41, %v34
  %v44 = vrot.slane %v43, 7
  %s45 = scalar_lea.vmem %s1, 40
  %46 = vst [vmem:[%s45] sm:$0xff] %v44
  %s47 = scalar_lea.vmem %s4, 56
  %v48 = vld [vmem:[%s47] sm:$0xff]
  %vm49 = vcmask 1046528
  %v50 = vsel %vm49, %v48, %v41
  %v51 = vrot.slane %v50, 7
  %s52 = scalar_lea.vmem %s1, 48
  %53 = vst [vmem:[%s52] sm:$0xff] %v51
  %s54 = scalar_lea.vmem %s4, 64
  %v55 = vld [vmem:[%s54] sm:$0xff]
  %vm56 = vcmask 1046528
  %v57 = vsel %vm56, %v55, %v48
  %v58 = vrot.slane %v57, 7
  %s59 = scalar_lea.vmem %s1, 56
  %60 = vst [vmem:[%s59] sm:$0xff] %v58
  %s61 = scalar_lea.vmem %s4, 72
  %v62 = vld [vmem:[%s61] sm:$0xff]
  %vm63 = vcmask 1046528
  %v64 = vsel %vm63, %v62, %v55
  %v65 = vrot.slane %v64, 7
  %s66 = scalar_lea.vmem %s1, 64
  %67 = vst [vmem:[%s66] sm:$0xff] %v65
  %s68 = scalar_lea.vmem %s4, 80
  %v69 = vld [vmem:[%s68] sm:$0xff]
  %vm70 = vcmask 1046528
  %v71 = vsel %vm70, %v69, %v62
  %v72 = vrot.slane %v71, 7
  %s73 = scalar_lea.vmem %s1, 72
  %74 = vst [vmem:[%s73] sm:$0xff] %v72
  %s75 = scalar_lea.vmem %s4, 88
  %v76 = vld [vmem:[%s75] sm:$0xff]
  %vm77 = vcmask 1046528
  %v78 = vsel %vm77, %v76, %v69
  %v79 = vrot.slane %v78, 7
  %s80 = scalar_lea.vmem %s1, 80
  %81 = vst [vmem:[%s80] sm:$0xff] %v79
  %s82 = scalar_lea.vmem %s4, 96
  %v83 = vld [vmem:[%s82] sm:$0xff]
  %vm84 = vcmask 1046528
  %v85 = vsel %vm84, %v83, %v76
  %v86 = vrot.slane %v85, 7
  %s87 = scalar_lea.vmem %s1, 88
  %88 = vst [vmem:[%s87] sm:$0xff] %v86
  %s89 = scalar_lea.vmem %s4, 104
  %v90 = vld [vmem:[%s89] sm:$0xff]
  %vm91 = vcmask 1046528
  %v92 = vsel %vm91, %v90, %v83
  %v93 = vrot.slane %v92, 7
  %s94 = scalar_lea.vmem %s1, 96
  %95 = vst [vmem:[%s94] sm:$0xff] %v93
  %s96 = scalar_lea.vmem %s4, 112
  %v97 = vld [vmem:[%s96] sm:$0xff]
  %vm98 = vcmask 1046528
  %v99 = vsel %vm98, %v97, %v90
  %v100 = vrot.slane %v99, 7
  %s101 = scalar_lea.vmem %s1, 104
  %102 = vst [vmem:[%s101] sm:$0xff] %v100
  %s103 = scalar_lea.vmem %s4, 120
  %v104 = vld [vmem:[%s103] sm:$0xff]
  %vm105 = vcmask 1046528
  %v106 = vsel %vm105, %v104, %v97
  %v107 = vrot.slane %v106, 7
  %s108 = scalar_lea.vmem %s1, 112
  %109 = vst [vmem:[%s108] sm:$0xff] %v107
  %s110 = scalar_lea.vmem %s4, 128
  %v111 = vld [vmem:[%s110] sm:$0xff]
  %vm112 = vcmask 1046528
  %v113 = vsel %vm112, %v111, %v104
  %v114 = vrot.slane %v113, 7
  %s115 = scalar_lea.vmem %s1, 120
  %116 = vst [vmem:[%s115] sm:$0xff] %v114
  %s117 = scalar_lea.vmem %s4, 136
  %v118 = vld [vmem:[%s117] sm:$0xff]
  %vm119 = vcmask 1046528
  %v120 = vsel %vm119, %v118, %v111
  %v121 = vrot.slane %v120, 7
  %s122 = scalar_lea.vmem %s1, 128
  %123 = vst [vmem:[%s122] sm:$0xff] %v121
  %s124 = scalar_lea.vmem %s4, 144
  %v125 = vld [vmem:[%s124] sm:$0xff]
  %vm126 = vcmask 1046528
  %v127 = vsel %vm126, %v125, %v118
  %v128 = vrot.slane %v127, 7
  %s129 = scalar_lea.vmem %s1, 136
  %130 = vst [vmem:[%s129] sm:$0xff] %v128
  %s131 = scalar_lea.vmem %s4, 152
  %v132 = vld [vmem:[%s131] sm:$0xff]
  %vm133 = vcmask 1046528
  %v134 = vsel %vm133, %v132, %v125
  %v135 = vrot.slane %v134, 7
  %s136 = scalar_lea.vmem %s1, 144
  %137 = vst [vmem:[%s136] sm:$0xff] %v135
  %s138 = scalar_lea.vmem %s4, 160
  %v139 = vld [vmem:[%s138] sm:$0xff]
  %vm140 = vcmask 1046528
  %v141 = vsel %vm140, %v139, %v132
  %v142 = vrot.slane %v141, 7
  %s143 = scalar_lea.vmem %s1, 152
  %144 = vst [vmem:[%s143] sm:$0xff] %v142
  %s145 = scalar_lea.vmem %s4, 168
  %v146 = vld [vmem:[%s145] sm:$0xff]
  %vm147 = vcmask 1046528
  %v148 = vsel %vm147, %v146, %v139
  %v149 = vrot.slane %v148, 7
  %s150 = scalar_lea.vmem %s1, 160
  %151 = vst [vmem:[%s150] sm:$0xff] %v149
  %s152 = scalar_lea.vmem %s4, 176
  %v153 = vld [vmem:[%s152] sm:$0xff]
  %vm154 = vcmask 1046528
  %v155 = vsel %vm154, %v153, %v146
  %v156 = vrot.slane %v155, 7
  %s157 = scalar_lea.vmem %s1, 168
  %158 = vst [vmem:[%s157] sm:$0xff] %v156
  %s159 = scalar_lea.vmem %s4, 184
  %v160 = vld [vmem:[%s159] sm:$0xff]
  %vm161 = vcmask 1046528
  %v162 = vsel %vm161, %v160, %v153
  %v163 = vrot.slane %v162, 7
  %s164 = scalar_lea.vmem %s1, 176
  %165 = vst [vmem:[%s164] sm:$0xff] %v163
  %s166 = scalar_lea.vmem %s4, 192
  %v167 = vld [vmem:[%s166] sm:$0xff]
  %vm168 = vcmask 1046528
  %v169 = vsel %vm168, %v167, %v160
  %v170 = vrot.slane %v169, 7
  %s171 = scalar_lea.vmem %s1, 184
  %172 = vst [vmem:[%s171] sm:$0xff] %v170
  %s173 = scalar_lea.vmem %s4, 200
  %v174 = vld [vmem:[%s173] sm:$0xff]
  %vm175 = vcmask 1046528
  %v176 = vsel %vm175, %v174, %v167
  %v177 = vrot.slane %v176, 7
  %s178 = scalar_lea.vmem %s1, 192
  %179 = vst [vmem:[%s178] sm:$0xff] %v177
  %s180 = scalar_lea.vmem %s4, 208
  %v181 = vld [vmem:[%s180] sm:$0xff]
  %vm182 = vcmask 1046528
  %v183 = vsel %vm182, %v181, %v174
  %v184 = vrot.slane %v183, 7
  %s185 = scalar_lea.vmem %s1, 200
  %186 = vst [vmem:[%s185] sm:$0xff] %v184
  %s187 = scalar_lea.vmem %s4, 216
  %v188 = vld [vmem:[%s187] sm:$0xff]
  %vm189 = vcmask 1046528
  %v190 = vsel %vm189, %v188, %v181
  %v191 = vrot.slane %v190, 7
  %s192 = scalar_lea.vmem %s1, 208
  %193 = vst [vmem:[%s192] sm:$0xff] %v191
  %s194 = scalar_lea.vmem %s4, 224
  %v195 = vld [vmem:[%s194] sm:$0xff]
  %vm196 = vcmask 1046528
  %v197 = vsel %vm196, %v195, %v188
  %v198 = vrot.slane %v197, 7
  %s199 = scalar_lea.vmem %s1, 216
  %200 = vst [vmem:[%s199] sm:$0xff] %v198
  %s201 = scalar_lea.vmem %s4, 232
  %v202 = vld [vmem:[%s201] sm:$0xff]
  %vm203 = vcmask 1046528
  %v204 = vsel %vm203, %v202, %v195
  %v205 = vrot.slane %v204, 7
  %s206 = scalar_lea.vmem %s1, 224
  %207 = vst [vmem:[%s206] sm:$0xff] %v205
  %s208 = scalar_lea.vmem %s4, 240
  %v209 = vld [vmem:[%s208] sm:$0xff]
  %vm210 = vcmask 1046528
  %v211 = vsel %vm210, %v209, %v202
  %v212 = vrot.slane %v211, 7
  %s213 = scalar_lea.vmem %s1, 232
  %214 = vst [vmem:[%s213] sm:$0xff] %v212
  %s215 = scalar_lea.vmem %s4, 248
  %v216 = vld [vmem:[%s215] sm:$0xff]
  %vm217 = vcmask 1046528
  %v218 = vsel %vm217, %v216, %v209
  %v219 = vrot.slane %v218, 7
  %s220 = scalar_lea.vmem %s1, 240
  %221 = vst [vmem:[%s220] sm:$0xff] %v219
  %s222 = scalar_lea.vmem %s4, 256
  %v223 = vld [vmem:[%s222] sm:$0xff]
  %vm224 = vcmask 1046528
  %v225 = vsel %vm224, %v223, %v216
  %v226 = vrot.slane %v225, 7
  %s227 = scalar_lea.vmem %s1, 248
  %228 = vst [vmem:[%s227] sm:$0xff] %v226
  %s229 = scalar_lea.vmem %s4, 264
  %v230 = vld [vmem:[%s229] sm:$0xff]
  %vm231 = vcmask 1046528
  %v232 = vsel %vm231, %v230, %v223
  %v233 = vrot.slane %v232, 7
  %s234 = scalar_lea.vmem %s1, 256
  %235 = vst [vmem:[%s234] sm:$0xff] %v233
  %s236 = scalar_lea.vmem %s4, 272
  %v237 = vld [vmem:[%s236] sm:$0xff]
  %vm238 = vcmask 1046528
  %v239 = vsel %vm238, %v237, %v230
  %v240 = vrot.slane %v239, 7
  %s241 = scalar_lea.vmem %s1, 264
  %242 = vst [vmem:[%s241] sm:$0xff] %v240
  %s243 = scalar_lea.vmem %s4, 280
  %v244 = vld [vmem:[%s243] sm:$0xff]
  %vm245 = vcmask 1046528
  %v246 = vsel %vm245, %v244, %v237
  %v247 = vrot.slane %v246, 7
  %s248 = scalar_lea.vmem %s1, 272
  %249 = vst [vmem:[%s248] sm:$0xff] %v247
  %s250 = scalar_lea.vmem %s4, 288
  %v251 = vld [vmem:[%s250] sm:$0xff]
  %vm252 = vcmask 1046528
  %v253 = vsel %vm252, %v251, %v244
  %v254 = vrot.slane %v253, 7
  %s255 = scalar_lea.vmem %s1, 280
  %256 = vst [vmem:[%s255] sm:$0xff] %v254
  %s257 = scalar_lea.vmem %s4, 296
  %v258 = vld [vmem:[%s257] sm:$0xff]
  %vm259 = vcmask 1046528
  %v260 = vsel %vm259, %v258, %v251
  %v261 = vrot.slane %v260, 7
  %s262 = scalar_lea.vmem %s1, 288
  %263 = vst [vmem:[%s262] sm:$0xff] %v261
  %s264 = scalar_lea.vmem %s4, 304
  %v265 = vld [vmem:[%s264] sm:$0xff]
  %vm266 = vcmask 1046528
  %v267 = vsel %vm266, %v265, %v258
  %v268 = vrot.slane %v267, 7
  %s269 = scalar_lea.vmem %s1, 296
  %270 = vst [vmem:[%s269] sm:$0xff] %v268
  %s271 = scalar_lea.vmem %s4, 312
  %v272 = vld [vmem:[%s271] sm:$0xff]
  %vm273 = vcmask 1046528
  %v274 = vsel %vm273, %v272, %v265
  %v275 = vrot.slane %v274, 7
  %s276 = scalar_lea.vmem %s1, 304
  %277 = vst [vmem:[%s276] sm:$0xff] %v275
  %s278 = scalar_lea.vmem %s4, 320
  %v279 = vld [vmem:[%s278] sm:$0xff]
  %vm280 = vcmask 1046528
  %v281 = vsel %vm280, %v279, %v272
  %v282 = vrot.slane %v281, 7
  %s283 = scalar_lea.vmem %s1, 312
  %284 = vst [vmem:[%s283] sm:$0xff] %v282
  %s285 = scalar_lea.vmem %s4, 328
  %v286 = vld [vmem:[%s285] sm:$0xff]
  %vm287 = vcmask 1046528
  %v288 = vsel %vm287, %v286, %v279
  %v289 = vrot.slane %v288, 7
  %s290 = scalar_lea.vmem %s1, 320
  %291 = vst [vmem:[%s290] sm:$0xff] %v289
  %s292 = scalar_lea.vmem %s4, 336
  %v293 = vld [vmem:[%s292] sm:$0xff]
  %vm294 = vcmask 1046528
  %v295 = vsel %vm294, %v293, %v286
  %v296 = vrot.slane %v295, 7
  %s297 = scalar_lea.vmem %s1, 328
  %298 = vst [vmem:[%s297] sm:$0xff] %v296
  %s299 = scalar_lea.vmem %s4, 344
  %v300 = vld [vmem:[%s299] sm:$0xff]
  %vm301 = vcmask 1046528
  %v302 = vsel %vm301, %v300, %v293
  %v303 = vrot.slane %v302, 7
  %s304 = scalar_lea.vmem %s1, 336
  %305 = vst [vmem:[%s304] sm:$0xff] %v303
  %s306 = scalar_lea.vmem %s4, 352
  %v307 = vld [vmem:[%s306] sm:$0xff]
  %vm308 = vcmask 1046528
  %v309 = vsel %vm308, %v307, %v300
  %v310 = vrot.slane %v309, 7
  %s311 = scalar_lea.vmem %s1, 344
  %312 = vst [vmem:[%s311] sm:$0xff] %v310
  %s313 = scalar_lea.vmem %s4, 360
  %v314 = vld [vmem:[%s313] sm:$0xff]
  %vm315 = vcmask 1046528
  %v316 = vsel %vm315, %v314, %v307
  %v317 = vrot.slane %v316, 7
  %s318 = scalar_lea.vmem %s1, 352
  %319 = vst [vmem:[%s318] sm:$0xff] %v317
  %s320 = scalar_lea.vmem %s4, 368
  %v321 = vld [vmem:[%s320] sm:$0xff]
  %vm322 = vcmask 1046528
  %v323 = vsel %vm322, %v321, %v314
  %v324 = vrot.slane %v323, 7
  %s325 = scalar_lea.vmem %s1, 360
  %326 = vst [vmem:[%s325] sm:$0xff] %v324
  %s327 = scalar_lea.vmem %s4, 376
  %v328 = vld [vmem:[%s327] sm:$0xff]
  %vm329 = vcmask 1046528
  %v330 = vsel %vm329, %v328, %v321
  %v331 = vrot.slane %v330, 7
  %s332 = scalar_lea.vmem %s1, 368
  %333 = vst [vmem:[%s332] sm:$0xff] %v331
  %s334 = scalar_lea.vmem %s4, 384
  %v335 = vld [vmem:[%s334] sm:$0xff]
  %vm336 = vcmask 1046528
  %v337 = vsel %vm336, %v335, %v328
  %v338 = vrot.slane %v337, 7
  %s339 = scalar_lea.vmem %s1, 376
  %340 = vst [vmem:[%s339] sm:$0xff] %v338
  %s341 = scalar_lea.vmem %s4, 392
  %v342 = vld [vmem:[%s341] sm:$0xff]
  %vm343 = vcmask 1046528
  %v344 = vsel %vm343, %v342, %v335
  %v345 = vrot.slane %v344, 7
  %s346 = scalar_lea.vmem %s1, 384
  %347 = vst [vmem:[%s346] sm:$0xff] %v345
  %s348 = scalar_lea.vmem %s4, 400
  %v349 = vld [vmem:[%s348] sm:$0xff]
  %vm350 = vcmask 1046528
  %v351 = vsel %vm350, %v349, %v342
  %v352 = vrot.slane %v351, 7
  %s353 = scalar_lea.vmem %s1, 392
  %354 = vst [vmem:[%s353] sm:$0xff] %v352
  %s355 = scalar_lea.vmem %s4, 408
  %v356 = vld [vmem:[%s355] sm:$0xff]
  %vm357 = vcmask 1046528
  %v358 = vsel %vm357, %v356, %v349
  %v359 = vrot.slane %v358, 7
  %s360 = scalar_lea.vmem %s1, 400
  %361 = vst [vmem:[%s360] sm:$0xff] %v359
  %s362 = scalar_lea.vmem %s4, 416
  %v363 = vld [vmem:[%s362] sm:$0xff]
  %vm364 = vcmask 1046528
  %v365 = vsel %vm364, %v363, %v356
  %v366 = vrot.slane %v365, 7
  %s367 = scalar_lea.vmem %s1, 408
  %368 = vst [vmem:[%s367] sm:$0xff] %v366
  %s369 = scalar_lea.vmem %s4, 424
  %v370 = vld [vmem:[%s369] sm:$0xff]
  %vm371 = vcmask 1046528
  %v372 = vsel %vm371, %v370, %v363
  %v373 = vrot.slane %v372, 7
  %s374 = scalar_lea.vmem %s1, 416
  %375 = vst [vmem:[%s374] sm:$0xff] %v373
  %s376 = scalar_lea.vmem %s4, 432
  %v377 = vld [vmem:[%s376] sm:$0xff]
  %vm378 = vcmask 1046528
  %v379 = vsel %vm378, %v377, %v370
  %v380 = vrot.slane %v379, 7
  %s381 = scalar_lea.vmem %s1, 424
  %382 = vst [vmem:[%s381] sm:$0xff] %v380
  %s383 = scalar_lea.vmem %s4, 440
  %v384 = vld [vmem:[%s383] sm:$0xff]
  %vm385 = vcmask 1046528
  %v386 = vsel %vm385, %v384, %v377
  %v387 = vrot.slane %v386, 7
  %s388 = scalar_lea.vmem %s1, 432
  %389 = vst [vmem:[%s388] sm:$0xff] %v387
  %s390 = scalar_lea.vmem %s4, 448
  %v391 = vld [vmem:[%s390] sm:$0xff]
  %vm392 = vcmask 1046528
  %v393 = vsel %vm392, %v391, %v384
  %v394 = vrot.slane %v393, 7
  %s395 = scalar_lea.vmem %s1, 440
  %396 = vst [vmem:[%s395] sm:$0xff] %v394
  %s397 = scalar_lea.vmem %s4, 456
  %v398 = vld [vmem:[%s397] sm:$0xff]
  %vm399 = vcmask 1046528
  %v400 = vsel %vm399, %v398, %v391
  %v401 = vrot.slane %v400, 7
  %s402 = scalar_lea.vmem %s1, 448
  %403 = vst [vmem:[%s402] sm:$0xff] %v401
  %s404 = scalar_lea.vmem %s4, 464
  %v405 = vld [vmem:[%s404] sm:$0xff]
  %vm406 = vcmask 1046528
  %v407 = vsel %vm406, %v405, %v398
  %v408 = vrot.slane %v407, 7
  %s409 = scalar_lea.vmem %s1, 456
  %410 = vst [vmem:[%s409] sm:$0xff] %v408
  %s411 = scalar_lea.vmem %s4, 472
  %v412 = vld [vmem:[%s411] sm:$0xff]
  %vm413 = vcmask 1046528
  %v414 = vsel %vm413, %v412, %v405
  %v415 = vrot.slane %v414, 7
  %s416 = scalar_lea.vmem %s1, 464
  %417 = vst [vmem:[%s416] sm:$0xff] %v415
  %s418 = scalar_lea.vmem %s4, 480
  %v419 = vld [vmem:[%s418] sm:$0xff]
  %vm420 = vcmask 1046528
  %v421 = vsel %vm420, %v419, %v412
  %v422 = vrot.slane %v421, 7
  %s423 = scalar_lea.vmem %s1, 472
  %424 = vst [vmem:[%s423] sm:$0xff] %v422
  %s425 = scalar_lea.vmem %s4, 488
  %v426 = vld [vmem:[%s425] sm:$0xff]
  %vm427 = vcmask 1046528
  %v428 = vsel %vm427, %v426, %v419
  %v429 = vrot.slane %v428, 7
  %s430 = scalar_lea.vmem %s1, 480
  %431 = vst [vmem:[%s430] sm:$0xff] %v429
  %s432 = scalar_lea.vmem %s4, 496
  %v433 = vld [vmem:[%s432] sm:$0xff]
  %vm434 = vcmask 1046528
  %v435 = vsel %vm434, %v433, %v426
  %v436 = vrot.slane %v435, 7
  %s437 = scalar_lea.vmem %s1, 488
  %438 = vst [vmem:[%s437] sm:$0xff] %v436
  %s439 = scalar_lea.vmem %s4, 504
  %v440 = vld [vmem:[%s439] sm:$0xff]
  %vm441 = vcmask 1046528
  %v442 = vsel %vm441, %v440, %v433
  %v443 = vrot.slane %v442, 7
  %s444 = scalar_lea.vmem %s1, 496
  %445 = vst [vmem:[%s444] sm:$0xff] %v443
  %s446 = scalar_lea.vmem %s4, 512
  %v447 = vld [vmem:[%s446] sm:$0xff]
  %vm448 = vcmask 1046528
  %v449 = vsel %vm448, %v447, %v440
  %v450 = vrot.slane %v449, 7
  %s451 = scalar_lea.vmem %s1, 504
  %452 = vst [vmem:[%s451] sm:$0xff] %v450
  %s453 = scalar_lea.vmem %s4, 520
  %v454 = vld [vmem:[%s453] sm:$0xff]
  %vm455 = vcmask 1046528
  %v456 = vsel %vm455, %v454, %v447
  %v457 = vrot.slane %v456, 7
  %s458 = scalar_lea.vmem %s1, 512
  %459 = vst [vmem:[%s458] sm:$0xff] %v457
  %s460 = scalar_lea.vmem %s4, 528
  %v461 = vld [vmem:[%s460] sm:$0xff]
  %vm462 = vcmask 1046528
  %v463 = vsel %vm462, %v461, %v454
  %v464 = vrot.slane %v463, 7
  %s465 = scalar_lea.vmem %s1, 520
  %466 = vst [vmem:[%s465] sm:$0xff] %v464
  %s467 = scalar_lea.vmem %s4, 536
  %v468 = vld [vmem:[%s467] sm:$0xff]
  %vm469 = vcmask 1046528
  %v470 = vsel %vm469, %v468, %v461
  %v471 = vrot.slane %v470, 7
  %s472 = scalar_lea.vmem %s1, 528
  %473 = vst [vmem:[%s472] sm:$0xff] %v471
  %s474 = scalar_lea.vmem %s4, 544
  %v475 = vld [vmem:[%s474] sm:$0xff]
  %vm476 = vcmask 1046528
  %v477 = vsel %vm476, %v475, %v468
  %v478 = vrot.slane %v477, 7
  %s479 = scalar_lea.vmem %s1, 536
  %480 = vst [vmem:[%s479] sm:$0xff] %v478
  %s481 = scalar_lea.vmem %s4, 552
  %v482 = vld [vmem:[%s481] sm:$0xff]
  %vm483 = vcmask 1046528
  %v484 = vsel %vm483, %v482, %v475
  %v485 = vrot.slane %v484, 7
  %s486 = scalar_lea.vmem %s1, 544
  %487 = vst [vmem:[%s486] sm:$0xff] %v485
  %s488 = scalar_lea.vmem %s4, 560
  %v489 = vld [vmem:[%s488] sm:$0xff]
  %vm490 = vcmask 1046528
  %v491 = vsel %vm490, %v489, %v482
  %v492 = vrot.slane %v491, 7
  %s493 = scalar_lea.vmem %s1, 552
  %494 = vst [vmem:[%s493] sm:$0xff] %v492
  %s495 = scalar_lea.vmem %s4, 568
  %v496 = vld [vmem:[%s495] sm:$0xff]
  %vm497 = vcmask 1046528
  %v498 = vsel %vm497, %v496, %v489
  %v499 = vrot.slane %v498, 7
  %s500 = scalar_lea.vmem %s1, 560
  %501 = vst [vmem:[%s500] sm:$0xff] %v499
  %s502 = scalar_lea.vmem %s4, 576
  %v503 = vld [vmem:[%s502] sm:$0xff]
  %vm504 = vcmask 1046528
  %v505 = vsel %vm504, %v503, %v496
  %v506 = vrot.slane %v505, 7
  %s507 = scalar_lea.vmem %s1, 568
  %508 = vst [vmem:[%s507] sm:$0xff] %v506
  %s509 = scalar_lea.vmem %s4, 584
  %v510 = vld [vmem:[%s509] sm:$0xff]
  %vm511 = vcmask 1046528
  %v512 = vsel %vm511, %v510, %v503
  %v513 = vrot.slane %v512, 7
  %s514 = scalar_lea.vmem %s1, 576
  %515 = vst [vmem:[%s514] sm:$0xff] %v513
  %s516 = scalar_lea.vmem %s4, 592
  %v517 = vld [vmem:[%s516] sm:$0xff]
  %vm518 = vcmask 1046528
  %v519 = vsel %vm518, %v517, %v510
  %v520 = vrot.slane %v519, 7
  %s521 = scalar_lea.vmem %s1, 584
  %522 = vst [vmem:[%s521] sm:$0xff] %v520
  %s523 = scalar_lea.vmem %s4, 600
  %v524 = vld [vmem:[%s523] sm:$0xff]
  %vm525 = vcmask 1046528
  %v526 = vsel %vm525, %v524, %v517
  %v527 = vrot.slane %v526, 7
  %s528 = scalar_lea.vmem %s1, 592
  %529 = vst [vmem:[%s528] sm:$0xff] %v527
  %s530 = scalar_lea.vmem %s4, 608
  %v531 = vld [vmem:[%s530] sm:$0xff]
  %vm532 = vcmask 1046528
  %v533 = vsel %vm532, %v531, %v524
  %v534 = vrot.slane %v533, 7
  %s535 = scalar_lea.vmem %s1, 600
  %536 = vst [vmem:[%s535] sm:$0xff] %v534
  %s537 = scalar_lea.vmem %s4, 616
  %v538 = vld [vmem:[%s537] sm:$0xff]
  %vm539 = vcmask 1046528
  %v540 = vsel %vm539, %v538, %v531
  %v541 = vrot.slane %v540, 7
  %s542 = scalar_lea.vmem %s1, 608
  %543 = vst [vmem:[%s542] sm:$0xff] %v541
  %s544 = scalar_lea.vmem %s4, 624
  %v545 = vld [vmem:[%s544] sm:$0xff]
  %vm546 = vcmask 1046528
  %v547 = vsel %vm546, %v545, %v538
  %v548 = vrot.slane %v547, 7
  %s549 = scalar_lea.vmem %s1, 616
  %550 = vst [vmem:[%s549] sm:$0xff] %v548
  %s551 = scalar_lea.vmem %s4, 632
  %v552 = vld [vmem:[%s551] sm:$0xff]
  %vm553 = vcmask 1046528
  %v554 = vsel %vm553, %v552, %v545
  %v555 = vrot.slane %v554, 7
  %s556 = scalar_lea.vmem %s1, 624
  %557 = vst [vmem:[%s556] sm:$0xff] %v555
  %s558 = scalar_lea.vmem %s4, 640
  %v559 = vld [vmem:[%s558] sm:$0xff]
  %vm560 = vcmask 1046528
  %v561 = vsel %vm560, %v559, %v552
  %v562 = vrot.slane %v561, 7
  %s563 = scalar_lea.vmem %s1, 632
  %564 = vst [vmem:[%s563] sm:$0xff] %v562
  %s565 = scalar_lea.vmem %s4, 648
  %v566 = vld [vmem:[%s565] sm:$0xff]
  %vm567 = vcmask 1046528
  %v568 = vsel %vm567, %v566, %v559
  %v569 = vrot.slane %v568, 7
  %s570 = scalar_lea.vmem %s1, 640
  %571 = vst [vmem:[%s570] sm:$0xff] %v569
  %s572 = scalar_lea.vmem %s4, 656
  %v573 = vld [vmem:[%s572] sm:$0xff]
  %vm574 = vcmask 1046528
  %v575 = vsel %vm574, %v573, %v566
  %v576 = vrot.slane %v575, 7
  %s577 = scalar_lea.vmem %s1, 648
  %578 = vst [vmem:[%s577] sm:$0xff] %v576
  %s579 = scalar_lea.vmem %s4, 664
  %v580 = vld [vmem:[%s579] sm:$0xff]
  %vm581 = vcmask 1046528
  %v582 = vsel %vm581, %v580, %v573
  %v583 = vrot.slane %v582, 7
  %s584 = scalar_lea.vmem %s1, 656
  %585 = vst [vmem:[%s584] sm:$0xff] %v583
  %s586 = scalar_lea.vmem %s4, 672
  %v587 = vld [vmem:[%s586] sm:$0xff]
  %vm588 = vcmask 1046528
  %v589 = vsel %vm588, %v587, %v580
  %v590 = vrot.slane %v589, 7
  %s591 = scalar_lea.vmem %s1, 664
  %592 = vst [vmem:[%s591] sm:$0xff] %v590
  %s593 = scalar_lea.vmem %s4, 680
  %v594 = vld [vmem:[%s593] sm:$0xff]
  %vm595 = vcmask 1046528
  %v596 = vsel %vm595, %v594, %v587
  %v597 = vrot.slane %v596, 7
  %s598 = scalar_lea.vmem %s1, 672
  %599 = vst [vmem:[%s598] sm:$0xff] %v597
  %s600 = scalar_lea.vmem %s4, 688
  %v601 = vld [vmem:[%s600] sm:$0xff]
  %vm602 = vcmask 1046528
  %v603 = vsel %vm602, %v601, %v594
  %v604 = vrot.slane %v603, 7
  %s605 = scalar_lea.vmem %s1, 680
  %606 = vst [vmem:[%s605] sm:$0xff] %v604
  %s607 = scalar_lea.vmem %s4, 696
  %v608 = vld [vmem:[%s607] sm:$0xff]
  %vm609 = vcmask 1046528
  %v610 = vsel %vm609, %v608, %v601
  %v611 = vrot.slane %v610, 7
  %s612 = scalar_lea.vmem %s1, 688
  %613 = vst [vmem:[%s612] sm:$0xff] %v611
  %s614 = scalar_lea.vmem %s4, 704
  %v615 = vld [vmem:[%s614] sm:$0xff]
  %vm616 = vcmask 1046528
  %v617 = vsel %vm616, %v615, %v608
  %v618 = vrot.slane %v617, 7
  %s619 = scalar_lea.vmem %s1, 696
  %620 = vst [vmem:[%s619] sm:$0xff] %v618
  %s621 = scalar_lea.vmem %s4, 712
  %v622 = vld [vmem:[%s621] sm:$0xff]
  %vm623 = vcmask 1046528
  %v624 = vsel %vm623, %v622, %v615
  %v625 = vrot.slane %v624, 7
  %s626 = scalar_lea.vmem %s1, 704
  %627 = vst [vmem:[%s626] sm:$0xff] %v625
  %s628 = scalar_lea.vmem %s4, 720
  %v629 = vld [vmem:[%s628] sm:$0xff]
  %vm630 = vcmask 1046528
  %v631 = vsel %vm630, %v629, %v622
  %v632 = vrot.slane %v631, 7
  %s633 = scalar_lea.vmem %s1, 712
  %634 = vst [vmem:[%s633] sm:$0xff] %v632
  %s635 = scalar_lea.vmem %s4, 728
  %v636 = vld [vmem:[%s635] sm:$0xff]
  %vm637 = vcmask 1046528
  %v638 = vsel %vm637, %v636, %v629
  %v639 = vrot.slane %v638, 7
  %s640 = scalar_lea.vmem %s1, 720
  %641 = vst [vmem:[%s640] sm:$0xff] %v639
  %s642 = scalar_lea.vmem %s4, 736
  %v643 = vld [vmem:[%s642] sm:$0xff]
  %vm644 = vcmask 1046528
  %v645 = vsel %vm644, %v643, %v636
  %v646 = vrot.slane %v645, 7
  %s647 = scalar_lea.vmem %s1, 728
  %648 = vst [vmem:[%s647] sm:$0xff] %v646
  %s649 = scalar_lea.vmem %s4, 744
  %v650 = vld [vmem:[%s649] sm:$0xff]
  %vm651 = vcmask 1046528
  %v652 = vsel %vm651, %v650, %v643
  %v653 = vrot.slane %v652, 7
  %s654 = scalar_lea.vmem %s1, 736
  %655 = vst [vmem:[%s654] sm:$0xff] %v653
  %s656 = scalar_lea.vmem %s4, 752
  %v657 = vld [vmem:[%s656] sm:$0xff]
  %vm658 = vcmask 1046528
  %v659 = vsel %vm658, %v657, %v650
  %v660 = vrot.slane %v659, 7
  %s661 = scalar_lea.vmem %s1, 744
  %662 = vst [vmem:[%s661] sm:$0xff] %v660
  %s663 = scalar_lea.vmem %s4, 760
  %v664 = vld [vmem:[%s663] sm:$0xff]
  %vm665 = vcmask 1046528
  %v666 = vsel %vm665, %v664, %v657
  %v667 = vrot.slane %v666, 7
  %s668 = scalar_lea.vmem %s1, 752
  %669 = vst [vmem:[%s668] sm:$0xff] %v667
  %s670 = scalar_lea.vmem %s4, 768
  %v671 = vld [vmem:[%s670] sm:$0xff]
  %vm672 = vcmask 1046528
  %v673 = vsel %vm672, %v671, %v664
  %v674 = vrot.slane %v673, 7
  %s675 = scalar_lea.vmem %s1, 760
  %676 = vst [vmem:[%s675] sm:$0xff] %v674
  %s677 = scalar_lea.vmem %s4, 776
  %v678 = vld [vmem:[%s677] sm:$0xff]
  %vm679 = vcmask 1046528
  %v680 = vsel %vm679, %v678, %v671
  %v681 = vrot.slane %v680, 7
  %s682 = scalar_lea.vmem %s1, 768
  %683 = vst [vmem:[%s682] sm:$0xff] %v681
  %s684 = scalar_lea.vmem %s4, 784
  %v685 = vld [vmem:[%s684] sm:$0xff]
  %vm686 = vcmask 1046528
  %v687 = vsel %vm686, %v685, %v678
  %v688 = vrot.slane %v687, 7
  %s689 = scalar_lea.vmem %s1, 776
  %690 = vst [vmem:[%s689] sm:$0xff] %v688
  %s691 = scalar_lea.vmem %s4, 792
  %v692 = vld [vmem:[%s691] sm:$0xff]
  %vm693 = vcmask 1046528
  %v694 = vsel %vm693, %v692, %v685
  %v695 = vrot.slane %v694, 7
  %s696 = scalar_lea.vmem %s1, 784
  %697 = vst [vmem:[%s696] sm:$0xff] %v695
  %s698 = scalar_lea.vmem %s4, 800
  %v699 = vld [vmem:[%s698] sm:$0xff]
  %vm700 = vcmask 1046528
  %v701 = vsel %vm700, %v699, %v692
  %v702 = vrot.slane %v701, 7
  %s703 = scalar_lea.vmem %s1, 792
  %704 = vst [vmem:[%s703] sm:$0xff] %v702
  %s705 = scalar_lea.vmem %s4, 808
  %v706 = vld [vmem:[%s705] sm:$0xff]
  %vm707 = vcmask 1046528
  %v708 = vsel %vm707, %v706, %v699
  %v709 = vrot.slane %v708, 7
  %s710 = scalar_lea.vmem %s1, 800
  %711 = vst [vmem:[%s710] sm:$0xff] %v709
  %s712 = scalar_lea.vmem %s4, 816
  %v713 = vld [vmem:[%s712] sm:$0xff]
  %vm714 = vcmask 1046528
  %v715 = vsel %vm714, %v713, %v706
  %v716 = vrot.slane %v715, 7
  %s717 = scalar_lea.vmem %s1, 808
  %718 = vst [vmem:[%s717] sm:$0xff] %v716
  %s719 = scalar_lea.vmem %s4, 824
  %v720 = vld [vmem:[%s719] sm:$0xff]
  %vm721 = vcmask 1046528
  %v722 = vsel %vm721, %v720, %v713
  %v723 = vrot.slane %v722, 7
  %s724 = scalar_lea.vmem %s1, 816
  %725 = vst [vmem:[%s724] sm:$0xff] %v723
  %s726 = scalar_lea.vmem %s4, 832
  %v727 = vld [vmem:[%s726] sm:$0xff]
  %vm728 = vcmask 1046528
  %v729 = vsel %vm728, %v727, %v720
  %v730 = vrot.slane %v729, 7
  %s731 = scalar_lea.vmem %s1, 824
  %732 = vst [vmem:[%s731] sm:$0xff] %v730
  %s733 = scalar_lea.vmem %s4, 840
  %v734 = vld [vmem:[%s733] sm:$0xff]
  %vm735 = vcmask 1046528
  %v736 = vsel %vm735, %v734, %v727
  %v737 = vrot.slane %v736, 7
  %s738 = scalar_lea.vmem %s1, 832
  %739 = vst [vmem:[%s738] sm:$0xff] %v737
  %s740 = scalar_lea.vmem %s4, 848
  %v741 = vld [vmem:[%s740] sm:$0xff]
  %vm742 = vcmask 1046528
  %v743 = vsel %vm742, %v741, %v734
  %v744 = vrot.slane %v743, 7
  %s745 = scalar_lea.vmem %s1, 840
  %746 = vst [vmem:[%s745] sm:$0xff] %v744
  %s747 = scalar_lea.vmem %s4, 856
  %v748 = vld [vmem:[%s747] sm:$0xff]
  %vm749 = vcmask 1046528
  %v750 = vsel %vm749, %v748, %v741
  %v751 = vrot.slane %v750, 7
  %s752 = scalar_lea.vmem %s1, 848
  %753 = vst [vmem:[%s752] sm:$0xff] %v751
  %s754 = scalar_lea.vmem %s4, 864
  %v755 = vld [vmem:[%s754] sm:$0xff]
  %vm756 = vcmask 1046528
  %v757 = vsel %vm756, %v755, %v748
  %v758 = vrot.slane %v757, 7
  %s759 = scalar_lea.vmem %s1, 856
  %760 = vst [vmem:[%s759] sm:$0xff] %v758
  %s761 = scalar_lea.vmem %s4, 872
  %v762 = vld [vmem:[%s761] sm:$0xff]
  %vm763 = vcmask 1046528
  %v764 = vsel %vm763, %v762, %v755
  %v765 = vrot.slane %v764, 7
  %s766 = scalar_lea.vmem %s1, 864
  %767 = vst [vmem:[%s766] sm:$0xff] %v765
  %s768 = scalar_lea.vmem %s4, 880
  %v769 = vld [vmem:[%s768] sm:$0xff]
  %vm770 = vcmask 1046528
  %v771 = vsel %vm770, %v769, %v762
  %v772 = vrot.slane %v771, 7
  %s773 = scalar_lea.vmem %s1, 872
  %774 = vst [vmem:[%s773] sm:$0xff] %v772
  %s775 = scalar_lea.vmem %s4, 888
  %v776 = vld [vmem:[%s775] sm:$0xff]
  %vm777 = vcmask 1046528
  %v778 = vsel %vm777, %v776, %v769
  %v779 = vrot.slane %v778, 7
  %s780 = scalar_lea.vmem %s1, 880
  %781 = vst [vmem:[%s780] sm:$0xff] %v779
  %s782 = scalar_lea.vmem %s4, 896
  %v783 = vld [vmem:[%s782] sm:$0xff]
  %vm784 = vcmask 1046528
  %v785 = vsel %vm784, %v783, %v776
  %v786 = vrot.slane %v785, 7
  %s787 = scalar_lea.vmem %s1, 888
  %788 = vst [vmem:[%s787] sm:$0xff] %v786
  %s789 = scalar_lea.vmem %s4, 904
  %v790 = vld [vmem:[%s789] sm:$0xff]
  %vm791 = vcmask 1046528
  %v792 = vsel %vm791, %v790, %v783
  %v793 = vrot.slane %v792, 7
  %s794 = scalar_lea.vmem %s1, 896
  %795 = vst [vmem:[%s794] sm:$0xff] %v793
  %s796 = scalar_lea.vmem %s4, 912
  %v797 = vld [vmem:[%s796] sm:$0xff]
  %vm798 = vcmask 1046528
  %v799 = vsel %vm798, %v797, %v790
  %v800 = vrot.slane %v799, 7
  %s801 = scalar_lea.vmem %s1, 904
  %802 = vst [vmem:[%s801] sm:$0xff] %v800
  %s803 = scalar_lea.vmem %s4, 920
  %v804 = vld [vmem:[%s803] sm:$0xff]
  %vm805 = vcmask 1046528
  %v806 = vsel %vm805, %v804, %v797
  %v807 = vrot.slane %v806, 7
  %s808 = scalar_lea.vmem %s1, 912
  %809 = vst [vmem:[%s808] sm:$0xff] %v807
  %s810 = scalar_lea.vmem %s4, 928
  %v811 = vld [vmem:[%s810] sm:$0xff]
  %vm812 = vcmask 1046528
  %v813 = vsel %vm812, %v811, %v804
  %v814 = vrot.slane %v813, 7
  %s815 = scalar_lea.vmem %s1, 920
  %816 = vst [vmem:[%s815] sm:$0xff] %v814
  %s817 = scalar_lea.vmem %s4, 936
  %v818 = vld [vmem:[%s817] sm:$0xff]
  %vm819 = vcmask 1046528
  %v820 = vsel %vm819, %v818, %v811
  %v821 = vrot.slane %v820, 7
  %s822 = scalar_lea.vmem %s1, 928
  %823 = vst [vmem:[%s822] sm:$0xff] %v821
  %s824 = scalar_lea.vmem %s4, 944
  %v825 = vld [vmem:[%s824] sm:$0xff]
  %vm826 = vcmask 1046528
  %v827 = vsel %vm826, %v825, %v818
  %v828 = vrot.slane %v827, 7
  %s829 = scalar_lea.vmem %s1, 936
  %830 = vst [vmem:[%s829] sm:$0xff] %v828
  %s831 = scalar_lea.vmem %s4, 952
  %v832 = vld [vmem:[%s831] sm:$0xff]
  %vm833 = vcmask 1046528
  %v834 = vsel %vm833, %v832, %v825
  %v835 = vrot.slane %v834, 7
  %s836 = scalar_lea.vmem %s1, 944
  %837 = vst [vmem:[%s836] sm:$0xff] %v835
  %s838 = scalar_lea.vmem %s4, 960
  %v839 = vld [vmem:[%s838] sm:$0xff]
  %vm840 = vcmask 1046528
  %v841 = vsel %vm840, %v839, %v832
  %v842 = vrot.slane %v841, 7
  %s843 = scalar_lea.vmem %s1, 952
  %844 = vst [vmem:[%s843] sm:$0xff] %v842
  %s845 = scalar_lea.vmem %s4, 968
  %v846 = vld [vmem:[%s845] sm:$0xff]
  %vm847 = vcmask 1046528
  %v848 = vsel %vm847, %v846, %v839
  %v849 = vrot.slane %v848, 7
  %s850 = scalar_lea.vmem %s1, 960
  %851 = vst [vmem:[%s850] sm:$0xff] %v849
  %s852 = scalar_lea.vmem %s4, 976
  %v853 = vld [vmem:[%s852] sm:$0xff]
  %vm854 = vcmask 1046528
  %v855 = vsel %vm854, %v853, %v846
  %v856 = vrot.slane %v855, 7
  %s857 = scalar_lea.vmem %s1, 968
  %858 = vst [vmem:[%s857] sm:$0xff] %v856
  %s859 = scalar_lea.vmem %s4, 984
  %v860 = vld [vmem:[%s859] sm:$0xff]
  %vm861 = vcmask 1046528
  %v862 = vsel %vm861, %v860, %v853
  %v863 = vrot.slane %v862, 7
  %s864 = scalar_lea.vmem %s1, 976
  %865 = vst [vmem:[%s864] sm:$0xff] %v863
  %s866 = scalar_lea.vmem %s4, 992
  %v867 = vld [vmem:[%s866] sm:$0xff]
  %vm868 = vcmask 1046528
  %v869 = vsel %vm868, %v867, %v860
  %v870 = vrot.slane %v869, 7
  %s871 = scalar_lea.vmem %s1, 984
  %872 = vst [vmem:[%s871] sm:$0xff] %v870
  %s873 = scalar_lea.vmem %s4, 1000
  %v874 = vld [vmem:[%s873] sm:$0xff]
  %vm875 = vcmask 1046528
  %v876 = vsel %vm875, %v874, %v867
  %v877 = vrot.slane %v876, 7
  %s878 = scalar_lea.vmem %s1, 992
  %879 = vst [vmem:[%s878] sm:$0xff] %v877
  %s880 = scalar_lea.vmem %s4, 1008
  %v881 = vld [vmem:[%s880] sm:$0xff]
  %vm882 = vcmask 1046528
  %v883 = vsel %vm882, %v881, %v874
  %v884 = vrot.slane %v883, 7
  %s885 = scalar_lea.vmem %s1, 1000
  %886 = vst [vmem:[%s885] sm:$0xff] %v884
  %s887 = scalar_lea.vmem %s4, 1016
  %v888 = vld [vmem:[%s887] sm:$0xff]
  %vm889 = vcmask 1046528
  %v890 = vsel %vm889, %v888, %v881
  %v891 = vrot.slane %v890, 7
  %s892 = scalar_lea.vmem %s1, 1008
  %893 = vst [vmem:[%s892] sm:$0xff] %v891
  %s894 = scalar_lea.vmem %s4, 1024
  %v895 = vld [vmem:[%s894] sm:$0xff]
  %vm896 = vcmask 1046528
  %v897 = vsel %vm896, %v895, %v888
  %v898 = vrot.slane %v897, 7
  %s899 = scalar_lea.vmem %s1, 1016
  %900 = vst [vmem:[%s899] sm:$0xff] %v898
  %s901 = scalar_lea.vmem %s4, 1032
  %v902 = vld [vmem:[%s901] sm:$0xff]
  %vm903 = vcmask 1046528
  %v904 = vsel %vm903, %v902, %v895
  %v905 = vrot.slane %v904, 7
  %s906 = scalar_lea.vmem %s1, 1024
  %907 = vst [vmem:[%s906] sm:$0xff] %v905
  %s908 = scalar_lea.vmem %s4, 1040
  %v909 = vld [vmem:[%s908] sm:$0xff]
  %vm910 = vcmask 1046528
  %v911 = vsel %vm910, %v909, %v902
  %v912 = vrot.slane %v911, 7
  %s913 = scalar_lea.vmem %s1, 1032
  %914 = vst [vmem:[%s913] sm:$0xff] %v912
  %s915 = scalar_lea.vmem %s4, 1048
  %v916 = vld [vmem:[%s915] sm:$0xff]
  %vm917 = vcmask 1046528
  %v918 = vsel %vm917, %v916, %v909
  %v919 = vrot.slane %v918, 7
  %s920 = scalar_lea.vmem %s1, 1040
  %921 = vst [vmem:[%s920] sm:$0xff] %v919
  %s922 = scalar_lea.vmem %s4, 1056
  %v923 = vld [vmem:[%s922] sm:$0xff]
  %vm924 = vcmask 1046528
  %v925 = vsel %vm924, %v923, %v916
  %v926 = vrot.slane %v925, 7
  %s927 = scalar_lea.vmem %s1, 1048
  %928 = vst [vmem:[%s927] sm:$0xff] %v926
  %s929 = scalar_lea.vmem %s4, 1064
  %v930 = vld [vmem:[%s929] sm:$0xff]
  %vm931 = vcmask 1046528
  %v932 = vsel %vm931, %v930, %v923
  %v933 = vrot.slane %v932, 7
  %s934 = scalar_lea.vmem %s1, 1056
  %935 = vst [vmem:[%s934] sm:$0xff] %v933
  %s936 = scalar_lea.vmem %s4, 1072
  %v937 = vld [vmem:[%s936] sm:$0xff]
  %vm938 = vcmask 1046528
  %v939 = vsel %vm938, %v937, %v930
  %v940 = vrot.slane %v939, 7
  %s941 = scalar_lea.vmem %s1, 1064
  %942 = vst [vmem:[%s941] sm:$0xff] %v940
  %s943 = scalar_lea.vmem %s4, 1080
  %v944 = vld [vmem:[%s943] sm:$0xff]
  %vm945 = vcmask 1046528
  %v946 = vsel %vm945, %v944, %v937
  %v947 = vrot.slane %v946, 7
  %s948 = scalar_lea.vmem %s1, 1072
  %949 = vst [vmem:[%s948] sm:$0xff] %v947
  %s950 = scalar_lea.vmem %s4, 1088
  %v951 = vld [vmem:[%s950] sm:$0xff]
  %vm952 = vcmask 1046528
  %v953 = vsel %vm952, %v951, %v944
  %v954 = vrot.slane %v953, 7
  %s955 = scalar_lea.vmem %s1, 1080
  %956 = vst [vmem:[%s955] sm:$0xff] %v954
  %s957 = scalar_lea.vmem %s4, 1096
  %v958 = vld [vmem:[%s957] sm:$0xff]
  %vm959 = vcmask 1046528
  %v960 = vsel %vm959, %v958, %v951
  %v961 = vrot.slane %v960, 7
  %s962 = scalar_lea.vmem %s1, 1088
  %963 = vst [vmem:[%s962] sm:$0xff] %v961
  %s964 = scalar_lea.vmem %s4, 1104
  %v965 = vld [vmem:[%s964] sm:$0xff]
  %vm966 = vcmask 1046528
  %v967 = vsel %vm966, %v965, %v958
  %v968 = vrot.slane %v967, 7
  %s969 = scalar_lea.vmem %s1, 1096
  %970 = vst [vmem:[%s969] sm:$0xff] %v968
  %s971 = scalar_lea.vmem %s4, 1112
  %v972 = vld [vmem:[%s971] sm:$0xff]
  %vm973 = vcmask 1046528
  %v974 = vsel %vm973, %v972, %v965
  %v975 = vrot.slane %v974, 7
  %s976 = scalar_lea.vmem %s1, 1104
  %977 = vst [vmem:[%s976] sm:$0xff] %v975
  %s978 = scalar_lea.vmem %s4, 1120
  %v979 = vld [vmem:[%s978] sm:$0xff]
  %vm980 = vcmask 1046528
  %v981 = vsel %vm980, %v979, %v972
  %v982 = vrot.slane %v981, 7
  %s983 = scalar_lea.vmem %s1, 1112
  %984 = vst [vmem:[%s983] sm:$0xff] %v982
  %s985 = scalar_lea.vmem %s4, 1128
  %v986 = vld [vmem:[%s985] sm:$0xff]
  %vm987 = vcmask 1046528
  %v988 = vsel %vm987, %v986, %v979
  %v989 = vrot.slane %v988, 7
  %s990 = scalar_lea.vmem %s1, 1120
  %991 = vst [vmem:[%s990] sm:$0xff] %v989
  %s992 = scalar_lea.vmem %s4, 1136
  %v993 = vld [vmem:[%s992] sm:$0xff]
  %vm994 = vcmask 1046528
  %v995 = vsel %vm994, %v993, %v986
  %v996 = vrot.slane %v995, 7
  %s997 = scalar_lea.vmem %s1, 1128
  %998 = vst [vmem:[%s997] sm:$0xff] %v996
  %s999 = scalar_lea.vmem %s4, 1144
  %v1000 = vld [vmem:[%s999] sm:$0xff]
  %vm1001 = vcmask 1046528
  %v1002 = vsel %vm1001, %v1000, %v993
  %v1003 = vrot.slane %v1002, 7
  %s1004 = scalar_lea.vmem %s1, 1136
  %1005 = vst [vmem:[%s1004] sm:$0xff] %v1003
  %s1006 = scalar_lea.vmem %s4, 1152
  %v1007 = vld [vmem:[%s1006] sm:$0xff]
  %vm1008 = vcmask 1046528
  %v1009 = vsel %vm1008, %v1007, %v1000
  %v1010 = vrot.slane %v1009, 7
  %s1011 = scalar_lea.vmem %s1, 1144
  %1012 = vst [vmem:[%s1011] sm:$0xff] %v1010
  %s1013 = scalar_lea.vmem %s4, 1160
  %v1014 = vld [vmem:[%s1013] sm:$0xff]
  %vm1015 = vcmask 1046528
  %v1016 = vsel %vm1015, %v1014, %v1007
  %v1017 = vrot.slane %v1016, 7
  %s1018 = scalar_lea.vmem %s1, 1152
  %1019 = vst [vmem:[%s1018] sm:$0xff] %v1017
  %s1020 = scalar_lea.vmem %s4, 1168
  %v1021 = vld [vmem:[%s1020] sm:$0xff]
  %vm1022 = vcmask 1046528
  %v1023 = vsel %vm1022, %v1021, %v1014
  %v1024 = vrot.slane %v1023, 7
  %s1025 = scalar_lea.vmem %s1, 1160
  %1026 = vst [vmem:[%s1025] sm:$0xff] %v1024
  %s1027 = scalar_lea.vmem %s4, 1176
  %v1028 = vld [vmem:[%s1027] sm:$0xff]
  %vm1029 = vcmask 1046528
  %v1030 = vsel %vm1029, %v1028, %v1021
  %v1031 = vrot.slane %v1030, 7
  %s1032 = scalar_lea.vmem %s1, 1168
  %1033 = vst [vmem:[%s1032] sm:$0xff] %v1031
  %s1034 = scalar_lea.vmem %s4, 1184
  %v1035 = vld [vmem:[%s1034] sm:$0xff]
  %vm1036 = vcmask 1046528
  %v1037 = vsel %vm1036, %v1035, %v1028
  %v1038 = vrot.slane %v1037, 7
  %s1039 = scalar_lea.vmem %s1, 1176
  %1040 = vst [vmem:[%s1039] sm:$0xff] %v1038
  %s1041 = scalar_lea.vmem %s4, 1192
  %v1042 = vld [vmem:[%s1041] sm:$0xff]
  %vm1043 = vcmask 1046528
  %v1044 = vsel %vm1043, %v1042, %v1035
  %v1045 = vrot.slane %v1044, 7
  %s1046 = scalar_lea.vmem %s1, 1184
  %1047 = vst [vmem:[%s1046] sm:$0xff] %v1045
  %s1048 = scalar_lea.vmem %s4, 1200
  %v1049 = vld [vmem:[%s1048] sm:$0xff]
  %vm1050 = vcmask 1046528
  %v1051 = vsel %vm1050, %v1049, %v1042
  %v1052 = vrot.slane %v1051, 7
  %s1053 = scalar_lea.vmem %s1, 1192
  %1054 = vst [vmem:[%s1053] sm:$0xff] %v1052
  %s1055 = scalar_lea.vmem %s4, 1208
  %v1056 = vld [vmem:[%s1055] sm:$0xff]
  %vm1057 = vcmask 1046528
  %v1058 = vsel %vm1057, %v1056, %v1049
  %v1059 = vrot.slane %v1058, 7
  %s1060 = scalar_lea.vmem %s1, 1200
  %1061 = vst [vmem:[%s1060] sm:$0xff] %v1059
  %s1062 = scalar_lea.vmem %s4, 1216
  %v1063 = vld [vmem:[%s1062] sm:$0xff]
  %vm1064 = vcmask 1046528
  %v1065 = vsel %vm1064, %v1063, %v1056
  %v1066 = vrot.slane %v1065, 7
  %s1067 = scalar_lea.vmem %s1, 1208
  %1068 = vst [vmem:[%s1067] sm:$0xff] %v1066
  %s1069 = scalar_lea.vmem %s4, 1224
  %v1070 = vld [vmem:[%s1069] sm:$0xff]
  %vm1071 = vcmask 1046528
  %v1072 = vsel %vm1071, %v1070, %v1063
  %v1073 = vrot.slane %v1072, 7
  %s1074 = scalar_lea.vmem %s1, 1216
  %1075 = vst [vmem:[%s1074] sm:$0xff] %v1073
  %s1076 = scalar_lea.vmem %s4, 1232
  %v1077 = vld [vmem:[%s1076] sm:$0xff]
  %vm1078 = vcmask 1046528
  %v1079 = vsel %vm1078, %v1077, %v1070
  %v1080 = vrot.slane %v1079, 7
  %s1081 = scalar_lea.vmem %s1, 1224
  %1082 = vst [vmem:[%s1081] sm:$0xff] %v1080
  %s1083 = scalar_lea.vmem %s4, 1240
  %v1084 = vld [vmem:[%s1083] sm:$0xff]
  %vm1085 = vcmask 1046528
  %v1086 = vsel %vm1085, %v1084, %v1077
  %v1087 = vrot.slane %v1086, 7
  %s1088 = scalar_lea.vmem %s1, 1232
  %1089 = vst [vmem:[%s1088] sm:$0xff] %v1087
  %s1090 = scalar_lea.vmem %s4, 1248
  %v1091 = vld [vmem:[%s1090] sm:$0xff]
  %vm1092 = vcmask 1046528
  %v1093 = vsel %vm1092, %v1091, %v1084
  %v1094 = vrot.slane %v1093, 7
  %s1095 = scalar_lea.vmem %s1, 1240
  %1096 = vst [vmem:[%s1095] sm:$0xff] %v1094
  %s1097 = scalar_lea.vmem %s4, 1256
  %v1098 = vld [vmem:[%s1097] sm:$0xff]
  %vm1099 = vcmask 1046528
  %v1100 = vsel %vm1099, %v1098, %v1091
  %v1101 = vrot.slane %v1100, 7
  %s1102 = scalar_lea.vmem %s1, 1248
  %1103 = vst [vmem:[%s1102] sm:$0xff] %v1101
  %s1104 = scalar_lea.vmem %s4, 1264
  %v1105 = vld [vmem:[%s1104] sm:$0xff]
  %vm1106 = vcmask 1046528
  %v1107 = vsel %vm1106, %v1105, %v1098
  %v1108 = vrot.slane %v1107, 7
  %s1109 = scalar_lea.vmem %s1, 1256
  %1110 = vst [vmem:[%s1109] sm:$0xff] %v1108
  %s1111 = scalar_lea.vmem %s4, 1272
  %v1112 = vld [vmem:[%s1111] sm:$0xff]
  %vm1113 = vcmask 1046528
  %v1114 = vsel %vm1113, %v1112, %v1105
  %v1115 = vrot.slane %v1114, 7
  %s1116 = scalar_lea.vmem %s1, 1264
  %1117 = vst [vmem:[%s1116] sm:$0xff] %v1115
  %s1118 = scalar_lea.vmem %s4, 1280
  %v1119 = vld [vmem:[%s1118] sm:$0xff]
  %vm1120 = vcmask 1046528
  %v1121 = vsel %vm1120, %v1119, %v1112
  %v1122 = vrot.slane %v1121, 7
  %s1123 = scalar_lea.vmem %s1, 1272
  %1124 = vst [vmem:[%s1123] sm:$0xff] %v1122
  %s1125 = scalar_lea.vmem %s4, 1288
  %v1126 = vld [vmem:[%s1125] sm:$0xff]
  %vm1127 = vcmask 1046528
  %v1128 = vsel %vm1127, %v1126, %v1119
  %v1129 = vrot.slane %v1128, 7
  %s1130 = scalar_lea.vmem %s1, 1280
  %1131 = vst [vmem:[%s1130] sm:$0xff] %v1129
  %s1132 = scalar_lea.vmem %s4, 1296
  %v1133 = vld [vmem:[%s1132] sm:$0xff]
  %vm1134 = vcmask 1046528
  %v1135 = vsel %vm1134, %v1133, %v1126
  %v1136 = vrot.slane %v1135, 7
  %s1137 = scalar_lea.vmem %s1, 1288
  %1138 = vst [vmem:[%s1137] sm:$0xff] %v1136
  %s1139 = scalar_lea.vmem %s4, 1304
  %v1140 = vld [vmem:[%s1139] sm:$0xff]
  %vm1141 = vcmask 1046528
  %v1142 = vsel %vm1141, %v1140, %v1133
  %v1143 = vrot.slane %v1142, 7
  %s1144 = scalar_lea.vmem %s1, 1296
  %1145 = vst [vmem:[%s1144] sm:$0xff] %v1143
  %s1146 = scalar_lea.vmem %s4, 1312
  %v1147 = vld [vmem:[%s1146] sm:$0xff]
  %vm1148 = vcmask 1046528
  %v1149 = vsel %vm1148, %v1147, %v1140
  %v1150 = vrot.slane %v1149, 7
  %s1151 = scalar_lea.vmem %s1, 1304
  %1152 = vst [vmem:[%s1151] sm:$0xff] %v1150
  %s1153 = scalar_lea.vmem %s4, 1320
  %v1154 = vld [vmem:[%s1153] sm:$0xff]
  %vm1155 = vcmask 1046528
  %v1156 = vsel %vm1155, %v1154, %v1147
  %v1157 = vrot.slane %v1156, 7
  %s1158 = scalar_lea.vmem %s1, 1312
  %1159 = vst [vmem:[%s1158] sm:$0xff] %v1157
  %s1160 = scalar_lea.vmem %s4, 1328
  %v1161 = vld [vmem:[%s1160] sm:$0xff]
  %vm1162 = vcmask 1046528
  %v1163 = vsel %vm1162, %v1161, %v1154
  %v1164 = vrot.slane %v1163, 7
  %s1165 = scalar_lea.vmem %s1, 1320
  %1166 = vst [vmem:[%s1165] sm:$0xff] %v1164
  %s1167 = scalar_lea.vmem %s4, 1336
  %v1168 = vld [vmem:[%s1167] sm:$0xff]
  %vm1169 = vcmask 1046528
  %v1170 = vsel %vm1169, %v1168, %v1161
  %v1171 = vrot.slane %v1170, 7
  %s1172 = scalar_lea.vmem %s1, 1328
  %1173 = vst [vmem:[%s1172] sm:$0xff] %v1171
  %s1174 = scalar_lea.vmem %s4, 1344
  %v1175 = vld [vmem:[%s1174] sm:$0xff]
  %vm1176 = vcmask 1046528
  %v1177 = vsel %vm1176, %v1175, %v1168
  %v1178 = vrot.slane %v1177, 7
  %s1179 = scalar_lea.vmem %s1, 1336
  %1180 = vst [vmem:[%s1179] sm:$0xff] %v1178
  %s1181 = scalar_lea.vmem %s4, 1352
  %v1182 = vld [vmem:[%s1181] sm:$0xff]
  %vm1183 = vcmask 1046528
  %v1184 = vsel %vm1183, %v1182, %v1175
  %v1185 = vrot.slane %v1184, 7
  %s1186 = scalar_lea.vmem %s1, 1344
  %1187 = vst [vmem:[%s1186] sm:$0xff] %v1185
  %s1188 = scalar_lea.vmem %s4, 1360
  %v1189 = vld [vmem:[%s1188] sm:$0xff]
  %vm1190 = vcmask 1046528
  %v1191 = vsel %vm1190, %v1189, %v1182
  %v1192 = vrot.slane %v1191, 7
  %s1193 = scalar_lea.vmem %s1, 1352
  %1194 = vst [vmem:[%s1193] sm:$0xff] %v1192
  %s1195 = scalar_lea.vmem %s4, 1368
  %v1196 = vld [vmem:[%s1195] sm:$0xff]
  %vm1197 = vcmask 1046528
  %v1198 = vsel %vm1197, %v1196, %v1189
  %v1199 = vrot.slane %v1198, 7
  %s1200 = scalar_lea.vmem %s1, 1360
  %1201 = vst [vmem:[%s1200] sm:$0xff] %v1199
  %s1202 = scalar_lea.vmem %s4, 1376
  %v1203 = vld [vmem:[%s1202] sm:$0xff]
  %vm1204 = vcmask 1046528
  %v1205 = vsel %vm1204, %v1203, %v1196
  %v1206 = vrot.slane %v1205, 7
  %s1207 = scalar_lea.vmem %s1, 1368
  %1208 = vst [vmem:[%s1207] sm:$0xff] %v1206
  %s1209 = scalar_lea.vmem %s4, 1384
  %v1210 = vld [vmem:[%s1209] sm:$0xff]
  %vm1211 = vcmask 1046528
  %v1212 = vsel %vm1211, %v1210, %v1203
  %v1213 = vrot.slane %v1212, 7
  %s1214 = scalar_lea.vmem %s1, 1376
  %1215 = vst [vmem:[%s1214] sm:$0xff] %v1213
  %s1216 = scalar_lea.vmem %s4, 1392
  %v1217 = vld [vmem:[%s1216] sm:$0xff]
  %vm1218 = vcmask 1046528
  %v1219 = vsel %vm1218, %v1217, %v1210
  %v1220 = vrot.slane %v1219, 7
  %s1221 = scalar_lea.vmem %s1, 1384
  %1222 = vst [vmem:[%s1221] sm:$0xff] %v1220
  %s1223 = scalar_lea.vmem %s4, 1400
  %v1224 = vld [vmem:[%s1223] sm:$0xff]
  %vm1225 = vcmask 1046528
  %v1226 = vsel %vm1225, %v1224, %v1217
  %v1227 = vrot.slane %v1226, 7
  %s1228 = scalar_lea.vmem %s1, 1392
  %1229 = vst [vmem:[%s1228] sm:$0xff] %v1227
  %s1230 = scalar_lea.vmem %s4, 1408
  %v1231 = vld [vmem:[%s1230] sm:$0xff]
  %vm1232 = vcmask 1046528
  %v1233 = vsel %vm1232, %v1231, %v1224
  %v1234 = vrot.slane %v1233, 7
  %s1235 = scalar_lea.vmem %s1, 1400
  %1236 = vst [vmem:[%s1235] sm:$0xff] %v1234
  %s1237 = scalar_lea.vmem %s4, 1416
  %v1238 = vld [vmem:[%s1237] sm:$0xff]
  %vm1239 = vcmask 1046528
  %v1240 = vsel %vm1239, %v1238, %v1231
  %v1241 = vrot.slane %v1240, 7
  %s1242 = scalar_lea.vmem %s1, 1408
  %1243 = vst [vmem:[%s1242] sm:$0xff] %v1241
  %s1244 = scalar_lea.vmem %s4, 1424
  %v1245 = vld [vmem:[%s1244] sm:$0xff]
  %vm1246 = vcmask 1046528
  %v1247 = vsel %vm1246, %v1245, %v1238
  %v1248 = vrot.slane %v1247, 7
  %s1249 = scalar_lea.vmem %s1, 1416
  %1250 = vst [vmem:[%s1249] sm:$0xff] %v1248
  %s1251 = scalar_lea.vmem %s4, 1432
  %v1252 = vld [vmem:[%s1251] sm:$0xff]
  %vm1253 = vcmask 1046528
  %v1254 = vsel %vm1253, %v1252, %v1245
  %v1255 = vrot.slane %v1254, 7
  %s1256 = scalar_lea.vmem %s1, 1424
  %1257 = vst [vmem:[%s1256] sm:$0xff] %v1255
  %s1258 = scalar_lea.vmem %s4, 1440
  %v1259 = vld [vmem:[%s1258] sm:$0xff]
  %vm1260 = vcmask 1046528
  %v1261 = vsel %vm1260, %v1259, %v1252
  %v1262 = vrot.slane %v1261, 7
  %s1263 = scalar_lea.vmem %s1, 1432
  %1264 = vst [vmem:[%s1263] sm:$0xff] %v1262
  %s1265 = scalar_lea.vmem %s4, 1448
  %v1266 = vld [vmem:[%s1265] sm:$0xff]
  %vm1267 = vcmask 1046528
  %v1268 = vsel %vm1267, %v1266, %v1259
  %v1269 = vrot.slane %v1268, 7
  %s1270 = scalar_lea.vmem %s1, 1440
  %1271 = vst [vmem:[%s1270] sm:$0xff] %v1269
  %s1272 = scalar_lea.vmem %s4, 1456
  %v1273 = vld [vmem:[%s1272] sm:$0xff]
  %vm1274 = vcmask 1046528
  %v1275 = vsel %vm1274, %v1273, %v1266
  %v1276 = vrot.slane %v1275, 7
  %s1277 = scalar_lea.vmem %s1, 1448
  %1278 = vst [vmem:[%s1277] sm:$0xff] %v1276
  %s1279 = scalar_lea.vmem %s4, 1464
  %v1280 = vld [vmem:[%s1279] sm:$0xff]
  %vm1281 = vcmask 1046528
  %v1282 = vsel %vm1281, %v1280, %v1273
  %v1283 = vrot.slane %v1282, 7
  %s1284 = scalar_lea.vmem %s1, 1456
  %1285 = vst [vmem:[%s1284] sm:$0xff] %v1283
  %s1286 = scalar_lea.vmem %s4, 1472
  %v1287 = vld [vmem:[%s1286] sm:$0xff]
  %vm1288 = vcmask 1046528
  %v1289 = vsel %vm1288, %v1287, %v1280
  %v1290 = vrot.slane %v1289, 7
  %s1291 = scalar_lea.vmem %s1, 1464
  %1292 = vst [vmem:[%s1291] sm:$0xff] %v1290
  %s1293 = scalar_lea.vmem %s4, 1480
  %v1294 = vld [vmem:[%s1293] sm:$0xff]
  %vm1295 = vcmask 1046528
  %v1296 = vsel %vm1295, %v1294, %v1287
  %v1297 = vrot.slane %v1296, 7
  %s1298 = scalar_lea.vmem %s1, 1472
  %1299 = vst [vmem:[%s1298] sm:$0xff] %v1297
  %s1300 = scalar_lea.vmem %s4, 1488
  %v1301 = vld [vmem:[%s1300] sm:$0xff]
  %vm1302 = vcmask 1046528
  %v1303 = vsel %vm1302, %v1301, %v1294
  %v1304 = vrot.slane %v1303, 7
  %s1305 = scalar_lea.vmem %s1, 1480
  %1306 = vst [vmem:[%s1305] sm:$0xff] %v1304
  %s1307 = scalar_lea.vmem %s4, 1496
  %v1308 = vld [vmem:[%s1307] sm:$0xff]
  %vm1309 = vcmask 1046528
  %v1310 = vsel %vm1309, %v1308, %v1301
  %v1311 = vrot.slane %v1310, 7
  %s1312 = scalar_lea.vmem %s1, 1488
  %1313 = vst [vmem:[%s1312] sm:$0xff] %v1311
  %s1314 = scalar_lea.vmem %s4, 1504
  %v1315 = vld [vmem:[%s1314] sm:$0xff]
  %vm1316 = vcmask 1046528
  %v1317 = vsel %vm1316, %v1315, %v1308
  %v1318 = vrot.slane %v1317, 7
  %s1319 = scalar_lea.vmem %s1, 1496
  %1320 = vst [vmem:[%s1319] sm:$0xff] %v1318
  %s1321 = scalar_lea.vmem %s4, 1512
  %v1322 = vld [vmem:[%s1321] sm:$0xff]
  %vm1323 = vcmask 1046528
  %v1324 = vsel %vm1323, %v1322, %v1315
  %v1325 = vrot.slane %v1324, 7
  %s1326 = scalar_lea.vmem %s1, 1504
  %1327 = vst [vmem:[%s1326] sm:$0xff] %v1325
  %s1328 = scalar_lea.vmem %s4, 1520
  %v1329 = vld [vmem:[%s1328] sm:$0xff]
  %vm1330 = vcmask 1046528
  %v1331 = vsel %vm1330, %v1329, %v1322
  %v1332 = vrot.slane %v1331, 7
  %s1333 = scalar_lea.vmem %s1, 1512
  %1334 = vst [vmem:[%s1333] sm:$0xff] %v1332
  %s1335 = scalar_lea.vmem %s4, 1528
  %v1336 = vld [vmem:[%s1335] sm:$0xff]
  %vm1337 = vcmask 1046528
  %v1338 = vsel %vm1337, %v1336, %v1329
  %v1339 = vrot.slane %v1338, 7
  %s1340 = scalar_lea.vmem %s1, 1520
  %1341 = vst [vmem:[%s1340] sm:$0xff] %v1339
  %s1342 = scalar_lea.vmem %s4, 1536
  %v1343 = vld [vmem:[%s1342] sm:$0xff]
  %vm1344 = vcmask 1046528
  %v1345 = vsel %vm1344, %v1343, %v1336
  %v1346 = vrot.slane %v1345, 7
  %s1347 = scalar_lea.vmem %s1, 1528
  %1348 = vst [vmem:[%s1347] sm:$0xff] %v1346

// kernel: blip_retrieval_forward.3
$region0: #{blip_retrieval_forward.3}
  #allocation0 [shape = 'u32[]', space=smem, size = 0x4, offset = 0x4, fixed_abs, tag = 'smem constant byte address 0x4 - core index']
  #allocation1 [shape = 'u32[72,128]{1,0:T(1,128)}', space=vmem, size = 0x9000, scoped, tag = 'internal scratch']
  %s0 = inlined_call_operand.vmem [shape: f32[2872,128], index: 0, kind: input, shape index: {}]
  %s1 = inlined_call_operand.vmem [shape: f32[2872,128], index: 1, kind: input, shape index: {}]
  %s2 = inlined_call_operand.vmem [shape: f32[2872,128], index: 2, kind: output, shape index: {}]
  %s3 = sld [smem:[#allocation0]]
  $region18: #{blip_retrieval_forward.3} parent=0
    _
  %s5 = ssub.s32 1, %s3
  %s6 = scalar_select 0, %s5, %s3
  // Predicated region
  $region2: #{blip_retrieval_forward.3} parent=0 // pred_check
    _
  $region3: #{blip_retrieval_forward.3} parent=0 // pred_check_branch
    %8 = sbr.rel (0) target = $region5
  $region4: #{blip_retrieval_forward.3} parent=0 // pred_region
    _
  $region5: #{blip_retrieval_forward.3} parent=0 // pred_fallthru
    _
  // Predicated region
  $region6: #{blip_retrieval_forward.3} parent=0 // pred_check
    _
  $region7: #{blip_retrieval_forward.3} parent=0 // pred_check_branch
    %10 = sbr.rel (0) target = $region9
  $region8: #{blip_retrieval_forward.3} parent=0 // pred_region
    _
  $region9: #{blip_retrieval_forward.3} parent=0 // pred_fallthru
    _
  %v11 = vld [vmem:[%s0] sm:$0xff]
  %v12 = vld [vmem:[%s0 + $0x8] sm:$0xff]
  %v13 = vld [vmem:[%s0 + $0x10] sm:$0xff]
  %v14 = vld [vmem:[%s0 + $0x18] sm:$0xff]
  %v15 = vld [vmem:[%s0 + $0x20] sm:$0xff]
  %v16 = vld [vmem:[%s0 + $0x28] sm:$0xff]
  %v17 = vld [vmem:[%s0 + $0x30] sm:$0xff]
  %v18 = vld [vmem:[%s0 + $0x38] sm:$0xff]
  %v19 = vld [vmem:[%s0 + $0x40] sm:$0xff]
  %v20 = vld [vmem:[%s0 + $0x48] sm:$0xff]
  %v21 = vld [vmem:[%s0 + $0x50] sm:$0xff]
  %v22 = vld [vmem:[%s0 + $0x58] sm:$0xff]
  %v23 = vld [vmem:[%s0 + $0x60] sm:$0xff]
  %v24 = vld [vmem:[%s0 + $0x68] sm:$0xff]
  %v25 = vld [vmem:[%s0 + $0x70] sm:$0xff]
  %v26 = vld [vmem:[%s0 + $0x78] sm:$0xff]
  %v27 = vld [vmem:[%s0 + $0x80] sm:$0xff]
  %v28 = vld [vmem:[%s0 + $0x88] sm:$0xff]
  %v29 = vld [vmem:[%s0 + $0x90] sm:$0xff]
  %v30 = vld [vmem:[%s0 + $0x98] sm:$0xff]
  %v31 = vld [vmem:[%s0 + $0xa0] sm:$0xff]
  %v32 = vld [vmem:[%s0 + $0xa8] sm:$0xff]
  %v33 = vld [vmem:[%s0 + $0xb0] sm:$0xff]
  %v34 = vld [vmem:[%s0 + $0xb8] sm:$0xff]
  %v35 = vld [vmem:[%s0 + $0xc0] sm:$0xff]
  %v36 = vld [vmem:[%s0 + $0xc8] sm:$0xff]
  %v37 = vld [vmem:[%s0 + $0xd0] sm:$0xff]
  %v38 = vld [vmem:[%s0 + $0xd8] sm:$0xff]
  %v39 = vld [vmem:[%s0 + $0xe0] sm:$0xff]
  %v40 = vld [vmem:[%s0 + $0xe8] sm:$0xff]
  %v41 = vld [vmem:[%s0 + $0xf0] sm:$0xff]
  %v42 = vld [vmem:[%s0 + $0xf8] sm:$0xff]
  %v43 = vld [vmem:[%s0 + $0x100] sm:$0xff]
  %v44 = vld [vmem:[%s0 + $0x108] sm:$0xff]
  %v45 = vld [vmem:[%s0 + $0x110] sm:$0xff]
  %v46 = vld [vmem:[%s0 + $0x118] sm:$0xff]
  %v47 = vld [vmem:[%s0 + $0x120] sm:$0xff]
  %v48 = vld [vmem:[%s0 + $0x128] sm:$0xff]
  %v49 = vld [vmem:[%s0 + $0x130] sm:$0xff]
  %v50 = vld [vmem:[%s0 + $0x138] sm:$0xff]
  %v51 = vld [vmem:[%s0 + $0x140] sm:$0xff]
  %v52 = vld [vmem:[%s0 + $0x148] sm:$0xff]
  %v53 = vld [vmem:[%s0 + $0x150] sm:$0xff]
  %v54 = vld [vmem:[%s0 + $0x158] sm:$0xff]
  %v55 = vld [vmem:[%s0 + $0x160] sm:$0xff]
  %v56 = vld [vmem:[%s0 + $0x168] sm:$0xff]
  %v57 = vld [vmem:[%s0 + $0x170] sm:$0xff]
  %v58 = vld [vmem:[%s0 + $0x178] sm:$0xff]
  %v59 = vld [vmem:[%s0 + $0x180] sm:$0xff]
  %v60 = vld [vmem:[%s0 + $0x188] sm:$0xff]
  %v61 = vld [vmem:[%s0 + $0x190] sm:$0xff]
  %v62 = vld [vmem:[%s0 + $0x198] sm:$0xff]
  %v63 = vld [vmem:[%s0 + $0x1a0] sm:$0xff]
  %v64 = vld [vmem:[%s0 + $0x1a8] sm:$0xff]
  %v65 = vld [vmem:[%s0 + $0x1b0] sm:$0xff]
  %v66 = vld [vmem:[%s0 + $0x1b8] sm:$0xff]
  %v67 = vld [vmem:[%s0 + $0x1c0] sm:$0xff]
  %v68 = vld [vmem:[%s0 + $0x1c8] sm:$0xff]
  %v69 = vld [vmem:[%s0 + $0x1d0] sm:$0xff]
  %v70 = vld [vmem:[%s0 + $0x1d8] sm:$0xff]
  %v71 = vld [vmem:[%s0 + $0x1e0] sm:$0xff]
  %v72 = vld [vmem:[%s0 + $0x1e8] sm:$0xff]
  %v73 = vld [vmem:[%s0 + $0x1f0] sm:$0xff]
  %v74 = vld [vmem:[%s0 + $0x1f8] sm:$0xff]
  %v75 = vld [vmem:[%s0 + $0x200] sm:$0xff]
  %v76 = vld [vmem:[%s0 + $0x208] sm:$0xff]
  %v77 = vld [vmem:[%s0 + $0x210] sm:$0xff]
  %v78 = vld [vmem:[%s0 + $0x218] sm:$0xff]
  %v79 = vld [vmem:[%s0 + $0x220] sm:$0xff]
  %v80 = vld [vmem:[%s0 + $0x228] sm:$0xff]
  %v81 = vld [vmem:[%s0 + $0x230] sm:$0xff]
  %v82 = vld [vmem:[%s0 + $0x238] sm:$0xff]
  %v83 = vld [vmem:[%s0 + $0x240] sm:$0xff]
  %v84 = vld [vmem:[%s0 + $0x248] sm:$0xff]
  %v85 = vld [vmem:[%s0 + $0x250] sm:$0xff]
  %v86 = vld [vmem:[%s0 + $0x258] sm:$0xff]
  %v87 = vld [vmem:[%s0 + $0x260] sm:$0xff]
  %v88 = vld [vmem:[%s0 + $0x268] sm:$0xff]
  %v89 = vld [vmem:[%s0 + $0x270] sm:$0xff]
  %v90 = vld [vmem:[%s0 + $0x278] sm:$0xff]
  %v91 = vld [vmem:[%s0 + $0x280] sm:$0xff]
  %v92 = vld [vmem:[%s0 + $0x288] sm:$0xff]
  %v93 = vld [vmem:[%s0 + $0x290] sm:$0xff]
  %v94 = vld [vmem:[%s0 + $0x298] sm:$0xff]
  %v95 = vld [vmem:[%s0 + $0x2a0] sm:$0xff]
  %v96 = vld [vmem:[%s0 + $0x2a8] sm:$0xff]
  %v97 = vld [vmem:[%s0 + $0x2b0] sm:$0xff]
  %v98 = vld [vmem:[%s0 + $0x2b8] sm:$0xff]
  %v99 = vld [vmem:[%s0 + $0x2c0] sm:$0xff]
  %v100 = vld [vmem:[%s0 + $0x2c8] sm:$0xff]
  %v101 = vld [vmem:[%s0 + $0x2d0] sm:$0xff]
  %v102 = vld [vmem:[%s0 + $0x2d8] sm:$0xff]
  %v103 = vld [vmem:[%s0 + $0x2e0] sm:$0xff]
  %v104 = vld [vmem:[%s0 + $0x2e8] sm:$0xff]
  %v105 = vld [vmem:[%s0 + $0x2f0] sm:$0xff]
  %v106 = vld [vmem:[%s0 + $0x2f8] sm:$0xff]
  %v107 = vld [vmem:[%s0 + $0x300] sm:$0xff]
  %v108 = vld [vmem:[%s0 + $0x308] sm:$0xff]
  %v109 = vld [vmem:[%s0 + $0x310] sm:$0xff]
  %v110 = vld [vmem:[%s0 + $0x318] sm:$0xff]
  %v111 = vld [vmem:[%s0 + $0x320] sm:$0xff]
  %v112 = vld [vmem:[%s0 + $0x328] sm:$0xff]
  %v113 = vld [vmem:[%s0 + $0x330] sm:$0xff]
  %v114 = vld [vmem:[%s0 + $0x338] sm:$0xff]
  %v115 = vld [vmem:[%s0 + $0x340] sm:$0xff]
  %v116 = vld [vmem:[%s0 + $0x348] sm:$0xff]
  %v117 = vld [vmem:[%s0 + $0x350] sm:$0xff]
  %v118 = vld [vmem:[%s0 + $0x358] sm:$0xff]
  %v119 = vld [vmem:[%s0 + $0x360] sm:$0xff]
  %v120 = vld [vmem:[%s0 + $0x368] sm:$0xff]
  %v121 = vld [vmem:[%s0 + $0x370] sm:$0xff]
  %v122 = vld [vmem:[%s0 + $0x378] sm:$0xff]
  %v123 = vld [vmem:[%s0 + $0x380] sm:$0xff]
  %v124 = vld [vmem:[%s0 + $0x388] sm:$0xff]
  %v125 = vld [vmem:[%s0 + $0x390] sm:$0xff]
  %v126 = vld [vmem:[%s0 + $0x398] sm:$0xff]
  %v127 = vld [vmem:[%s0 + $0x3a0] sm:$0xff]
  %v128 = vld [vmem:[%s0 + $0x3a8] sm:$0xff]
  %v129 = vld [vmem:[%s0 + $0x3b0] sm:$0xff]
  %v130 = vld [vmem:[%s0 + $0x3b8] sm:$0xff]
  %v131 = vld [vmem:[%s0 + $0x3c0] sm:$0xff]
  %v132 = vld [vmem:[%s0 + $0x3c8] sm:$0xff]
  %v133 = vld [vmem:[%s0 + $0x3d0] sm:$0xff]
  %v134 = vld [vmem:[%s0 + $0x3d8] sm:$0xff]
  %v135 = vld [vmem:[%s0 + $0x3e0] sm:$0xff]
  %v136 = vld [vmem:[%s0 + $0x3e8] sm:$0xff]
  %v137 = vld [vmem:[%s0 + $0x3f0] sm:$0xff]
  %v138 = vld [vmem:[%s0 + $0x3f8] sm:$0xff]
  %v139 = vld [vmem:[%s0 + $0x400] sm:$0xff]
  %v140 = vld [vmem:[%s0 + $0x408] sm:$0xff]
  %v141 = vld [vmem:[%s0 + $0x410] sm:$0xff]
  %v142 = vld [vmem:[%s0 + $0x418] sm:$0xff]
  %v143 = vld [vmem:[%s0 + $0x420] sm:$0xff]
  %v144 = vld [vmem:[%s0 + $0x428] sm:$0xff]
  %v145 = vld [vmem:[%s0 + $0x430] sm:$0xff]
  %v146 = vld [vmem:[%s0 + $0x438] sm:$0xff]
  %v147 = vld [vmem:[%s0 + $0x440] sm:$0xff]
  %v148 = vld [vmem:[%s0 + $0x448] sm:$0xff]
  %v149 = vld [vmem:[%s0 + $0x450] sm:$0xff]
  %v150 = vld [vmem:[%s0 + $0x458] sm:$0xff]
  %v151 = vld [vmem:[%s0 + $0x460] sm:$0xff]
  %v152 = vld [vmem:[%s0 + $0x468] sm:$0xff]
  %v153 = vld [vmem:[%s0 + $0x470] sm:$0xff]
  %v154 = vld [vmem:[%s0 + $0x478] sm:$0xff]
  %v155 = vld [vmem:[%s0 + $0x480] sm:$0xff]
  %v156 = vld [vmem:[%s0 + $0x488] sm:$0xff]
  %v157 = vld [vmem:[%s0 + $0x490] sm:$0xff]
  %v158 = vld [vmem:[%s0 + $0x498] sm:$0xff]
  %v159 = vld [vmem:[%s0 + $0x4a0] sm:$0xff]
  %v160 = vld [vmem:[%s0 + $0x4a8] sm:$0xff]
  %v161 = vld [vmem:[%s0 + $0x4b0] sm:$0xff]
  %v162 = vld [vmem:[%s0 + $0x4b8] sm:$0xff]
  %v163 = vld [vmem:[%s0 + $0x4c0] sm:$0xff]
  %v164 = vld [vmem:[%s0 + $0x4c8] sm:$0xff]
  %v165 = vld [vmem:[%s0 + $0x4d0] sm:$0xff]
  %v166 = vld [vmem:[%s0 + $0x4d8] sm:$0xff]
  %v167 = vld [vmem:[%s0 + $0x4e0] sm:$0xff]
  %v168 = vld [vmem:[%s0 + $0x4e8] sm:$0xff]
  %v169 = vld [vmem:[%s0 + $0x4f0] sm:$0xff]
  %v170 = vld [vmem:[%s0 + $0x4f8] sm:$0xff]
  %v171 = vld [vmem:[%s0 + $0x500] sm:$0xff]
  %v172 = vld [vmem:[%s0 + $0x508] sm:$0xff]
  %v173 = vld [vmem:[%s0 + $0x510] sm:$0xff]
  %v174 = vld [vmem:[%s0 + $0x518] sm:$0xff]
  %v175 = vld [vmem:[%s0 + $0x520] sm:$0xff]
  %v176 = vld [vmem:[%s0 + $0x528] sm:$0xff]
  %v177 = vld [vmem:[%s0 + $0x530] sm:$0xff]
  %v178 = vld [vmem:[%s0 + $0x538] sm:$0xff]
  %v179 = vld [vmem:[%s0 + $0x540] sm:$0xff]
  %v180 = vld [vmem:[%s0 + $0x548] sm:$0xff]
  %v181 = vld [vmem:[%s0 + $0x550] sm:$0xff]
  %v182 = vld [vmem:[%s0 + $0x558] sm:$0xff]
  %v183 = vld [vmem:[%s0 + $0x560] sm:$0xff]
  %v184 = vld [vmem:[%s0 + $0x568] sm:$0xff]
  %v185 = vld [vmem:[%s0 + $0x570] sm:$0xff]
  %v186 = vld [vmem:[%s0 + $0x578] sm:$0xff]
  %v187 = vld [vmem:[%s0 + $0x580] sm:$0xff]
  %v188 = vld [vmem:[%s0 + $0x588] sm:$0xff]
  %v189 = vld [vmem:[%s0 + $0x590] sm:$0xff]
  %v190 = vld [vmem:[%s0 + $0x598] sm:$0xff]
  %v191 = vld [vmem:[%s0 + $0x5a0] sm:$0xff]
  %v192 = vld [vmem:[%s0 + $0x5a8] sm:$0xff]
  %v193 = vld [vmem:[%s0 + $0x5b0] sm:$0xff]
  %v194 = vld [vmem:[%s0 + $0x5b8] sm:$0xff]
  %v195 = vld [vmem:[%s0 + $0x5c0] sm:$0xff]
  %v196 = vld [vmem:[%s0 + $0x5c8] sm:$0xff]
  %v197 = vld [vmem:[%s0 + $0x5d0] sm:$0xff]
  %v198 = vld [vmem:[%s0 + $0x5d8] sm:$0xff]
  %v199 = vld [vmem:[%s0 + $0x5e0] sm:$0xff]
  %v200 = vld [vmem:[%s0 + $0x5e8] sm:$0xff]
  %v201 = vld [vmem:[%s0 + $0x5f0] sm:$0xff]
  %v202 = vld [vmem:[%s0 + $0x5f8] sm:$0xff]
  %v203 = vld [vmem:[%s0 + $0x600] sm:$0xff]
  %v204 = vld [vmem:[%s0 + $0x608] sm:$0xff]
  %v205 = vld [vmem:[%s0 + $0x610] sm:$0xff]
  %v206 = vld [vmem:[%s0 + $0x618] sm:$0xff]
  %v207 = vld [vmem:[%s0 + $0x620] sm:$0xff]
  %v208 = vld [vmem:[%s0 + $0x628] sm:$0xff]
  %v209 = vld [vmem:[%s0 + $0x630] sm:$0xff]
  %v210 = vld [vmem:[%s0 + $0x638] sm:$0xff]
  %v211 = vld [vmem:[%s0 + $0x640] sm:$0xff]
  %v212 = vld [vmem:[%s0 + $0x648] sm:$0xff]
  %v213 = vld [vmem:[%s0 + $0x650] sm:$0xff]
  %v214 = vld [vmem:[%s0 + $0x658] sm:$0xff]
  %v215 = vld [vmem:[%s0 + $0x660] sm:$0xff]
  %v216 = vld [vmem:[%s0 + $0x668] sm:$0xff]
  %v217 = vld [vmem:[%s0 + $0x670] sm:$0xff]
  %v218 = vld [vmem:[%s0 + $0x678] sm:$0xff]
  %v219 = vld [vmem:[%s0 + $0x680] sm:$0xff]
  %v220 = vld [vmem:[%s0 + $0x688] sm:$0xff]
  %v221 = vld [vmem:[%s0 + $0x690] sm:$0xff]
  %v222 = vld [vmem:[%s0 + $0x698] sm:$0xff]
  %v223 = vld [vmem:[%s0 + $0x6a0] sm:$0xff]
  %v224 = vld [vmem:[%s0 + $0x6a8] sm:$0xff]
  %v225 = vld [vmem:[%s0 + $0x6b0] sm:$0xff]
  %v226 = vld [vmem:[%s0 + $0x6b8] sm:$0xff]
  %v227 = vld [vmem:[%s0 + $0x6c0] sm:$0xff]
  %v228 = vld [vmem:[%s0 + $0x6c8] sm:$0xff]
  %v229 = vld [vmem:[%s0 + $0x6d0] sm:$0xff]
  %v230 = vld [vmem:[%s0 + $0x6d8] sm:$0xff]
  %v231 = vld [vmem:[%s0 + $0x6e0] sm:$0xff]
  %v232 = vld [vmem:[%s0 + $0x6e8] sm:$0xff]
  %v233 = vld [vmem:[%s0 + $0x6f0] sm:$0xff]
  %v234 = vld [vmem:[%s0 + $0x6f8] sm:$0xff]
  %v235 = vld [vmem:[%s0 + $0x700] sm:$0xff]
  %v236 = vld [vmem:[%s0 + $0x708] sm:$0xff]
  %v237 = vld [vmem:[%s0 + $0x710] sm:$0xff]
  %v238 = vld [vmem:[%s0 + $0x718] sm:$0xff]
  %v239 = vld [vmem:[%s0 + $0x720] sm:$0xff]
  %v240 = vld [vmem:[%s0 + $0x728] sm:$0xff]
  %v241 = vld [vmem:[%s0 + $0x730] sm:$0xff]
  %v242 = vld [vmem:[%s0 + $0x738] sm:$0xff]
  %v243 = vld [vmem:[%s0 + $0x740] sm:$0xff]
  %v244 = vld [vmem:[%s0 + $0x748] sm:$0xff]
  %v245 = vld [vmem:[%s0 + $0x750] sm:$0xff]
  %v246 = vld [vmem:[%s0 + $0x758] sm:$0xff]
  %v247 = vld [vmem:[%s0 + $0x760] sm:$0xff]
  %v248 = vld [vmem:[%s0 + $0x768] sm:$0xff]
  %v249 = vld [vmem:[%s0 + $0x770] sm:$0xff]
  %v250 = vld [vmem:[%s0 + $0x778] sm:$0xff]
  %v251 = vld [vmem:[%s0 + $0x780] sm:$0xff]
  %v252 = vld [vmem:[%s0 + $0x788] sm:$0xff]
  %v253 = vld [vmem:[%s0 + $0x790] sm:$0xff]
  %v254 = vld [vmem:[%s0 + $0x798] sm:$0xff]
  %v255 = vld [vmem:[%s0 + $0x7a0] sm:$0xff]
  %v256 = vld [vmem:[%s0 + $0x7a8] sm:$0xff]
  %v257 = vld [vmem:[%s0 + $0x7b0] sm:$0xff]
  %v258 = vld [vmem:[%s0 + $0x7b8] sm:$0xff]
  %v259 = vld [vmem:[%s0 + $0x7c0] sm:$0xff]
  %v260 = vld [vmem:[%s0 + $0x7c8] sm:$0xff]
  %v261 = vld [vmem:[%s0 + $0x7d0] sm:$0xff]
  %v262 = vld [vmem:[%s0 + $0x7d8] sm:$0xff]
  %v263 = vld [vmem:[%s0 + $0x7e0] sm:$0xff]
  %v264 = vld [vmem:[%s0 + $0x7e8] sm:$0xff]
  %v265 = vld [vmem:[%s0 + $0x7f0] sm:$0xff]
  %v266 = vld [vmem:[%s0 + $0x7f8] sm:$0xff]
  %v267 = vld [vmem:[%s0 + $0x800] sm:$0xff]
  %v268 = vld [vmem:[%s0 + $0x808] sm:$0xff]
  %v269 = vld [vmem:[%s0 + $0x810] sm:$0xff]
  %v270 = vld [vmem:[%s0 + $0x818] sm:$0xff]
  %v271 = vld [vmem:[%s0 + $0x820] sm:$0xff]
  %v272 = vld [vmem:[%s0 + $0x828] sm:$0xff]
  %v273 = vld [vmem:[%s0 + $0x830] sm:$0xff]
  %v274 = vld [vmem:[%s0 + $0x838] sm:$0xff]
  %v275 = vld [vmem:[%s0 + $0x840] sm:$0xff]
  %v276 = vld [vmem:[%s0 + $0x848] sm:$0xff]
  %v277 = vld [vmem:[%s0 + $0x850] sm:$0xff]
  %v278 = vld [vmem:[%s0 + $0x858] sm:$0xff]
  %v279 = vld [vmem:[%s0 + $0x860] sm:$0xff]
  %v280 = vld [vmem:[%s0 + $0x868] sm:$0xff]
  %v281 = vld [vmem:[%s0 + $0x870] sm:$0xff]
  %v282 = vld [vmem:[%s0 + $0x878] sm:$0xff]
  %v283 = vld [vmem:[%s0 + $0x880] sm:$0xff]
  %v284 = vld [vmem:[%s0 + $0x888] sm:$0xff]
  %v285 = vld [vmem:[%s0 + $0x890] sm:$0xff]
  %v286 = vld [vmem:[%s0 + $0x898] sm:$0xff]
  %v287 = vld [vmem:[%s0 + $0x8a0] sm:$0xff]
  %v288 = vld [vmem:[%s0 + $0x8a8] sm:$0xff]
  %v289 = vld [vmem:[%s0 + $0x8b0] sm:$0xff]
  %v290 = vld [vmem:[%s0 + $0x8b8] sm:$0xff]
  %v291 = vld [vmem:[%s0 + $0x8c0] sm:$0xff]
  %v292 = vld [vmem:[%s0 + $0x8c8] sm:$0xff]
  %v293 = vld [vmem:[%s0 + $0x8d0] sm:$0xff]
  %v294 = vld [vmem:[%s0 + $0x8d8] sm:$0xff]
  %v295 = vld [vmem:[%s0 + $0x8e0] sm:$0xff]
  %v296 = vld [vmem:[%s0 + $0x8e8] sm:$0xff]
  %v297 = vld [vmem:[%s0 + $0x8f0] sm:$0xff]
  %v298 = vld [vmem:[%s0 + $0x8f8] sm:$0xff]
  %v299 = vld [vmem:[%s0 + $0x900] sm:$0xff]
  %v300 = vld [vmem:[%s0 + $0x908] sm:$0xff]
  %v301 = vld [vmem:[%s0 + $0x910] sm:$0xff]
  %v302 = vld [vmem:[%s0 + $0x918] sm:$0xff]
  %v303 = vld [vmem:[%s0 + $0x920] sm:$0xff]
  %v304 = vld [vmem:[%s0 + $0x928] sm:$0xff]
  %v305 = vld [vmem:[%s0 + $0x930] sm:$0xff]
  %v306 = vld [vmem:[%s0 + $0x938] sm:$0xff]
  %v307 = vld [vmem:[%s0 + $0x940] sm:$0xff]
  %v308 = vld [vmem:[%s0 + $0x948] sm:$0xff]
  %v309 = vld [vmem:[%s0 + $0x950] sm:$0xff]
  %v310 = vld [vmem:[%s0 + $0x958] sm:$0xff]
  %v311 = vld [vmem:[%s0 + $0x960] sm:$0xff]
  %v312 = vld [vmem:[%s0 + $0x968] sm:$0xff]
  %v313 = vld [vmem:[%s0 + $0x970] sm:$0xff]
  %v314 = vld [vmem:[%s0 + $0x978] sm:$0xff]
  %v315 = vld [vmem:[%s0 + $0x980] sm:$0xff]
  %v316 = vld [vmem:[%s0 + $0x988] sm:$0xff]
  %v317 = vld [vmem:[%s0 + $0x990] sm:$0xff]
  %v318 = vld [vmem:[%s0 + $0x998] sm:$0xff]
  %v319 = vld [vmem:[%s0 + $0x9a0] sm:$0xff]
  %v320 = vld [vmem:[%s0 + $0x9a8] sm:$0xff]
  %v321 = vld [vmem:[%s0 + $0x9b0] sm:$0xff]
  %v322 = vld [vmem:[%s0 + $0x9b8] sm:$0xff]
  %v323 = vld [vmem:[%s0 + $0x9c0] sm:$0xff]
  %v324 = vld [vmem:[%s0 + $0x9c8] sm:$0xff]
  %v325 = vld [vmem:[%s0 + $0x9d0] sm:$0xff]
  %v326 = vld [vmem:[%s0 + $0x9d8] sm:$0xff]
  %v327 = vld [vmem:[%s0 + $0x9e0] sm:$0xff]
  %v328 = vld [vmem:[%s0 + $0x9e8] sm:$0xff]
  %v329 = vld [vmem:[%s0 + $0x9f0] sm:$0xff]
  %v330 = vld [vmem:[%s0 + $0x9f8] sm:$0xff]
  %v331 = vld [vmem:[%s0 + $0xa00] sm:$0xff]
  %v332 = vld [vmem:[%s0 + $0xa08] sm:$0xff]
  %v333 = vld [vmem:[%s0 + $0xa10] sm:$0xff]
  %v334 = vld [vmem:[%s0 + $0xa18] sm:$0xff]
  %v335 = vld [vmem:[%s0 + $0xa20] sm:$0xff]
  %v336 = vld [vmem:[%s0 + $0xa28] sm:$0xff]
  %v337 = vld [vmem:[%s0 + $0xa30] sm:$0xff]
  %v338 = vld [vmem:[%s0 + $0xa38] sm:$0xff]
  %v339 = vld [vmem:[%s0 + $0xa40] sm:$0xff]
  %v340 = vld [vmem:[%s0 + $0xa48] sm:$0xff]
  %v341 = vld [vmem:[%s0 + $0xa50] sm:$0xff]
  %v342 = vld [vmem:[%s0 + $0xa58] sm:$0xff]
  %v343 = vld [vmem:[%s0 + $0xa60] sm:$0xff]
  %v344 = vld [vmem:[%s0 + $0xa68] sm:$0xff]
  %v345 = vld [vmem:[%s0 + $0xa70] sm:$0xff]
  %v346 = vld [vmem:[%s0 + $0xa78] sm:$0xff]
  %v347 = vld [vmem:[%s0 + $0xa80] sm:$0xff]
  %v348 = vld [vmem:[%s0 + $0xa88] sm:$0xff]
  %v349 = vld [vmem:[%s0 + $0xa90] sm:$0xff]
  %v350 = vld [vmem:[%s0 + $0xa98] sm:$0xff]
  %v351 = vld [vmem:[%s0 + $0xaa0] sm:$0xff]
  %v352 = vld [vmem:[%s0 + $0xaa8] sm:$0xff]
  %v353 = vld [vmem:[%s0 + $0xab0] sm:$0xff]
  %v354 = vld [vmem:[%s0 + $0xab8] sm:$0xff]
  %v355 = vld [vmem:[%s0 + $0xac0] sm:$0xff]
  %v356 = vld [vmem:[%s0 + $0xac8] sm:$0xff]
  %v357 = vld [vmem:[%s0 + $0xad0] sm:$0xff]
  %v358 = vld [vmem:[%s0 + $0xad8] sm:$0xff]
  %v359 = vld [vmem:[%s0 + $0xae0] sm:$0xff]
  %v360 = vld [vmem:[%s0 + $0xae8] sm:$0xff]
  %v361 = vld [vmem:[%s0 + $0xaf0] sm:$0xff]
  %v362 = vld [vmem:[%s0 + $0xaf8] sm:$0xff]
  %v363 = vld [vmem:[%s0 + $0xb00] sm:$0xff]
  %v364 = vld [vmem:[%s0 + $0xb08] sm:$0xff]
  %v365 = vld [vmem:[%s0 + $0xb10] sm:$0xff]
  %v366 = vld [vmem:[%s0 + $0xb18] sm:$0xff]
  %v367 = vld [vmem:[%s0 + $0xb20] sm:$0xff]
  %v368 = vld [vmem:[%s0 + $0xb28] sm:$0xff]
  %v369 = vld [vmem:[%s0 + $0xb30] sm:$0xff]
  %v370 = vmul.f32 %v11, 0.995
  %v371 = vmul.f32 %v12, 0.995
  %v372 = vmul.f32 %v13, 0.995
  %v373 = vmul.f32 %v14, 0.995
  %v374 = vmul.f32 %v15, 0.995
  %v375 = vmul.f32 %v16, 0.995
  %v376 = vmul.f32 %v17, 0.995
  %v377 = vmul.f32 %v18, 0.995
  %v378 = vmul.f32 %v19, 0.995
  %v379 = vmul.f32 %v20, 0.995
  %v380 = vmul.f32 %v21, 0.995
  %v381 = vmul.f32 %v22, 0.995
  %v382 = vmul.f32 %v23, 0.995
  %v383 = vmul.f32 %v24, 0.995
  %v384 = vmul.f32 %v25, 0.995
  %v385 = vmul.f32 %v26, 0.995
  %v386 = vmul.f32 %v27, 0.995
  %v387 = vmul.f32 %v28, 0.995
  %v388 = vmul.f32 %v29, 0.995
  %v389 = vmul.f32 %v30, 0.995
  %v390 = vmul.f32 %v31, 0.995
  %v391 = vmul.f32 %v32, 0.995
  %v392 = vmul.f32 %v33, 0.995
  %v393 = vmul.f32 %v34, 0.995
  %v394 = vmul.f32 %v35, 0.995
  %v395 = vmul.f32 %v36, 0.995
  %v396 = vmul.f32 %v37, 0.995
  %v397 = vmul.f32 %v38, 0.995
  %v398 = vmul.f32 %v39, 0.995
  %v399 = vmul.f32 %v40, 0.995
  %v400 = vmul.f32 %v41, 0.995
  %v401 = vmul.f32 %v42, 0.995
  %v402 = vmul.f32 %v43, 0.995
  %v403 = vmul.f32 %v44, 0.995
  %v404 = vmul.f32 %v45, 0.995
  %v405 = vmul.f32 %v46, 0.995
  %v406 = vmul.f32 %v47, 0.995
  %v407 = vmul.f32 %v48, 0.995
  %v408 = vmul.f32 %v49, 0.995
  %v409 = vmul.f32 %v50, 0.995
  %v410 = vmul.f32 %v51, 0.995
  %v411 = vmul.f32 %v52, 0.995
  %v412 = vmul.f32 %v53, 0.995
  %v413 = vmul.f32 %v54, 0.995
  %v414 = vmul.f32 %v55, 0.995
  %v415 = vmul.f32 %v56, 0.995
  %v416 = vmul.f32 %v57, 0.995
  %v417 = vmul.f32 %v58, 0.995
  %v418 = vmul.f32 %v59, 0.995
  %v419 = vmul.f32 %v60, 0.995
  %v420 = vmul.f32 %v61, 0.995
  %v421 = vmul.f32 %v62, 0.995
  %v422 = vmul.f32 %v63, 0.995
  %v423 = vmul.f32 %v64, 0.995
  %v424 = vmul.f32 %v65, 0.995
  %v425 = vmul.f32 %v66, 0.995
  %v426 = vmul.f32 %v67, 0.995
  %v427 = vmul.f32 %v68, 0.995
  %v428 = vmul.f32 %v69, 0.995
  %v429 = vmul.f32 %v70, 0.995
  %v430 = vmul.f32 %v71, 0.995
  %v431 = vmul.f32 %v72, 0.995
  %v432 = vmul.f32 %v73, 0.995
  %v433 = vmul.f32 %v74, 0.995
  %v434 = vmul.f32 %v75, 0.995
  %v435 = vmul.f32 %v76, 0.995
  %v436 = vmul.f32 %v77, 0.995
  %v437 = vmul.f32 %v78, 0.995
  %v438 = vmul.f32 %v79, 0.995
  %v439 = vmul.f32 %v80, 0.995
  %v440 = vmul.f32 %v81, 0.995
  %v441 = vmul.f32 %v82, 0.995
  %v442 = vmul.f32 %v83, 0.995
  %v443 = vmul.f32 %v84, 0.995
  %v444 = vmul.f32 %v85, 0.995
  %v445 = vmul.f32 %v86, 0.995
  %v446 = vmul.f32 %v87, 0.995
  %v447 = vmul.f32 %v88, 0.995
  %v448 = vmul.f32 %v89, 0.995
  %v449 = vmul.f32 %v90, 0.995
  %v450 = vmul.f32 %v91, 0.995
  %v451 = vmul.f32 %v92, 0.995
  %v452 = vmul.f32 %v93, 0.995
  %v453 = vmul.f32 %v94, 0.995
  %v454 = vmul.f32 %v95, 0.995
  %v455 = vmul.f32 %v96, 0.995
  %v456 = vmul.f32 %v97, 0.995
  %v457 = vmul.f32 %v98, 0.995
  %v458 = vmul.f32 %v99, 0.995
  %v459 = vmul.f32 %v100, 0.995
  %v460 = vmul.f32 %v101, 0.995
  %v461 = vmul.f32 %v102, 0.995
  %v462 = vmul.f32 %v103, 0.995
  %v463 = vmul.f32 %v104, 0.995
  %v464 = vmul.f32 %v105, 0.995
  %v465 = vmul.f32 %v106, 0.995
  %v466 = vmul.f32 %v107, 0.995
  %v467 = vmul.f32 %v108, 0.995
  %v468 = vmul.f32 %v109, 0.995
  %v469 = vmul.f32 %v110, 0.995
  %v470 = vmul.f32 %v111, 0.995
  %v471 = vmul.f32 %v112, 0.995
  %v472 = vmul.f32 %v113, 0.995
  %v473 = vmul.f32 %v114, 0.995
  %v474 = vmul.f32 %v115, 0.995
  %v475 = vmul.f32 %v116, 0.995
  %v476 = vmul.f32 %v117, 0.995
  %v477 = vmul.f32 %v118, 0.995
  %v478 = vmul.f32 %v119, 0.995
  %v479 = vmul.f32 %v120, 0.995
  %v480 = vmul.f32 %v121, 0.995
  %v481 = vmul.f32 %v122, 0.995
  %v482 = vmul.f32 %v123, 0.995
  %v483 = vmul.f32 %v124, 0.995
  %v484 = vmul.f32 %v125, 0.995
  %v485 = vmul.f32 %v126, 0.995
  %v486 = vmul.f32 %v127, 0.995
  %v487 = vmul.f32 %v128, 0.995
  %v488 = vmul.f32 %v129, 0.995
  %v489 = vmul.f32 %v130, 0.995
  %v490 = vmul.f32 %v131, 0.995
  %v491 = vmul.f32 %v132, 0.995
  %v492 = vmul.f32 %v133, 0.995
  %v493 = vmul.f32 %v134, 0.995
  %v494 = vmul.f32 %v135, 0.995
  %v495 = vmul.f32 %v136, 0.995
  %v496 = vmul.f32 %v137, 0.995
  %v497 = vmul.f32 %v138, 0.995
  %v498 = vmul.f32 %v139, 0.995
  %v499 = vmul.f32 %v140, 0.995
  %v500 = vmul.f32 %v141, 0.995
  %v501 = vmul.f32 %v142, 0.995
  %v502 = vmul.f32 %v143, 0.995
  %v503 = vmul.f32 %v144, 0.995
  %v504 = vmul.f32 %v145, 0.995
  %v505 = vmul.f32 %v146, 0.995
  %v506 = vmul.f32 %v147, 0.995
  %v507 = vmul.f32 %v148, 0.995
  %v508 = vmul.f32 %v149, 0.995
  %v509 = vmul.f32 %v150, 0.995
  %v510 = vmul.f32 %v151, 0.995
  %v511 = vmul.f32 %v152, 0.995
  %v512 = vmul.f32 %v153, 0.995
  %v513 = vmul.f32 %v154, 0.995
  %v514 = vmul.f32 %v155, 0.995
  %v515 = vmul.f32 %v156, 0.995
  %v516 = vmul.f32 %v157, 0.995
  %v517 = vmul.f32 %v158, 0.995
  %v518 = vmul.f32 %v159, 0.995
  %v519 = vmul.f32 %v160, 0.995
  %v520 = vmul.f32 %v161, 0.995
  %v521 = vmul.f32 %v162, 0.995
  %v522 = vmul.f32 %v163, 0.995
  %v523 = vmul.f32 %v164, 0.995
  %v524 = vmul.f32 %v165, 0.995
  %v525 = vmul.f32 %v166, 0.995
  %v526 = vmul.f32 %v167, 0.995
  %v527 = vmul.f32 %v168, 0.995
  %v528 = vmul.f32 %v169, 0.995
  %v529 = vmul.f32 %v170, 0.995
  %v530 = vmul.f32 %v171, 0.995
  %v531 = vmul.f32 %v172, 0.995
  %v532 = vmul.f32 %v173, 0.995
  %v533 = vmul.f32 %v174, 0.995
  %v534 = vmul.f32 %v175, 0.995
  %v535 = vmul.f32 %v176, 0.995
  %v536 = vmul.f32 %v177, 0.995
  %v537 = vmul.f32 %v178, 0.995
  %v538 = vmul.f32 %v179, 0.995
  %v539 = vmul.f32 %v180, 0.995
  %v540 = vmul.f32 %v181, 0.995
  %v541 = vmul.f32 %v182, 0.995
  %v542 = vmul.f32 %v183, 0.995
  %v543 = vmul.f32 %v184, 0.995
  %v544 = vmul.f32 %v185, 0.995
  %v545 = vmul.f32 %v186, 0.995
  %v546 = vmul.f32 %v187, 0.995
  %v547 = vmul.f32 %v188, 0.995
  %v548 = vmul.f32 %v189, 0.995
  %v549 = vmul.f32 %v190, 0.995
  %v550 = vmul.f32 %v191, 0.995
  %v551 = vmul.f32 %v192, 0.995
  %v552 = vmul.f32 %v193, 0.995
  %v553 = vmul.f32 %v194, 0.995
  %v554 = vmul.f32 %v195, 0.995
  %v555 = vmul.f32 %v196, 0.995
  %v556 = vmul.f32 %v197, 0.995
  %v557 = vmul.f32 %v198, 0.995
  %v558 = vmul.f32 %v199, 0.995
  %v559 = vmul.f32 %v200, 0.995
  %v560 = vmul.f32 %v201, 0.995
  %v561 = vmul.f32 %v202, 0.995
  %v562 = vmul.f32 %v203, 0.995
  %v563 = vmul.f32 %v204, 0.995
  %v564 = vmul.f32 %v205, 0.995
  %v565 = vmul.f32 %v206, 0.995
  %v566 = vmul.f32 %v207, 0.995
  %v567 = vmul.f32 %v208, 0.995
  %v568 = vmul.f32 %v209, 0.995
  %v569 = vmul.f32 %v210, 0.995
  %v570 = vmul.f32 %v211, 0.995
  %v571 = vmul.f32 %v212, 0.995
  %v572 = vmul.f32 %v213, 0.995
  %v573 = vmul.f32 %v214, 0.995
  %v574 = vmul.f32 %v215, 0.995
  %v575 = vmul.f32 %v216, 0.995
  %v576 = vmul.f32 %v217, 0.995
  %v577 = vmul.f32 %v218, 0.995
  %v578 = vmul.f32 %v219, 0.995
  %v579 = vmul.f32 %v220, 0.995
  %v580 = vmul.f32 %v221, 0.995
  %v581 = vmul.f32 %v222, 0.995
  %v582 = vmul.f32 %v223, 0.995
  %v583 = vmul.f32 %v224, 0.995
  %v584 = vmul.f32 %v225, 0.995
  %v585 = vmul.f32 %v226, 0.995
  %v586 = vmul.f32 %v227, 0.995
  %v587 = vmul.f32 %v228, 0.995
  %v588 = vmul.f32 %v229, 0.995
  %v589 = vmul.f32 %v230, 0.995
  %v590 = vmul.f32 %v231, 0.995
  %v591 = vmul.f32 %v232, 0.995
  %v592 = vmul.f32 %v233, 0.995
  %v593 = vmul.f32 %v234, 0.995
  %v594 = vmul.f32 %v235, 0.995
  %v595 = vmul.f32 %v236, 0.995
  %v596 = vmul.f32 %v237, 0.995
  %v597 = vmul.f32 %v238, 0.995
  %v598 = vmul.f32 %v239, 0.995
  %v599 = vmul.f32 %v240, 0.995
  %v600 = vmul.f32 %v241, 0.995
  %v601 = vmul.f32 %v242, 0.995
  %v602 = vmul.f32 %v243, 0.995
  %v603 = vmul.f32 %v244, 0.995
  %v604 = vmul.f32 %v245, 0.995
  %v605 = vmul.f32 %v246, 0.995
  %v606 = vmul.f32 %v247, 0.995
  %v607 = vmul.f32 %v248, 0.995
  %v608 = vmul.f32 %v249, 0.995
  %v609 = vmul.f32 %v250, 0.995
  %v610 = vmul.f32 %v251, 0.995
  %v611 = vmul.f32 %v252, 0.995
  %v612 = vmul.f32 %v253, 0.995
  %v613 = vmul.f32 %v254, 0.995
  %v614 = vmul.f32 %v255, 0.995
  %v615 = vmul.f32 %v256, 0.995
  %v616 = vmul.f32 %v257, 0.995
  %v617 = vmul.f32 %v258, 0.995
  %v618 = vmul.f32 %v259, 0.995
  %v619 = vmul.f32 %v260, 0.995
  %v620 = vmul.f32 %v261, 0.995
  %v621 = vmul.f32 %v262, 0.995
  %v622 = vmul.f32 %v263, 0.995
  %v623 = vmul.f32 %v264, 0.995
  %v624 = vmul.f32 %v265, 0.995
  %v625 = vmul.f32 %v266, 0.995
  %v626 = vmul.f32 %v267, 0.995
  %v627 = vmul.f32 %v268, 0.995
  %v628 = vmul.f32 %v269, 0.995
  %v629 = vmul.f32 %v270, 0.995
  %v630 = vmul.f32 %v271, 0.995
  %v631 = vmul.f32 %v272, 0.995
  %v632 = vmul.f32 %v273, 0.995
  %v633 = vmul.f32 %v274, 0.995
  %v634 = vmul.f32 %v275, 0.995
  %v635 = vmul.f32 %v276, 0.995
  %v636 = vmul.f32 %v277, 0.995
  %v637 = vmul.f32 %v278, 0.995
  %v638 = vmul.f32 %v279, 0.995
  %v639 = vmul.f32 %v280, 0.995
  %v640 = vmul.f32 %v281, 0.995
  %v641 = vmul.f32 %v282, 0.995
  %v642 = vmul.f32 %v283, 0.995
  %v643 = vmul.f32 %v284, 0.995
  %v644 = vmul.f32 %v285, 0.995
  %v645 = vmul.f32 %v286, 0.995
  %v646 = vmul.f32 %v287, 0.995
  %v647 = vmul.f32 %v288, 0.995
  %v648 = vmul.f32 %v289, 0.995
  %v649 = vmul.f32 %v290, 0.995
  %v650 = vmul.f32 %v291, 0.995
  %v651 = vmul.f32 %v292, 0.995
  %v652 = vmul.f32 %v293, 0.995
  %v653 = vmul.f32 %v294, 0.995
  %v654 = vmul.f32 %v295, 0.995
  %v655 = vmul.f32 %v296, 0.995
  %v656 = vmul.f32 %v297, 0.995
  %v657 = vmul.f32 %v298, 0.995
  %v658 = vmul.f32 %v299, 0.995
  %v659 = vmul.f32 %v300, 0.995
  %v660 = vmul.f32 %v301, 0.995
  %v661 = vmul.f32 %v302, 0.995
  %v662 = vmul.f32 %v303, 0.995
  %v663 = vmul.f32 %v304, 0.995
  %v664 = vmul.f32 %v305, 0.995
  %v665 = vmul.f32 %v306, 0.995
  %v666 = vmul.f32 %v307, 0.995
  %v667 = vmul.f32 %v308, 0.995
  %v668 = vmul.f32 %v309, 0.995
  %v669 = vmul.f32 %v310, 0.995
  %v670 = vmul.f32 %v311, 0.995
  %v671 = vmul.f32 %v312, 0.995
  %v672 = vmul.f32 %v313, 0.995
  %v673 = vmul.f32 %v314, 0.995
  %v674 = vmul.f32 %v315, 0.995
  %v675 = vmul.f32 %v316, 0.995
  %v676 = vmul.f32 %v317, 0.995
  %v677 = vmul.f32 %v318, 0.995
  %v678 = vmul.f32 %v319, 0.995
  %v679 = vmul.f32 %v320, 0.995
  %v680 = vmul.f32 %v321, 0.995
  %v681 = vmul.f32 %v322, 0.995
  %v682 = vmul.f32 %v323, 0.995
  %v683 = vmul.f32 %v324, 0.995
  %v684 = vmul.f32 %v325, 0.995
  %v685 = vmul.f32 %v326, 0.995
  %v686 = vmul.f32 %v327, 0.995
  %v687 = vmul.f32 %v328, 0.995
  %v688 = vmul.f32 %v329, 0.995
  %v689 = vmul.f32 %v330, 0.995
  %v690 = vmul.f32 %v331, 0.995
  %v691 = vmul.f32 %v332, 0.995
  %v692 = vmul.f32 %v333, 0.995
  %v693 = vmul.f32 %v334, 0.995
  %v694 = vmul.f32 %v335, 0.995
  %v695 = vmul.f32 %v336, 0.995
  %v696 = vmul.f32 %v337, 0.995
  %v697 = vmul.f32 %v338, 0.995
  %v698 = vmul.f32 %v339, 0.995
  %v699 = vmul.f32 %v340, 0.995
  %v700 = vmul.f32 %v341, 0.995
  %v701 = vmul.f32 %v342, 0.995
  %v702 = vmul.f32 %v343, 0.995
  %v703 = vmul.f32 %v344, 0.995
  %v704 = vmul.f32 %v345, 0.995
  %v705 = vmul.f32 %v346, 0.995
  %v706 = vmul.f32 %v347, 0.995
  %v707 = vmul.f32 %v348, 0.995
  %v708 = vmul.f32 %v349, 0.995
  %v709 = vmul.f32 %v350, 0.995
  %v710 = vmul.f32 %v351, 0.995
  %v711 = vmul.f32 %v352, 0.995
  %v712 = vmul.f32 %v353, 0.995
  %v713 = vmul.f32 %v354, 0.995
  %v714 = vmul.f32 %v355, 0.995
  %v715 = vmul.f32 %v356, 0.995
  %v716 = vmul.f32 %v357, 0.995
  %v717 = vmul.f32 %v358, 0.995
  %v718 = vmul.f32 %v359, 0.995
  %v719 = vmul.f32 %v360, 0.995
  %v720 = vmul.f32 %v361, 0.995
  %v721 = vmul.f32 %v362, 0.995
  %v722 = vmul.f32 %v363, 0.995
  %v723 = vmul.f32 %v364, 0.995
  %v724 = vmul.f32 %v365, 0.995
  %v725 = vmul.f32 %v366, 0.995
  %v726 = vmul.f32 %v367, 0.995
  %v727 = vmul.f32 %v368, 0.995
  %v728 = vmul.f32 %v369, 0.995
  %v729 = vld [vmem:[%s1] sm:$0xff]
  %v730 = vld [vmem:[%s1 + $0x8] sm:$0xff]
  %v731 = vld [vmem:[%s1 + $0x10] sm:$0xff]
  %v732 = vld [vmem:[%s1 + $0x18] sm:$0xff]
  %v733 = vld [vmem:[%s1 + $0x20] sm:$0xff]
  %v734 = vld [vmem:[%s1 + $0x28] sm:$0xff]
  %v735 = vld [vmem:[%s1 + $0x30] sm:$0xff]
  %v736 = vld [vmem:[%s1 + $0x38] sm:$0xff]
  %v737 = vld [vmem:[%s1 + $0x40] sm:$0xff]
  %v738 = vld [vmem:[%s1 + $0x48] sm:$0xff]
  %v739 = vld [vmem:[%s1 + $0x50] sm:$0xff]
  %v740 = vld [vmem:[%s1 + $0x58] sm:$0xff]
  %v741 = vld [vmem:[%s1 + $0x60] sm:$0xff]
  %v742 = vld [vmem:[%s1 + $0x68] sm:$0xff]
  %v743 = vld [vmem:[%s1 + $0x70] sm:$0xff]
  %v744 = vld [vmem:[%s1 + $0x78] sm:$0xff]
  %v745 = vld [vmem:[%s1 + $0x80] sm:$0xff]
  %v746 = vld [vmem:[%s1 + $0x88] sm:$0xff]
  %v747 = vld [vmem:[%s1 + $0x90] sm:$0xff]
  %v748 = vld [vmem:[%s1 + $0x98] sm:$0xff]
  %v749 = vld [vmem:[%s1 + $0xa0] sm:$0xff]
  %v750 = vld [vmem:[%s1 + $0xa8] sm:$0xff]
  %v751 = vld [vmem:[%s1 + $0xb0] sm:$0xff]
  %v752 = vld [vmem:[%s1 + $0xb8] sm:$0xff]
  %v753 = vld [vmem:[%s1 + $0xc0] sm:$0xff]
  %v754 = vld [vmem:[%s1 + $0xc8] sm:$0xff]
  %v755 = vld [vmem:[%s1 + $0xd0] sm:$0xff]
  %v756 = vld [vmem:[%s1 + $0xd8] sm:$0xff]
  %v757 = vld [vmem:[%s1 + $0xe0] sm:$0xff]
  %v758 = vld [vmem:[%s1 + $0xe8] sm:$0xff]
  %v759 = vld [vmem:[%s1 + $0xf0] sm:$0xff]
  %v760 = vld [vmem:[%s1 + $0xf8] sm:$0xff]
  %v761 = vld [vmem:[%s1 + $0x100] sm:$0xff]
  %v762 = vld [vmem:[%s1 + $0x108] sm:$0xff]
  %v763 = vld [vmem:[%s1 + $0x110] sm:$0xff]
  %v764 = vld [vmem:[%s1 + $0x118] sm:$0xff]
  %v765 = vld [vmem:[%s1 + $0x120] sm:$0xff]
  %v766 = vld [vmem:[%s1 + $0x128] sm:$0xff]
  %v767 = vld [vmem:[%s1 + $0x130] sm:$0xff]
  %v768 = vld [vmem:[%s1 + $0x138] sm:$0xff]
  %v769 = vld [vmem:[%s1 + $0x140] sm:$0xff]
  %v770 = vld [vmem:[%s1 + $0x148] sm:$0xff]
  %v771 = vld [vmem:[%s1 + $0x150] sm:$0xff]
  %v772 = vld [vmem:[%s1 + $0x158] sm:$0xff]
  %v773 = vld [vmem:[%s1 + $0x160] sm:$0xff]
  %v774 = vld [vmem:[%s1 + $0x168] sm:$0xff]
  %v775 = vld [vmem:[%s1 + $0x170] sm:$0xff]
  %v776 = vld [vmem:[%s1 + $0x178] sm:$0xff]
  %v777 = vld [vmem:[%s1 + $0x180] sm:$0xff]
  %v778 = vld [vmem:[%s1 + $0x188] sm:$0xff]
  %v779 = vld [vmem:[%s1 + $0x190] sm:$0xff]
  %v780 = vld [vmem:[%s1 + $0x198] sm:$0xff]
  %v781 = vld [vmem:[%s1 + $0x1a0] sm:$0xff]
  %v782 = vld [vmem:[%s1 + $0x1a8] sm:$0xff]
  %v783 = vld [vmem:[%s1 + $0x1b0] sm:$0xff]
  %v784 = vld [vmem:[%s1 + $0x1b8] sm:$0xff]
  %v785 = vld [vmem:[%s1 + $0x1c0] sm:$0xff]
  %v786 = vld [vmem:[%s1 + $0x1c8] sm:$0xff]
  %v787 = vld [vmem:[%s1 + $0x1d0] sm:$0xff]
  %v788 = vld [vmem:[%s1 + $0x1d8] sm:$0xff]
  %v789 = vld [vmem:[%s1 + $0x1e0] sm:$0xff]
  %v790 = vld [vmem:[%s1 + $0x1e8] sm:$0xff]
  %v791 = vld [vmem:[%s1 + $0x1f0] sm:$0xff]
  %v792 = vld [vmem:[%s1 + $0x1f8] sm:$0xff]
  %v793 = vld [vmem:[%s1 + $0x200] sm:$0xff]
  %v794 = vld [vmem:[%s1 + $0x208] sm:$0xff]
  %v795 = vld [vmem:[%s1 + $0x210] sm:$0xff]
  %v796 = vld [vmem:[%s1 + $0x218] sm:$0xff]
  %v797 = vld [vmem:[%s1 + $0x220] sm:$0xff]
  %v798 = vld [vmem:[%s1 + $0x228] sm:$0xff]
  %v799 = vld [vmem:[%s1 + $0x230] sm:$0xff]
  %v800 = vld [vmem:[%s1 + $0x238] sm:$0xff]
  %v801 = vld [vmem:[%s1 + $0x240] sm:$0xff]
  %v802 = vld [vmem:[%s1 + $0x248] sm:$0xff]
  %v803 = vld [vmem:[%s1 + $0x250] sm:$0xff]
  %v804 = vld [vmem:[%s1 + $0x258] sm:$0xff]
  %v805 = vld [vmem:[%s1 + $0x260] sm:$0xff]
  %v806 = vld [vmem:[%s1 + $0x268] sm:$0xff]
  %v807 = vld [vmem:[%s1 + $0x270] sm:$0xff]
  %v808 = vld [vmem:[%s1 + $0x278] sm:$0xff]
  %v809 = vld [vmem:[%s1 + $0x280] sm:$0xff]
  %v810 = vld [vmem:[%s1 + $0x288] sm:$0xff]
  %v811 = vld [vmem:[%s1 + $0x290] sm:$0xff]
  %v812 = vld [vmem:[%s1 + $0x298] sm:$0xff]
  %v813 = vld [vmem:[%s1 + $0x2a0] sm:$0xff]
  %v814 = vld [vmem:[%s1 + $0x2a8] sm:$0xff]
  %v815 = vld [vmem:[%s1 + $0x2b0] sm:$0xff]
  %v816 = vld [vmem:[%s1 + $0x2b8] sm:$0xff]
  %v817 = vld [vmem:[%s1 + $0x2c0] sm:$0xff]
  %v818 = vld [vmem:[%s1 + $0x2c8] sm:$0xff]
  %v819 = vld [vmem:[%s1 + $0x2d0] sm:$0xff]
  %v820 = vld [vmem:[%s1 + $0x2d8] sm:$0xff]
  %v821 = vld [vmem:[%s1 + $0x2e0] sm:$0xff]
  %v822 = vld [vmem:[%s1 + $0x2e8] sm:$0xff]
  %v823 = vld [vmem:[%s1 + $0x2f0] sm:$0xff]
  %v824 = vld [vmem:[%s1 + $0x2f8] sm:$0xff]
  %v825 = vld [vmem:[%s1 + $0x300] sm:$0xff]
  %v826 = vld [vmem:[%s1 + $0x308] sm:$0xff]
  %v827 = vld [vmem:[%s1 + $0x310] sm:$0xff]
  %v828 = vld [vmem:[%s1 + $0x318] sm:$0xff]
  %v829 = vld [vmem:[%s1 + $0x320] sm:$0xff]
  %v830 = vld [vmem:[%s1 + $0x328] sm:$0xff]
  %v831 = vld [vmem:[%s1 + $0x330] sm:$0xff]
  %v832 = vld [vmem:[%s1 + $0x338] sm:$0xff]
  %v833 = vld [vmem:[%s1 + $0x340] sm:$0xff]
  %v834 = vld [vmem:[%s1 + $0x348] sm:$0xff]
  %v835 = vld [vmem:[%s1 + $0x350] sm:$0xff]
  %v836 = vld [vmem:[%s1 + $0x358] sm:$0xff]
  %v837 = vld [vmem:[%s1 + $0x360] sm:$0xff]
  %v838 = vld [vmem:[%s1 + $0x368] sm:$0xff]
  %v839 = vld [vmem:[%s1 + $0x370] sm:$0xff]
  %v840 = vld [vmem:[%s1 + $0x378] sm:$0xff]
  %v841 = vld [vmem:[%s1 + $0x380] sm:$0xff]
  %v842 = vld [vmem:[%s1 + $0x388] sm:$0xff]
  %v843 = vld [vmem:[%s1 + $0x390] sm:$0xff]
  %v844 = vld [vmem:[%s1 + $0x398] sm:$0xff]
  %v845 = vld [vmem:[%s1 + $0x3a0] sm:$0xff]
  %v846 = vld [vmem:[%s1 + $0x3a8] sm:$0xff]
  %v847 = vld [vmem:[%s1 + $0x3b0] sm:$0xff]
  %v848 = vld [vmem:[%s1 + $0x3b8] sm:$0xff]
  %v849 = vld [vmem:[%s1 + $0x3c0] sm:$0xff]
  %v850 = vld [vmem:[%s1 + $0x3c8] sm:$0xff]
  %v851 = vld [vmem:[%s1 + $0x3d0] sm:$0xff]
  %v852 = vld [vmem:[%s1 + $0x3d8] sm:$0xff]
  %v853 = vld [vmem:[%s1 + $0x3e0] sm:$0xff]
  %v854 = vld [vmem:[%s1 + $0x3e8] sm:$0xff]
  %v855 = vld [vmem:[%s1 + $0x3f0] sm:$0xff]
  %v856 = vld [vmem:[%s1 + $0x3f8] sm:$0xff]
  %v857 = vld [vmem:[%s1 + $0x400] sm:$0xff]
  %v858 = vld [vmem:[%s1 + $0x408] sm:$0xff]
  %v859 = vld [vmem:[%s1 + $0x410] sm:$0xff]
  %v860 = vld [vmem:[%s1 + $0x418] sm:$0xff]
  %v861 = vld [vmem:[%s1 + $0x420] sm:$0xff]
  %v862 = vld [vmem:[%s1 + $0x428] sm:$0xff]
  %v863 = vld [vmem:[%s1 + $0x430] sm:$0xff]
  %v864 = vld [vmem:[%s1 + $0x438] sm:$0xff]
  %v865 = vld [vmem:[%s1 + $0x440] sm:$0xff]
  %v866 = vld [vmem:[%s1 + $0x448] sm:$0xff]
  %v867 = vld [vmem:[%s1 + $0x450] sm:$0xff]
  %v868 = vld [vmem:[%s1 + $0x458] sm:$0xff]
  %v869 = vld [vmem:[%s1 + $0x460] sm:$0xff]
  %v870 = vld [vmem:[%s1 + $0x468] sm:$0xff]
  %v871 = vld [vmem:[%s1 + $0x470] sm:$0xff]
  %v872 = vld [vmem:[%s1 + $0x478] sm:$0xff]
  %v873 = vld [vmem:[%s1 + $0x480] sm:$0xff]
  %v874 = vld [vmem:[%s1 + $0x488] sm:$0xff]
  %v875 = vld [vmem:[%s1 + $0x490] sm:$0xff]
  %v876 = vld [vmem:[%s1 + $0x498] sm:$0xff]
  %v877 = vld [vmem:[%s1 + $0x4a0] sm:$0xff]
  %v878 = vld [vmem:[%s1 + $0x4a8] sm:$0xff]
  %v879 = vld [vmem:[%s1 + $0x4b0] sm:$0xff]
  %v880 = vld [vmem:[%s1 + $0x4b8] sm:$0xff]
  %v881 = vld [vmem:[%s1 + $0x4c0] sm:$0xff]
  %v882 = vld [vmem:[%s1 + $0x4c8] sm:$0xff]
  %v883 = vld [vmem:[%s1 + $0x4d0] sm:$0xff]
  %v884 = vld [vmem:[%s1 + $0x4d8] sm:$0xff]
  %v885 = vld [vmem:[%s1 + $0x4e0] sm:$0xff]
  %v886 = vld [vmem:[%s1 + $0x4e8] sm:$0xff]
  %v887 = vld [vmem:[%s1 + $0x4f0] sm:$0xff]
  %v888 = vld [vmem:[%s1 + $0x4f8] sm:$0xff]
  %v889 = vld [vmem:[%s1 + $0x500] sm:$0xff]
  %v890 = vld [vmem:[%s1 + $0x508] sm:$0xff]
  %v891 = vld [vmem:[%s1 + $0x510] sm:$0xff]
  %v892 = vld [vmem:[%s1 + $0x518] sm:$0xff]
  %v893 = vld [vmem:[%s1 + $0x520] sm:$0xff]
  %v894 = vld [vmem:[%s1 + $0x528] sm:$0xff]
  %v895 = vld [vmem:[%s1 + $0x530] sm:$0xff]
  %v896 = vld [vmem:[%s1 + $0x538] sm:$0xff]
  %v897 = vld [vmem:[%s1 + $0x540] sm:$0xff]
  %v898 = vld [vmem:[%s1 + $0x548] sm:$0xff]
  %v899 = vld [vmem:[%s1 + $0x550] sm:$0xff]
  %v900 = vld [vmem:[%s1 + $0x558] sm:$0xff]
  %v901 = vld [vmem:[%s1 + $0x560] sm:$0xff]
  %v902 = vld [vmem:[%s1 + $0x568] sm:$0xff]
  %v903 = vld [vmem:[%s1 + $0x570] sm:$0xff]
  %v904 = vld [vmem:[%s1 + $0x578] sm:$0xff]
  %v905 = vld [vmem:[%s1 + $0x580] sm:$0xff]
  %v906 = vld [vmem:[%s1 + $0x588] sm:$0xff]
  %v907 = vld [vmem:[%s1 + $0x590] sm:$0xff]
  %v908 = vld [vmem:[%s1 + $0x598] sm:$0xff]
  %v909 = vld [vmem:[%s1 + $0x5a0] sm:$0xff]
  %v910 = vld [vmem:[%s1 + $0x5a8] sm:$0xff]
  %v911 = vld [vmem:[%s1 + $0x5b0] sm:$0xff]
  %v912 = vld [vmem:[%s1 + $0x5b8] sm:$0xff]
  %v913 = vld [vmem:[%s1 + $0x5c0] sm:$0xff]
  %v914 = vld [vmem:[%s1 + $0x5c8] sm:$0xff]
  %v915 = vld [vmem:[%s1 + $0x5d0] sm:$0xff]
  %v916 = vld [vmem:[%s1 + $0x5d8] sm:$0xff]
  %v917 = vld [vmem:[%s1 + $0x5e0] sm:$0xff]
  %v918 = vld [vmem:[%s1 + $0x5e8] sm:$0xff]
  %v919 = vld [vmem:[%s1 + $0x5f0] sm:$0xff]
  %v920 = vld [vmem:[%s1 + $0x5f8] sm:$0xff]
  %v921 = vld [vmem:[%s1 + $0x600] sm:$0xff]
  %v922 = vld [vmem:[%s1 + $0x608] sm:$0xff]
  %v923 = vld [vmem:[%s1 + $0x610] sm:$0xff]
  %v924 = vld [vmem:[%s1 + $0x618] sm:$0xff]
  %v925 = vld [vmem:[%s1 + $0x620] sm:$0xff]
  %v926 = vld [vmem:[%s1 + $0x628] sm:$0xff]
  %v927 = vld [vmem:[%s1 + $0x630] sm:$0xff]
  %v928 = vld [vmem:[%s1 + $0x638] sm:$0xff]
  %v929 = vld [vmem:[%s1 + $0x640] sm:$0xff]
  %v930 = vld [vmem:[%s1 + $0x648] sm:$0xff]
  %v931 = vld [vmem:[%s1 + $0x650] sm:$0xff]
  %v932 = vld [vmem:[%s1 + $0x658] sm:$0xff]
  %v933 = vld [vmem:[%s1 + $0x660] sm:$0xff]
  %v934 = vld [vmem:[%s1 + $0x668] sm:$0xff]
  %v935 = vld [vmem:[%s1 + $0x670] sm:$0xff]
  %v936 = vld [vmem:[%s1 + $0x678] sm:$0xff]
  %v937 = vld [vmem:[%s1 + $0x680] sm:$0xff]
  %v938 = vld [vmem:[%s1 + $0x688] sm:$0xff]
  %v939 = vld [vmem:[%s1 + $0x690] sm:$0xff]
  %v940 = vld [vmem:[%s1 + $0x698] sm:$0xff]
  %v941 = vld [vmem:[%s1 + $0x6a0] sm:$0xff]
  %v942 = vld [vmem:[%s1 + $0x6a8] sm:$0xff]
  %v943 = vld [vmem:[%s1 + $0x6b0] sm:$0xff]
  %v944 = vld [vmem:[%s1 + $0x6b8] sm:$0xff]
  %v945 = vld [vmem:[%s1 + $0x6c0] sm:$0xff]
  %v946 = vld [vmem:[%s1 + $0x6c8] sm:$0xff]
  %v947 = vld [vmem:[%s1 + $0x6d0] sm:$0xff]
  %v948 = vld [vmem:[%s1 + $0x6d8] sm:$0xff]
  %v949 = vld [vmem:[%s1 + $0x6e0] sm:$0xff]
  %v950 = vld [vmem:[%s1 + $0x6e8] sm:$0xff]
  %v951 = vld [vmem:[%s1 + $0x6f0] sm:$0xff]
  %v952 = vld [vmem:[%s1 + $0x6f8] sm:$0xff]
  %v953 = vld [vmem:[%s1 + $0x700] sm:$0xff]
  %v954 = vld [vmem:[%s1 + $0x708] sm:$0xff]
  %v955 = vld [vmem:[%s1 + $0x710] sm:$0xff]
  %v956 = vld [vmem:[%s1 + $0x718] sm:$0xff]
  %v957 = vld [vmem:[%s1 + $0x720] sm:$0xff]
  %v958 = vld [vmem:[%s1 + $0x728] sm:$0xff]
  %v959 = vld [vmem:[%s1 + $0x730] sm:$0xff]
  %v960 = vld [vmem:[%s1 + $0x738] sm:$0xff]
  %v961 = vld [vmem:[%s1 + $0x740] sm:$0xff]
  %v962 = vld [vmem:[%s1 + $0x748] sm:$0xff]
  %v963 = vld [vmem:[%s1 + $0x750] sm:$0xff]
  %v964 = vld [vmem:[%s1 + $0x758] sm:$0xff]
  %v965 = vld [vmem:[%s1 + $0x760] sm:$0xff]
  %v966 = vld [vmem:[%s1 + $0x768] sm:$0xff]
  %v967 = vld [vmem:[%s1 + $0x770] sm:$0xff]
  %v968 = vld [vmem:[%s1 + $0x778] sm:$0xff]
  %v969 = vld [vmem:[%s1 + $0x780] sm:$0xff]
  %v970 = vld [vmem:[%s1 + $0x788] sm:$0xff]
  %v971 = vld [vmem:[%s1 + $0x790] sm:$0xff]
  %v972 = vld [vmem:[%s1 + $0x798] sm:$0xff]
  %v973 = vld [vmem:[%s1 + $0x7a0] sm:$0xff]
  %v974 = vld [vmem:[%s1 + $0x7a8] sm:$0xff]
  %v975 = vld [vmem:[%s1 + $0x7b0] sm:$0xff]
  %v976 = vld [vmem:[%s1 + $0x7b8] sm:$0xff]
  %v977 = vld [vmem:[%s1 + $0x7c0] sm:$0xff]
  %v978 = vld [vmem:[%s1 + $0x7c8] sm:$0xff]
  %v979 = vld [vmem:[%s1 + $0x7d0] sm:$0xff]
  %v980 = vld [vmem:[%s1 + $0x7d8] sm:$0xff]
  %v981 = vld [vmem:[%s1 + $0x7e0] sm:$0xff]
  %v982 = vld [vmem:[%s1 + $0x7e8] sm:$0xff]
  %v983 = vld [vmem:[%s1 + $0x7f0] sm:$0xff]
  %v984 = vld [vmem:[%s1 + $0x7f8] sm:$0xff]
  %v985 = vld [vmem:[%s1 + $0x800] sm:$0xff]
  %v986 = vld [vmem:[%s1 + $0x808] sm:$0xff]
  %v987 = vld [vmem:[%s1 + $0x810] sm:$0xff]
  %v988 = vld [vmem:[%s1 + $0x818] sm:$0xff]
  %v989 = vld [vmem:[%s1 + $0x820] sm:$0xff]
  %v990 = vld [vmem:[%s1 + $0x828] sm:$0xff]
  %v991 = vld [vmem:[%s1 + $0x830] sm:$0xff]
  %v992 = vld [vmem:[%s1 + $0x838] sm:$0xff]
  %v993 = vld [vmem:[%s1 + $0x840] sm:$0xff]
  %v994 = vld [vmem:[%s1 + $0x848] sm:$0xff]
  %v995 = vld [vmem:[%s1 + $0x850] sm:$0xff]
  %v996 = vld [vmem:[%s1 + $0x858] sm:$0xff]
  %v997 = vld [vmem:[%s1 + $0x860] sm:$0xff]
  %v998 = vld [vmem:[%s1 + $0x868] sm:$0xff]
  %v999 = vld [vmem:[%s1 + $0x870] sm:$0xff]
  %v1000 = vld [vmem:[%s1 + $0x878] sm:$0xff]
  %v1001 = vld [vmem:[%s1 + $0x880] sm:$0xff]
  %v1002 = vld [vmem:[%s1 + $0x888] sm:$0xff]
  %v1003 = vld [vmem:[%s1 + $0x890] sm:$0xff]
  %v1004 = vld [vmem:[%s1 + $0x898] sm:$0xff]
  %v1005 = vld [vmem:[%s1 + $0x8a0] sm:$0xff]
  %v1006 = vld [vmem:[%s1 + $0x8a8] sm:$0xff]
  %v1007 = vld [vmem:[%s1 + $0x8b0] sm:$0xff]
  %v1008 = vld [vmem:[%s1 + $0x8b8] sm:$0xff]
  %v1009 = vld [vmem:[%s1 + $0x8c0] sm:$0xff]
  %v1010 = vld [vmem:[%s1 + $0x8c8] sm:$0xff]
  %v1011 = vld [vmem:[%s1 + $0x8d0] sm:$0xff]
  %v1012 = vld [vmem:[%s1 + $0x8d8] sm:$0xff]
  %v1013 = vld [vmem:[%s1 + $0x8e0] sm:$0xff]
  %v1014 = vld [vmem:[%s1 + $0x8e8] sm:$0xff]
  %v1015 = vld [vmem:[%s1 + $0x8f0] sm:$0xff]
  %v1016 = vld [vmem:[%s1 + $0x8f8] sm:$0xff]
  %v1017 = vld [vmem:[%s1 + $0x900] sm:$0xff]
  %v1018 = vld [vmem:[%s1 + $0x908] sm:$0xff]
  %v1019 = vld [vmem:[%s1 + $0x910] sm:$0xff]
  %v1020 = vld [vmem:[%s1 + $0x918] sm:$0xff]
  %v1021 = vld [vmem:[%s1 + $0x920] sm:$0xff]
  %v1022 = vld [vmem:[%s1 + $0x928] sm:$0xff]
  %v1023 = vld [vmem:[%s1 + $0x930] sm:$0xff]
  %v1024 = vld [vmem:[%s1 + $0x938] sm:$0xff]
  %v1025 = vld [vmem:[%s1 + $0x940] sm:$0xff]
  %v1026 = vld [vmem:[%s1 + $0x948] sm:$0xff]
  %v1027 = vld [vmem:[%s1 + $0x950] sm:$0xff]
  %v1028 = vld [vmem:[%s1 + $0x958] sm:$0xff]
  %v1029 = vld [vmem:[%s1 + $0x960] sm:$0xff]
  %v1030 = vld [vmem:[%s1 + $0x968] sm:$0xff]
  %v1031 = vld [vmem:[%s1 + $0x970] sm:$0xff]
  %v1032 = vld [vmem:[%s1 + $0x978] sm:$0xff]
  %v1033 = vld [vmem:[%s1 + $0x980] sm:$0xff]
  %v1034 = vld [vmem:[%s1 + $0x988] sm:$0xff]
  %v1035 = vld [vmem:[%s1 + $0x990] sm:$0xff]
  %v1036 = vld [vmem:[%s1 + $0x998] sm:$0xff]
  %v1037 = vld [vmem:[%s1 + $0x9a0] sm:$0xff]
  %v1038 = vld [vmem:[%s1 + $0x9a8] sm:$0xff]
  %v1039 = vld [vmem:[%s1 + $0x9b0] sm:$0xff]
  %v1040 = vld [vmem:[%s1 + $0x9b8] sm:$0xff]
  %v1041 = vld [vmem:[%s1 + $0x9c0] sm:$0xff]
  %v1042 = vld [vmem:[%s1 + $0x9c8] sm:$0xff]
  %v1043 = vld [vmem:[%s1 + $0x9d0] sm:$0xff]
  %v1044 = vld [vmem:[%s1 + $0x9d8] sm:$0xff]
  %v1045 = vld [vmem:[%s1 + $0x9e0] sm:$0xff]
  %v1046 = vld [vmem:[%s1 + $0x9e8] sm:$0xff]
  %v1047 = vld [vmem:[%s1 + $0x9f0] sm:$0xff]
  %v1048 = vld [vmem:[%s1 + $0x9f8] sm:$0xff]
  %v1049 = vld [vmem:[%s1 + $0xa00] sm:$0xff]
  %v1050 = vld [vmem:[%s1 + $0xa08] sm:$0xff]
  %v1051 = vld [vmem:[%s1 + $0xa10] sm:$0xff]
  %v1052 = vld [vmem:[%s1 + $0xa18] sm:$0xff]
  %v1053 = vld [vmem:[%s1 + $0xa20] sm:$0xff]
  %v1054 = vld [vmem:[%s1 + $0xa28] sm:$0xff]
  %v1055 = vld [vmem:[%s1 + $0xa30] sm:$0xff]
  %v1056 = vld [vmem:[%s1 + $0xa38] sm:$0xff]
  %v1057 = vld [vmem:[%s1 + $0xa40] sm:$0xff]
  %v1058 = vld [vmem:[%s1 + $0xa48] sm:$0xff]
  %v1059 = vld [vmem:[%s1 + $0xa50] sm:$0xff]
  %v1060 = vld [vmem:[%s1 + $0xa58] sm:$0xff]
  %v1061 = vld [vmem:[%s1 + $0xa60] sm:$0xff]
  %v1062 = vld [vmem:[%s1 + $0xa68] sm:$0xff]
  %v1063 = vld [vmem:[%s1 + $0xa70] sm:$0xff]
  %v1064 = vld [vmem:[%s1 + $0xa78] sm:$0xff]
  %v1065 = vld [vmem:[%s1 + $0xa80] sm:$0xff]
  %v1066 = vld [vmem:[%s1 + $0xa88] sm:$0xff]
  %v1067 = vld [vmem:[%s1 + $0xa90] sm:$0xff]
  %v1068 = vld [vmem:[%s1 + $0xa98] sm:$0xff]
  %v1069 = vld [vmem:[%s1 + $0xaa0] sm:$0xff]
  %v1070 = vld [vmem:[%s1 + $0xaa8] sm:$0xff]
  %v1071 = vld [vmem:[%s1 + $0xab0] sm:$0xff]
  %v1072 = vld [vmem:[%s1 + $0xab8] sm:$0xff]
  %v1073 = vld [vmem:[%s1 + $0xac0] sm:$0xff]
  %v1074 = vld [vmem:[%s1 + $0xac8] sm:$0xff]
  %v1075 = vld [vmem:[%s1 + $0xad0] sm:$0xff]
  %v1076 = vld [vmem:[%s1 + $0xad8] sm:$0xff]
  %v1077 = vld [vmem:[%s1 + $0xae0] sm:$0xff]
  %v1078 = vld [vmem:[%s1 + $0xae8] sm:$0xff]
  %v1079 = vld [vmem:[%s1 + $0xaf0] sm:$0xff]
  %v1080 = vld [vmem:[%s1 + $0xaf8] sm:$0xff]
  %v1081 = vld [vmem:[%s1 + $0xb00] sm:$0xff]
  %v1082 = vld [vmem:[%s1 + $0xb08] sm:$0xff]
  %v1083 = vld [vmem:[%s1 + $0xb10] sm:$0xff]
  %v1084 = vld [vmem:[%s1 + $0xb18] sm:$0xff]
  %v1085 = vld [vmem:[%s1 + $0xb20] sm:$0xff]
  %v1086 = vld [vmem:[%s1 + $0xb28] sm:$0xff]
  %v1087 = vld [vmem:[%s1 + $0xb30] sm:$0xff]
  %v1088 = vmul.f32 %v729, 0.005
  %v1089 = vmul.f32 %v730, 0.005
  %v1090 = vmul.f32 %v731, 0.005
  %v1091 = vmul.f32 %v732, 0.005
  %v1092 = vmul.f32 %v733, 0.005
  %v1093 = vmul.f32 %v734, 0.005
  %v1094 = vmul.f32 %v735, 0.005
  %v1095 = vmul.f32 %v736, 0.005
  %v1096 = vmul.f32 %v737, 0.005
  %v1097 = vmul.f32 %v738, 0.005
  %v1098 = vmul.f32 %v739, 0.005
  %v1099 = vmul.f32 %v740, 0.005
  %v1100 = vmul.f32 %v741, 0.005
  %v1101 = vmul.f32 %v742, 0.005
  %v1102 = vmul.f32 %v743, 0.005
  %v1103 = vmul.f32 %v744, 0.005
  %v1104 = vmul.f32 %v745, 0.005
  %v1105 = vmul.f32 %v746, 0.005
  %v1106 = vmul.f32 %v747, 0.005
  %v1107 = vmul.f32 %v748, 0.005
  %v1108 = vmul.f32 %v749, 0.005
  %v1109 = vmul.f32 %v750, 0.005
  %v1110 = vmul.f32 %v751, 0.005
  %v1111 = vmul.f32 %v752, 0.005
  %v1112 = vmul.f32 %v753, 0.005
  %v1113 = vmul.f32 %v754, 0.005
  %v1114 = vmul.f32 %v755, 0.005
  %v1115 = vmul.f32 %v756, 0.005
  %v1116 = vmul.f32 %v757, 0.005
  %v1117 = vmul.f32 %v758, 0.005
  %v1118 = vmul.f32 %v759, 0.005
  %v1119 = vmul.f32 %v760, 0.005
  %v1120 = vmul.f32 %v761, 0.005
  %v1121 = vmul.f32 %v762, 0.005
  %v1122 = vmul.f32 %v763, 0.005
  %v1123 = vmul.f32 %v764, 0.005
  %v1124 = vmul.f32 %v765, 0.005
  %v1125 = vmul.f32 %v766, 0.005
  %v1126 = vmul.f32 %v767, 0.005
  %v1127 = vmul.f32 %v768, 0.005
  %v1128 = vmul.f32 %v769, 0.005
  %v1129 = vmul.f32 %v770, 0.005
  %v1130 = vmul.f32 %v771, 0.005
  %v1131 = vmul.f32 %v772, 0.005
  %v1132 = vmul.f32 %v773, 0.005
  %v1133 = vmul.f32 %v774, 0.005
  %v1134 = vmul.f32 %v775, 0.005
  %v1135 = vmul.f32 %v776, 0.005
  %v1136 = vmul.f32 %v777, 0.005
  %v1137 = vmul.f32 %v778, 0.005
  %v1138 = vmul.f32 %v779, 0.005
  %v1139 = vmul.f32 %v780, 0.005
  %v1140 = vmul.f32 %v781, 0.005
  %v1141 = vmul.f32 %v782, 0.005
  %v1142 = vmul.f32 %v783, 0.005
  %v1143 = vmul.f32 %v784, 0.005
  %v1144 = vmul.f32 %v785, 0.005
  %v1145 = vmul.f32 %v786, 0.005
  %v1146 = vmul.f32 %v787, 0.005
  %v1147 = vmul.f32 %v788, 0.005
  %v1148 = vmul.f32 %v789, 0.005
  %v1149 = vmul.f32 %v790, 0.005
  %v1150 = vmul.f32 %v791, 0.005
  %v1151 = vmul.f32 %v792, 0.005
  %v1152 = vmul.f32 %v793, 0.005
  %v1153 = vmul.f32 %v794, 0.005
  %v1154 = vmul.f32 %v795, 0.005
  %v1155 = vmul.f32 %v796, 0.005
  %v1156 = vmul.f32 %v797, 0.005
  %v1157 = vmul.f32 %v798, 0.005
  %v1158 = vmul.f32 %v799, 0.005
  %v1159 = vmul.f32 %v800, 0.005
  %v1160 = vmul.f32 %v801, 0.005
  %v1161 = vmul.f32 %v802, 0.005
  %v1162 = vmul.f32 %v803, 0.005
  %v1163 = vmul.f32 %v804, 0.005
  %v1164 = vmul.f32 %v805, 0.005
  %v1165 = vmul.f32 %v806, 0.005
  %v1166 = vmul.f32 %v807, 0.005
  %v1167 = vmul.f32 %v808, 0.005
  %v1168 = vmul.f32 %v809, 0.005
  %v1169 = vmul.f32 %v810, 0.005
  %v1170 = vmul.f32 %v811, 0.005
  %v1171 = vmul.f32 %v812, 0.005
  %v1172 = vmul.f32 %v813, 0.005
  %v1173 = vmul.f32 %v814, 0.005
  %v1174 = vmul.f32 %v815, 0.005
  %v1175 = vmul.f32 %v816, 0.005
  %v1176 = vmul.f32 %v817, 0.005
  %v1177 = vmul.f32 %v818, 0.005
  %v1178 = vmul.f32 %v819, 0.005
  %v1179 = vmul.f32 %v820, 0.005
  %v1180 = vmul.f32 %v821, 0.005
  %v1181 = vmul.f32 %v822, 0.005
  %v1182 = vmul.f32 %v823, 0.005
  %v1183 = vmul.f32 %v824, 0.005
  %v1184 = vmul.f32 %v825, 0.005
  %v1185 = vmul.f32 %v826, 0.005
  %v1186 = vmul.f32 %v827, 0.005
  %v1187 = vmul.f32 %v828, 0.005
  %v1188 = vmul.f32 %v829, 0.005
  %v1189 = vmul.f32 %v830, 0.005
  %v1190 = vmul.f32 %v831, 0.005
  %v1191 = vmul.f32 %v832, 0.005
  %v1192 = vmul.f32 %v833, 0.005
  %v1193 = vmul.f32 %v834, 0.005
  %v1194 = vmul.f32 %v835, 0.005
  %v1195 = vmul.f32 %v836, 0.005
  %v1196 = vmul.f32 %v837, 0.005
  %v1197 = vmul.f32 %v838, 0.005
  %v1198 = vmul.f32 %v839, 0.005
  %v1199 = vmul.f32 %v840, 0.005
  %v1200 = vmul.f32 %v841, 0.005
  %v1201 = vmul.f32 %v842, 0.005
  %v1202 = vmul.f32 %v843, 0.005
  %v1203 = vmul.f32 %v844, 0.005
  %v1204 = vmul.f32 %v845, 0.005
  %v1205 = vmul.f32 %v846, 0.005
  %v1206 = vmul.f32 %v847, 0.005
  %v1207 = vmul.f32 %v848, 0.005
  %v1208 = vmul.f32 %v849, 0.005
  %v1209 = vmul.f32 %v850, 0.005
  %v1210 = vmul.f32 %v851, 0.005
  %v1211 = vmul.f32 %v852, 0.005
  %v1212 = vmul.f32 %v853, 0.005
  %v1213 = vmul.f32 %v854, 0.005
  %v1214 = vmul.f32 %v855, 0.005
  %v1215 = vmul.f32 %v856, 0.005
  %v1216 = vmul.f32 %v857, 0.005
  %v1217 = vmul.f32 %v858, 0.005
  %v1218 = vmul.f32 %v859, 0.005
  %v1219 = vmul.f32 %v860, 0.005
  %v1220 = vmul.f32 %v861, 0.005
  %v1221 = vmul.f32 %v862, 0.005
  %v1222 = vmul.f32 %v863, 0.005
  %v1223 = vmul.f32 %v864, 0.005
  %v1224 = vmul.f32 %v865, 0.005
  %v1225 = vmul.f32 %v866, 0.005
  %v1226 = vmul.f32 %v867, 0.005
  %v1227 = vmul.f32 %v868, 0.005
  %v1228 = vmul.f32 %v869, 0.005
  %v1229 = vmul.f32 %v870, 0.005
  %v1230 = vmul.f32 %v871, 0.005
  %v1231 = vmul.f32 %v872, 0.005
  %v1232 = vmul.f32 %v873, 0.005
  %v1233 = vmul.f32 %v874, 0.005
  %v1234 = vmul.f32 %v875, 0.005
  %v1235 = vmul.f32 %v876, 0.005
  %v1236 = vmul.f32 %v877, 0.005
  %v1237 = vmul.f32 %v878, 0.005
  %v1238 = vmul.f32 %v879, 0.005
  %v1239 = vmul.f32 %v880, 0.005
  %v1240 = vmul.f32 %v881, 0.005
  %v1241 = vmul.f32 %v882, 0.005
  %v1242 = vmul.f32 %v883, 0.005
  %v1243 = vmul.f32 %v884, 0.005
  %v1244 = vmul.f32 %v885, 0.005
  %v1245 = vmul.f32 %v886, 0.005
  %v1246 = vmul.f32 %v887, 0.005
  %v1247 = vmul.f32 %v888, 0.005
  %v1248 = vmul.f32 %v889, 0.005
  %v1249 = vmul.f32 %v890, 0.005
  %v1250 = vmul.f32 %v891, 0.005
  %v1251 = vmul.f32 %v892, 0.005
  %v1252 = vmul.f32 %v893, 0.005
  %v1253 = vmul.f32 %v894, 0.005
  %v1254 = vmul.f32 %v895, 0.005
  %v1255 = vmul.f32 %v896, 0.005
  %v1256 = vmul.f32 %v897, 0.005
  %v1257 = vmul.f32 %v898, 0.005
  %v1258 = vmul.f32 %v899, 0.005
  %v1259 = vmul.f32 %v900, 0.005
  %v1260 = vmul.f32 %v901, 0.005
  %v1261 = vmul.f32 %v902, 0.005
  %v1262 = vmul.f32 %v903, 0.005
  %v1263 = vmul.f32 %v904, 0.005
  %v1264 = vmul.f32 %v905, 0.005
  %v1265 = vmul.f32 %v906, 0.005
  %v1266 = vmul.f32 %v907, 0.005
  %v1267 = vmul.f32 %v908, 0.005
  %v1268 = vmul.f32 %v909, 0.005
  %v1269 = vmul.f32 %v910, 0.005
  %v1270 = vmul.f32 %v911, 0.005
  %v1271 = vmul.f32 %v912, 0.005
  %v1272 = vmul.f32 %v913, 0.005
  %v1273 = vmul.f32 %v914, 0.005
  %v1274 = vmul.f32 %v915, 0.005
  %v1275 = vmul.f32 %v916, 0.005
  %v1276 = vmul.f32 %v917, 0.005
  %v1277 = vmul.f32 %v918, 0.005
  %v1278 = vmul.f32 %v919, 0.005
  %v1279 = vmul.f32 %v920, 0.005
  %v1280 = vmul.f32 %v921, 0.005
  %v1281 = vmul.f32 %v922, 0.005
  %v1282 = vmul.f32 %v923, 0.005
  %v1283 = vmul.f32 %v924, 0.005
  %v1284 = vmul.f32 %v925, 0.005
  %v1285 = vmul.f32 %v926, 0.005
  %v1286 = vmul.f32 %v927, 0.005
  %v1287 = vmul.f32 %v928, 0.005
  %v1288 = vmul.f32 %v929, 0.005
  %v1289 = vmul.f32 %v930, 0.005
  %v1290 = vmul.f32 %v931, 0.005
  %v1291 = vmul.f32 %v932, 0.005
  %v1292 = vmul.f32 %v933, 0.005
  %v1293 = vmul.f32 %v934, 0.005
  %v1294 = vmul.f32 %v935, 0.005
  %v1295 = vmul.f32 %v936, 0.005
  %v1296 = vmul.f32 %v937, 0.005
  %v1297 = vmul.f32 %v938, 0.005
  %v1298 = vmul.f32 %v939, 0.005
  %v1299 = vmul.f32 %v940, 0.005
  %v1300 = vmul.f32 %v941, 0.005
  %v1301 = vmul.f32 %v942, 0.005
  %v1302 = vmul.f32 %v943, 0.005
  %v1303 = vmul.f32 %v944, 0.005
  %v1304 = vmul.f32 %v945, 0.005
  %v1305 = vmul.f32 %v946, 0.005
  %v1306 = vmul.f32 %v947, 0.005
  %v1307 = vmul.f32 %v948, 0.005
  %v1308 = vmul.f32 %v949, 0.005
  %v1309 = vmul.f32 %v950, 0.005
  %v1310 = vmul.f32 %v951, 0.005
  %v1311 = vmul.f32 %v952, 0.005
  %v1312 = vmul.f32 %v953, 0.005
  %v1313 = vmul.f32 %v954, 0.005
  %v1314 = vmul.f32 %v955, 0.005
  %v1315 = vmul.f32 %v956, 0.005
  %v1316 = vmul.f32 %v957, 0.005
  %v1317 = vmul.f32 %v958, 0.005
  %v1318 = vmul.f32 %v959, 0.005
  %v1319 = vmul.f32 %v960, 0.005
  %v1320 = vmul.f32 %v961, 0.005
  %v1321 = vmul.f32 %v962, 0.005
  %v1322 = vmul.f32 %v963, 0.005
  %v1323 = vmul.f32 %v964, 0.005
  %v1324 = vmul.f32 %v965, 0.005
  %v1325 = vmul.f32 %v966, 0.005
  %v1326 = vmul.f32 %v967, 0.005
  %v1327 = vmul.f32 %v968, 0.005
  %v1328 = vmul.f32 %v969, 0.005
  %v1329 = vmul.f32 %v970, 0.005
  %v1330 = vmul.f32 %v971, 0.005
  %v1331 = vmul.f32 %v972, 0.005
  %v1332 = vmul.f32 %v973, 0.005
  %v1333 = vmul.f32 %v974, 0.005
  %v1334 = vmul.f32 %v975, 0.005
  %v1335 = vmul.f32 %v976, 0.005
  %v1336 = vmul.f32 %v977, 0.005
  %v1337 = vmul.f32 %v978, 0.005
  %v1338 = vmul.f32 %v979, 0.005
  %v1339 = vmul.f32 %v980, 0.005
  %v1340 = vmul.f32 %v981, 0.005
  %v1341 = vmul.f32 %v982, 0.005
  %v1342 = vmul.f32 %v983, 0.005
  %v1343 = vmul.f32 %v984, 0.005
  %v1344 = vmul.f32 %v985, 0.005
  %v1345 = vmul.f32 %v986, 0.005
  %v1346 = vmul.f32 %v987, 0.005
  %v1347 = vmul.f32 %v988, 0.005
  %v1348 = vmul.f32 %v989, 0.005
  %v1349 = vmul.f32 %v990, 0.005
  %v1350 = vmul.f32 %v991, 0.005
  %v1351 = vmul.f32 %v992, 0.005
  %v1352 = vmul.f32 %v993, 0.005
  %v1353 = vmul.f32 %v994, 0.005
  %v1354 = vmul.f32 %v995, 0.005
  %v1355 = vmul.f32 %v996, 0.005
  %v1356 = vmul.f32 %v997, 0.005
  %v1357 = vmul.f32 %v998, 0.005
  %v1358 = vmul.f32 %v999, 0.005
  %v1359 = vmul.f32 %v1000, 0.005
  %v1360 = vmul.f32 %v1001, 0.005
  %v1361 = vmul.f32 %v1002, 0.005
  %v1362 = vmul.f32 %v1003, 0.005
  %v1363 = vmul.f32 %v1004, 0.005
  %v1364 = vmul.f32 %v1005, 0.005
  %v1365 = vmul.f32 %v1006, 0.005
  %v1366 = vmul.f32 %v1007, 0.005
  %v1367 = vmul.f32 %v1008, 0.005
  %v1368 = vmul.f32 %v1009, 0.005
  %v1369 = vmul.f32 %v1010, 0.005
  %v1370 = vmul.f32 %v1011, 0.005
  %v1371 = vmul.f32 %v1012, 0.005
  %v1372 = vmul.f32 %v1013, 0.005
  %v1373 = vmul.f32 %v1014, 0.005
  %v1374 = vmul.f32 %v1015, 0.005
  %v1375 = vmul.f32 %v1016, 0.005
  %v1376 = vmul.f32 %v1017, 0.005
  %v1377 = vmul.f32 %v1018, 0.005
  %v1378 = vmul.f32 %v1019, 0.005
  %v1379 = vmul.f32 %v1020, 0.005
  %v1380 = vmul.f32 %v1021, 0.005
  %v1381 = vmul.f32 %v1022, 0.005
  %v1382 = vmul.f32 %v1023, 0.005
  %v1383 = vmul.f32 %v1024, 0.005
  %v1384 = vmul.f32 %v1025, 0.005
  %v1385 = vmul.f32 %v1026, 0.005
  %v1386 = vmul.f32 %v1027, 0.005
  %v1387 = vmul.f32 %v1028, 0.005
  %v1388 = vmul.f32 %v1029, 0.005
  %v1389 = vmul.f32 %v1030, 0.005
  %v1390 = vmul.f32 %v1031, 0.005
  %v1391 = vmul.f32 %v1032, 0.005
  %v1392 = vmul.f32 %v1033, 0.005
  %v1393 = vmul.f32 %v1034, 0.005
  %v1394 = vmul.f32 %v1035, 0.005
  %v1395 = vmul.f32 %v1036, 0.005
  %v1396 = vmul.f32 %v1037, 0.005
  %v1397 = vmul.f32 %v1038, 0.005
  %v1398 = vmul.f32 %v1039, 0.005
  %v1399 = vmul.f32 %v1040, 0.005
  %v1400 = vmul.f32 %v1041, 0.005
  %v1401 = vmul.f32 %v1042, 0.005
  %v1402 = vmul.f32 %v1043, 0.005
  %v1403 = vmul.f32 %v1044, 0.005
  %v1404 = vmul.f32 %v1045, 0.005
  %v1405 = vmul.f32 %v1046, 0.005
  %v1406 = vmul.f32 %v1047, 0.005
  %v1407 = vmul.f32 %v1048, 0.005
  %v1408 = vmul.f32 %v1049, 0.005
  %v1409 = vmul.f32 %v1050, 0.005
  %v1410 = vmul.f32 %v1051, 0.005
  %v1411 = vmul.f32 %v1052, 0.005
  %v1412 = vmul.f32 %v1053, 0.005
  %v1413 = vmul.f32 %v1054, 0.005
  %v1414 = vmul.f32 %v1055, 0.005
  %v1415 = vmul.f32 %v1056, 0.005
  %v1416 = vmul.f32 %v1057, 0.005
  %v1417 = vmul.f32 %v1058, 0.005
  %v1418 = vmul.f32 %v1059, 0.005
  %v1419 = vmul.f32 %v1060, 0.005
  %v1420 = vmul.f32 %v1061, 0.005
  %v1421 = vmul.f32 %v1062, 0.005
  %v1422 = vmul.f32 %v1063, 0.005
  %v1423 = vmul.f32 %v1064, 0.005
  %v1424 = vmul.f32 %v1065, 0.005
  %v1425 = vmul.f32 %v1066, 0.005
  %v1426 = vmul.f32 %v1067, 0.005
  %v1427 = vmul.f32 %v1068, 0.005
  %v1428 = vmul.f32 %v1069, 0.005
  %v1429 = vmul.f32 %v1070, 0.005
  %v1430 = vmul.f32 %v1071, 0.005
  %v1431 = vmul.f32 %v1072, 0.005
  %v1432 = vmul.f32 %v1073, 0.005
  %v1433 = vmul.f32 %v1074, 0.005
  %v1434 = vmul.f32 %v1075, 0.005
  %v1435 = vmul.f32 %v1076, 0.005
  %v1436 = vmul.f32 %v1077, 0.005
  %v1437 = vmul.f32 %v1078, 0.005
  %v1438 = vmul.f32 %v1079, 0.005
  %v1439 = vmul.f32 %v1080, 0.005
  %v1440 = vmul.f32 %v1081, 0.005
  %v1441 = vmul.f32 %v1082, 0.005
  %v1442 = vmul.f32 %v1083, 0.005
  %v1443 = vmul.f32 %v1084, 0.005
  %v1444 = vmul.f32 %v1085, 0.005
  %v1445 = vmul.f32 %v1086, 0.005
  %v1446 = vmul.f32 %v1087, 0.005
  %v1447 = vadd.f32 %v370, %v1088
  %v1448 = vadd.f32 %v371, %v1089
  %v1449 = vadd.f32 %v372, %v1090
  %v1450 = vadd.f32 %v373, %v1091
  %v1451 = vadd.f32 %v374, %v1092
  %v1452 = vadd.f32 %v375, %v1093
  %v1453 = vadd.f32 %v376, %v1094
  %v1454 = vadd.f32 %v377, %v1095
  %v1455 = vadd.f32 %v378, %v1096
  %v1456 = vadd.f32 %v379, %v1097
  %v1457 = vadd.f32 %v380, %v1098
  %v1458 = vadd.f32 %v381, %v1099
  %v1459 = vadd.f32 %v382, %v1100
  %v1460 = vadd.f32 %v383, %v1101
  %v1461 = vadd.f32 %v384, %v1102
  %v1462 = vadd.f32 %v385, %v1103
  %v1463 = vadd.f32 %v386, %v1104
  %v1464 = vadd.f32 %v387, %v1105
  %v1465 = vadd.f32 %v388, %v1106
  %v1466 = vadd.f32 %v389, %v1107
  %v1467 = vadd.f32 %v390, %v1108
  %v1468 = vadd.f32 %v391, %v1109
  %v1469 = vadd.f32 %v392, %v1110
  %v1470 = vadd.f32 %v393, %v1111
  %v1471 = vadd.f32 %v394, %v1112
  %v1472 = vadd.f32 %v395, %v1113
  %v1473 = vadd.f32 %v396, %v1114
  %v1474 = vadd.f32 %v397, %v1115
  %v1475 = vadd.f32 %v398, %v1116
  %v1476 = vadd.f32 %v399, %v1117
  %v1477 = vadd.f32 %v400, %v1118
  %v1478 = vadd.f32 %v401, %v1119
  %v1479 = vadd.f32 %v402, %v1120
  %v1480 = vadd.f32 %v403, %v1121
  %v1481 = vadd.f32 %v404, %v1122
  %v1482 = vadd.f32 %v405, %v1123
  %v1483 = vadd.f32 %v406, %v1124
  %v1484 = vadd.f32 %v407, %v1125
  %v1485 = vadd.f32 %v408, %v1126
  %v1486 = vadd.f32 %v409, %v1127
  %v1487 = vadd.f32 %v410, %v1128
  %v1488 = vadd.f32 %v411, %v1129
  %v1489 = vadd.f32 %v412, %v1130
  %v1490 = vadd.f32 %v413, %v1131
  %v1491 = vadd.f32 %v414, %v1132
  %v1492 = vadd.f32 %v415, %v1133
  %v1493 = vadd.f32 %v416, %v1134
  %v1494 = vadd.f32 %v417, %v1135
  %v1495 = vadd.f32 %v418, %v1136
  %v1496 = vadd.f32 %v419, %v1137
  %v1497 = vadd.f32 %v420, %v1138
  %v1498 = vadd.f32 %v421, %v1139
  %v1499 = vadd.f32 %v422, %v1140
  %v1500 = vadd.f32 %v423, %v1141
  %v1501 = vadd.f32 %v424, %v1142
  %v1502 = vadd.f32 %v425, %v1143
  %v1503 = vadd.f32 %v426, %v1144
  %v1504 = vadd.f32 %v427, %v1145
  %v1505 = vadd.f32 %v428, %v1146
  %v1506 = vadd.f32 %v429, %v1147
  %v1507 = vadd.f32 %v430, %v1148
  %v1508 = vadd.f32 %v431, %v1149
  %v1509 = vadd.f32 %v432, %v1150
  %v1510 = vadd.f32 %v433, %v1151
  %v1511 = vadd.f32 %v434, %v1152
  %v1512 = vadd.f32 %v435, %v1153
  %v1513 = vadd.f32 %v436, %v1154
  %v1514 = vadd.f32 %v437, %v1155
  %v1515 = vadd.f32 %v438, %v1156
  %v1516 = vadd.f32 %v439, %v1157
  %v1517 = vadd.f32 %v440, %v1158
  %v1518 = vadd.f32 %v441, %v1159
  %v1519 = vadd.f32 %v442, %v1160
  %v1520 = vadd.f32 %v443, %v1161
  %v1521 = vadd.f32 %v444, %v1162
  %v1522 = vadd.f32 %v445, %v1163
  %v1523 = vadd.f32 %v446, %v1164
  %v1524 = vadd.f32 %v447, %v1165
  %v1525 = vadd.f32 %v448, %v1166
  %v1526 = vadd.f32 %v449, %v1167
  %v1527 = vadd.f32 %v450, %v1168
  %v1528 = vadd.f32 %v451, %v1169
  %v1529 = vadd.f32 %v452, %v1170
  %v1530 = vadd.f32 %v453, %v1171
  %v1531 = vadd.f32 %v454, %v1172
  %v1532 = vadd.f32 %v455, %v1173
  %v1533 = vadd.f32 %v456, %v1174
  %v1534 = vadd.f32 %v457, %v1175
  %v1535 = vadd.f32 %v458, %v1176
  %v1536 = vadd.f32 %v459, %v1177
  %v1537 = vadd.f32 %v460, %v1178
  %v1538 = vadd.f32 %v461, %v1179
  %v1539 = vadd.f32 %v462, %v1180
  %v1540 = vadd.f32 %v463, %v1181
  %v1541 = vadd.f32 %v464, %v1182
  %v1542 = vadd.f32 %v465, %v1183
  %v1543 = vadd.f32 %v466, %v1184
  %v1544 = vadd.f32 %v467, %v1185
  %v1545 = vadd.f32 %v468, %v1186
  %v1546 = vadd.f32 %v469, %v1187
  %v1547 = vadd.f32 %v470, %v1188
  %v1548 = vadd.f32 %v471, %v1189
  %v1549 = vadd.f32 %v472, %v1190
  %v1550 = vadd.f32 %v473, %v1191
  %v1551 = vadd.f32 %v474, %v1192
  %v1552 = vadd.f32 %v475, %v1193
  %v1553 = vadd.f32 %v476, %v1194
  %v1554 = vadd.f32 %v477, %v1195
  %v1555 = vadd.f32 %v478, %v1196
  %v1556 = vadd.f32 %v479, %v1197
  %v1557 = vadd.f32 %v480, %v1198
  %v1558 = vadd.f32 %v481, %v1199
  %v1559 = vadd.f32 %v482, %v1200
  %v1560 = vadd.f32 %v483, %v1201
  %v1561 = vadd.f32 %v484, %v1202
  %v1562 = vadd.f32 %v485, %v1203
  %v1563 = vadd.f32 %v486, %v1204
  %v1564 = vadd.f32 %v487, %v1205
  %v1565 = vadd.f32 %v488, %v1206
  %v1566 = vadd.f32 %v489, %v1207
  %v1567 = vadd.f32 %v490, %v1208
  %v1568 = vadd.f32 %v491, %v1209
  %v1569 = vadd.f32 %v492, %v1210
  %v1570 = vadd.f32 %v493, %v1211
  %v1571 = vadd.f32 %v494, %v1212
  %v1572 = vadd.f32 %v495, %v1213
  %v1573 = vadd.f32 %v496, %v1214
  %v1574 = vadd.f32 %v497, %v1215
  %v1575 = vadd.f32 %v498, %v1216
  %v1576 = vadd.f32 %v499, %v1217
  %v1577 = vadd.f32 %v500, %v1218
  %v1578 = vadd.f32 %v501, %v1219
  %v1579 = vadd.f32 %v502, %v1220
  %v1580 = vadd.f32 %v503, %v1221
  %v1581 = vadd.f32 %v504, %v1222
  %v1582 = vadd.f32 %v505, %v1223
  %v1583 = vadd.f32 %v506, %v1224
  %v1584 = vadd.f32 %v507, %v1225
  %v1585 = vadd.f32 %v508, %v1226
  %v1586 = vadd.f32 %v509, %v1227
  %v1587 = vadd.f32 %v510, %v1228
  %v1588 = vadd.f32 %v511, %v1229
  %v1589 = vadd.f32 %v512, %v1230
  %v1590 = vadd.f32 %v513, %v1231
  %v1591 = vadd.f32 %v514, %v1232
  %v1592 = vadd.f32 %v515, %v1233
  %v1593 = vadd.f32 %v516, %v1234
  %v1594 = vadd.f32 %v517, %v1235
  %v1595 = vadd.f32 %v518, %v1236
  %v1596 = vadd.f32 %v519, %v1237
  %v1597 = vadd.f32 %v520, %v1238
  %v1598 = vadd.f32 %v521, %v1239
  %v1599 = vadd.f32 %v522, %v1240
  %v1600 = vadd.f32 %v523, %v1241
  %v1601 = vadd.f32 %v524, %v1242
  %v1602 = vadd.f32 %v525, %v1243
  %v1603 = vadd.f32 %v526, %v1244
  %v1604 = vadd.f32 %v527, %v1245
  %v1605 = vadd.f32 %v528, %v1246
  %v1606 = vadd.f32 %v529, %v1247
  %v1607 = vadd.f32 %v530, %v1248
  %v1608 = vadd.f32 %v531, %v1249
  %v1609 = vadd.f32 %v532, %v1250
  %v1610 = vadd.f32 %v533, %v1251
  %v1611 = vadd.f32 %v534, %v1252
  %v1612 = vadd.f32 %v535, %v1253
  %v1613 = vadd.f32 %v536, %v1254
  %v1614 = vadd.f32 %v537, %v1255
  %v1615 = vadd.f32 %v538, %v1256
  %v1616 = vadd.f32 %v539, %v1257
  %v1617 = vadd.f32 %v540, %v1258
  %v1618 = vadd.f32 %v541, %v1259
  %v1619 = vadd.f32 %v542, %v1260
  %v1620 = vadd.f32 %v543, %v1261
  %v1621 = vadd.f32 %v544, %v1262
  %v1622 = vadd.f32 %v545, %v1263
  %v1623 = vadd.f32 %v546, %v1264
  %v1624 = vadd.f32 %v547, %v1265
  %v1625 = vadd.f32 %v548, %v1266
  %v1626 = vadd.f32 %v549, %v1267
  %v1627 = vadd.f32 %v550, %v1268
  %v1628 = vadd.f32 %v551, %v1269
  %v1629 = vadd.f32 %v552, %v1270
  %v1630 = vadd.f32 %v553, %v1271
  %v1631 = vadd.f32 %v554, %v1272
  %v1632 = vadd.f32 %v555, %v1273
  %v1633 = vadd.f32 %v556, %v1274
  %v1634 = vadd.f32 %v557, %v1275
  %v1635 = vadd.f32 %v558, %v1276
  %v1636 = vadd.f32 %v559, %v1277
  %v1637 = vadd.f32 %v560, %v1278
  %v1638 = vadd.f32 %v561, %v1279
  %v1639 = vadd.f32 %v562, %v1280
  %v1640 = vadd.f32 %v563, %v1281
  %v1641 = vadd.f32 %v564, %v1282
  %v1642 = vadd.f32 %v565, %v1283
  %v1643 = vadd.f32 %v566, %v1284
  %v1644 = vadd.f32 %v567, %v1285
  %v1645 = vadd.f32 %v568, %v1286
  %v1646 = vadd.f32 %v569, %v1287
  %v1647 = vadd.f32 %v570, %v1288
  %v1648 = vadd.f32 %v571, %v1289
  %v1649 = vadd.f32 %v572, %v1290
  %v1650 = vadd.f32 %v573, %v1291
  %v1651 = vadd.f32 %v574, %v1292
  %v1652 = vadd.f32 %v575, %v1293
  %v1653 = vadd.f32 %v576, %v1294
  %v1654 = vadd.f32 %v577, %v1295
  %v1655 = vadd.f32 %v578, %v1296
  %v1656 = vadd.f32 %v579, %v1297
  %v1657 = vadd.f32 %v580, %v1298
  %v1658 = vadd.f32 %v581, %v1299
  %v1659 = vadd.f32 %v582, %v1300
  %v1660 = vadd.f32 %v583, %v1301
  %v1661 = vadd.f32 %v584, %v1302
  %v1662 = vadd.f32 %v585, %v1303
  %v1663 = vadd.f32 %v586, %v1304
  %v1664 = vadd.f32 %v587, %v1305
  %v1665 = vadd.f32 %v588, %v1306
  %v1666 = vadd.f32 %v589, %v1307
  %v1667 = vadd.f32 %v590, %v1308
  %v1668 = vadd.f32 %v591, %v1309
  %v1669 = vadd.f32 %v592, %v1310
  %v1670 = vadd.f32 %v593, %v1311
  %v1671 = vadd.f32 %v594, %v1312
  %v1672 = vadd.f32 %v595, %v1313
  %v1673 = vadd.f32 %v596, %v1314
  %v1674 = vadd.f32 %v597, %v1315
  %v1675 = vadd.f32 %v598, %v1316
  %v1676 = vadd.f32 %v599, %v1317
  %v1677 = vadd.f32 %v600, %v1318
  %v1678 = vadd.f32 %v601, %v1319
  %v1679 = vadd.f32 %v602, %v1320
  %v1680 = vadd.f32 %v603, %v1321
  %v1681 = vadd.f32 %v604, %v1322
  %v1682 = vadd.f32 %v605, %v1323
  %v1683 = vadd.f32 %v606, %v1324
  %v1684 = vadd.f32 %v607, %v1325
  %v1685 = vadd.f32 %v608, %v1326
  %v1686 = vadd.f32 %v609, %v1327
  %v1687 = vadd.f32 %v610, %v1328
  %v1688 = vadd.f32 %v611, %v1329
  %v1689 = vadd.f32 %v612, %v1330
  %v1690 = vadd.f32 %v613, %v1331
  %v1691 = vadd.f32 %v614, %v1332
  %v1692 = vadd.f32 %v615, %v1333
  %v1693 = vadd.f32 %v616, %v1334
  %v1694 = vadd.f32 %v617, %v1335
  %v1695 = vadd.f32 %v618, %v1336
  %v1696 = vadd.f32 %v619, %v1337
  %v1697 = vadd.f32 %v620, %v1338
  %v1698 = vadd.f32 %v621, %v1339
  %v1699 = vadd.f32 %v622, %v1340
  %v1700 = vadd.f32 %v623, %v1341
  %v1701 = vadd.f32 %v624, %v1342
  %v1702 = vadd.f32 %v625, %v1343
  %v1703 = vadd.f32 %v626, %v1344
  %v1704 = vadd.f32 %v627, %v1345
  %v1705 = vadd.f32 %v628, %v1346
  %v1706 = vadd.f32 %v629, %v1347
  %v1707 = vadd.f32 %v630, %v1348
  %v1708 = vadd.f32 %v631, %v1349
  %v1709 = vadd.f32 %v632, %v1350
  %v1710 = vadd.f32 %v633, %v1351
  %v1711 = vadd.f32 %v634, %v1352
  %v1712 = vadd.f32 %v635, %v1353
  %v1713 = vadd.f32 %v636, %v1354
  %v1714 = vadd.f32 %v637, %v1355
  %v1715 = vadd.f32 %v638, %v1356
  %v1716 = vadd.f32 %v639, %v1357
  %v1717 = vadd.f32 %v640, %v1358
  %v1718 = vadd.f32 %v641, %v1359
  %v1719 = vadd.f32 %v642, %v1360
  %v1720 = vadd.f32 %v643, %v1361
  %v1721 = vadd.f32 %v644, %v1362
  %v1722 = vadd.f32 %v645, %v1363
  %v1723 = vadd.f32 %v646, %v1364
  %v1724 = vadd.f32 %v647, %v1365
  %v1725 = vadd.f32 %v648, %v1366
  %v1726 = vadd.f32 %v649, %v1367
  %v1727 = vadd.f32 %v650, %v1368
  %v1728 = vadd.f32 %v651, %v1369
  %v1729 = vadd.f32 %v652, %v1370
  %v1730 = vadd.f32 %v653, %v1371
  %v1731 = vadd.f32 %v654, %v1372
  %v1732 = vadd.f32 %v655, %v1373
  %v1733 = vadd.f32 %v656, %v1374
  %v1734 = vadd.f32 %v657, %v1375
  %v1735 = vadd.f32 %v658, %v1376
  %v1736 = vadd.f32 %v659, %v1377
  %v1737 = vadd.f32 %v660, %v1378
  %v1738 = vadd.f32 %v661, %v1379
  %v1739 = vadd.f32 %v662, %v1380
  %v1740 = vadd.f32 %v663, %v1381
  %v1741 = vadd.f32 %v664, %v1382
  %v1742 = vadd.f32 %v665, %v1383
  %v1743 = vadd.f32 %v666, %v1384
  %v1744 = vadd.f32 %v667, %v1385
  %v1745 = vadd.f32 %v668, %v1386
  %v1746 = vadd.f32 %v669, %v1387
  %v1747 = vadd.f32 %v670, %v1388
  %v1748 = vadd.f32 %v671, %v1389
  %v1749 = vadd.f32 %v672, %v1390
  %v1750 = vadd.f32 %v673, %v1391
  %v1751 = vadd.f32 %v674, %v1392
  %v1752 = vadd.f32 %v675, %v1393
  %v1753 = vadd.f32 %v676, %v1394
  %v1754 = vadd.f32 %v677, %v1395
  %v1755 = vadd.f32 %v678, %v1396
  %v1756 = vadd.f32 %v679, %v1397
  %v1757 = vadd.f32 %v680, %v1398
  %v1758 = vadd.f32 %v681, %v1399
  %v1759 = vadd.f32 %v682, %v1400
  %v1760 = vadd.f32 %v683, %v1401
  %v1761 = vadd.f32 %v684, %v1402
  %v1762 = vadd.f32 %v685, %v1403
  %v1763 = vadd.f32 %v686, %v1404
  %v1764 = vadd.f32 %v687, %v1405
  %v1765 = vadd.f32 %v688, %v1406
  %v1766 = vadd.f32 %v689, %v1407
  %v1767 = vadd.f32 %v690, %v1408
  %v1768 = vadd.f32 %v691, %v1409
  %v1769 = vadd.f32 %v692, %v1410
  %v1770 = vadd.f32 %v693, %v1411
  %v1771 = vadd.f32 %v694, %v1412
  %v1772 = vadd.f32 %v695, %v1413
  %v1773 = vadd.f32 %v696, %v1414
  %v1774 = vadd.f32 %v697, %v1415
  %v1775 = vadd.f32 %v698, %v1416
  %v1776 = vadd.f32 %v699, %v1417
  %v1777 = vadd.f32 %v700, %v1418
  %v1778 = vadd.f32 %v701, %v1419
  %v1779 = vadd.f32 %v702, %v1420
  %v1780 = vadd.f32 %v703, %v1421
  %v1781 = vadd.f32 %v704, %v1422
  %v1782 = vadd.f32 %v705, %v1423
  %v1783 = vadd.f32 %v706, %v1424
  %v1784 = vadd.f32 %v707, %v1425
  %v1785 = vadd.f32 %v708, %v1426
  %v1786 = vadd.f32 %v709, %v1427
  %v1787 = vadd.f32 %v710, %v1428
  %v1788 = vadd.f32 %v711, %v1429
  %v1789 = vadd.f32 %v712, %v1430
  %v1790 = vadd.f32 %v713, %v1431
  %v1791 = vadd.f32 %v714, %v1432
  %v1792 = vadd.f32 %v715, %v1433
  %v1793 = vadd.f32 %v716, %v1434
  %v1794 = vadd.f32 %v717, %v1435
  %v1795 = vadd.f32 %v718, %v1436
  %v1796 = vadd.f32 %v719, %v1437
  %v1797 = vadd.f32 %v720, %v1438
  %v1798 = vadd.f32 %v721, %v1439
  %v1799 = vadd.f32 %v722, %v1440
  %v1800 = vadd.f32 %v723, %v1441
  %v1801 = vadd.f32 %v724, %v1442
  %v1802 = vadd.f32 %v725, %v1443
  %v1803 = vadd.f32 %v726, %v1444
  %v1804 = vadd.f32 %v727, %v1445
  %v1805 = vadd.f32 %v728, %v1446
  %1806 = vst [vmem:[%s2] sm:$0xff] %v1447
  %1807 = vst [vmem:[%s2 + $0x8] sm:$0xff] %v1448
  %1808 = vst [vmem:[%s2 + $0x10] sm:$0xff] %v1449
  %1809 = vst [vmem:[%s2 + $0x18] sm:$0xff] %v1450
  %1810 = vst [vmem:[%s2 + $0x20] sm:$0xff] %v1451
  %1811 = vst [vmem:[%s2 + $0x28] sm:$0xff] %v1452
  %1812 = vst [vmem:[%s2 + $0x30] sm:$0xff] %v1453
  %1813 = vst [vmem:[%s2 + $0x38] sm:$0xff] %v1454
  %1814 = vst [vmem:[%s2 + $0x40] sm:$0xff] %v1455
  %1815 = vst [vmem:[%s2 + $0x48] sm:$0xff] %v1456
  %1816 = vst [vmem:[%s2 + $0x50] sm:$0xff] %v1457
  %1817 = vst [vmem:[%s2 + $0x58] sm:$0xff] %v1458
  %1818 = vst [vmem:[%s2 + $0x60] sm:$0xff] %v1459
  %1819 = vst [vmem:[%s2 + $0x68] sm:$0xff] %v1460
  %1820 = vst [vmem:[%s2 + $0x70] sm:$0xff] %v1461
  %1821 = vst [vmem:[%s2 + $0x78] sm:$0xff] %v1462
  %1822 = vst [vmem:[%s2 + $0x80] sm:$0xff] %v1463
  %1823 = vst [vmem:[%s2 + $0x88] sm:$0xff] %v1464
  %1824 = vst [vmem:[%s2 + $0x90] sm:$0xff] %v1465
  %1825 = vst [vmem:[%s2 + $0x98] sm:$0xff] %v1466
  %1826 = vst [vmem:[%s2 + $0xa0] sm:$0xff] %v1467
  %1827 = vst [vmem:[%s2 + $0xa8] sm:$0xff] %v1468
  %1828 = vst [vmem:[%s2 + $0xb0] sm:$0xff] %v1469
  %1829 = vst [vmem:[%s2 + $0xb8] sm:$0xff] %v1470
  %1830 = vst [vmem:[%s2 + $0xc0] sm:$0xff] %v1471
  %1831 = vst [vmem:[%s2 + $0xc8] sm:$0xff] %v1472
  %1832 = vst [vmem:[%s2 + $0xd0] sm:$0xff] %v1473
  %1833 = vst [vmem:[%s2 + $0xd8] sm:$0xff] %v1474
  %1834 = vst [vmem:[%s2 + $0xe0] sm:$0xff] %v1475
  %1835 = vst [vmem:[%s2 + $0xe8] sm:$0xff] %v1476
  %1836 = vst [vmem:[%s2 + $0xf0] sm:$0xff] %v1477
  %1837 = vst [vmem:[%s2 + $0xf8] sm:$0xff] %v1478
  %1838 = vst [vmem:[%s2 + $0x100] sm:$0xff] %v1479
  %1839 = vst [vmem:[%s2 + $0x108] sm:$0xff] %v1480
  %1840 = vst [vmem:[%s2 + $0x110] sm:$0xff] %v1481
  %1841 = vst [vmem:[%s2 + $0x118] sm:$0xff] %v1482
  %1842 = vst [vmem:[%s2 + $0x120] sm:$0xff] %v1483
  %1843 = vst [vmem:[%s2 + $0x128] sm:$0xff] %v1484
  %1844 = vst [vmem:[%s2 + $0x130] sm:$0xff] %v1485
  %1845 = vst [vmem:[%s2 + $0x138] sm:$0xff] %v1486
  %1846 = vst [vmem:[%s2 + $0x140] sm:$0xff] %v1487
  %1847 = vst [vmem:[%s2 + $0x148] sm:$0xff] %v1488
  %1848 = vst [vmem:[%s2 + $0x150] sm:$0xff] %v1489
  %1849 = vst [vmem:[%s2 + $0x158] sm:$0xff] %v1490
  %1850 = vst [vmem:[%s2 + $0x160] sm:$0xff] %v1491
  %1851 = vst [vmem:[%s2 + $0x168] sm:$0xff] %v1492
  %1852 = vst [vmem:[%s2 + $0x170] sm:$0xff] %v1493
  %1853 = vst [vmem:[%s2 + $0x178] sm:$0xff] %v1494
  %1854 = vst [vmem:[%s2 + $0x180] sm:$0xff] %v1495
  %1855 = vst [vmem:[%s2 + $0x188] sm:$0xff] %v1496
  %1856 = vst [vmem:[%s2 + $0x190] sm:$0xff] %v1497
  %1857 = vst [vmem:[%s2 + $0x198] sm:$0xff] %v1498
  %1858 = vst [vmem:[%s2 + $0x1a0] sm:$0xff] %v1499
  %1859 = vst [vmem:[%s2 + $0x1a8] sm:$0xff] %v1500
  %1860 = vst [vmem:[%s2 + $0x1b0] sm:$0xff] %v1501
  %1861 = vst [vmem:[%s2 + $0x1b8] sm:$0xff] %v1502
  %1862 = vst [vmem:[%s2 + $0x1c0] sm:$0xff] %v1503
  %1863 = vst [vmem:[%s2 + $0x1c8] sm:$0xff] %v1504
  %1864 = vst [vmem:[%s2 + $0x1d0] sm:$0xff] %v1505
  %1865 = vst [vmem:[%s2 + $0x1d8] sm:$0xff] %v1506
  %1866 = vst [vmem:[%s2 + $0x1e0] sm:$0xff] %v1507
  %1867 = vst [vmem:[%s2 + $0x1e8] sm:$0xff] %v1508
  %1868 = vst [vmem:[%s2 + $0x1f0] sm:$0xff] %v1509
  %1869 = vst [vmem:[%s2 + $0x1f8] sm:$0xff] %v1510
  %1870 = vst [vmem:[%s2 + $0x200] sm:$0xff] %v1511
  %1871 = vst [vmem:[%s2 + $0x208] sm:$0xff] %v1512
  %1872 = vst [vmem:[%s2 + $0x210] sm:$0xff] %v1513
  %1873 = vst [vmem:[%s2 + $0x218] sm:$0xff] %v1514
  %1874 = vst [vmem:[%s2 + $0x220] sm:$0xff] %v1515
  %1875 = vst [vmem:[%s2 + $0x228] sm:$0xff] %v1516
  %1876 = vst [vmem:[%s2 + $0x230] sm:$0xff] %v1517
  %1877 = vst [vmem:[%s2 + $0x238] sm:$0xff] %v1518
  %1878 = vst [vmem:[%s2 + $0x240] sm:$0xff] %v1519
  %1879 = vst [vmem:[%s2 + $0x248] sm:$0xff] %v1520
  %1880 = vst [vmem:[%s2 + $0x250] sm:$0xff] %v1521
  %1881 = vst [vmem:[%s2 + $0x258] sm:$0xff] %v1522
  %1882 = vst [vmem:[%s2 + $0x260] sm:$0xff] %v1523
  %1883 = vst [vmem:[%s2 + $0x268] sm:$0xff] %v1524
  %1884 = vst [vmem:[%s2 + $0x270] sm:$0xff] %v1525
  %1885 = vst [vmem:[%s2 + $0x278] sm:$0xff] %v1526
  %1886 = vst [vmem:[%s2 + $0x280] sm:$0xff] %v1527
  %1887 = vst [vmem:[%s2 + $0x288] sm:$0xff] %v1528
  %1888 = vst [vmem:[%s2 + $0x290] sm:$0xff] %v1529
  %1889 = vst [vmem:[%s2 + $0x298] sm:$0xff] %v1530
  %1890 = vst [vmem:[%s2 + $0x2a0] sm:$0xff] %v1531
  %1891 = vst [vmem:[%s2 + $0x2a8] sm:$0xff] %v1532
  %1892 = vst [vmem:[%s2 + $0x2b0] sm:$0xff] %v1533
  %1893 = vst [vmem:[%s2 + $0x2b8] sm:$0xff] %v1534
  %1894 = vst [vmem:[%s2 + $0x2c0] sm:$0xff] %v1535
  %1895 = vst [vmem:[%s2 + $0x2c8] sm:$0xff] %v1536
  %1896 = vst [vmem:[%s2 + $0x2d0] sm:$0xff] %v1537
  %1897 = vst [vmem:[%s2 + $0x2d8] sm:$0xff] %v1538
  %1898 = vst [vmem:[%s2 + $0x2e0] sm:$0xff] %v1539
  %1899 = vst [vmem:[%s2 + $0x2e8] sm:$0xff] %v1540
  %1900 = vst [vmem:[%s2 + $0x2f0] sm:$0xff] %v1541
  %1901 = vst [vmem:[%s2 + $0x2f8] sm:$0xff] %v1542
  %1902 = vst [vmem:[%s2 + $0x300] sm:$0xff] %v1543
  %1903 = vst [vmem:[%s2 + $0x308] sm:$0xff] %v1544
  %1904 = vst [vmem:[%s2 + $0x310] sm:$0xff] %v1545
  %1905 = vst [vmem:[%s2 + $0x318] sm:$0xff] %v1546
  %1906 = vst [vmem:[%s2 + $0x320] sm:$0xff] %v1547
  %1907 = vst [vmem:[%s2 + $0x328] sm:$0xff] %v1548
  %1908 = vst [vmem:[%s2 + $0x330] sm:$0xff] %v1549
  %1909 = vst [vmem:[%s2 + $0x338] sm:$0xff] %v1550
  %1910 = vst [vmem:[%s2 + $0x340] sm:$0xff] %v1551
  %1911 = vst [vmem:[%s2 + $0x348] sm:$0xff] %v1552
  %1912 = vst [vmem:[%s2 + $0x350] sm:$0xff] %v1553
  %1913 = vst [vmem:[%s2 + $0x358] sm:$0xff] %v1554
  %1914 = vst [vmem:[%s2 + $0x360] sm:$0xff] %v1555
  %1915 = vst [vmem:[%s2 + $0x368] sm:$0xff] %v1556
  %1916 = vst [vmem:[%s2 + $0x370] sm:$0xff] %v1557
  %1917 = vst [vmem:[%s2 + $0x378] sm:$0xff] %v1558
  %1918 = vst [vmem:[%s2 + $0x380] sm:$0xff] %v1559
  %1919 = vst [vmem:[%s2 + $0x388] sm:$0xff] %v1560
  %1920 = vst [vmem:[%s2 + $0x390] sm:$0xff] %v1561
  %1921 = vst [vmem:[%s2 + $0x398] sm:$0xff] %v1562
  %1922 = vst [vmem:[%s2 + $0x3a0] sm:$0xff] %v1563
  %1923 = vst [vmem:[%s2 + $0x3a8] sm:$0xff] %v1564
  %1924 = vst [vmem:[%s2 + $0x3b0] sm:$0xff] %v1565
  %1925 = vst [vmem:[%s2 + $0x3b8] sm:$0xff] %v1566
  %1926 = vst [vmem:[%s2 + $0x3c0] sm:$0xff] %v1567
  %1927 = vst [vmem:[%s2 + $0x3c8] sm:$0xff] %v1568
  %1928 = vst [vmem:[%s2 + $0x3d0] sm:$0xff] %v1569
  %1929 = vst [vmem:[%s2 + $0x3d8] sm:$0xff] %v1570
  %1930 = vst [vmem:[%s2 + $0x3e0] sm:$0xff] %v1571
  %1931 = vst [vmem:[%s2 + $0x3e8] sm:$0xff] %v1572
  %1932 = vst [vmem:[%s2 + $0x3f0] sm:$0xff] %v1573
  %1933 = vst [vmem:[%s2 + $0x3f8] sm:$0xff] %v1574
  %1934 = vst [vmem:[%s2 + $0x400] sm:$0xff] %v1575
  %1935 = vst [vmem:[%s2 + $0x408] sm:$0xff] %v1576
  %1936 = vst [vmem:[%s2 + $0x410] sm:$0xff] %v1577
  %1937 = vst [vmem:[%s2 + $0x418] sm:$0xff] %v1578
  %1938 = vst [vmem:[%s2 + $0x420] sm:$0xff] %v1579
  %1939 = vst [vmem:[%s2 + $0x428] sm:$0xff] %v1580
  %1940 = vst [vmem:[%s2 + $0x430] sm:$0xff] %v1581
  %1941 = vst [vmem:[%s2 + $0x438] sm:$0xff] %v1582
  %1942 = vst [vmem:[%s2 + $0x440] sm:$0xff] %v1583
  %1943 = vst [vmem:[%s2 + $0x448] sm:$0xff] %v1584
  %1944 = vst [vmem:[%s2 + $0x450] sm:$0xff] %v1585
  %1945 = vst [vmem:[%s2 + $0x458] sm:$0xff] %v1586
  %1946 = vst [vmem:[%s2 + $0x460] sm:$0xff] %v1587
  %1947 = vst [vmem:[%s2 + $0x468] sm:$0xff] %v1588
  %1948 = vst [vmem:[%s2 + $0x470] sm:$0xff] %v1589
  %1949 = vst [vmem:[%s2 + $0x478] sm:$0xff] %v1590
  %1950 = vst [vmem:[%s2 + $0x480] sm:$0xff] %v1591
  %1951 = vst [vmem:[%s2 + $0x488] sm:$0xff] %v1592
  %1952 = vst [vmem:[%s2 + $0x490] sm:$0xff] %v1593
  %1953 = vst [vmem:[%s2 + $0x498] sm:$0xff] %v1594
  %1954 = vst [vmem:[%s2 + $0x4a0] sm:$0xff] %v1595
  %1955 = vst [vmem:[%s2 + $0x4a8] sm:$0xff] %v1596
  %1956 = vst [vmem:[%s2 + $0x4b0] sm:$0xff] %v1597
  %1957 = vst [vmem:[%s2 + $0x4b8] sm:$0xff] %v1598
  %1958 = vst [vmem:[%s2 + $0x4c0] sm:$0xff] %v1599
  %1959 = vst [vmem:[%s2 + $0x4c8] sm:$0xff] %v1600
  %1960 = vst [vmem:[%s2 + $0x4d0] sm:$0xff] %v1601
  %1961 = vst [vmem:[%s2 + $0x4d8] sm:$0xff] %v1602
  %1962 = vst [vmem:[%s2 + $0x4e0] sm:$0xff] %v1603
  %1963 = vst [vmem:[%s2 + $0x4e8] sm:$0xff] %v1604
  %1964 = vst [vmem:[%s2 + $0x4f0] sm:$0xff] %v1605
  %1965 = vst [vmem:[%s2 + $0x4f8] sm:$0xff] %v1606
  %1966 = vst [vmem:[%s2 + $0x500] sm:$0xff] %v1607
  %1967 = vst [vmem:[%s2 + $0x508] sm:$0xff] %v1608
  %1968 = vst [vmem:[%s2 + $0x510] sm:$0xff] %v1609
  %1969 = vst [vmem:[%s2 + $0x518] sm:$0xff] %v1610
  %1970 = vst [vmem:[%s2 + $0x520] sm:$0xff] %v1611
  %1971 = vst [vmem:[%s2 + $0x528] sm:$0xff] %v1612
  %1972 = vst [vmem:[%s2 + $0x530] sm:$0xff] %v1613
  %1973 = vst [vmem:[%s2 + $0x538] sm:$0xff] %v1614
  %1974 = vst [vmem:[%s2 + $0x540] sm:$0xff] %v1615
  %1975 = vst [vmem:[%s2 + $0x548] sm:$0xff] %v1616
  %1976 = vst [vmem:[%s2 + $0x550] sm:$0xff] %v1617
  %1977 = vst [vmem:[%s2 + $0x558] sm:$0xff] %v1618
  %1978 = vst [vmem:[%s2 + $0x560] sm:$0xff] %v1619
  %1979 = vst [vmem:[%s2 + $0x568] sm:$0xff] %v1620
  %1980 = vst [vmem:[%s2 + $0x570] sm:$0xff] %v1621
  %1981 = vst [vmem:[%s2 + $0x578] sm:$0xff] %v1622
  %1982 = vst [vmem:[%s2 + $0x580] sm:$0xff] %v1623
  %1983 = vst [vmem:[%s2 + $0x588] sm:$0xff] %v1624
  %1984 = vst [vmem:[%s2 + $0x590] sm:$0xff] %v1625
  %1985 = vst [vmem:[%s2 + $0x598] sm:$0xff] %v1626
  %1986 = vst [vmem:[%s2 + $0x5a0] sm:$0xff] %v1627
  %1987 = vst [vmem:[%s2 + $0x5a8] sm:$0xff] %v1628
  %1988 = vst [vmem:[%s2 + $0x5b0] sm:$0xff] %v1629
  %1989 = vst [vmem:[%s2 + $0x5b8] sm:$0xff] %v1630
  %1990 = vst [vmem:[%s2 + $0x5c0] sm:$0xff] %v1631
  %1991 = vst [vmem:[%s2 + $0x5c8] sm:$0xff] %v1632
  %1992 = vst [vmem:[%s2 + $0x5d0] sm:$0xff] %v1633
  %1993 = vst [vmem:[%s2 + $0x5d8] sm:$0xff] %v1634
  %1994 = vst [vmem:[%s2 + $0x5e0] sm:$0xff] %v1635
  %1995 = vst [vmem:[%s2 + $0x5e8] sm:$0xff] %v1636
  %1996 = vst [vmem:[%s2 + $0x5f0] sm:$0xff] %v1637
  %1997 = vst [vmem:[%s2 + $0x5f8] sm:$0xff] %v1638
  %1998 = vst [vmem:[%s2 + $0x600] sm:$0xff] %v1639
  %1999 = vst [vmem:[%s2 + $0x608] sm:$0xff] %v1640
  %2000 = vst [vmem:[%s2 + $0x610] sm:$0xff] %v1641
  %2001 = vst [vmem:[%s2 + $0x618] sm:$0xff] %v1642
  %2002 = vst [vmem:[%s2 + $0x620] sm:$0xff] %v1643
  %2003 = vst [vmem:[%s2 + $0x628] sm:$0xff] %v1644
  %2004 = vst [vmem:[%s2 + $0x630] sm:$0xff] %v1645
  %2005 = vst [vmem:[%s2 + $0x638] sm:$0xff] %v1646
  %2006 = vst [vmem:[%s2 + $0x640] sm:$0xff] %v1647
  %2007 = vst [vmem:[%s2 + $0x648] sm:$0xff] %v1648
  %2008 = vst [vmem:[%s2 + $0x650] sm:$0xff] %v1649
  %2009 = vst [vmem:[%s2 + $0x658] sm:$0xff] %v1650
  %2010 = vst [vmem:[%s2 + $0x660] sm:$0xff] %v1651
  %2011 = vst [vmem:[%s2 + $0x668] sm:$0xff] %v1652
  %2012 = vst [vmem:[%s2 + $0x670] sm:$0xff] %v1653
  %2013 = vst [vmem:[%s2 + $0x678] sm:$0xff] %v1654
  %2014 = vst [vmem:[%s2 + $0x680] sm:$0xff] %v1655
  %2015 = vst [vmem:[%s2 + $0x688] sm:$0xff] %v1656
  %2016 = vst [vmem:[%s2 + $0x690] sm:$0xff] %v1657
  %2017 = vst [vmem:[%s2 + $0x698] sm:$0xff] %v1658
  %2018 = vst [vmem:[%s2 + $0x6a0] sm:$0xff] %v1659
  %2019 = vst [vmem:[%s2 + $0x6a8] sm:$0xff] %v1660
  %2020 = vst [vmem:[%s2 + $0x6b0] sm:$0xff] %v1661
  %2021 = vst [vmem:[%s2 + $0x6b8] sm:$0xff] %v1662
  %2022 = vst [vmem:[%s2 + $0x6c0] sm:$0xff] %v1663
  %2023 = vst [vmem:[%s2 + $0x6c8] sm:$0xff] %v1664
  %2024 = vst [vmem:[%s2 + $0x6d0] sm:$0xff] %v1665
  %2025 = vst [vmem:[%s2 + $0x6d8] sm:$0xff] %v1666
  %2026 = vst [vmem:[%s2 + $0x6e0] sm:$0xff] %v1667
  %2027 = vst [vmem:[%s2 + $0x6e8] sm:$0xff] %v1668
  %2028 = vst [vmem:[%s2 + $0x6f0] sm:$0xff] %v1669
  %2029 = vst [vmem:[%s2 + $0x6f8] sm:$0xff] %v1670
  %2030 = vst [vmem:[%s2 + $0x700] sm:$0xff] %v1671
  %2031 = vst [vmem:[%s2 + $0x708] sm:$0xff] %v1672
  %2032 = vst [vmem:[%s2 + $0x710] sm:$0xff] %v1673
  %2033 = vst [vmem:[%s2 + $0x718] sm:$0xff] %v1674
  %2034 = vst [vmem:[%s2 + $0x720] sm:$0xff] %v1675
  %2035 = vst [vmem:[%s2 + $0x728] sm:$0xff] %v1676
  %2036 = vst [vmem:[%s2 + $0x730] sm:$0xff] %v1677
  %2037 = vst [vmem:[%s2 + $0x738] sm:$0xff] %v1678
  %2038 = vst [vmem:[%s2 + $0x740] sm:$0xff] %v1679
  %2039 = vst [vmem:[%s2 + $0x748] sm:$0xff] %v1680
  %2040 = vst [vmem:[%s2 + $0x750] sm:$0xff] %v1681
  %2041 = vst [vmem:[%s2 + $0x758] sm:$0xff] %v1682
  %2042 = vst [vmem:[%s2 + $0x760] sm:$0xff] %v1683
  %2043 = vst [vmem:[%s2 + $0x768] sm:$0xff] %v1684
  %2044 = vst [vmem:[%s2 + $0x770] sm:$0xff] %v1685
  %2045 = vst [vmem:[%s2 + $0x778] sm:$0xff] %v1686
  %2046 = vst [vmem:[%s2 + $0x780] sm:$0xff] %v1687
  %2047 = vst [vmem:[%s2 + $0x788] sm:$0xff] %v1688
  %2048 = vst [vmem:[%s2 + $0x790] sm:$0xff] %v1689
  %2049 = vst [vmem:[%s2 + $0x798] sm:$0xff] %v1690
  %2050 = vst [vmem:[%s2 + $0x7a0] sm:$0xff] %v1691
  %2051 = vst [vmem:[%s2 + $0x7a8] sm:$0xff] %v1692
  %2052 = vst [vmem:[%s2 + $0x7b0] sm:$0xff] %v1693
  %2053 = vst [vmem:[%s2 + $0x7b8] sm:$0xff] %v1694
  %2054 = vst [vmem:[%s2 + $0x7c0] sm:$0xff] %v1695
  %2055 = vst [vmem:[%s2 + $0x7c8] sm:$0xff] %v1696
  %2056 = vst [vmem:[%s2 + $0x7d0] sm:$0xff] %v1697
  %2057 = vst [vmem:[%s2 + $0x7d8] sm:$0xff] %v1698
  %2058 = vst [vmem:[%s2 + $0x7e0] sm:$0xff] %v1699
  %2059 = vst [vmem:[%s2 + $0x7e8] sm:$0xff] %v1700
  %2060 = vst [vmem:[%s2 + $0x7f0] sm:$0xff] %v1701
  %2061 = vst [vmem:[%s2 + $0x7f8] sm:$0xff] %v1702
  %2062 = vst [vmem:[%s2 + $0x800] sm:$0xff] %v1703
  %2063 = vst [vmem:[%s2 + $0x808] sm:$0xff] %v1704
  %2064 = vst [vmem:[%s2 + $0x810] sm:$0xff] %v1705
  %2065 = vst [vmem:[%s2 + $0x818] sm:$0xff] %v1706
  %2066 = vst [vmem:[%s2 + $0x820] sm:$0xff] %v1707
  %2067 = vst [vmem:[%s2 + $0x828] sm:$0xff] %v1708
  %2068 = vst [vmem:[%s2 + $0x830] sm:$0xff] %v1709
  %2069 = vst [vmem:[%s2 + $0x838] sm:$0xff] %v1710
  %2070 = vst [vmem:[%s2 + $0x840] sm:$0xff] %v1711
  %2071 = vst [vmem:[%s2 + $0x848] sm:$0xff] %v1712
  %2072 = vst [vmem:[%s2 + $0x850] sm:$0xff] %v1713
  %2073 = vst [vmem:[%s2 + $0x858] sm:$0xff] %v1714
  %2074 = vst [vmem:[%s2 + $0x860] sm:$0xff] %v1715
  %2075 = vst [vmem:[%s2 + $0x868] sm:$0xff] %v1716
  %2076 = vst [vmem:[%s2 + $0x870] sm:$0xff] %v1717
  %2077 = vst [vmem:[%s2 + $0x878] sm:$0xff] %v1718
  %2078 = vst [vmem:[%s2 + $0x880] sm:$0xff] %v1719
  %2079 = vst [vmem:[%s2 + $0x888] sm:$0xff] %v1720
  %2080 = vst [vmem:[%s2 + $0x890] sm:$0xff] %v1721
  %2081 = vst [vmem:[%s2 + $0x898] sm:$0xff] %v1722
  %2082 = vst [vmem:[%s2 + $0x8a0] sm:$0xff] %v1723
  %2083 = vst [vmem:[%s2 + $0x8a8] sm:$0xff] %v1724
  %2084 = vst [vmem:[%s2 + $0x8b0] sm:$0xff] %v1725
  %2085 = vst [vmem:[%s2 + $0x8b8] sm:$0xff] %v1726
  %2086 = vst [vmem:[%s2 + $0x8c0] sm:$0xff] %v1727
  %2087 = vst [vmem:[%s2 + $0x8c8] sm:$0xff] %v1728
  %2088 = vst [vmem:[%s2 + $0x8d0] sm:$0xff] %v1729
  %2089 = vst [vmem:[%s2 + $0x8d8] sm:$0xff] %v1730
  %2090 = vst [vmem:[%s2 + $0x8e0] sm:$0xff] %v1731
  %2091 = vst [vmem:[%s2 + $0x8e8] sm:$0xff] %v1732
  %2092 = vst [vmem:[%s2 + $0x8f0] sm:$0xff] %v1733
  %2093 = vst [vmem:[%s2 + $0x8f8] sm:$0xff] %v1734
  %2094 = vst [vmem:[%s2 + $0x900] sm:$0xff] %v1735
  %2095 = vst [vmem:[%s2 + $0x908] sm:$0xff] %v1736
  %2096 = vst [vmem:[%s2 + $0x910] sm:$0xff] %v1737
  %2097 = vst [vmem:[%s2 + $0x918] sm:$0xff] %v1738
  %2098 = vst [vmem:[%s2 + $0x920] sm:$0xff] %v1739
  %2099 = vst [vmem:[%s2 + $0x928] sm:$0xff] %v1740
  %2100 = vst [vmem:[%s2 + $0x930] sm:$0xff] %v1741
  %2101 = vst [vmem:[%s2 + $0x938] sm:$0xff] %v1742
  %2102 = vst [vmem:[%s2 + $0x940] sm:$0xff] %v1743
  %2103 = vst [vmem:[%s2 + $0x948] sm:$0xff] %v1744
  %2104 = vst [vmem:[%s2 + $0x950] sm:$0xff] %v1745
  %2105 = vst [vmem:[%s2 + $0x958] sm:$0xff] %v1746
  %2106 = vst [vmem:[%s2 + $0x960] sm:$0xff] %v1747
  %2107 = vst [vmem:[%s2 + $0x968] sm:$0xff] %v1748
  %2108 = vst [vmem:[%s2 + $0x970] sm:$0xff] %v1749
  %2109 = vst [vmem:[%s2 + $0x978] sm:$0xff] %v1750
  %2110 = vst [vmem:[%s2 + $0x980] sm:$0xff] %v1751
  %2111 = vst [vmem:[%s2 + $0x988] sm:$0xff] %v1752
  %2112 = vst [vmem:[%s2 + $0x990] sm:$0xff] %v1753
  %2113 = vst [vmem:[%s2 + $0x998] sm:$0xff] %v1754
  %2114 = vst [vmem:[%s2 + $0x9a0] sm:$0xff] %v1755
  %2115 = vst [vmem:[%s2 + $0x9a8] sm:$0xff] %v1756
  %2116 = vst [vmem:[%s2 + $0x9b0] sm:$0xff] %v1757
  %2117 = vst [vmem:[%s2 + $0x9b8] sm:$0xff] %v1758
  %2118 = vst [vmem:[%s2 + $0x9c0] sm:$0xff] %v1759
  %2119 = vst [vmem:[%s2 + $0x9c8] sm:$0xff] %v1760
  %2120 = vst [vmem:[%s2 + $0x9d0] sm:$0xff] %v1761
  %2121 = vst [vmem:[%s2 + $0x9d8] sm:$0xff] %v1762
  %2122 = vst [vmem:[%s2 + $0x9e0] sm:$0xff] %v1763
  %2123 = vst [vmem:[%s2 + $0x9e8] sm:$0xff] %v1764
  %2124 = vst [vmem:[%s2 + $0x9f0] sm:$0xff] %v1765
  %2125 = vst [vmem:[%s2 + $0x9f8] sm:$0xff] %v1766
  %2126 = vst [vmem:[%s2 + $0xa00] sm:$0xff] %v1767
  %2127 = vst [vmem:[%s2 + $0xa08] sm:$0xff] %v1768
  %2128 = vst [vmem:[%s2 + $0xa10] sm:$0xff] %v1769
  %2129 = vst [vmem:[%s2 + $0xa18] sm:$0xff] %v1770
  %2130 = vst [vmem:[%s2 + $0xa20] sm:$0xff] %v1771
  %2131 = vst [vmem:[%s2 + $0xa28] sm:$0xff] %v1772
  %2132 = vst [vmem:[%s2 + $0xa30] sm:$0xff] %v1773
  %2133 = vst [vmem:[%s2 + $0xa38] sm:$0xff] %v1774
  %2134 = vst [vmem:[%s2 + $0xa40] sm:$0xff] %v1775
  %2135 = vst [vmem:[%s2 + $0xa48] sm:$0xff] %v1776
  %2136 = vst [vmem:[%s2 + $0xa50] sm:$0xff] %v1777
  %2137 = vst [vmem:[%s2 + $0xa58] sm:$0xff] %v1778
  %2138 = vst [vmem:[%s2 + $0xa60] sm:$0xff] %v1779
  %2139 = vst [vmem:[%s2 + $0xa68] sm:$0xff] %v1780
  %2140 = vst [vmem:[%s2 + $0xa70] sm:$0xff] %v1781
  %2141 = vst [vmem:[%s2 + $0xa78] sm:$0xff] %v1782
  %2142 = vst [vmem:[%s2 + $0xa80] sm:$0xff] %v1783
  %2143 = vst [vmem:[%s2 + $0xa88] sm:$0xff] %v1784
  %2144 = vst [vmem:[%s2 + $0xa90] sm:$0xff] %v1785
  %2145 = vst [vmem:[%s2 + $0xa98] sm:$0xff] %v1786
  %2146 = vst [vmem:[%s2 + $0xaa0] sm:$0xff] %v1787
  %2147 = vst [vmem:[%s2 + $0xaa8] sm:$0xff] %v1788
  %2148 = vst [vmem:[%s2 + $0xab0] sm:$0xff] %v1789
  %2149 = vst [vmem:[%s2 + $0xab8] sm:$0xff] %v1790
  %2150 = vst [vmem:[%s2 + $0xac0] sm:$0xff] %v1791
  %2151 = vst [vmem:[%s2 + $0xac8] sm:$0xff] %v1792
  %2152 = vst [vmem:[%s2 + $0xad0] sm:$0xff] %v1793
  %2153 = vst [vmem:[%s2 + $0xad8] sm:$0xff] %v1794
  %2154 = vst [vmem:[%s2 + $0xae0] sm:$0xff] %v1795
  %2155 = vst [vmem:[%s2 + $0xae8] sm:$0xff] %v1796
  %2156 = vst [vmem:[%s2 + $0xaf0] sm:$0xff] %v1797
  %2157 = vst [vmem:[%s2 + $0xaf8] sm:$0xff] %v1798
  %2158 = vst [vmem:[%s2 + $0xb00] sm:$0xff] %v1799
  %2159 = vst [vmem:[%s2 + $0xb08] sm:$0xff] %v1800
  %2160 = vst [vmem:[%s2 + $0xb10] sm:$0xff] %v1801
  %2161 = vst [vmem:[%s2 + $0xb18] sm:$0xff] %v1802
  %2162 = vst [vmem:[%s2 + $0xb20] sm:$0xff] %v1803
  %2163 = vst [vmem:[%s2 + $0xb28] sm:$0xff] %v1804
  %2164 = vst [vmem:[%s2 + $0xb30] sm:$0xff] %v1805
  // Predicated region
  $region10: #{blip_retrieval_forward.3} parent=0 // pred_check
    _
  $region11: #{blip_retrieval_forward.3} parent=0 // pred_check_branch
    %2166 = sbr.rel (0) target = $region13
  $region12: #{blip_retrieval_forward.3} parent=0 // pred_region
    _
  $region13: #{blip_retrieval_forward.3} parent=0 // pred_fallthru
    _
  // Predicated region
  $region14: #{blip_retrieval_forward.3} parent=0 // pred_check
    _
  $region15: #{blip_retrieval_forward.3} parent=0 // pred_check_branch
    %2168 = sbr.rel (0) target = $region17
  $region16: #{blip_retrieval_forward.3} parent=0 // pred_region
    _
  $region17: #{blip_retrieval_forward.3} parent=0 // pred_fallthru
    _

// kernel: blip_retrieval_forward.4
$region0: #{blip_retrieval_forward.4}
  #allocation0 [shape = 'u32[]', space=smem, size = 0x4, offset = 0x4, fixed_abs, tag = 'smem constant byte address 0x4 - core index']
  #allocation1 [shape = 'u32[72,128]{1,0:T(1,128)}', space=vmem, size = 0x9000, scoped, tag = 'internal scratch']
  %s0 = inlined_call_operand.vmem [shape: f32[32,768], index: 0, kind: input, shape index: {}]
  %s1 = inlined_call_operand.vmem [shape: f32[768,512], index: 1, kind: input, shape index: {}]
  %s2 = inlined_call_operand.vmem [shape: f32[1,512], index: 2, kind: input, shape index: {}]
  %s3 = inlined_call_operand.vmem [shape: f32[256,256], index: 3, kind: input, shape index: {}]
  %s4 = inlined_call_operand.vmem [shape: f32[256,512], index: 4, kind: input, shape index: {}]
  %s5 = inlined_call_operand.vmem [shape: f32[1,512], index: 5, kind: input, shape index: {}]
  %s6 = inlined_call_operand.vmem [shape: f32[32,512], index: 6, kind: output, shape index: {0}]
  %s7 = inlined_call_operand.vmem [shape: f32[256,512], index: 7, kind: output, shape index: {1}]
  %8 = xla_tuple %s6, %s7
  %s9 = sld [smem:[#allocation0]]
  $region42: #{blip_retrieval_forward.4} parent=0
    _
  %s11 = ssub.s32 1, %s9
  %s12 = scalar_select 0, %s11, %s9
  // Predicated region
  $region2: #{blip_retrieval_forward.4} parent=0 // pred_check
    _
  $region3: #{blip_retrieval_forward.4} parent=0 // pred_check_branch
    %14 = sbr.rel (0) target = $region5
  $region4: #{blip_retrieval_forward.4} parent=0 // pred_region
    _
  $region5: #{blip_retrieval_forward.4} parent=0 // pred_fallthru
    _
  // Predicated region
  $region6: #{blip_retrieval_forward.4} parent=0 // pred_check
    _
  $region7: #{blip_retrieval_forward.4} parent=0 // pred_check_branch
    %16 = sbr.rel (0) target = $region9
  $region8: #{blip_retrieval_forward.4} parent=0 // pred_region
    _
  $region9: #{blip_retrieval_forward.4} parent=0 // pred_fallthru
    _
  // Predicated region
  $region10: #{blip_retrieval_forward.4} parent=0 // pred_check
    _
  $region11: #{blip_retrieval_forward.4} parent=0 // pred_check_branch
    %18 = sbr.rel (0) target = $region13
  $region12: #{blip_retrieval_forward.4} parent=0 // pred_region
    _
  $region13: #{blip_retrieval_forward.4} parent=0 // pred_fallthru
    _
  // Predicated region
  $region14: #{blip_retrieval_forward.4} parent=0 // pred_check
    _
  $region15: #{blip_retrieval_forward.4} parent=0 // pred_check_branch
    %20 = sbr.rel (0) target = $region17
  $region16: #{blip_retrieval_forward.4} parent=0 // pred_region
    _
  $region17: #{blip_retrieval_forward.4} parent=0 // pred_fallthru
    _
  // Predicated region
  $region18: #{blip_retrieval_forward.4} parent=0 // pred_check
    _
  $region19: #{blip_retrieval_forward.4} parent=0 // pred_check_branch
    %22 = sbr.rel (0) target = $region21
  $region20: #{blip_retrieval_forward.4} parent=0 // pred_region
    _
  $region21: #{blip_retrieval_forward.4} parent=0 // pred_fallthru
    _
  // Predicated region
  $region22: #{blip_retrieval_forward.4} parent=0 // pred_check
    _
  $region23: #{blip_retrieval_forward.4} parent=0 // pred_check_branch
    %24 = sbr.rel (0) target = $region25
  $region24: #{blip_retrieval_forward.4} parent=0 // pred_region
    _
  $region25: #{blip_retrieval_forward.4} parent=0 // pred_fallthru
    _
  %v25 = vld [vmem:[%s0] sm:$0xff]
  %v26 = vld [vmem:[%s0 + $0x8] sm:$0xff]
  %v27 = vld [vmem:[%s0 + $0x10] sm:$0xff]
  %v28 = vld [vmem:[%s0 + $0x18] sm:$0xff]
  %v29 = vld [vmem:[%s0 + $0x20] sm:$0xff]
  %v30 = vld [vmem:[%s0 + $0x28] sm:$0xff]
  %v31 = vld [vmem:[%s0 + $0x30] sm:$0xff]
  %v32 = vld [vmem:[%s0 + $0x38] sm:$0xff]
  %v33 = vld [vmem:[%s0 + $0x40] sm:$0xff]
  %v34 = vld [vmem:[%s0 + $0x48] sm:$0xff]
  %v35 = vld [vmem:[%s0 + $0x50] sm:$0xff]
  %v36 = vld [vmem:[%s0 + $0x58] sm:$0xff]
  %v37 = vld [vmem:[%s0 + $0x60] sm:$0xff]
  %v38 = vld [vmem:[%s0 + $0x68] sm:$0xff]
  %v39 = vld [vmem:[%s0 + $0x70] sm:$0xff]
  %v40 = vld [vmem:[%s0 + $0x78] sm:$0xff]
  %v41 = vld [vmem:[%s0 + $0x80] sm:$0xff]
  %v42 = vld [vmem:[%s0 + $0x88] sm:$0xff]
  %v43 = vld [vmem:[%s0 + $0x90] sm:$0xff]
  %v44 = vld [vmem:[%s0 + $0x98] sm:$0xff]
  %v45 = vld [vmem:[%s0 + $0xa0] sm:$0xff]
  %v46 = vld [vmem:[%s0 + $0xa8] sm:$0xff]
  %v47 = vld [vmem:[%s0 + $0xb0] sm:$0xff]
  %v48 = vld [vmem:[%s0 + $0xb8] sm:$0xff]
  %v49 = vld [vmem:[%s1] sm:$0xff]
  %v50 = vld [vmem:[%s1 + $0x8] sm:$0xff]
  %v51 = vld [vmem:[%s1 + $0x10] sm:$0xff]
  %v52 = vld [vmem:[%s1 + $0x18] sm:$0xff]
  %v53 = vld [vmem:[%s1 + $0x20] sm:$0xff]
  %v54 = vld [vmem:[%s1 + $0x28] sm:$0xff]
  %v55 = vld [vmem:[%s1 + $0x30] sm:$0xff]
  %v56 = vld [vmem:[%s1 + $0x38] sm:$0xff]
  %v57 = vld [vmem:[%s1 + $0x40] sm:$0xff]
  %v58 = vld [vmem:[%s1 + $0x48] sm:$0xff]
  %v59 = vld [vmem:[%s1 + $0x50] sm:$0xff]
  %v60 = vld [vmem:[%s1 + $0x58] sm:$0xff]
  %v61 = vld [vmem:[%s1 + $0x60] sm:$0xff]
  %v62 = vld [vmem:[%s1 + $0x68] sm:$0xff]
  %v63 = vld [vmem:[%s1 + $0x70] sm:$0xff]
  %v64 = vld [vmem:[%s1 + $0x78] sm:$0xff]
  %v65 = vld [vmem:[%s1 + $0x80] sm:$0xff]
  %v66 = vld [vmem:[%s1 + $0x88] sm:$0xff]
  %v67 = vld [vmem:[%s1 + $0x90] sm:$0xff]
  %v68 = vld [vmem:[%s1 + $0x98] sm:$0xff]
  %v69 = vld [vmem:[%s1 + $0xa0] sm:$0xff]
  %v70 = vld [vmem:[%s1 + $0xa8] sm:$0xff]
  %v71 = vld [vmem:[%s1 + $0xb0] sm:$0xff]
  %v72 = vld [vmem:[%s1 + $0xb8] sm:$0xff]
  %v73 = vld [vmem:[%s1 + $0xc0] sm:$0xff]
  %v74 = vld [vmem:[%s1 + $0xc8] sm:$0xff]
  %v75 = vld [vmem:[%s1 + $0xd0] sm:$0xff]
  %v76 = vld [vmem:[%s1 + $0xd8] sm:$0xff]
  %v77 = vld [vmem:[%s1 + $0xe0] sm:$0xff]
  %v78 = vld [vmem:[%s1 + $0xe8] sm:$0xff]
  %v79 = vld [vmem:[%s1 + $0xf0] sm:$0xff]
  %v80 = vld [vmem:[%s1 + $0xf8] sm:$0xff]
  %v81 = vld [vmem:[%s1 + $0x100] sm:$0xff]
  %v82 = vld [vmem:[%s1 + $0x108] sm:$0xff]
  %v83 = vld [vmem:[%s1 + $0x110] sm:$0xff]
  %v84 = vld [vmem:[%s1 + $0x118] sm:$0xff]
  %v85 = vld [vmem:[%s1 + $0x120] sm:$0xff]
  %v86 = vld [vmem:[%s1 + $0x128] sm:$0xff]
  %v87 = vld [vmem:[%s1 + $0x130] sm:$0xff]
  %v88 = vld [vmem:[%s1 + $0x138] sm:$0xff]
  %v89 = vld [vmem:[%s1 + $0x140] sm:$0xff]
  %v90 = vld [vmem:[%s1 + $0x148] sm:$0xff]
  %v91 = vld [vmem:[%s1 + $0x150] sm:$0xff]
  %v92 = vld [vmem:[%s1 + $0x158] sm:$0xff]
  %v93 = vld [vmem:[%s1 + $0x160] sm:$0xff]
  %v94 = vld [vmem:[%s1 + $0x168] sm:$0xff]
  %v95 = vld [vmem:[%s1 + $0x170] sm:$0xff]
  %v96 = vld [vmem:[%s1 + $0x178] sm:$0xff]
  %v97 = vld [vmem:[%s1 + $0x180] sm:$0xff]
  %v98 = vld [vmem:[%s1 + $0x188] sm:$0xff]
  %v99 = vld [vmem:[%s1 + $0x190] sm:$0xff]
  %v100 = vld [vmem:[%s1 + $0x198] sm:$0xff]
  %v101 = vld [vmem:[%s1 + $0x1a0] sm:$0xff]
  %v102 = vld [vmem:[%s1 + $0x1a8] sm:$0xff]
  %v103 = vld [vmem:[%s1 + $0x1b0] sm:$0xff]
  %v104 = vld [vmem:[%s1 + $0x1b8] sm:$0xff]
  %v105 = vld [vmem:[%s1 + $0x1c0] sm:$0xff]
  %v106 = vld [vmem:[%s1 + $0x1c8] sm:$0xff]
  %v107 = vld [vmem:[%s1 + $0x1d0] sm:$0xff]
  %v108 = vld [vmem:[%s1 + $0x1d8] sm:$0xff]
  %v109 = vld [vmem:[%s1 + $0x1e0] sm:$0xff]
  %v110 = vld [vmem:[%s1 + $0x1e8] sm:$0xff]
  %v111 = vld [vmem:[%s1 + $0x1f0] sm:$0xff]
  %v112 = vld [vmem:[%s1 + $0x1f8] sm:$0xff]
  %v113 = vld [vmem:[%s1 + $0x200] sm:$0xff]
  %v114 = vld [vmem:[%s1 + $0x208] sm:$0xff]
  %v115 = vld [vmem:[%s1 + $0x210] sm:$0xff]
  %v116 = vld [vmem:[%s1 + $0x218] sm:$0xff]
  %v117 = vld [vmem:[%s1 + $0x220] sm:$0xff]
  %v118 = vld [vmem:[%s1 + $0x228] sm:$0xff]
  %v119 = vld [vmem:[%s1 + $0x230] sm:$0xff]
  %v120 = vld [vmem:[%s1 + $0x238] sm:$0xff]
  %v121 = vld [vmem:[%s1 + $0x240] sm:$0xff]
  %v122 = vld [vmem:[%s1 + $0x248] sm:$0xff]
  %v123 = vld [vmem:[%s1 + $0x250] sm:$0xff]
  %v124 = vld [vmem:[%s1 + $0x258] sm:$0xff]
  %v125 = vld [vmem:[%s1 + $0x260] sm:$0xff]
  %v126 = vld [vmem:[%s1 + $0x268] sm:$0xff]
  %v127 = vld [vmem:[%s1 + $0x270] sm:$0xff]
  %v128 = vld [vmem:[%s1 + $0x278] sm:$0xff]
  %v129 = vld [vmem:[%s1 + $0x280] sm:$0xff]
  %v130 = vld [vmem:[%s1 + $0x288] sm:$0xff]
  %v131 = vld [vmem:[%s1 + $0x290] sm:$0xff]
  %v132 = vld [vmem:[%s1 + $0x298] sm:$0xff]
  %v133 = vld [vmem:[%s1 + $0x2a0] sm:$0xff]
  %v134 = vld [vmem:[%s1 + $0x2a8] sm:$0xff]
  %v135 = vld [vmem:[%s1 + $0x2b0] sm:$0xff]
  %v136 = vld [vmem:[%s1 + $0x2b8] sm:$0xff]
  %v137 = vld [vmem:[%s1 + $0x2c0] sm:$0xff]
  %v138 = vld [vmem:[%s1 + $0x2c8] sm:$0xff]
  %v139 = vld [vmem:[%s1 + $0x2d0] sm:$0xff]
  %v140 = vld [vmem:[%s1 + $0x2d8] sm:$0xff]
  %v141 = vld [vmem:[%s1 + $0x2e0] sm:$0xff]
  %v142 = vld [vmem:[%s1 + $0x2e8] sm:$0xff]
  %v143 = vld [vmem:[%s1 + $0x2f0] sm:$0xff]
  %v144 = vld [vmem:[%s1 + $0x2f8] sm:$0xff]
  %v145 = vld [vmem:[%s1 + $0x300] sm:$0xff]
  %v146 = vld [vmem:[%s1 + $0x308] sm:$0xff]
  %v147 = vld [vmem:[%s1 + $0x310] sm:$0xff]
  %v148 = vld [vmem:[%s1 + $0x318] sm:$0xff]
  %v149 = vld [vmem:[%s1 + $0x320] sm:$0xff]
  %v150 = vld [vmem:[%s1 + $0x328] sm:$0xff]
  %v151 = vld [vmem:[%s1 + $0x330] sm:$0xff]
  %v152 = vld [vmem:[%s1 + $0x338] sm:$0xff]
  %v153 = vld [vmem:[%s1 + $0x340] sm:$0xff]
  %v154 = vld [vmem:[%s1 + $0x348] sm:$0xff]
  %v155 = vld [vmem:[%s1 + $0x350] sm:$0xff]
  %v156 = vld [vmem:[%s1 + $0x358] sm:$0xff]
  %v157 = vld [vmem:[%s1 + $0x360] sm:$0xff]
  %v158 = vld [vmem:[%s1 + $0x368] sm:$0xff]
  %v159 = vld [vmem:[%s1 + $0x370] sm:$0xff]
  %v160 = vld [vmem:[%s1 + $0x378] sm:$0xff]
  %v161 = vld [vmem:[%s1 + $0x380] sm:$0xff]
  %v162 = vld [vmem:[%s1 + $0x388] sm:$0xff]
  %v163 = vld [vmem:[%s1 + $0x390] sm:$0xff]
  %v164 = vld [vmem:[%s1 + $0x398] sm:$0xff]
  %v165 = vld [vmem:[%s1 + $0x3a0] sm:$0xff]
  %v166 = vld [vmem:[%s1 + $0x3a8] sm:$0xff]
  %v167 = vld [vmem:[%s1 + $0x3b0] sm:$0xff]
  %v168 = vld [vmem:[%s1 + $0x3b8] sm:$0xff]
  %v169 = vld [vmem:[%s1 + $0x3c0] sm:$0xff]
  %v170 = vld [vmem:[%s1 + $0x3c8] sm:$0xff]
  %v171 = vld [vmem:[%s1 + $0x3d0] sm:$0xff]
  %v172 = vld [vmem:[%s1 + $0x3d8] sm:$0xff]
  %v173 = vld [vmem:[%s1 + $0x3e0] sm:$0xff]
  %v174 = vld [vmem:[%s1 + $0x3e8] sm:$0xff]
  %v175 = vld [vmem:[%s1 + $0x3f0] sm:$0xff]
  %v176 = vld [vmem:[%s1 + $0x3f8] sm:$0xff]
  %v177 = vld [vmem:[%s1 + $0x400] sm:$0xff]
  %v178 = vld [vmem:[%s1 + $0x408] sm:$0xff]
  %v179 = vld [vmem:[%s1 + $0x410] sm:$0xff]
  %v180 = vld [vmem:[%s1 + $0x418] sm:$0xff]
  %v181 = vld [vmem:[%s1 + $0x420] sm:$0xff]
  %v182 = vld [vmem:[%s1 + $0x428] sm:$0xff]
  %v183 = vld [vmem:[%s1 + $0x430] sm:$0xff]
  %v184 = vld [vmem:[%s1 + $0x438] sm:$0xff]
  %v185 = vld [vmem:[%s1 + $0x440] sm:$0xff]
  %v186 = vld [vmem:[%s1 + $0x448] sm:$0xff]
  %v187 = vld [vmem:[%s1 + $0x450] sm:$0xff]
  %v188 = vld [vmem:[%s1 + $0x458] sm:$0xff]
  %v189 = vld [vmem:[%s1 + $0x460] sm:$0xff]
  %v190 = vld [vmem:[%s1 + $0x468] sm:$0xff]
  %v191 = vld [vmem:[%s1 + $0x470] sm:$0xff]
  %v192 = vld [vmem:[%s1 + $0x478] sm:$0xff]
  %v193 = vld [vmem:[%s1 + $0x480] sm:$0xff]
  %v194 = vld [vmem:[%s1 + $0x488] sm:$0xff]
  %v195 = vld [vmem:[%s1 + $0x490] sm:$0xff]
  %v196 = vld [vmem:[%s1 + $0x498] sm:$0xff]
  %v197 = vld [vmem:[%s1 + $0x4a0] sm:$0xff]
  %v198 = vld [vmem:[%s1 + $0x4a8] sm:$0xff]
  %v199 = vld [vmem:[%s1 + $0x4b0] sm:$0xff]
  %v200 = vld [vmem:[%s1 + $0x4b8] sm:$0xff]
  %v201 = vld [vmem:[%s1 + $0x4c0] sm:$0xff]
  %v202 = vld [vmem:[%s1 + $0x4c8] sm:$0xff]
  %v203 = vld [vmem:[%s1 + $0x4d0] sm:$0xff]
  %v204 = vld [vmem:[%s1 + $0x4d8] sm:$0xff]
  %v205 = vld [vmem:[%s1 + $0x4e0] sm:$0xff]
  %v206 = vld [vmem:[%s1 + $0x4e8] sm:$0xff]
  %v207 = vld [vmem:[%s1 + $0x4f0] sm:$0xff]
  %v208 = vld [vmem:[%s1 + $0x4f8] sm:$0xff]
  %v209 = vld [vmem:[%s1 + $0x500] sm:$0xff]
  %v210 = vld [vmem:[%s1 + $0x508] sm:$0xff]
  %v211 = vld [vmem:[%s1 + $0x510] sm:$0xff]
  %v212 = vld [vmem:[%s1 + $0x518] sm:$0xff]
  %v213 = vld [vmem:[%s1 + $0x520] sm:$0xff]
  %v214 = vld [vmem:[%s1 + $0x528] sm:$0xff]
  %v215 = vld [vmem:[%s1 + $0x530] sm:$0xff]
  %v216 = vld [vmem:[%s1 + $0x538] sm:$0xff]
  %v217 = vld [vmem:[%s1 + $0x540] sm:$0xff]
  %v218 = vld [vmem:[%s1 + $0x548] sm:$0xff]
  %v219 = vld [vmem:[%s1 + $0x550] sm:$0xff]
  %v220 = vld [vmem:[%s1 + $0x558] sm:$0xff]
  %v221 = vld [vmem:[%s1 + $0x560] sm:$0xff]
  %v222 = vld [vmem:[%s1 + $0x568] sm:$0xff]
  %v223 = vld [vmem:[%s1 + $0x570] sm:$0xff]
  %v224 = vld [vmem:[%s1 + $0x578] sm:$0xff]
  %v225 = vld [vmem:[%s1 + $0x580] sm:$0xff]
  %v226 = vld [vmem:[%s1 + $0x588] sm:$0xff]
  %v227 = vld [vmem:[%s1 + $0x590] sm:$0xff]
  %v228 = vld [vmem:[%s1 + $0x598] sm:$0xff]
  %v229 = vld [vmem:[%s1 + $0x5a0] sm:$0xff]
  %v230 = vld [vmem:[%s1 + $0x5a8] sm:$0xff]
  %v231 = vld [vmem:[%s1 + $0x5b0] sm:$0xff]
  %v232 = vld [vmem:[%s1 + $0x5b8] sm:$0xff]
  %v233 = vld [vmem:[%s1 + $0x5c0] sm:$0xff]
  %v234 = vld [vmem:[%s1 + $0x5c8] sm:$0xff]
  %v235 = vld [vmem:[%s1 + $0x5d0] sm:$0xff]
  %v236 = vld [vmem:[%s1 + $0x5d8] sm:$0xff]
  %v237 = vld [vmem:[%s1 + $0x5e0] sm:$0xff]
  %v238 = vld [vmem:[%s1 + $0x5e8] sm:$0xff]
  %v239 = vld [vmem:[%s1 + $0x5f0] sm:$0xff]
  %v240 = vld [vmem:[%s1 + $0x5f8] sm:$0xff]
  %v241 = vld [vmem:[%s1 + $0x600] sm:$0xff]
  %v242 = vld [vmem:[%s1 + $0x608] sm:$0xff]
  %v243 = vld [vmem:[%s1 + $0x610] sm:$0xff]
  %v244 = vld [vmem:[%s1 + $0x618] sm:$0xff]
  %v245 = vld [vmem:[%s1 + $0x620] sm:$0xff]
  %v246 = vld [vmem:[%s1 + $0x628] sm:$0xff]
  %v247 = vld [vmem:[%s1 + $0x630] sm:$0xff]
  %v248 = vld [vmem:[%s1 + $0x638] sm:$0xff]
  %v249 = vld [vmem:[%s1 + $0x640] sm:$0xff]
  %v250 = vld [vmem:[%s1 + $0x648] sm:$0xff]
  %v251 = vld [vmem:[%s1 + $0x650] sm:$0xff]
  %v252 = vld [vmem:[%s1 + $0x658] sm:$0xff]
  %v253 = vld [vmem:[%s1 + $0x660] sm:$0xff]
  %v254 = vld [vmem:[%s1 + $0x668] sm:$0xff]
  %v255 = vld [vmem:[%s1 + $0x670] sm:$0xff]
  %v256 = vld [vmem:[%s1 + $0x678] sm:$0xff]
  %v257 = vld [vmem:[%s1 + $0x680] sm:$0xff]
  %v258 = vld [vmem:[%s1 + $0x688] sm:$0xff]
  %v259 = vld [vmem:[%s1 + $0x690] sm:$0xff]
  %v260 = vld [vmem:[%s1 + $0x698] sm:$0xff]
  %v261 = vld [vmem:[%s1 + $0x6a0] sm:$0xff]
  %v262 = vld [vmem:[%s1 + $0x6a8] sm:$0xff]
  %v263 = vld [vmem:[%s1 + $0x6b0] sm:$0xff]
  %v264 = vld [vmem:[%s1 + $0x6b8] sm:$0xff]
  %v265 = vld [vmem:[%s1 + $0x6c0] sm:$0xff]
  %v266 = vld [vmem:[%s1 + $0x6c8] sm:$0xff]
  %v267 = vld [vmem:[%s1 + $0x6d0] sm:$0xff]
  %v268 = vld [vmem:[%s1 + $0x6d8] sm:$0xff]
  %v269 = vld [vmem:[%s1 + $0x6e0] sm:$0xff]
  %v270 = vld [vmem:[%s1 + $0x6e8] sm:$0xff]
  %v271 = vld [vmem:[%s1 + $0x6f0] sm:$0xff]
  %v272 = vld [vmem:[%s1 + $0x6f8] sm:$0xff]
  %v273 = vld [vmem:[%s1 + $0x700] sm:$0xff]
  %v274 = vld [vmem:[%s1 + $0x708] sm:$0xff]
  %v275 = vld [vmem:[%s1 + $0x710] sm:$0xff]
  %v276 = vld [vmem:[%s1 + $0x718] sm:$0xff]
  %v277 = vld [vmem:[%s1 + $0x720] sm:$0xff]
  %v278 = vld [vmem:[%s1 + $0x728] sm:$0xff]
  %v279 = vld [vmem:[%s1 + $0x730] sm:$0xff]
  %v280 = vld [vmem:[%s1 + $0x738] sm:$0xff]
  %v281 = vld [vmem:[%s1 + $0x740] sm:$0xff]
  %v282 = vld [vmem:[%s1 + $0x748] sm:$0xff]
  %v283 = vld [vmem:[%s1 + $0x750] sm:$0xff]
  %v284 = vld [vmem:[%s1 + $0x758] sm:$0xff]
  %v285 = vld [vmem:[%s1 + $0x760] sm:$0xff]
  %v286 = vld [vmem:[%s1 + $0x768] sm:$0xff]
  %v287 = vld [vmem:[%s1 + $0x770] sm:$0xff]
  %v288 = vld [vmem:[%s1 + $0x778] sm:$0xff]
  %v289 = vld [vmem:[%s1 + $0x780] sm:$0xff]
  %v290 = vld [vmem:[%s1 + $0x788] sm:$0xff]
  %v291 = vld [vmem:[%s1 + $0x790] sm:$0xff]
  %v292 = vld [vmem:[%s1 + $0x798] sm:$0xff]
  %v293 = vld [vmem:[%s1 + $0x7a0] sm:$0xff]
  %v294 = vld [vmem:[%s1 + $0x7a8] sm:$0xff]
  %v295 = vld [vmem:[%s1 + $0x7b0] sm:$0xff]
  %v296 = vld [vmem:[%s1 + $0x7b8] sm:$0xff]
  %v297 = vld [vmem:[%s1 + $0x7c0] sm:$0xff]
  %v298 = vld [vmem:[%s1 + $0x7c8] sm:$0xff]
  %v299 = vld [vmem:[%s1 + $0x7d0] sm:$0xff]
  %v300 = vld [vmem:[%s1 + $0x7d8] sm:$0xff]
  %v301 = vld [vmem:[%s1 + $0x7e0] sm:$0xff]
  %v302 = vld [vmem:[%s1 + $0x7e8] sm:$0xff]
  %v303 = vld [vmem:[%s1 + $0x7f0] sm:$0xff]
  %v304 = vld [vmem:[%s1 + $0x7f8] sm:$0xff]
  %v305 = vld [vmem:[%s1 + $0x800] sm:$0xff]
  %v306 = vld [vmem:[%s1 + $0x808] sm:$0xff]
  %v307 = vld [vmem:[%s1 + $0x810] sm:$0xff]
  %v308 = vld [vmem:[%s1 + $0x818] sm:$0xff]
  %v309 = vld [vmem:[%s1 + $0x820] sm:$0xff]
  %v310 = vld [vmem:[%s1 + $0x828] sm:$0xff]
  %v311 = vld [vmem:[%s1 + $0x830] sm:$0xff]
  %v312 = vld [vmem:[%s1 + $0x838] sm:$0xff]
  %v313 = vld [vmem:[%s1 + $0x840] sm:$0xff]
  %v314 = vld [vmem:[%s1 + $0x848] sm:$0xff]
  %v315 = vld [vmem:[%s1 + $0x850] sm:$0xff]
  %v316 = vld [vmem:[%s1 + $0x858] sm:$0xff]
  %v317 = vld [vmem:[%s1 + $0x860] sm:$0xff]
  %v318 = vld [vmem:[%s1 + $0x868] sm:$0xff]
  %v319 = vld [vmem:[%s1 + $0x870] sm:$0xff]
  %v320 = vld [vmem:[%s1 + $0x878] sm:$0xff]
  %v321 = vld [vmem:[%s1 + $0x880] sm:$0xff]
  %v322 = vld [vmem:[%s1 + $0x888] sm:$0xff]
  %v323 = vld [vmem:[%s1 + $0x890] sm:$0xff]
  %v324 = vld [vmem:[%s1 + $0x898] sm:$0xff]
  %v325 = vld [vmem:[%s1 + $0x8a0] sm:$0xff]
  %v326 = vld [vmem:[%s1 + $0x8a8] sm:$0xff]
  %v327 = vld [vmem:[%s1 + $0x8b0] sm:$0xff]
  %v328 = vld [vmem:[%s1 + $0x8b8] sm:$0xff]
  %v329 = vld [vmem:[%s1 + $0x8c0] sm:$0xff]
  %v330 = vld [vmem:[%s1 + $0x8c8] sm:$0xff]
  %v331 = vld [vmem:[%s1 + $0x8d0] sm:$0xff]
  %v332 = vld [vmem:[%s1 + $0x8d8] sm:$0xff]
  %v333 = vld [vmem:[%s1 + $0x8e0] sm:$0xff]
  %v334 = vld [vmem:[%s1 + $0x8e8] sm:$0xff]
  %v335 = vld [vmem:[%s1 + $0x8f0] sm:$0xff]
  %v336 = vld [vmem:[%s1 + $0x8f8] sm:$0xff]
  %v337 = vld [vmem:[%s1 + $0x900] sm:$0xff]
  %v338 = vld [vmem:[%s1 + $0x908] sm:$0xff]
  %v339 = vld [vmem:[%s1 + $0x910] sm:$0xff]
  %v340 = vld [vmem:[%s1 + $0x918] sm:$0xff]
  %v341 = vld [vmem:[%s1 + $0x920] sm:$0xff]
  %v342 = vld [vmem:[%s1 + $0x928] sm:$0xff]
  %v343 = vld [vmem:[%s1 + $0x930] sm:$0xff]
  %v344 = vld [vmem:[%s1 + $0x938] sm:$0xff]
  %v345 = vld [vmem:[%s1 + $0x940] sm:$0xff]
  %v346 = vld [vmem:[%s1 + $0x948] sm:$0xff]
  %v347 = vld [vmem:[%s1 + $0x950] sm:$0xff]
  %v348 = vld [vmem:[%s1 + $0x958] sm:$0xff]
  %v349 = vld [vmem:[%s1 + $0x960] sm:$0xff]
  %v350 = vld [vmem:[%s1 + $0x968] sm:$0xff]
  %v351 = vld [vmem:[%s1 + $0x970] sm:$0xff]
  %v352 = vld [vmem:[%s1 + $0x978] sm:$0xff]
  %v353 = vld [vmem:[%s1 + $0x980] sm:$0xff]
  %v354 = vld [vmem:[%s1 + $0x988] sm:$0xff]
  %v355 = vld [vmem:[%s1 + $0x990] sm:$0xff]
  %v356 = vld [vmem:[%s1 + $0x998] sm:$0xff]
  %v357 = vld [vmem:[%s1 + $0x9a0] sm:$0xff]
  %v358 = vld [vmem:[%s1 + $0x9a8] sm:$0xff]
  %v359 = vld [vmem:[%s1 + $0x9b0] sm:$0xff]
  %v360 = vld [vmem:[%s1 + $0x9b8] sm:$0xff]
  %v361 = vld [vmem:[%s1 + $0x9c0] sm:$0xff]
  %v362 = vld [vmem:[%s1 + $0x9c8] sm:$0xff]
  %v363 = vld [vmem:[%s1 + $0x9d0] sm:$0xff]
  %v364 = vld [vmem:[%s1 + $0x9d8] sm:$0xff]
  %v365 = vld [vmem:[%s1 + $0x9e0] sm:$0xff]
  %v366 = vld [vmem:[%s1 + $0x9e8] sm:$0xff]
  %v367 = vld [vmem:[%s1 + $0x9f0] sm:$0xff]
  %v368 = vld [vmem:[%s1 + $0x9f8] sm:$0xff]
  %v369 = vld [vmem:[%s1 + $0xa00] sm:$0xff]
  %v370 = vld [vmem:[%s1 + $0xa08] sm:$0xff]
  %v371 = vld [vmem:[%s1 + $0xa10] sm:$0xff]
  %v372 = vld [vmem:[%s1 + $0xa18] sm:$0xff]
  %v373 = vld [vmem:[%s1 + $0xa20] sm:$0xff]
  %v374 = vld [vmem:[%s1 + $0xa28] sm:$0xff]
  %v375 = vld [vmem:[%s1 + $0xa30] sm:$0xff]
  %v376 = vld [vmem:[%s1 + $0xa38] sm:$0xff]
  %v377 = vld [vmem:[%s1 + $0xa40] sm:$0xff]
  %v378 = vld [vmem:[%s1 + $0xa48] sm:$0xff]
  %v379 = vld [vmem:[%s1 + $0xa50] sm:$0xff]
  %v380 = vld [vmem:[%s1 + $0xa58] sm:$0xff]
  %v381 = vld [vmem:[%s1 + $0xa60] sm:$0xff]
  %v382 = vld [vmem:[%s1 + $0xa68] sm:$0xff]
  %v383 = vld [vmem:[%s1 + $0xa70] sm:$0xff]
  %v384 = vld [vmem:[%s1 + $0xa78] sm:$0xff]
  %v385 = vld [vmem:[%s1 + $0xa80] sm:$0xff]
  %v386 = vld [vmem:[%s1 + $0xa88] sm:$0xff]
  %v387 = vld [vmem:[%s1 + $0xa90] sm:$0xff]
  %v388 = vld [vmem:[%s1 + $0xa98] sm:$0xff]
  %v389 = vld [vmem:[%s1 + $0xaa0] sm:$0xff]
  %v390 = vld [vmem:[%s1 + $0xaa8] sm:$0xff]
  %v391 = vld [vmem:[%s1 + $0xab0] sm:$0xff]
  %v392 = vld [vmem:[%s1 + $0xab8] sm:$0xff]
  %v393 = vld [vmem:[%s1 + $0xac0] sm:$0xff]
  %v394 = vld [vmem:[%s1 + $0xac8] sm:$0xff]
  %v395 = vld [vmem:[%s1 + $0xad0] sm:$0xff]
  %v396 = vld [vmem:[%s1 + $0xad8] sm:$0xff]
  %v397 = vld [vmem:[%s1 + $0xae0] sm:$0xff]
  %v398 = vld [vmem:[%s1 + $0xae8] sm:$0xff]
  %v399 = vld [vmem:[%s1 + $0xaf0] sm:$0xff]
  %v400 = vld [vmem:[%s1 + $0xaf8] sm:$0xff]
  %v401 = vld [vmem:[%s1 + $0xb00] sm:$0xff]
  %v402 = vld [vmem:[%s1 + $0xb08] sm:$0xff]
  %v403 = vld [vmem:[%s1 + $0xb10] sm:$0xff]
  %v404 = vld [vmem:[%s1 + $0xb18] sm:$0xff]
  %v405 = vld [vmem:[%s1 + $0xb20] sm:$0xff]
  %v406 = vld [vmem:[%s1 + $0xb28] sm:$0xff]
  %v407 = vld [vmem:[%s1 + $0xb30] sm:$0xff]
  %v408 = vld [vmem:[%s1 + $0xb38] sm:$0xff]
  %v409 = vld [vmem:[%s1 + $0xb40] sm:$0xff]
  %v410 = vld [vmem:[%s1 + $0xb48] sm:$0xff]
  %v411 = vld [vmem:[%s1 + $0xb50] sm:$0xff]
  %v412 = vld [vmem:[%s1 + $0xb58] sm:$0xff]
  %v413 = vld [vmem:[%s1 + $0xb60] sm:$0xff]
  %v414 = vld [vmem:[%s1 + $0xb68] sm:$0xff]
  %v415 = vld [vmem:[%s1 + $0xb70] sm:$0xff]
  %v416 = vld [vmem:[%s1 + $0xb78] sm:$0xff]
  %v417 = vld [vmem:[%s1 + $0xb80] sm:$0xff]
  %v418 = vld [vmem:[%s1 + $0xb88] sm:$0xff]
  %v419 = vld [vmem:[%s1 + $0xb90] sm:$0xff]
  %v420 = vld [vmem:[%s1 + $0xb98] sm:$0xff]
  %v421 = vld [vmem:[%s1 + $0xba0] sm:$0xff]
  %v422 = vld [vmem:[%s1 + $0xba8] sm:$0xff]
  %v423 = vld [vmem:[%s1 + $0xbb0] sm:$0xff]
  %v424 = vld [vmem:[%s1 + $0xbb8] sm:$0xff]
  %v425 = vld [vmem:[%s1 + $0xbc0] sm:$0xff]
  %v426 = vld [vmem:[%s1 + $0xbc8] sm:$0xff]
  %v427 = vld [vmem:[%s1 + $0xbd0] sm:$0xff]
  %v428 = vld [vmem:[%s1 + $0xbd8] sm:$0xff]
  %v429 = vld [vmem:[%s1 + $0xbe0] sm:$0xff]
  %v430 = vld [vmem:[%s1 + $0xbe8] sm:$0xff]
  %v431 = vld [vmem:[%s1 + $0xbf0] sm:$0xff]
  %v432 = vld [vmem:[%s1 + $0xbf8] sm:$0xff]
  %v433 = vld [vmem:[%s2] sm:$0xf]
  %v435 = vperm.slane %v433, 0
  %v436 = vperm.slane %v433, 1
  %v437 = vperm.slane %v433, 2
  %v438 = vperm.slane %v433, 3
  %443 = vmatpush.msra.mxu0 %v109
  %444 = vmatpush.msra.mxu0 %v105
  %445 = vmatpush.msra.mxu0 %v101
  %446 = vmatpush.msra.mxu0 %v97
  %447 = vmatpush.msra.mxu0 %v93
  %448 = vmatpush.msra.mxu0 %v89
  %449 = vmatpush.msra.mxu0 %v85
  %450 = vmatpush.msra.mxu0 %v81
  %451 = vmatpush.msra.mxu0 %v77
  %452 = vmatpush.msra.mxu0 %v73
  %453 = vmatpush.msra.mxu0 %v69
  %454 = vmatpush.msra.mxu0 %v65
  %455 = vmatpush.msra.mxu0 %v61
  %456 = vmatpush.msra.mxu0 %v57
  %457 = vmatpush.msra.mxu0 %v53
  %458 = vmatpush.msra.mxu0 %v49
  %459 = vmatmul.f32.gmra.mxu0 %v25
  %v460 = vpop.f32.mrf.mxu0
  %v461 = vadd.f32 %v435, %v460
  %462 = vmatmul.f32.gmra.mxu0 %v31
  %v463 = vpop.f32.mrf.mxu0
  %v464 = vadd.f32 %v435, %v463
  %465 = vmatmul.f32.gmra.mxu0 %v37
  %v466 = vpop.f32.mrf.mxu0
  %v467 = vadd.f32 %v435, %v466
  %468 = vmatmul.f32.gmra.mxu0 %v43
  %v469 = vpop.f32.mrf.mxu0
  %v470 = vadd.f32 %v435, %v469
  %471 = vdwg.mxu0
  %472 = vmatpush.msra.mxu0 %v173
  %473 = vmatpush.msra.mxu0 %v169
  %474 = vmatpush.msra.mxu0 %v165
  %475 = vmatpush.msra.mxu0 %v161
  %476 = vmatpush.msra.mxu0 %v157
  %477 = vmatpush.msra.mxu0 %v153
  %478 = vmatpush.msra.mxu0 %v149
  %479 = vmatpush.msra.mxu0 %v145
  %480 = vmatpush.msra.mxu0 %v141
  %481 = vmatpush.msra.mxu0 %v137
  %482 = vmatpush.msra.mxu0 %v133
  %483 = vmatpush.msra.mxu0 %v129
  %484 = vmatpush.msra.mxu0 %v125
  %485 = vmatpush.msra.mxu0 %v121
  %486 = vmatpush.msra.mxu0 %v117
  %487 = vmatpush.msra.mxu0 %v113
  %488 = vmatmul.f32.gmra.mxu0 %v26
  %v489 = vpop.f32.mrf.mxu0
  %v490 = vadd.f32 %v461, %v489
  %491 = vmatmul.f32.gmra.mxu0 %v32
  %v492 = vpop.f32.mrf.mxu0
  %v493 = vadd.f32 %v464, %v492
  %494 = vmatmul.f32.gmra.mxu0 %v38
  %v495 = vpop.f32.mrf.mxu0
  %v496 = vadd.f32 %v467, %v495
  %497 = vmatmul.f32.gmra.mxu0 %v44
  %v498 = vpop.f32.mrf.mxu0
  %v499 = vadd.f32 %v470, %v498
  %500 = vdwg.mxu0
  %501 = vmatpush.msra.mxu0 %v237
  %502 = vmatpush.msra.mxu0 %v233
  %503 = vmatpush.msra.mxu0 %v229
  %504 = vmatpush.msra.mxu0 %v225
  %505 = vmatpush.msra.mxu0 %v221
  %506 = vmatpush.msra.mxu0 %v217
  %507 = vmatpush.msra.mxu0 %v213
  %508 = vmatpush.msra.mxu0 %v209
  %509 = vmatpush.msra.mxu0 %v205
  %510 = vmatpush.msra.mxu0 %v201
  %511 = vmatpush.msra.mxu0 %v197
  %512 = vmatpush.msra.mxu0 %v193
  %513 = vmatpush.msra.mxu0 %v189
  %514 = vmatpush.msra.mxu0 %v185
  %515 = vmatpush.msra.mxu0 %v181
  %516 = vmatpush.msra.mxu0 %v177
  %517 = vmatmul.f32.gmra.mxu0 %v27
  %v518 = vpop.f32.mrf.mxu0
  %v519 = vadd.f32 %v490, %v518
  %520 = vmatmul.f32.gmra.mxu0 %v33
  %v521 = vpop.f32.mrf.mxu0
  %v522 = vadd.f32 %v493, %v521
  %523 = vmatmul.f32.gmra.mxu0 %v39
  %v524 = vpop.f32.mrf.mxu0
  %v525 = vadd.f32 %v496, %v524
  %526 = vmatmul.f32.gmra.mxu0 %v45
  %v527 = vpop.f32.mrf.mxu0
  %v528 = vadd.f32 %v499, %v527
  %529 = vdwg.mxu0
  %530 = vmatpush.msra.mxu0 %v301
  %531 = vmatpush.msra.mxu0 %v297
  %532 = vmatpush.msra.mxu0 %v293
  %533 = vmatpush.msra.mxu0 %v289
  %534 = vmatpush.msra.mxu0 %v285
  %535 = vmatpush.msra.mxu0 %v281
  %536 = vmatpush.msra.mxu0 %v277
  %537 = vmatpush.msra.mxu0 %v273
  %538 = vmatpush.msra.mxu0 %v269
  %539 = vmatpush.msra.mxu0 %v265
  %540 = vmatpush.msra.mxu0 %v261
  %541 = vmatpush.msra.mxu0 %v257
  %542 = vmatpush.msra.mxu0 %v253
  %543 = vmatpush.msra.mxu0 %v249
  %544 = vmatpush.msra.mxu0 %v245
  %545 = vmatpush.msra.mxu0 %v241
  %546 = vmatmul.f32.gmra.mxu0 %v28
  %v547 = vpop.f32.mrf.mxu0
  %v548 = vadd.f32 %v519, %v547
  %549 = vmatmul.f32.gmra.mxu0 %v34
  %v550 = vpop.f32.mrf.mxu0
  %v551 = vadd.f32 %v522, %v550
  %552 = vmatmul.f32.gmra.mxu0 %v40
  %v553 = vpop.f32.mrf.mxu0
  %v554 = vadd.f32 %v525, %v553
  %555 = vmatmul.f32.gmra.mxu0 %v46
  %v556 = vpop.f32.mrf.mxu0
  %v557 = vadd.f32 %v528, %v556
  %558 = vdwg.mxu0
  %559 = vmatpush.msra.mxu0 %v365
  %560 = vmatpush.msra.mxu0 %v361
  %561 = vmatpush.msra.mxu0 %v357
  %562 = vmatpush.msra.mxu0 %v353
  %563 = vmatpush.msra.mxu0 %v349
  %564 = vmatpush.msra.mxu0 %v345
  %565 = vmatpush.msra.mxu0 %v341
  %566 = vmatpush.msra.mxu0 %v337
  %567 = vmatpush.msra.mxu0 %v333
  %568 = vmatpush.msra.mxu0 %v329
  %569 = vmatpush.msra.mxu0 %v325
  %570 = vmatpush.msra.mxu0 %v321
  %571 = vmatpush.msra.mxu0 %v317
  %572 = vmatpush.msra.mxu0 %v313
  %573 = vmatpush.msra.mxu0 %v309
  %574 = vmatpush.msra.mxu0 %v305
  %575 = vmatmul.f32.gmra.mxu0 %v29
  %v576 = vpop.f32.mrf.mxu0
  %v577 = vadd.f32 %v548, %v576
  %578 = vmatmul.f32.gmra.mxu0 %v35
  %v579 = vpop.f32.mrf.mxu0
  %v580 = vadd.f32 %v551, %v579
  %581 = vmatmul.f32.gmra.mxu0 %v41
  %v582 = vpop.f32.mrf.mxu0
  %v583 = vadd.f32 %v554, %v582
  %584 = vmatmul.f32.gmra.mxu0 %v47
  %v585 = vpop.f32.mrf.mxu0
  %v586 = vadd.f32 %v557, %v585
  %587 = vdwg.mxu0
  %588 = vmatpush.msra.mxu0 %v429
  %589 = vmatpush.msra.mxu0 %v425
  %590 = vmatpush.msra.mxu0 %v421
  %591 = vmatpush.msra.mxu0 %v417
  %592 = vmatpush.msra.mxu0 %v413
  %593 = vmatpush.msra.mxu0 %v409
  %594 = vmatpush.msra.mxu0 %v405
  %595 = vmatpush.msra.mxu0 %v401
  %596 = vmatpush.msra.mxu0 %v397
  %597 = vmatpush.msra.mxu0 %v393
  %598 = vmatpush.msra.mxu0 %v389
  %599 = vmatpush.msra.mxu0 %v385
  %600 = vmatpush.msra.mxu0 %v381
  %601 = vmatpush.msra.mxu0 %v377
  %602 = vmatpush.msra.mxu0 %v373
  %603 = vmatpush.msra.mxu0 %v369
  %604 = vmatmul.f32.gmra.mxu0 %v30
  %v605 = vpop.f32.mrf.mxu0
  %v606 = vadd.f32 %v577, %v605
  %607 = vmatmul.f32.gmra.mxu0 %v36
  %v608 = vpop.f32.mrf.mxu0
  %v609 = vadd.f32 %v580, %v608
  %610 = vmatmul.f32.gmra.mxu0 %v42
  %v611 = vpop.f32.mrf.mxu0
  %v612 = vadd.f32 %v583, %v611
  %613 = vmatmul.f32.gmra.mxu0 %v48
  %v614 = vpop.f32.mrf.mxu0
  %v615 = vadd.f32 %v586, %v614
  %616 = vdwg.mxu0
  %617 = vmatpush.msra.mxu0 %v110
  %618 = vmatpush.msra.mxu0 %v106
  %619 = vmatpush.msra.mxu0 %v102
  %620 = vmatpush.msra.mxu0 %v98
  %621 = vmatpush.msra.mxu0 %v94
  %622 = vmatpush.msra.mxu0 %v90
  %623 = vmatpush.msra.mxu0 %v86
  %624 = vmatpush.msra.mxu0 %v82
  %625 = vmatpush.msra.mxu0 %v78
  %626 = vmatpush.msra.mxu0 %v74
  %627 = vmatpush.msra.mxu0 %v70
  %628 = vmatpush.msra.mxu0 %v66
  %629 = vmatpush.msra.mxu0 %v62
  %630 = vmatpush.msra.mxu0 %v58
  %631 = vmatpush.msra.mxu0 %v54
  %632 = vmatpush.msra.mxu0 %v50
  %633 = vmatmul.f32.gmra.mxu0 %v25
  %v634 = vpop.f32.mrf.mxu0
  %v635 = vadd.f32 %v436, %v634
  %636 = vmatmul.f32.gmra.mxu0 %v31
  %v637 = vpop.f32.mrf.mxu0
  %v638 = vadd.f32 %v436, %v637
  %639 = vmatmul.f32.gmra.mxu0 %v37
  %v640 = vpop.f32.mrf.mxu0
  %v641 = vadd.f32 %v436, %v640
  %642 = vmatmul.f32.gmra.mxu0 %v43
  %v643 = vpop.f32.mrf.mxu0
  %v644 = vadd.f32 %v436, %v643
  %645 = vdwg.mxu0
  %646 = vmatpush.msra.mxu0 %v174
  %647 = vmatpush.msra.mxu0 %v170
  %648 = vmatpush.msra.mxu0 %v166
  %649 = vmatpush.msra.mxu0 %v162
  %650 = vmatpush.msra.mxu0 %v158
  %651 = vmatpush.msra.mxu0 %v154
  %652 = vmatpush.msra.mxu0 %v150
  %653 = vmatpush.msra.mxu0 %v146
  %654 = vmatpush.msra.mxu0 %v142
  %655 = vmatpush.msra.mxu0 %v138
  %656 = vmatpush.msra.mxu0 %v134
  %657 = vmatpush.msra.mxu0 %v130
  %658 = vmatpush.msra.mxu0 %v126
  %659 = vmatpush.msra.mxu0 %v122
  %660 = vmatpush.msra.mxu0 %v118
  %661 = vmatpush.msra.mxu0 %v114
  %662 = vmatmul.f32.gmra.mxu0 %v26
  %v663 = vpop.f32.mrf.mxu0
  %v664 = vadd.f32 %v635, %v663
  %665 = vmatmul.f32.gmra.mxu0 %v32
  %v666 = vpop.f32.mrf.mxu0
  %v667 = vadd.f32 %v638, %v666
  %668 = vmatmul.f32.gmra.mxu0 %v38
  %v669 = vpop.f32.mrf.mxu0
  %v670 = vadd.f32 %v641, %v669
  %671 = vmatmul.f32.gmra.mxu0 %v44
  %v672 = vpop.f32.mrf.mxu0
  %v673 = vadd.f32 %v644, %v672
  %674 = vdwg.mxu0
  %675 = vmatpush.msra.mxu0 %v238
  %676 = vmatpush.msra.mxu0 %v234
  %677 = vmatpush.msra.mxu0 %v230
  %678 = vmatpush.msra.mxu0 %v226
  %679 = vmatpush.msra.mxu0 %v222
  %680 = vmatpush.msra.mxu0 %v218
  %681 = vmatpush.msra.mxu0 %v214
  %682 = vmatpush.msra.mxu0 %v210
  %683 = vmatpush.msra.mxu0 %v206
  %684 = vmatpush.msra.mxu0 %v202
  %685 = vmatpush.msra.mxu0 %v198
  %686 = vmatpush.msra.mxu0 %v194
  %687 = vmatpush.msra.mxu0 %v190
  %688 = vmatpush.msra.mxu0 %v186
  %689 = vmatpush.msra.mxu0 %v182
  %690 = vmatpush.msra.mxu0 %v178
  %691 = vmatmul.f32.gmra.mxu0 %v27
  %v692 = vpop.f32.mrf.mxu0
  %v693 = vadd.f32 %v664, %v692
  %694 = vmatmul.f32.gmra.mxu0 %v33
  %v695 = vpop.f32.mrf.mxu0
  %v696 = vadd.f32 %v667, %v695
  %697 = vmatmul.f32.gmra.mxu0 %v39
  %v698 = vpop.f32.mrf.mxu0
  %v699 = vadd.f32 %v670, %v698
  %700 = vmatmul.f32.gmra.mxu0 %v45
  %v701 = vpop.f32.mrf.mxu0
  %v702 = vadd.f32 %v673, %v701
  %703 = vdwg.mxu0
  %704 = vmatpush.msra.mxu0 %v302
  %705 = vmatpush.msra.mxu0 %v298
  %706 = vmatpush.msra.mxu0 %v294
  %707 = vmatpush.msra.mxu0 %v290
  %708 = vmatpush.msra.mxu0 %v286
  %709 = vmatpush.msra.mxu0 %v282
  %710 = vmatpush.msra.mxu0 %v278
  %711 = vmatpush.msra.mxu0 %v274
  %712 = vmatpush.msra.mxu0 %v270
  %713 = vmatpush.msra.mxu0 %v266
  %714 = vmatpush.msra.mxu0 %v262
  %715 = vmatpush.msra.mxu0 %v258
  %716 = vmatpush.msra.mxu0 %v254
  %717 = vmatpush.msra.mxu0 %v250
  %718 = vmatpush.msra.mxu0 %v246
  %719 = vmatpush.msra.mxu0 %v242
  %720 = vmatmul.f32.gmra.mxu0 %v28
  %v721 = vpop.f32.mrf.mxu0
  %v722 = vadd.f32 %v693, %v721
  %723 = vmatmul.f32.gmra.mxu0 %v34
  %v724 = vpop.f32.mrf.mxu0
  %v725 = vadd.f32 %v696, %v724
  %726 = vmatmul.f32.gmra.mxu0 %v40
  %v727 = vpop.f32.mrf.mxu0
  %v728 = vadd.f32 %v699, %v727
  %729 = vmatmul.f32.gmra.mxu0 %v46
  %v730 = vpop.f32.mrf.mxu0
  %v731 = vadd.f32 %v702, %v730
  %732 = vdwg.mxu0
  %733 = vmatpush.msra.mxu0 %v366
  %734 = vmatpush.msra.mxu0 %v362
  %735 = vmatpush.msra.mxu0 %v358
  %736 = vmatpush.msra.mxu0 %v354
  %737 = vmatpush.msra.mxu0 %v350
  %738 = vmatpush.msra.mxu0 %v346
  %739 = vmatpush.msra.mxu0 %v342
  %740 = vmatpush.msra.mxu0 %v338
  %741 = vmatpush.msra.mxu0 %v334
  %742 = vmatpush.msra.mxu0 %v330
  %743 = vmatpush.msra.mxu0 %v326
  %744 = vmatpush.msra.mxu0 %v322
  %745 = vmatpush.msra.mxu0 %v318
  %746 = vmatpush.msra.mxu0 %v314
  %747 = vmatpush.msra.mxu0 %v310
  %748 = vmatpush.msra.mxu0 %v306
  %749 = vmatmul.f32.gmra.mxu0 %v29
  %v750 = vpop.f32.mrf.mxu0
  %v751 = vadd.f32 %v722, %v750
  %752 = vmatmul.f32.gmra.mxu0 %v35
  %v753 = vpop.f32.mrf.mxu0
  %v754 = vadd.f32 %v725, %v753
  %755 = vmatmul.f32.gmra.mxu0 %v41
  %v756 = vpop.f32.mrf.mxu0
  %v757 = vadd.f32 %v728, %v756
  %758 = vmatmul.f32.gmra.mxu0 %v47
  %v759 = vpop.f32.mrf.mxu0
  %v760 = vadd.f32 %v731, %v759
  %761 = vdwg.mxu0
  %762 = vmatpush.msra.mxu0 %v430
  %763 = vmatpush.msra.mxu0 %v426
  %764 = vmatpush.msra.mxu0 %v422
  %765 = vmatpush.msra.mxu0 %v418
  %766 = vmatpush.msra.mxu0 %v414
  %767 = vmatpush.msra.mxu0 %v410
  %768 = vmatpush.msra.mxu0 %v406
  %769 = vmatpush.msra.mxu0 %v402
  %770 = vmatpush.msra.mxu0 %v398
  %771 = vmatpush.msra.mxu0 %v394
  %772 = vmatpush.msra.mxu0 %v390
  %773 = vmatpush.msra.mxu0 %v386
  %774 = vmatpush.msra.mxu0 %v382
  %775 = vmatpush.msra.mxu0 %v378
  %776 = vmatpush.msra.mxu0 %v374
  %777 = vmatpush.msra.mxu0 %v370
  %778 = vmatmul.f32.gmra.mxu0 %v30
  %v779 = vpop.f32.mrf.mxu0
  %v780 = vadd.f32 %v751, %v779
  %781 = vmatmul.f32.gmra.mxu0 %v36
  %v782 = vpop.f32.mrf.mxu0
  %v783 = vadd.f32 %v754, %v782
  %784 = vmatmul.f32.gmra.mxu0 %v42
  %v785 = vpop.f32.mrf.mxu0
  %v786 = vadd.f32 %v757, %v785
  %787 = vmatmul.f32.gmra.mxu0 %v48
  %v788 = vpop.f32.mrf.mxu0
  %v789 = vadd.f32 %v760, %v788
  %790 = vdwg.mxu0
  %791 = vmatpush.msra.mxu0 %v111
  %792 = vmatpush.msra.mxu0 %v107
  %793 = vmatpush.msra.mxu0 %v103
  %794 = vmatpush.msra.mxu0 %v99
  %795 = vmatpush.msra.mxu0 %v95
  %796 = vmatpush.msra.mxu0 %v91
  %797 = vmatpush.msra.mxu0 %v87
  %798 = vmatpush.msra.mxu0 %v83
  %799 = vmatpush.msra.mxu0 %v79
  %800 = vmatpush.msra.mxu0 %v75
  %801 = vmatpush.msra.mxu0 %v71
  %802 = vmatpush.msra.mxu0 %v67
  %803 = vmatpush.msra.mxu0 %v63
  %804 = vmatpush.msra.mxu0 %v59
  %805 = vmatpush.msra.mxu0 %v55
  %806 = vmatpush.msra.mxu0 %v51
  %807 = vmatmul.f32.gmra.mxu0 %v25
  %v808 = vpop.f32.mrf.mxu0
  %v809 = vadd.f32 %v437, %v808
  %810 = vmatmul.f32.gmra.mxu0 %v31
  %v811 = vpop.f32.mrf.mxu0
  %v812 = vadd.f32 %v437, %v811
  %813 = vmatmul.f32.gmra.mxu0 %v37
  %v814 = vpop.f32.mrf.mxu0
  %v815 = vadd.f32 %v437, %v814
  %816 = vmatmul.f32.gmra.mxu0 %v43
  %v817 = vpop.f32.mrf.mxu0
  %v818 = vadd.f32 %v437, %v817
  %819 = vdwg.mxu0
  %820 = vmatpush.msra.mxu0 %v175
  %821 = vmatpush.msra.mxu0 %v171
  %822 = vmatpush.msra.mxu0 %v167
  %823 = vmatpush.msra.mxu0 %v163
  %824 = vmatpush.msra.mxu0 %v159
  %825 = vmatpush.msra.mxu0 %v155
  %826 = vmatpush.msra.mxu0 %v151
  %827 = vmatpush.msra.mxu0 %v147
  %828 = vmatpush.msra.mxu0 %v143
  %829 = vmatpush.msra.mxu0 %v139
  %830 = vmatpush.msra.mxu0 %v135
  %831 = vmatpush.msra.mxu0 %v131
  %832 = vmatpush.msra.mxu0 %v127
  %833 = vmatpush.msra.mxu0 %v123
  %834 = vmatpush.msra.mxu0 %v119
  %835 = vmatpush.msra.mxu0 %v115
  %836 = vmatmul.f32.gmra.mxu0 %v26
  %v837 = vpop.f32.mrf.mxu0
  %v838 = vadd.f32 %v809, %v837
  %839 = vmatmul.f32.gmra.mxu0 %v32
  %v840 = vpop.f32.mrf.mxu0
  %v841 = vadd.f32 %v812, %v840
  %842 = vmatmul.f32.gmra.mxu0 %v38
  %v843 = vpop.f32.mrf.mxu0
  %v844 = vadd.f32 %v815, %v843
  %845 = vmatmul.f32.gmra.mxu0 %v44
  %v846 = vpop.f32.mrf.mxu0
  %v847 = vadd.f32 %v818, %v846
  %848 = vdwg.mxu0
  %849 = vmatpush.msra.mxu0 %v239
  %850 = vmatpush.msra.mxu0 %v235
  %851 = vmatpush.msra.mxu0 %v231
  %852 = vmatpush.msra.mxu0 %v227
  %853 = vmatpush.msra.mxu0 %v223
  %854 = vmatpush.msra.mxu0 %v219
  %855 = vmatpush.msra.mxu0 %v215
  %856 = vmatpush.msra.mxu0 %v211
  %857 = vmatpush.msra.mxu0 %v207
  %858 = vmatpush.msra.mxu0 %v203
  %859 = vmatpush.msra.mxu0 %v199
  %860 = vmatpush.msra.mxu0 %v195
  %861 = vmatpush.msra.mxu0 %v191
  %862 = vmatpush.msra.mxu0 %v187
  %863 = vmatpush.msra.mxu0 %v183
  %864 = vmatpush.msra.mxu0 %v179
  %865 = vmatmul.f32.gmra.mxu0 %v27
  %v866 = vpop.f32.mrf.mxu0
  %v867 = vadd.f32 %v838, %v866
  %868 = vmatmul.f32.gmra.mxu0 %v33
  %v869 = vpop.f32.mrf.mxu0
  %v870 = vadd.f32 %v841, %v869
  %871 = vmatmul.f32.gmra.mxu0 %v39
  %v872 = vpop.f32.mrf.mxu0
  %v873 = vadd.f32 %v844, %v872
  %874 = vmatmul.f32.gmra.mxu0 %v45
  %v875 = vpop.f32.mrf.mxu0
  %v876 = vadd.f32 %v847, %v875
  %877 = vdwg.mxu0
  %878 = vmatpush.msra.mxu0 %v303
  %879 = vmatpush.msra.mxu0 %v299
  %880 = vmatpush.msra.mxu0 %v295
  %881 = vmatpush.msra.mxu0 %v291
  %882 = vmatpush.msra.mxu0 %v287
  %883 = vmatpush.msra.mxu0 %v283
  %884 = vmatpush.msra.mxu0 %v279
  %885 = vmatpush.msra.mxu0 %v275
  %886 = vmatpush.msra.mxu0 %v271
  %887 = vmatpush.msra.mxu0 %v267
  %888 = vmatpush.msra.mxu0 %v263
  %889 = vmatpush.msra.mxu0 %v259
  %890 = vmatpush.msra.mxu0 %v255
  %891 = vmatpush.msra.mxu0 %v251
  %892 = vmatpush.msra.mxu0 %v247
  %893 = vmatpush.msra.mxu0 %v243
  %894 = vmatmul.f32.gmra.mxu0 %v28
  %v895 = vpop.f32.mrf.mxu0
  %v896 = vadd.f32 %v867, %v895
  %897 = vmatmul.f32.gmra.mxu0 %v34
  %v898 = vpop.f32.mrf.mxu0
  %v899 = vadd.f32 %v870, %v898
  %900 = vmatmul.f32.gmra.mxu0 %v40
  %v901 = vpop.f32.mrf.mxu0
  %v902 = vadd.f32 %v873, %v901
  %903 = vmatmul.f32.gmra.mxu0 %v46
  %v904 = vpop.f32.mrf.mxu0
  %v905 = vadd.f32 %v876, %v904
  %906 = vdwg.mxu0
  %907 = vmatpush.msra.mxu0 %v367
  %908 = vmatpush.msra.mxu0 %v363
  %909 = vmatpush.msra.mxu0 %v359
  %910 = vmatpush.msra.mxu0 %v355
  %911 = vmatpush.msra.mxu0 %v351
  %912 = vmatpush.msra.mxu0 %v347
  %913 = vmatpush.msra.mxu0 %v343
  %914 = vmatpush.msra.mxu0 %v339
  %915 = vmatpush.msra.mxu0 %v335
  %916 = vmatpush.msra.mxu0 %v331
  %917 = vmatpush.msra.mxu0 %v327
  %918 = vmatpush.msra.mxu0 %v323
  %919 = vmatpush.msra.mxu0 %v319
  %920 = vmatpush.msra.mxu0 %v315
  %921 = vmatpush.msra.mxu0 %v311
  %922 = vmatpush.msra.mxu0 %v307
  %923 = vmatmul.f32.gmra.mxu0 %v29
  %v924 = vpop.f32.mrf.mxu0
  %v925 = vadd.f32 %v896, %v924
  %926 = vmatmul.f32.gmra.mxu0 %v35
  %v927 = vpop.f32.mrf.mxu0
  %v928 = vadd.f32 %v899, %v927
  %929 = vmatmul.f32.gmra.mxu0 %v41
  %v930 = vpop.f32.mrf.mxu0
  %v931 = vadd.f32 %v902, %v930
  %932 = vmatmul.f32.gmra.mxu0 %v47
  %v933 = vpop.f32.mrf.mxu0
  %v934 = vadd.f32 %v905, %v933
  %935 = vdwg.mxu0
  %936 = vmatpush.msra.mxu0 %v431
  %937 = vmatpush.msra.mxu0 %v427
  %938 = vmatpush.msra.mxu0 %v423
  %939 = vmatpush.msra.mxu0 %v419
  %940 = vmatpush.msra.mxu0 %v415
  %941 = vmatpush.msra.mxu0 %v411
  %942 = vmatpush.msra.mxu0 %v407
  %943 = vmatpush.msra.mxu0 %v403
  %944 = vmatpush.msra.mxu0 %v399
  %945 = vmatpush.msra.mxu0 %v395
  %946 = vmatpush.msra.mxu0 %v391
  %947 = vmatpush.msra.mxu0 %v387
  %948 = vmatpush.msra.mxu0 %v383
  %949 = vmatpush.msra.mxu0 %v379
  %950 = vmatpush.msra.mxu0 %v375
  %951 = vmatpush.msra.mxu0 %v371
  %952 = vmatmul.f32.gmra.mxu0 %v30
  %v953 = vpop.f32.mrf.mxu0
  %v954 = vadd.f32 %v925, %v953
  %955 = vmatmul.f32.gmra.mxu0 %v36
  %v956 = vpop.f32.mrf.mxu0
  %v957 = vadd.f32 %v928, %v956
  %958 = vmatmul.f32.gmra.mxu0 %v42
  %v959 = vpop.f32.mrf.mxu0
  %v960 = vadd.f32 %v931, %v959
  %961 = vmatmul.f32.gmra.mxu0 %v48
  %v962 = vpop.f32.mrf.mxu0
  %v963 = vadd.f32 %v934, %v962
  %964 = vdwg.mxu0
  %965 = vmatpush.msra.mxu0 %v112
  %966 = vmatpush.msra.mxu0 %v108
  %967 = vmatpush.msra.mxu0 %v104
  %968 = vmatpush.msra.mxu0 %v100
  %969 = vmatpush.msra.mxu0 %v96
  %970 = vmatpush.msra.mxu0 %v92
  %971 = vmatpush.msra.mxu0 %v88
  %972 = vmatpush.msra.mxu0 %v84
  %973 = vmatpush.msra.mxu0 %v80
  %974 = vmatpush.msra.mxu0 %v76
  %975 = vmatpush.msra.mxu0 %v72
  %976 = vmatpush.msra.mxu0 %v68
  %977 = vmatpush.msra.mxu0 %v64
  %978 = vmatpush.msra.mxu0 %v60
  %979 = vmatpush.msra.mxu0 %v56
  %980 = vmatpush.msra.mxu0 %v52
  %981 = vmatmul.f32.gmra.mxu0 %v25
  %v982 = vpop.f32.mrf.mxu0
  %v983 = vadd.f32 %v438, %v982
  %984 = vmatmul.f32.gmra.mxu0 %v31
  %v985 = vpop.f32.mrf.mxu0
  %v986 = vadd.f32 %v438, %v985
  %987 = vmatmul.f32.gmra.mxu0 %v37
  %v988 = vpop.f32.mrf.mxu0
  %v989 = vadd.f32 %v438, %v988
  %990 = vmatmul.f32.gmra.mxu0 %v43
  %v991 = vpop.f32.mrf.mxu0
  %v992 = vadd.f32 %v438, %v991
  %993 = vdwg.mxu0
  %994 = vmatpush.msra.mxu0 %v176
  %995 = vmatpush.msra.mxu0 %v172
  %996 = vmatpush.msra.mxu0 %v168
  %997 = vmatpush.msra.mxu0 %v164
  %998 = vmatpush.msra.mxu0 %v160
  %999 = vmatpush.msra.mxu0 %v156
  %1000 = vmatpush.msra.mxu0 %v152
  %1001 = vmatpush.msra.mxu0 %v148
  %1002 = vmatpush.msra.mxu0 %v144
  %1003 = vmatpush.msra.mxu0 %v140
  %1004 = vmatpush.msra.mxu0 %v136
  %1005 = vmatpush.msra.mxu0 %v132
  %1006 = vmatpush.msra.mxu0 %v128
  %1007 = vmatpush.msra.mxu0 %v124
  %1008 = vmatpush.msra.mxu0 %v120
  %1009 = vmatpush.msra.mxu0 %v116
  %1010 = vmatmul.f32.gmra.mxu0 %v26
  %v1011 = vpop.f32.mrf.mxu0
  %v1012 = vadd.f32 %v983, %v1011
  %1013 = vmatmul.f32.gmra.mxu0 %v32
  %v1014 = vpop.f32.mrf.mxu0
  %v1015 = vadd.f32 %v986, %v1014
  %1016 = vmatmul.f32.gmra.mxu0 %v38
  %v1017 = vpop.f32.mrf.mxu0
  %v1018 = vadd.f32 %v989, %v1017
  %1019 = vmatmul.f32.gmra.mxu0 %v44
  %v1020 = vpop.f32.mrf.mxu0
  %v1021 = vadd.f32 %v992, %v1020
  %1022 = vdwg.mxu0
  %1023 = vmatpush.msra.mxu0 %v240
  %1024 = vmatpush.msra.mxu0 %v236
  %1025 = vmatpush.msra.mxu0 %v232
  %1026 = vmatpush.msra.mxu0 %v228
  %1027 = vmatpush.msra.mxu0 %v224
  %1028 = vmatpush.msra.mxu0 %v220
  %1029 = vmatpush.msra.mxu0 %v216
  %1030 = vmatpush.msra.mxu0 %v212
  %1031 = vmatpush.msra.mxu0 %v208
  %1032 = vmatpush.msra.mxu0 %v204
  %1033 = vmatpush.msra.mxu0 %v200
  %1034 = vmatpush.msra.mxu0 %v196
  %1035 = vmatpush.msra.mxu0 %v192
  %1036 = vmatpush.msra.mxu0 %v188
  %1037 = vmatpush.msra.mxu0 %v184
  %1038 = vmatpush.msra.mxu0 %v180
  %1039 = vmatmul.f32.gmra.mxu0 %v27
  %v1040 = vpop.f32.mrf.mxu0
  %v1041 = vadd.f32 %v1012, %v1040
  %1042 = vmatmul.f32.gmra.mxu0 %v33
  %v1043 = vpop.f32.mrf.mxu0
  %v1044 = vadd.f32 %v1015, %v1043
  %1045 = vmatmul.f32.gmra.mxu0 %v39
  %v1046 = vpop.f32.mrf.mxu0
  %v1047 = vadd.f32 %v1018, %v1046
  %1048 = vmatmul.f32.gmra.mxu0 %v45
  %v1049 = vpop.f32.mrf.mxu0
  %v1050 = vadd.f32 %v1021, %v1049
  %1051 = vdwg.mxu0
  %1052 = vmatpush.msra.mxu0 %v304
  %1053 = vmatpush.msra.mxu0 %v300
  %1054 = vmatpush.msra.mxu0 %v296
  %1055 = vmatpush.msra.mxu0 %v292
  %1056 = vmatpush.msra.mxu0 %v288
  %1057 = vmatpush.msra.mxu0 %v284
  %1058 = vmatpush.msra.mxu0 %v280
  %1059 = vmatpush.msra.mxu0 %v276
  %1060 = vmatpush.msra.mxu0 %v272
  %1061 = vmatpush.msra.mxu0 %v268
  %1062 = vmatpush.msra.mxu0 %v264
  %1063 = vmatpush.msra.mxu0 %v260
  %1064 = vmatpush.msra.mxu0 %v256
  %1065 = vmatpush.msra.mxu0 %v252
  %1066 = vmatpush.msra.mxu0 %v248
  %1067 = vmatpush.msra.mxu0 %v244
  %1068 = vmatmul.f32.gmra.mxu0 %v28
  %v1069 = vpop.f32.mrf.mxu0
  %v1070 = vadd.f32 %v1041, %v1069
  %1071 = vmatmul.f32.gmra.mxu0 %v34
  %v1072 = vpop.f32.mrf.mxu0
  %v1073 = vadd.f32 %v1044, %v1072
  %1074 = vmatmul.f32.gmra.mxu0 %v40
  %v1075 = vpop.f32.mrf.mxu0
  %v1076 = vadd.f32 %v1047, %v1075
  %1077 = vmatmul.f32.gmra.mxu0 %v46
  %v1078 = vpop.f32.mrf.mxu0
  %v1079 = vadd.f32 %v1050, %v1078
  %1080 = vdwg.mxu0
  %1081 = vmatpush.msra.mxu0 %v368
  %1082 = vmatpush.msra.mxu0 %v364
  %1083 = vmatpush.msra.mxu0 %v360
  %1084 = vmatpush.msra.mxu0 %v356
  %1085 = vmatpush.msra.mxu0 %v352
  %1086 = vmatpush.msra.mxu0 %v348
  %1087 = vmatpush.msra.mxu0 %v344
  %1088 = vmatpush.msra.mxu0 %v340
  %1089 = vmatpush.msra.mxu0 %v336
  %1090 = vmatpush.msra.mxu0 %v332
  %1091 = vmatpush.msra.mxu0 %v328
  %1092 = vmatpush.msra.mxu0 %v324
  %1093 = vmatpush.msra.mxu0 %v320
  %1094 = vmatpush.msra.mxu0 %v316
  %1095 = vmatpush.msra.mxu0 %v312
  %1096 = vmatpush.msra.mxu0 %v308
  %1097 = vmatmul.f32.gmra.mxu0 %v29
  %v1098 = vpop.f32.mrf.mxu0
  %v1099 = vadd.f32 %v1070, %v1098
  %1100 = vmatmul.f32.gmra.mxu0 %v35
  %v1101 = vpop.f32.mrf.mxu0
  %v1102 = vadd.f32 %v1073, %v1101
  %1103 = vmatmul.f32.gmra.mxu0 %v41
  %v1104 = vpop.f32.mrf.mxu0
  %v1105 = vadd.f32 %v1076, %v1104
  %1106 = vmatmul.f32.gmra.mxu0 %v47
  %v1107 = vpop.f32.mrf.mxu0
  %v1108 = vadd.f32 %v1079, %v1107
  %1109 = vdwg.mxu0
  %1110 = vmatpush.msra.mxu0 %v432
  %1111 = vmatpush.msra.mxu0 %v428
  %1112 = vmatpush.msra.mxu0 %v424
  %1113 = vmatpush.msra.mxu0 %v420
  %1114 = vmatpush.msra.mxu0 %v416
  %1115 = vmatpush.msra.mxu0 %v412
  %1116 = vmatpush.msra.mxu0 %v408
  %1117 = vmatpush.msra.mxu0 %v404
  %1118 = vmatpush.msra.mxu0 %v400
  %1119 = vmatpush.msra.mxu0 %v396
  %1120 = vmatpush.msra.mxu0 %v392
  %1121 = vmatpush.msra.mxu0 %v388
  %1122 = vmatpush.msra.mxu0 %v384
  %1123 = vmatpush.msra.mxu0 %v380
  %1124 = vmatpush.msra.mxu0 %v376
  %1125 = vmatpush.msra.mxu0 %v372
  %1126 = vmatmul.f32.gmra.mxu0 %v30
  %v1127 = vpop.f32.mrf.mxu0
  %v1128 = vadd.f32 %v1099, %v1127
  %1129 = vmatmul.f32.gmra.mxu0 %v36
  %v1130 = vpop.f32.mrf.mxu0
  %v1131 = vadd.f32 %v1102, %v1130
  %1132 = vmatmul.f32.gmra.mxu0 %v42
  %v1133 = vpop.f32.mrf.mxu0
  %v1134 = vadd.f32 %v1105, %v1133
  %1135 = vmatmul.f32.gmra.mxu0 %v48
  %v1136 = vpop.f32.mrf.mxu0
  %v1137 = vadd.f32 %v1108, %v1136
  %1138 = vdwg.mxu0
  %1139 = vst [vmem:[%s6] sm:$0xff] %v606
  %1140 = vst [vmem:[%s6 + $0x8] sm:$0xff] %v780
  %1141 = vst [vmem:[%s6 + $0x10] sm:$0xff] %v954
  %1142 = vst [vmem:[%s6 + $0x18] sm:$0xff] %v1128
  %1143 = vst [vmem:[%s6 + $0x20] sm:$0xff] %v609
  %1144 = vst [vmem:[%s6 + $0x28] sm:$0xff] %v783
  %1145 = vst [vmem:[%s6 + $0x30] sm:$0xff] %v957
  %1146 = vst [vmem:[%s6 + $0x38] sm:$0xff] %v1131
  %1147 = vst [vmem:[%s6 + $0x40] sm:$0xff] %v612
  %1148 = vst [vmem:[%s6 + $0x48] sm:$0xff] %v786
  %1149 = vst [vmem:[%s6 + $0x50] sm:$0xff] %v960
  %1150 = vst [vmem:[%s6 + $0x58] sm:$0xff] %v1134
  %1151 = vst [vmem:[%s6 + $0x60] sm:$0xff] %v615
  %1152 = vst [vmem:[%s6 + $0x68] sm:$0xff] %v789
  %1153 = vst [vmem:[%s6 + $0x70] sm:$0xff] %v963
  %1154 = vst [vmem:[%s6 + $0x78] sm:$0xff] %v1137
  %v1155 = vld [vmem:[%s3] sm:$0xff]
  %v1156 = vld [vmem:[%s3 + $0x8] sm:$0xff]
  %v1157 = vld [vmem:[%s3 + $0x10] sm:$0xff]
  %v1158 = vld [vmem:[%s3 + $0x18] sm:$0xff]
  %v1159 = vld [vmem:[%s3 + $0x20] sm:$0xff]
  %v1160 = vld [vmem:[%s3 + $0x28] sm:$0xff]
  %v1161 = vld [vmem:[%s3 + $0x30] sm:$0xff]
  %v1162 = vld [vmem:[%s3 + $0x38] sm:$0xff]
  %v1163 = vld [vmem:[%s3 + $0x40] sm:$0xff]
  %v1164 = vld [vmem:[%s3 + $0x48] sm:$0xff]
  %v1165 = vld [vmem:[%s3 + $0x50] sm:$0xff]
  %v1166 = vld [vmem:[%s3 + $0x58] sm:$0xff]
  %v1167 = vld [vmem:[%s3 + $0x60] sm:$0xff]
  %v1168 = vld [vmem:[%s3 + $0x68] sm:$0xff]
  %v1169 = vld [vmem:[%s3 + $0x70] sm:$0xff]
  %v1170 = vld [vmem:[%s3 + $0x78] sm:$0xff]
  %v1171 = vld [vmem:[%s3 + $0x80] sm:$0xff]
  %v1172 = vld [vmem:[%s3 + $0x88] sm:$0xff]
  %v1173 = vld [vmem:[%s3 + $0x90] sm:$0xff]
  %v1174 = vld [vmem:[%s3 + $0x98] sm:$0xff]
  %v1175 = vld [vmem:[%s3 + $0xa0] sm:$0xff]
  %v1176 = vld [vmem:[%s3 + $0xa8] sm:$0xff]
  %v1177 = vld [vmem:[%s3 + $0xb0] sm:$0xff]
  %v1178 = vld [vmem:[%s3 + $0xb8] sm:$0xff]
  %v1179 = vld [vmem:[%s3 + $0xc0] sm:$0xff]
  %v1180 = vld [vmem:[%s3 + $0xc8] sm:$0xff]
  %v1181 = vld [vmem:[%s3 + $0xd0] sm:$0xff]
  %v1182 = vld [vmem:[%s3 + $0xd8] sm:$0xff]
  %v1183 = vld [vmem:[%s3 + $0xe0] sm:$0xff]
  %v1184 = vld [vmem:[%s3 + $0xe8] sm:$0xff]
  %v1185 = vld [vmem:[%s3 + $0xf0] sm:$0xff]
  %v1186 = vld [vmem:[%s3 + $0xf8] sm:$0xff]
  %v1187 = vld [vmem:[%s3 + $0x100] sm:$0xff]
  %v1188 = vld [vmem:[%s3 + $0x108] sm:$0xff]
  %v1189 = vld [vmem:[%s3 + $0x110] sm:$0xff]
  %v1190 = vld [vmem:[%s3 + $0x118] sm:$0xff]
  %v1191 = vld [vmem:[%s3 + $0x120] sm:$0xff]
  %v1192 = vld [vmem:[%s3 + $0x128] sm:$0xff]
  %v1193 = vld [vmem:[%s3 + $0x130] sm:$0xff]
  %v1194 = vld [vmem:[%s3 + $0x138] sm:$0xff]
  %v1195 = vld [vmem:[%s3 + $0x140] sm:$0xff]
  %v1196 = vld [vmem:[%s3 + $0x148] sm:$0xff]
  %v1197 = vld [vmem:[%s3 + $0x150] sm:$0xff]
  %v1198 = vld [vmem:[%s3 + $0x158] sm:$0xff]
  %v1199 = vld [vmem:[%s3 + $0x160] sm:$0xff]
  %v1200 = vld [vmem:[%s3 + $0x168] sm:$0xff]
  %v1201 = vld [vmem:[%s3 + $0x170] sm:$0xff]
  %v1202 = vld [vmem:[%s3 + $0x178] sm:$0xff]
  %v1203 = vld [vmem:[%s3 + $0x180] sm:$0xff]
  %v1204 = vld [vmem:[%s3 + $0x188] sm:$0xff]
  %v1205 = vld [vmem:[%s3 + $0x190] sm:$0xff]
  %v1206 = vld [vmem:[%s3 + $0x198] sm:$0xff]
  %v1207 = vld [vmem:[%s3 + $0x1a0] sm:$0xff]
  %v1208 = vld [vmem:[%s3 + $0x1a8] sm:$0xff]
  %v1209 = vld [vmem:[%s3 + $0x1b0] sm:$0xff]
  %v1210 = vld [vmem:[%s3 + $0x1b8] sm:$0xff]
  %v1211 = vld [vmem:[%s3 + $0x1c0] sm:$0xff]
  %v1212 = vld [vmem:[%s3 + $0x1c8] sm:$0xff]
  %v1213 = vld [vmem:[%s3 + $0x1d0] sm:$0xff]
  %v1214 = vld [vmem:[%s3 + $0x1d8] sm:$0xff]
  %v1215 = vld [vmem:[%s3 + $0x1e0] sm:$0xff]
  %v1216 = vld [vmem:[%s3 + $0x1e8] sm:$0xff]
  %v1217 = vld [vmem:[%s3 + $0x1f0] sm:$0xff]
  %v1218 = vld [vmem:[%s3 + $0x1f8] sm:$0xff]
  %v1219 = vld [vmem:[%s4] sm:$0xff]
  %v1220 = vld [vmem:[%s4 + $0x8] sm:$0xff]
  %v1221 = vld [vmem:[%s4 + $0x10] sm:$0xff]
  %v1222 = vld [vmem:[%s4 + $0x18] sm:$0xff]
  %v1223 = vld [vmem:[%s4 + $0x20] sm:$0xff]
  %v1224 = vld [vmem:[%s4 + $0x28] sm:$0xff]
  %v1225 = vld [vmem:[%s4 + $0x30] sm:$0xff]
  %v1226 = vld [vmem:[%s4 + $0x38] sm:$0xff]
  %v1227 = vld [vmem:[%s4 + $0x40] sm:$0xff]
  %v1228 = vld [vmem:[%s4 + $0x48] sm:$0xff]
  %v1229 = vld [vmem:[%s4 + $0x50] sm:$0xff]
  %v1230 = vld [vmem:[%s4 + $0x58] sm:$0xff]
  %v1231 = vld [vmem:[%s4 + $0x60] sm:$0xff]
  %v1232 = vld [vmem:[%s4 + $0x68] sm:$0xff]
  %v1233 = vld [vmem:[%s4 + $0x70] sm:$0xff]
  %v1234 = vld [vmem:[%s4 + $0x78] sm:$0xff]
  %v1235 = vld [vmem:[%s4 + $0x80] sm:$0xff]
  %v1236 = vld [vmem:[%s4 + $0x88] sm:$0xff]
  %v1237 = vld [vmem:[%s4 + $0x90] sm:$0xff]
  %v1238 = vld [vmem:[%s4 + $0x98] sm:$0xff]
  %v1239 = vld [vmem:[%s4 + $0xa0] sm:$0xff]
  %v1240 = vld [vmem:[%s4 + $0xa8] sm:$0xff]
  %v1241 = vld [vmem:[%s4 + $0xb0] sm:$0xff]
  %v1242 = vld [vmem:[%s4 + $0xb8] sm:$0xff]
  %v1243 = vld [vmem:[%s4 + $0xc0] sm:$0xff]
  %v1244 = vld [vmem:[%s4 + $0xc8] sm:$0xff]
  %v1245 = vld [vmem:[%s4 + $0xd0] sm:$0xff]
  %v1246 = vld [vmem:[%s4 + $0xd8] sm:$0xff]
  %v1247 = vld [vmem:[%s4 + $0xe0] sm:$0xff]
  %v1248 = vld [vmem:[%s4 + $0xe8] sm:$0xff]
  %v1249 = vld [vmem:[%s4 + $0xf0] sm:$0xff]
  %v1250 = vld [vmem:[%s4 + $0xf8] sm:$0xff]
  %v1251 = vld [vmem:[%s4 + $0x100] sm:$0xff]
  %v1252 = vld [vmem:[%s4 + $0x108] sm:$0xff]
  %v1253 = vld [vmem:[%s4 + $0x110] sm:$0xff]
  %v1254 = vld [vmem:[%s4 + $0x118] sm:$0xff]
  %v1255 = vld [vmem:[%s4 + $0x120] sm:$0xff]
  %v1256 = vld [vmem:[%s4 + $0x128] sm:$0xff]
  %v1257 = vld [vmem:[%s4 + $0x130] sm:$0xff]
  %v1258 = vld [vmem:[%s4 + $0x138] sm:$0xff]
  %v1259 = vld [vmem:[%s4 + $0x140] sm:$0xff]
  %v1260 = vld [vmem:[%s4 + $0x148] sm:$0xff]
  %v1261 = vld [vmem:[%s4 + $0x150] sm:$0xff]
  %v1262 = vld [vmem:[%s4 + $0x158] sm:$0xff]
  %v1263 = vld [vmem:[%s4 + $0x160] sm:$0xff]
  %v1264 = vld [vmem:[%s4 + $0x168] sm:$0xff]
  %v1265 = vld [vmem:[%s4 + $0x170] sm:$0xff]
  %v1266 = vld [vmem:[%s4 + $0x178] sm:$0xff]
  %v1267 = vld [vmem:[%s4 + $0x180] sm:$0xff]
  %v1268 = vld [vmem:[%s4 + $0x188] sm:$0xff]
  %v1269 = vld [vmem:[%s4 + $0x190] sm:$0xff]
  %v1270 = vld [vmem:[%s4 + $0x198] sm:$0xff]
  %v1271 = vld [vmem:[%s4 + $0x1a0] sm:$0xff]
  %v1272 = vld [vmem:[%s4 + $0x1a8] sm:$0xff]
  %v1273 = vld [vmem:[%s4 + $0x1b0] sm:$0xff]
  %v1274 = vld [vmem:[%s4 + $0x1b8] sm:$0xff]
  %v1275 = vld [vmem:[%s4 + $0x1c0] sm:$0xff]
  %v1276 = vld [vmem:[%s4 + $0x1c8] sm:$0xff]
  %v1277 = vld [vmem:[%s4 + $0x1d0] sm:$0xff]
  %v1278 = vld [vmem:[%s4 + $0x1d8] sm:$0xff]
  %v1279 = vld [vmem:[%s4 + $0x1e0] sm:$0xff]
  %v1280 = vld [vmem:[%s4 + $0x1e8] sm:$0xff]
  %v1281 = vld [vmem:[%s4 + $0x1f0] sm:$0xff]
  %v1282 = vld [vmem:[%s4 + $0x1f8] sm:$0xff]
  %v1283 = vld [vmem:[%s4 + $0x200] sm:$0xff]
  %v1284 = vld [vmem:[%s4 + $0x208] sm:$0xff]
  %v1285 = vld [vmem:[%s4 + $0x210] sm:$0xff]
  %v1286 = vld [vmem:[%s4 + $0x218] sm:$0xff]
  %v1287 = vld [vmem:[%s4 + $0x220] sm:$0xff]
  %v1288 = vld [vmem:[%s4 + $0x228] sm:$0xff]
  %v1289 = vld [vmem:[%s4 + $0x230] sm:$0xff]
  %v1290 = vld [vmem:[%s4 + $0x238] sm:$0xff]
  %v1291 = vld [vmem:[%s4 + $0x240] sm:$0xff]
  %v1292 = vld [vmem:[%s4 + $0x248] sm:$0xff]
  %v1293 = vld [vmem:[%s4 + $0x250] sm:$0xff]
  %v1294 = vld [vmem:[%s4 + $0x258] sm:$0xff]
  %v1295 = vld [vmem:[%s4 + $0x260] sm:$0xff]
  %v1296 = vld [vmem:[%s4 + $0x268] sm:$0xff]
  %v1297 = vld [vmem:[%s4 + $0x270] sm:$0xff]
  %v1298 = vld [vmem:[%s4 + $0x278] sm:$0xff]
  %v1299 = vld [vmem:[%s4 + $0x280] sm:$0xff]
  %v1300 = vld [vmem:[%s4 + $0x288] sm:$0xff]
  %v1301 = vld [vmem:[%s4 + $0x290] sm:$0xff]
  %v1302 = vld [vmem:[%s4 + $0x298] sm:$0xff]
  %v1303 = vld [vmem:[%s4 + $0x2a0] sm:$0xff]
  %v1304 = vld [vmem:[%s4 + $0x2a8] sm:$0xff]
  %v1305 = vld [vmem:[%s4 + $0x2b0] sm:$0xff]
  %v1306 = vld [vmem:[%s4 + $0x2b8] sm:$0xff]
  %v1307 = vld [vmem:[%s4 + $0x2c0] sm:$0xff]
  %v1308 = vld [vmem:[%s4 + $0x2c8] sm:$0xff]
  %v1309 = vld [vmem:[%s4 + $0x2d0] sm:$0xff]
  %v1310 = vld [vmem:[%s4 + $0x2d8] sm:$0xff]
  %v1311 = vld [vmem:[%s4 + $0x2e0] sm:$0xff]
  %v1312 = vld [vmem:[%s4 + $0x2e8] sm:$0xff]
  %v1313 = vld [vmem:[%s4 + $0x2f0] sm:$0xff]
  %v1314 = vld [vmem:[%s4 + $0x2f8] sm:$0xff]
  %v1315 = vld [vmem:[%s4 + $0x300] sm:$0xff]
  %v1316 = vld [vmem:[%s4 + $0x308] sm:$0xff]
  %v1317 = vld [vmem:[%s4 + $0x310] sm:$0xff]
  %v1318 = vld [vmem:[%s4 + $0x318] sm:$0xff]
  %v1319 = vld [vmem:[%s4 + $0x320] sm:$0xff]
  %v1320 = vld [vmem:[%s4 + $0x328] sm:$0xff]
  %v1321 = vld [vmem:[%s4 + $0x330] sm:$0xff]
  %v1322 = vld [vmem:[%s4 + $0x338] sm:$0xff]
  %v1323 = vld [vmem:[%s4 + $0x340] sm:$0xff]
  %v1324 = vld [vmem:[%s4 + $0x348] sm:$0xff]
  %v1325 = vld [vmem:[%s4 + $0x350] sm:$0xff]
  %v1326 = vld [vmem:[%s4 + $0x358] sm:$0xff]
  %v1327 = vld [vmem:[%s4 + $0x360] sm:$0xff]
  %v1328 = vld [vmem:[%s4 + $0x368] sm:$0xff]
  %v1329 = vld [vmem:[%s4 + $0x370] sm:$0xff]
  %v1330 = vld [vmem:[%s4 + $0x378] sm:$0xff]
  %v1331 = vld [vmem:[%s4 + $0x380] sm:$0xff]
  %v1332 = vld [vmem:[%s4 + $0x388] sm:$0xff]
  %v1333 = vld [vmem:[%s4 + $0x390] sm:$0xff]
  %v1334 = vld [vmem:[%s4 + $0x398] sm:$0xff]
  %v1335 = vld [vmem:[%s4 + $0x3a0] sm:$0xff]
  %v1336 = vld [vmem:[%s4 + $0x3a8] sm:$0xff]
  %v1337 = vld [vmem:[%s4 + $0x3b0] sm:$0xff]
  %v1338 = vld [vmem:[%s4 + $0x3b8] sm:$0xff]
  %v1339 = vld [vmem:[%s4 + $0x3c0] sm:$0xff]
  %v1340 = vld [vmem:[%s4 + $0x3c8] sm:$0xff]
  %v1341 = vld [vmem:[%s4 + $0x3d0] sm:$0xff]
  %v1342 = vld [vmem:[%s4 + $0x3d8] sm:$0xff]
  %v1343 = vld [vmem:[%s4 + $0x3e0] sm:$0xff]
  %v1344 = vld [vmem:[%s4 + $0x3e8] sm:$0xff]
  %v1345 = vld [vmem:[%s4 + $0x3f0] sm:$0xff]
  %v1346 = vld [vmem:[%s4 + $0x3f8] sm:$0xff]
  %v1347 = vld [vmem:[%s5] sm:$0xf]
  %v1349 = vperm.slane %v1347, 0
  %v1350 = vperm.slane %v1347, 1
  %v1351 = vperm.slane %v1347, 2
  %v1352 = vperm.slane %v1347, 3
  %1357 = vmatpush.msra.mxu0 %v1279
  %1358 = vmatpush.msra.mxu0 %v1275
  %1359 = vmatpush.msra.mxu0 %v1271
  %1360 = vmatpush.msra.mxu0 %v1267
  %1361 = vmatpush.msra.mxu0 %v1263
  %1362 = vmatpush.msra.mxu0 %v1259
  %1363 = vmatpush.msra.mxu0 %v1255
  %1364 = vmatpush.msra.mxu0 %v1251
  %1365 = vmatpush.msra.mxu0 %v1247
  %1366 = vmatpush.msra.mxu0 %v1243
  %1367 = vmatpush.msra.mxu0 %v1239
  %1368 = vmatpush.msra.mxu0 %v1235
  %1369 = vmatpush.msra.mxu0 %v1231
  %1370 = vmatpush.msra.mxu0 %v1227
  %1371 = vmatpush.msra.mxu0 %v1223
  %1372 = vmatpush.msra.mxu0 %v1219
  %1373 = vmatmul.f32.gmra.mxu0 %v1155
  %v1374 = vpop.f32.mrf.mxu0
  %v1375 = vadd.f32 %v1349, %v1374
  %1376 = vmatmul.f32.gmra.mxu0 %v1157
  %v1377 = vpop.f32.mrf.mxu0
  %v1378 = vadd.f32 %v1349, %v1377
  %1379 = vmatmul.f32.gmra.mxu0 %v1159
  %v1380 = vpop.f32.mrf.mxu0
  %v1381 = vadd.f32 %v1349, %v1380
  %1382 = vmatmul.f32.gmra.mxu0 %v1161
  %v1383 = vpop.f32.mrf.mxu0
  %v1384 = vadd.f32 %v1349, %v1383
  %1385 = vmatmul.f32.gmra.mxu0 %v1163
  %v1386 = vpop.f32.mrf.mxu0
  %v1387 = vadd.f32 %v1349, %v1386
  %1388 = vmatmul.f32.gmra.mxu0 %v1165
  %v1389 = vpop.f32.mrf.mxu0
  %v1390 = vadd.f32 %v1349, %v1389
  %1391 = vmatmul.f32.gmra.mxu0 %v1167
  %v1392 = vpop.f32.mrf.mxu0
  %v1393 = vadd.f32 %v1349, %v1392
  %1394 = vmatmul.f32.gmra.mxu0 %v1169
  %v1395 = vpop.f32.mrf.mxu0
  %v1396 = vadd.f32 %v1349, %v1395
  %1397 = vmatmul.f32.gmra.mxu0 %v1171
  %v1398 = vpop.f32.mrf.mxu0
  %v1399 = vadd.f32 %v1349, %v1398
  %1400 = vmatmul.f32.gmra.mxu0 %v1173
  %v1401 = vpop.f32.mrf.mxu0
  %v1402 = vadd.f32 %v1349, %v1401
  %1403 = vmatmul.f32.gmra.mxu0 %v1175
  %v1404 = vpop.f32.mrf.mxu0
  %v1405 = vadd.f32 %v1349, %v1404
  %1406 = vmatmul.f32.gmra.mxu0 %v1177
  %v1407 = vpop.f32.mrf.mxu0
  %v1408 = vadd.f32 %v1349, %v1407
  %1409 = vmatmul.f32.gmra.mxu0 %v1179
  %v1410 = vpop.f32.mrf.mxu0
  %v1411 = vadd.f32 %v1349, %v1410
  %1412 = vmatmul.f32.gmra.mxu0 %v1181
  %v1413 = vpop.f32.mrf.mxu0
  %v1414 = vadd.f32 %v1349, %v1413
  %1415 = vmatmul.f32.gmra.mxu0 %v1183
  %v1416 = vpop.f32.mrf.mxu0
  %v1417 = vadd.f32 %v1349, %v1416
  %1418 = vmatmul.f32.gmra.mxu0 %v1185
  %v1419 = vpop.f32.mrf.mxu0
  %v1420 = vadd.f32 %v1349, %v1419
  %1421 = vmatmul.f32.gmra.mxu0 %v1187
  %v1422 = vpop.f32.mrf.mxu0
  %v1423 = vadd.f32 %v1349, %v1422
  %1424 = vmatmul.f32.gmra.mxu0 %v1189
  %v1425 = vpop.f32.mrf.mxu0
  %v1426 = vadd.f32 %v1349, %v1425
  %1427 = vmatmul.f32.gmra.mxu0 %v1191
  %v1428 = vpop.f32.mrf.mxu0
  %v1429 = vadd.f32 %v1349, %v1428
  %1430 = vmatmul.f32.gmra.mxu0 %v1193
  %v1431 = vpop.f32.mrf.mxu0
  %v1432 = vadd.f32 %v1349, %v1431
  %1433 = vmatmul.f32.gmra.mxu0 %v1195
  %v1434 = vpop.f32.mrf.mxu0
  %v1435 = vadd.f32 %v1349, %v1434
  %1436 = vmatmul.f32.gmra.mxu0 %v1197
  %v1437 = vpop.f32.mrf.mxu0
  %v1438 = vadd.f32 %v1349, %v1437
  %1439 = vmatmul.f32.gmra.mxu0 %v1199
  %v1440 = vpop.f32.mrf.mxu0
  %v1441 = vadd.f32 %v1349, %v1440
  %1442 = vmatmul.f32.gmra.mxu0 %v1201
  %v1443 = vpop.f32.mrf.mxu0
  %v1444 = vadd.f32 %v1349, %v1443
  %1445 = vmatmul.f32.gmra.mxu0 %v1203
  %v1446 = vpop.f32.mrf.mxu0
  %v1447 = vadd.f32 %v1349, %v1446
  %1448 = vmatmul.f32.gmra.mxu0 %v1205
  %v1449 = vpop.f32.mrf.mxu0
  %v1450 = vadd.f32 %v1349, %v1449
  %1451 = vmatmul.f32.gmra.mxu0 %v1207
  %v1452 = vpop.f32.mrf.mxu0
  %v1453 = vadd.f32 %v1349, %v1452
  %1454 = vmatmul.f32.gmra.mxu0 %v1209
  %v1455 = vpop.f32.mrf.mxu0
  %v1456 = vadd.f32 %v1349, %v1455
  %1457 = vmatmul.f32.gmra.mxu0 %v1211
  %v1458 = vpop.f32.mrf.mxu0
  %v1459 = vadd.f32 %v1349, %v1458
  %1460 = vmatmul.f32.gmra.mxu0 %v1213
  %v1461 = vpop.f32.mrf.mxu0
  %v1462 = vadd.f32 %v1349, %v1461
  %1463 = vmatmul.f32.gmra.mxu0 %v1215
  %v1464 = vpop.f32.mrf.mxu0
  %v1465 = vadd.f32 %v1349, %v1464
  %1466 = vmatmul.f32.gmra.mxu0 %v1217
  %v1467 = vpop.f32.mrf.mxu0
  %v1468 = vadd.f32 %v1349, %v1467
  %1469 = vdwg.mxu0
  %1470 = vmatpush.msra.mxu0 %v1343
  %1471 = vmatpush.msra.mxu0 %v1339
  %1472 = vmatpush.msra.mxu0 %v1335
  %1473 = vmatpush.msra.mxu0 %v1331
  %1474 = vmatpush.msra.mxu0 %v1327
  %1475 = vmatpush.msra.mxu0 %v1323
  %1476 = vmatpush.msra.mxu0 %v1319
  %1477 = vmatpush.msra.mxu0 %v1315
  %1478 = vmatpush.msra.mxu0 %v1311
  %1479 = vmatpush.msra.mxu0 %v1307
  %1480 = vmatpush.msra.mxu0 %v1303
  %1481 = vmatpush.msra.mxu0 %v1299
  %1482 = vmatpush.msra.mxu0 %v1295
  %1483 = vmatpush.msra.mxu0 %v1291
  %1484 = vmatpush.msra.mxu0 %v1287
  %1485 = vmatpush.msra.mxu0 %v1283
  %1486 = vmatmul.f32.gmra.mxu0 %v1156
  %v1487 = vpop.f32.mrf.mxu0
  %v1488 = vadd.f32 %v1375, %v1487
  %1489 = vmatmul.f32.gmra.mxu0 %v1158
  %v1490 = vpop.f32.mrf.mxu0
  %v1491 = vadd.f32 %v1378, %v1490
  %1492 = vmatmul.f32.gmra.mxu0 %v1160
  %v1493 = vpop.f32.mrf.mxu0
  %v1494 = vadd.f32 %v1381, %v1493
  %1495 = vmatmul.f32.gmra.mxu0 %v1162
  %v1496 = vpop.f32.mrf.mxu0
  %v1497 = vadd.f32 %v1384, %v1496
  %1498 = vmatmul.f32.gmra.mxu0 %v1164
  %v1499 = vpop.f32.mrf.mxu0
  %v1500 = vadd.f32 %v1387, %v1499
  %1501 = vmatmul.f32.gmra.mxu0 %v1166
  %v1502 = vpop.f32.mrf.mxu0
  %v1503 = vadd.f32 %v1390, %v1502
  %1504 = vmatmul.f32.gmra.mxu0 %v1168
  %v1505 = vpop.f32.mrf.mxu0
  %v1506 = vadd.f32 %v1393, %v1505
  %1507 = vmatmul.f32.gmra.mxu0 %v1170
  %v1508 = vpop.f32.mrf.mxu0
  %v1509 = vadd.f32 %v1396, %v1508
  %1510 = vmatmul.f32.gmra.mxu0 %v1172
  %v1511 = vpop.f32.mrf.mxu0
  %v1512 = vadd.f32 %v1399, %v1511
  %1513 = vmatmul.f32.gmra.mxu0 %v1174
  %v1514 = vpop.f32.mrf.mxu0
  %v1515 = vadd.f32 %v1402, %v1514
  %1516 = vmatmul.f32.gmra.mxu0 %v1176
  %v1517 = vpop.f32.mrf.mxu0
  %v1518 = vadd.f32 %v1405, %v1517
  %1519 = vmatmul.f32.gmra.mxu0 %v1178
  %v1520 = vpop.f32.mrf.mxu0
  %v1521 = vadd.f32 %v1408, %v1520
  %1522 = vmatmul.f32.gmra.mxu0 %v1180
  %v1523 = vpop.f32.mrf.mxu0
  %v1524 = vadd.f32 %v1411, %v1523
  %1525 = vmatmul.f32.gmra.mxu0 %v1182
  %v1526 = vpop.f32.mrf.mxu0
  %v1527 = vadd.f32 %v1414, %v1526
  %1528 = vmatmul.f32.gmra.mxu0 %v1184
  %v1529 = vpop.f32.mrf.mxu0
  %v1530 = vadd.f32 %v1417, %v1529
  %1531 = vmatmul.f32.gmra.mxu0 %v1186
  %v1532 = vpop.f32.mrf.mxu0
  %v1533 = vadd.f32 %v1420, %v1532
  %1534 = vmatmul.f32.gmra.mxu0 %v1188
  %v1535 = vpop.f32.mrf.mxu0
  %v1536 = vadd.f32 %v1423, %v1535
  %1537 = vmatmul.f32.gmra.mxu0 %v1190
  %v1538 = vpop.f32.mrf.mxu0
  %v1539 = vadd.f32 %v1426, %v1538
  %1540 = vmatmul.f32.gmra.mxu0 %v1192
  %v1541 = vpop.f32.mrf.mxu0
  %v1542 = vadd.f32 %v1429, %v1541
  %1543 = vmatmul.f32.gmra.mxu0 %v1194
  %v1544 = vpop.f32.mrf.mxu0
  %v1545 = vadd.f32 %v1432, %v1544
  %1546 = vmatmul.f32.gmra.mxu0 %v1196
  %v1547 = vpop.f32.mrf.mxu0
  %v1548 = vadd.f32 %v1435, %v1547
  %1549 = vmatmul.f32.gmra.mxu0 %v1198
  %v1550 = vpop.f32.mrf.mxu0
  %v1551 = vadd.f32 %v1438, %v1550
  %1552 = vmatmul.f32.gmra.mxu0 %v1200
  %v1553 = vpop.f32.mrf.mxu0
  %v1554 = vadd.f32 %v1441, %v1553
  %1555 = vmatmul.f32.gmra.mxu0 %v1202
  %v1556 = vpop.f32.mrf.mxu0
  %v1557 = vadd.f32 %v1444, %v1556
  %1558 = vmatmul.f32.gmra.mxu0 %v1204
  %v1559 = vpop.f32.mrf.mxu0
  %v1560 = vadd.f32 %v1447, %v1559
  %1561 = vmatmul.f32.gmra.mxu0 %v1206
  %v1562 = vpop.f32.mrf.mxu0
  %v1563 = vadd.f32 %v1450, %v1562
  %1564 = vmatmul.f32.gmra.mxu0 %v1208
  %v1565 = vpop.f32.mrf.mxu0
  %v1566 = vadd.f32 %v1453, %v1565
  %1567 = vmatmul.f32.gmra.mxu0 %v1210
  %v1568 = vpop.f32.mrf.mxu0
  %v1569 = vadd.f32 %v1456, %v1568
  %1570 = vmatmul.f32.gmra.mxu0 %v1212
  %v1571 = vpop.f32.mrf.mxu0
  %v1572 = vadd.f32 %v1459, %v1571
  %1573 = vmatmul.f32.gmra.mxu0 %v1214
  %v1574 = vpop.f32.mrf.mxu0
  %v1575 = vadd.f32 %v1462, %v1574
  %1576 = vmatmul.f32.gmra.mxu0 %v1216
  %v1577 = vpop.f32.mrf.mxu0
  %v1578 = vadd.f32 %v1465, %v1577
  %1579 = vmatmul.f32.gmra.mxu0 %v1218
  %v1580 = vpop.f32.mrf.mxu0
  %v1581 = vadd.f32 %v1468, %v1580
  %1582 = vdwg.mxu0
  %1583 = vmatpush.msra.mxu0 %v1280
  %1584 = vmatpush.msra.mxu0 %v1276
  %1585 = vmatpush.msra.mxu0 %v1272
  %1586 = vmatpush.msra.mxu0 %v1268
  %1587 = vmatpush.msra.mxu0 %v1264
  %1588 = vmatpush.msra.mxu0 %v1260
  %1589 = vmatpush.msra.mxu0 %v1256
  %1590 = vmatpush.msra.mxu0 %v1252
  %1591 = vmatpush.msra.mxu0 %v1248
  %1592 = vmatpush.msra.mxu0 %v1244
  %1593 = vmatpush.msra.mxu0 %v1240
  %1594 = vmatpush.msra.mxu0 %v1236
  %1595 = vmatpush.msra.mxu0 %v1232
  %1596 = vmatpush.msra.mxu0 %v1228
  %1597 = vmatpush.msra.mxu0 %v1224
  %1598 = vmatpush.msra.mxu0 %v1220
  %1599 = vmatmul.f32.gmra.mxu0 %v1155
  %v1600 = vpop.f32.mrf.mxu0
  %v1601 = vadd.f32 %v1350, %v1600
  %1602 = vmatmul.f32.gmra.mxu0 %v1157
  %v1603 = vpop.f32.mrf.mxu0
  %v1604 = vadd.f32 %v1350, %v1603
  %1605 = vmatmul.f32.gmra.mxu0 %v1159
  %v1606 = vpop.f32.mrf.mxu0
  %v1607 = vadd.f32 %v1350, %v1606
  %1608 = vmatmul.f32.gmra.mxu0 %v1161
  %v1609 = vpop.f32.mrf.mxu0
  %v1610 = vadd.f32 %v1350, %v1609
  %1611 = vmatmul.f32.gmra.mxu0 %v1163
  %v1612 = vpop.f32.mrf.mxu0
  %v1613 = vadd.f32 %v1350, %v1612
  %1614 = vmatmul.f32.gmra.mxu0 %v1165
  %v1615 = vpop.f32.mrf.mxu0
  %v1616 = vadd.f32 %v1350, %v1615
  %1617 = vmatmul.f32.gmra.mxu0 %v1167
  %v1618 = vpop.f32.mrf.mxu0
  %v1619 = vadd.f32 %v1350, %v1618
  %1620 = vmatmul.f32.gmra.mxu0 %v1169
  %v1621 = vpop.f32.mrf.mxu0
  %v1622 = vadd.f32 %v1350, %v1621
  %1623 = vmatmul.f32.gmra.mxu0 %v1171
  %v1624 = vpop.f32.mrf.mxu0
  %v1625 = vadd.f32 %v1350, %v1624
  %1626 = vmatmul.f32.gmra.mxu0 %v1173
  %v1627 = vpop.f32.mrf.mxu0
  %v1628 = vadd.f32 %v1350, %v1627
  %1629 = vmatmul.f32.gmra.mxu0 %v1175
  %v1630 = vpop.f32.mrf.mxu0
  %v1631 = vadd.f32 %v1350, %v1630
  %1632 = vmatmul.f32.gmra.mxu0 %v1177
  %v1633 = vpop.f32.mrf.mxu0
  %v1634 = vadd.f32 %v1350, %v1633
  %1635 = vmatmul.f32.gmra.mxu0 %v1179
  %v1636 = vpop.f32.mrf.mxu0
  %v1637 = vadd.f32 %v1350, %v1636
  %1638 = vmatmul.f32.gmra.mxu0 %v1181
  %v1639 = vpop.f32.mrf.mxu0
  %v1640 = vadd.f32 %v1350, %v1639
  %1641 = vmatmul.f32.gmra.mxu0 %v1183
  %v1642 = vpop.f32.mrf.mxu0
  %v1643 = vadd.f32 %v1350, %v1642
  %1644 = vmatmul.f32.gmra.mxu0 %v1185
  %v1645 = vpop.f32.mrf.mxu0
  %v1646 = vadd.f32 %v1350, %v1645
  %1647 = vmatmul.f32.gmra.mxu0 %v1187
  %v1648 = vpop.f32.mrf.mxu0
  %v1649 = vadd.f32 %v1350, %v1648
  %1650 = vmatmul.f32.gmra.mxu0 %v1189
  %v1651 = vpop.f32.mrf.mxu0
  %v1652 = vadd.f32 %v1350, %v1651
  %1653 = vmatmul.f32.gmra.mxu0 %v1191
  %v1654 = vpop.f32.mrf.mxu0
  %v1655 = vadd.f32 %v1350, %v1654
  %1656 = vmatmul.f32.gmra.mxu0 %v1193
  %v1657 = vpop.f32.mrf.mxu0
  %v1658 = vadd.f32 %v1350, %v1657
  %1659 = vmatmul.f32.gmra.mxu0 %v1195
  %v1660 = vpop.f32.mrf.mxu0
  %v1661 = vadd.f32 %v1350, %v1660
  %1662 = vmatmul.f32.gmra.mxu0 %v1197
  %v1663 = vpop.f32.mrf.mxu0
  %v1664 = vadd.f32 %v1350, %v1663
  %1665 = vmatmul.f32.gmra.mxu0 %v1199
  %v1666 = vpop.f32.mrf.mxu0
  %v1667 = vadd.f32 %v1350, %v1666
  %1668 = vmatmul.f32.gmra.mxu0 %v1201
  %v1669 = vpop.f32.mrf.mxu0
  %v1670 = vadd.f32 %v1350, %v1669
  %1671 = vmatmul.f32.gmra.mxu0 %v1203
  %v1672 = vpop.f32.mrf.mxu0
  %v1673 = vadd.f32 %v1350, %v1672
  %1674 = vmatmul.f32.gmra.mxu0 %v1205
  %v1675 = vpop.f32.mrf.mxu0
  %v1676 = vadd.f32 %v1350, %v1675
  %1677 = vmatmul.f32.gmra.mxu0 %v1207
  %v1678 = vpop.f32.mrf.mxu0
  %v1679 = vadd.f32 %v1350, %v1678
  %1680 = vmatmul.f32.gmra.mxu0 %v1209
  %v1681 = vpop.f32.mrf.mxu0
  %v1682 = vadd.f32 %v1350, %v1681
  %1683 = vmatmul.f32.gmra.mxu0 %v1211
  %v1684 = vpop.f32.mrf.mxu0
  %v1685 = vadd.f32 %v1350, %v1684
  %1686 = vmatmul.f32.gmra.mxu0 %v1213
  %v1687 = vpop.f32.mrf.mxu0
  %v1688 = vadd.f32 %v1350, %v1687
  %1689 = vmatmul.f32.gmra.mxu0 %v1215
  %v1690 = vpop.f32.mrf.mxu0
  %v1691 = vadd.f32 %v1350, %v1690
  %1692 = vmatmul.f32.gmra.mxu0 %v1217
  %v1693 = vpop.f32.mrf.mxu0
  %v1694 = vadd.f32 %v1350, %v1693
  %1695 = vdwg.mxu0
  %1696 = vmatpush.msra.mxu0 %v1344
  %1697 = vmatpush.msra.mxu0 %v1340
  %1698 = vmatpush.msra.mxu0 %v1336
  %1699 = vmatpush.msra.mxu0 %v1332
  %1700 = vmatpush.msra.mxu0 %v1328
  %1701 = vmatpush.msra.mxu0 %v1324
  %1702 = vmatpush.msra.mxu0 %v1320
  %1703 = vmatpush.msra.mxu0 %v1316
  %1704 = vmatpush.msra.mxu0 %v1312
  %1705 = vmatpush.msra.mxu0 %v1308
  %1706 = vmatpush.msra.mxu0 %v1304
  %1707 = vmatpush.msra.mxu0 %v1300
  %1708 = vmatpush.msra.mxu0 %v1296
  %1709 = vmatpush.msra.mxu0 %v1292
  %1710 = vmatpush.msra.mxu0 %v1288
  %1711 = vmatpush.msra.mxu0 %v1284
  %1712 = vmatmul.f32.gmra.mxu0 %v1156
  %v1713 = vpop.f32.mrf.mxu0
  %v1714 = vadd.f32 %v1601, %v1713
  %1715 = vmatmul.f32.gmra.mxu0 %v1158
  %v1716 = vpop.f32.mrf.mxu0
  %v1717 = vadd.f32 %v1604, %v1716
  %1718 = vmatmul.f32.gmra.mxu0 %v1160
  %v1719 = vpop.f32.mrf.mxu0
  %v1720 = vadd.f32 %v1607, %v1719
  %1721 = vmatmul.f32.gmra.mxu0 %v1162
  %v1722 = vpop.f32.mrf.mxu0
  %v1723 = vadd.f32 %v1610, %v1722
  %1724 = vmatmul.f32.gmra.mxu0 %v1164
  %v1725 = vpop.f32.mrf.mxu0
  %v1726 = vadd.f32 %v1613, %v1725
  %1727 = vmatmul.f32.gmra.mxu0 %v1166
  %v1728 = vpop.f32.mrf.mxu0
  %v1729 = vadd.f32 %v1616, %v1728
  %1730 = vmatmul.f32.gmra.mxu0 %v1168
  %v1731 = vpop.f32.mrf.mxu0
  %v1732 = vadd.f32 %v1619, %v1731
  %1733 = vmatmul.f32.gmra.mxu0 %v1170
  %v1734 = vpop.f32.mrf.mxu0
  %v1735 = vadd.f32 %v1622, %v1734
  %1736 = vmatmul.f32.gmra.mxu0 %v1172
  %v1737 = vpop.f32.mrf.mxu0
  %v1738 = vadd.f32 %v1625, %v1737
  %1739 = vmatmul.f32.gmra.mxu0 %v1174
  %v1740 = vpop.f32.mrf.mxu0
  %v1741 = vadd.f32 %v1628, %v1740
  %1742 = vmatmul.f32.gmra.mxu0 %v1176
  %v1743 = vpop.f32.mrf.mxu0
  %v1744 = vadd.f32 %v1631, %v1743
  %1745 = vmatmul.f32.gmra.mxu0 %v1178
  %v1746 = vpop.f32.mrf.mxu0
  %v1747 = vadd.f32 %v1634, %v1746
  %1748 = vmatmul.f32.gmra.mxu0 %v1180
  %v1749 = vpop.f32.mrf.mxu0
  %v1750 = vadd.f32 %v1637, %v1749
  %1751 = vmatmul.f32.gmra.mxu0 %v1182
  %v1752 = vpop.f32.mrf.mxu0
  %v1753 = vadd.f32 %v1640, %v1752
  %1754 = vmatmul.f32.gmra.mxu0 %v1184
  %v1755 = vpop.f32.mrf.mxu0
  %v1756 = vadd.f32 %v1643, %v1755
  %1757 = vmatmul.f32.gmra.mxu0 %v1186
  %v1758 = vpop.f32.mrf.mxu0
  %v1759 = vadd.f32 %v1646, %v1758
  %1760 = vmatmul.f32.gmra.mxu0 %v1188
  %v1761 = vpop.f32.mrf.mxu0
  %v1762 = vadd.f32 %v1649, %v1761
  %1763 = vmatmul.f32.gmra.mxu0 %v1190
  %v1764 = vpop.f32.mrf.mxu0
  %v1765 = vadd.f32 %v1652, %v1764
  %1766 = vmatmul.f32.gmra.mxu0 %v1192
  %v1767 = vpop.f32.mrf.mxu0
  %v1768 = vadd.f32 %v1655, %v1767
  %1769 = vmatmul.f32.gmra.mxu0 %v1194
  %v1770 = vpop.f32.mrf.mxu0
  %v1771 = vadd.f32 %v1658, %v1770
  %1772 = vmatmul.f32.gmra.mxu0 %v1196
  %v1773 = vpop.f32.mrf.mxu0
  %v1774 = vadd.f32 %v1661, %v1773
  %1775 = vmatmul.f32.gmra.mxu0 %v1198
  %v1776 = vpop.f32.mrf.mxu0
  %v1777 = vadd.f32 %v1664, %v1776
  %1778 = vmatmul.f32.gmra.mxu0 %v1200
  %v1779 = vpop.f32.mrf.mxu0
  %v1780 = vadd.f32 %v1667, %v1779
  %1781 = vmatmul.f32.gmra.mxu0 %v1202
  %v1782 = vpop.f32.mrf.mxu0
  %v1783 = vadd.f32 %v1670, %v1782
  %1784 = vmatmul.f32.gmra.mxu0 %v1204
  %v1785 = vpop.f32.mrf.mxu0
  %v1786 = vadd.f32 %v1673, %v1785
  %1787 = vmatmul.f32.gmra.mxu0 %v1206
  %v1788 = vpop.f32.mrf.mxu0
  %v1789 = vadd.f32 %v1676, %v1788
  %1790 = vmatmul.f32.gmra.mxu0 %v1208
  %v1791 = vpop.f32.mrf.mxu0
  %v1792 = vadd.f32 %v1679, %v1791
  %1793 = vmatmul.f32.gmra.mxu0 %v1210
  %v1794 = vpop.f32.mrf.mxu0
  %v1795 = vadd.f32 %v1682, %v1794
  %1796 = vmatmul.f32.gmra.mxu0 %v1212
  %v1797 = vpop.f32.mrf.mxu0
  %v1798 = vadd.f32 %v1685, %v1797
  %1799 = vmatmul.f32.gmra.mxu0 %v1214
  %v1800 = vpop.f32.mrf.mxu0
  %v1801 = vadd.f32 %v1688, %v1800
  %1802 = vmatmul.f32.gmra.mxu0 %v1216
  %v1803 = vpop.f32.mrf.mxu0
  %v1804 = vadd.f32 %v1691, %v1803
  %1805 = vmatmul.f32.gmra.mxu0 %v1218
  %v1806 = vpop.f32.mrf.mxu0
  %v1807 = vadd.f32 %v1694, %v1806
  %1808 = vdwg.mxu0
  %1809 = vmatpush.msra.mxu0 %v1281
  %1810 = vmatpush.msra.mxu0 %v1277
  %1811 = vmatpush.msra.mxu0 %v1273
  %1812 = vmatpush.msra.mxu0 %v1269
  %1813 = vmatpush.msra.mxu0 %v1265
  %1814 = vmatpush.msra.mxu0 %v1261
  %1815 = vmatpush.msra.mxu0 %v1257
  %1816 = vmatpush.msra.mxu0 %v1253
  %1817 = vmatpush.msra.mxu0 %v1249
  %1818 = vmatpush.msra.mxu0 %v1245
  %1819 = vmatpush.msra.mxu0 %v1241
  %1820 = vmatpush.msra.mxu0 %v1237
  %1821 = vmatpush.msra.mxu0 %v1233
  %1822 = vmatpush.msra.mxu0 %v1229
  %1823 = vmatpush.msra.mxu0 %v1225
  %1824 = vmatpush.msra.mxu0 %v1221
  %1825 = vmatmul.f32.gmra.mxu0 %v1155
  %v1826 = vpop.f32.mrf.mxu0
  %v1827 = vadd.f32 %v1351, %v1826
  %1828 = vmatmul.f32.gmra.mxu0 %v1157
  %v1829 = vpop.f32.mrf.mxu0
  %v1830 = vadd.f32 %v1351, %v1829
  %1831 = vmatmul.f32.gmra.mxu0 %v1159
  %v1832 = vpop.f32.mrf.mxu0
  %v1833 = vadd.f32 %v1351, %v1832
  %1834 = vmatmul.f32.gmra.mxu0 %v1161
  %v1835 = vpop.f32.mrf.mxu0
  %v1836 = vadd.f32 %v1351, %v1835
  %1837 = vmatmul.f32.gmra.mxu0 %v1163
  %v1838 = vpop.f32.mrf.mxu0
  %v1839 = vadd.f32 %v1351, %v1838
  %1840 = vmatmul.f32.gmra.mxu0 %v1165
  %v1841 = vpop.f32.mrf.mxu0
  %v1842 = vadd.f32 %v1351, %v1841
  %1843 = vmatmul.f32.gmra.mxu0 %v1167
  %v1844 = vpop.f32.mrf.mxu0
  %v1845 = vadd.f32 %v1351, %v1844
  %1846 = vmatmul.f32.gmra.mxu0 %v1169
  %v1847 = vpop.f32.mrf.mxu0
  %v1848 = vadd.f32 %v1351, %v1847
  %1849 = vmatmul.f32.gmra.mxu0 %v1171
  %v1850 = vpop.f32.mrf.mxu0
  %v1851 = vadd.f32 %v1351, %v1850
  %1852 = vmatmul.f32.gmra.mxu0 %v1173
  %v1853 = vpop.f32.mrf.mxu0
  %v1854 = vadd.f32 %v1351, %v1853
  %1855 = vmatmul.f32.gmra.mxu0 %v1175
  %v1856 = vpop.f32.mrf.mxu0
  %v1857 = vadd.f32 %v1351, %v1856
  %1858 = vmatmul.f32.gmra.mxu0 %v1177
  %v1859 = vpop.f32.mrf.mxu0
  %v1860 = vadd.f32 %v1351, %v1859
  %1861 = vmatmul.f32.gmra.mxu0 %v1179
  %v1862 = vpop.f32.mrf.mxu0
  %v1863 = vadd.f32 %v1351, %v1862
  %1864 = vmatmul.f32.gmra.mxu0 %v1181
  %v1865 = vpop.f32.mrf.mxu0
  %v1866 = vadd.f32 %v1351, %v1865
  %1867 = vmatmul.f32.gmra.mxu0 %v1183
  %v1868 = vpop.f32.mrf.mxu0
  %v1869 = vadd.f32 %v1351, %v1868
  %1870 = vmatmul.f32.gmra.mxu0 %v1185
  %v1871 = vpop.f32.mrf.mxu0
  %v1872 = vadd.f32 %v1351, %v1871
  %1873 = vmatmul.f32.gmra.mxu0 %v1187
  %v1874 = vpop.f32.mrf.mxu0
  %v1875 = vadd.f32 %v1351, %v1874
  %1876 = vmatmul.f32.gmra.mxu0 %v1189
  %v1877 = vpop.f32.mrf.mxu0
  %v1878 = vadd.f32 %v1351, %v1877
  %1879 = vmatmul.f32.gmra.mxu0 %v1191
  %v1880 = vpop.f32.mrf.mxu0
  %v1881 = vadd.f32 %v1351, %v1880
  %1882 = vmatmul.f32.gmra.mxu0 %v1193
  %v1883 = vpop.f32.mrf.mxu0
  %v1884 = vadd.f32 %v1351, %v1883
  %1885 = vmatmul.f32.gmra.mxu0 %v1195
  %v1886 = vpop.f32.mrf.mxu0
  %v1887 = vadd.f32 %v1351, %v1886
  %1888 = vmatmul.f32.gmra.mxu0 %v1197
  %v1889 = vpop.f32.mrf.mxu0
  %v1890 = vadd.f32 %v1351, %v1889
  %1891 = vmatmul.f32.gmra.mxu0 %v1199
  %v1892 = vpop.f32.mrf.mxu0
  %v1893 = vadd.f32 %v1351, %v1892
  %1894 = vmatmul.f32.gmra.mxu0 %v1201
  %v1895 = vpop.f32.mrf.mxu0
  %v1896 = vadd.f32 %v1351, %v1895
  %1897 = vmatmul.f32.gmra.mxu0 %v1203
  %v1898 = vpop.f32.mrf.mxu0
  %v1899 = vadd.f32 %v1351, %v1898
  %1900 = vmatmul.f32.gmra.mxu0 %v1205
  %v1901 = vpop.f32.mrf.mxu0
  %v1902 = vadd.f32 %v1351, %v1901
  %1903 = vmatmul.f32.gmra.mxu0 %v1207
  %v1904 = vpop.f32.mrf.mxu0
  %v1905 = vadd.f32 %v1351, %v1904
  %1906 = vmatmul.f32.gmra.mxu0 %v1209
  %v1907 = vpop.f32.mrf.mxu0
  %v1908 = vadd.f32 %v1351, %v1907
  %1909 = vmatmul.f32.gmra.mxu0 %v1211
  %v1910 = vpop.f32.mrf.mxu0
  %v1911 = vadd.f32 %v1351, %v1910
  %1912 = vmatmul.f32.gmra.mxu0 %v1213
  %v1913 = vpop.f32.mrf.mxu0
  %v1914 = vadd.f32 %v1351, %v1913
  %1915 = vmatmul.f32.gmra.mxu0 %v1215
  %v1916 = vpop.f32.mrf.mxu0
  %v1917 = vadd.f32 %v1351, %v1916
  %1918 = vmatmul.f32.gmra.mxu0 %v1217
  %v1919 = vpop.f32.mrf.mxu0
  %v1920 = vadd.f32 %v1351, %v1919
  %1921 = vdwg.mxu0
  %1922 = vmatpush.msra.mxu0 %v1345
  %1923 = vmatpush.msra.mxu0 %v1341
  %1924 = vmatpush.msra.mxu0 %v1337
  %1925 = vmatpush.msra.mxu0 %v1333
  %1926 = vmatpush.msra.mxu0 %v1329
  %1927 = vmatpush.msra.mxu0 %v1325
  %1928 = vmatpush.msra.mxu0 %v1321
  %1929 = vmatpush.msra.mxu0 %v1317
  %1930 = vmatpush.msra.mxu0 %v1313
  %1931 = vmatpush.msra.mxu0 %v1309
  %1932 = vmatpush.msra.mxu0 %v1305
  %1933 = vmatpush.msra.mxu0 %v1301
  %1934 = vmatpush.msra.mxu0 %v1297
  %1935 = vmatpush.msra.mxu0 %v1293
  %1936 = vmatpush.msra.mxu0 %v1289
  %1937 = vmatpush.msra.mxu0 %v1285
  %1938 = vmatmul.f32.gmra.mxu0 %v1156
  %v1939 = vpop.f32.mrf.mxu0
  %v1940 = vadd.f32 %v1827, %v1939
  %1941 = vmatmul.f32.gmra.mxu0 %v1158
  %v1942 = vpop.f32.mrf.mxu0
  %v1943 = vadd.f32 %v1830, %v1942
  %1944 = vmatmul.f32.gmra.mxu0 %v1160
  %v1945 = vpop.f32.mrf.mxu0
  %v1946 = vadd.f32 %v1833, %v1945
  %1947 = vmatmul.f32.gmra.mxu0 %v1162
  %v1948 = vpop.f32.mrf.mxu0
  %v1949 = vadd.f32 %v1836, %v1948
  %1950 = vmatmul.f32.gmra.mxu0 %v1164
  %v1951 = vpop.f32.mrf.mxu0
  %v1952 = vadd.f32 %v1839, %v1951
  %1953 = vmatmul.f32.gmra.mxu0 %v1166
  %v1954 = vpop.f32.mrf.mxu0
  %v1955 = vadd.f32 %v1842, %v1954
  %1956 = vmatmul.f32.gmra.mxu0 %v1168
  %v1957 = vpop.f32.mrf.mxu0
  %v1958 = vadd.f32 %v1845, %v1957
  %1959 = vmatmul.f32.gmra.mxu0 %v1170
  %v1960 = vpop.f32.mrf.mxu0
  %v1961 = vadd.f32 %v1848, %v1960
  %1962 = vmatmul.f32.gmra.mxu0 %v1172
  %v1963 = vpop.f32.mrf.mxu0
  %v1964 = vadd.f32 %v1851, %v1963
  %1965 = vmatmul.f32.gmra.mxu0 %v1174
  %v1966 = vpop.f32.mrf.mxu0
  %v1967 = vadd.f32 %v1854, %v1966
  %1968 = vmatmul.f32.gmra.mxu0 %v1176
  %v1969 = vpop.f32.mrf.mxu0
  %v1970 = vadd.f32 %v1857, %v1969
  %1971 = vmatmul.f32.gmra.mxu0 %v1178
  %v1972 = vpop.f32.mrf.mxu0
  %v1973 = vadd.f32 %v1860, %v1972
  %1974 = vmatmul.f32.gmra.mxu0 %v1180
  %v1975 = vpop.f32.mrf.mxu0
  %v1976 = vadd.f32 %v1863, %v1975
  %1977 = vmatmul.f32.gmra.mxu0 %v1182
  %v1978 = vpop.f32.mrf.mxu0
  %v1979 = vadd.f32 %v1866, %v1978
  %1980 = vmatmul.f32.gmra.mxu0 %v1184
  %v1981 = vpop.f32.mrf.mxu0
  %v1982 = vadd.f32 %v1869, %v1981
  %1983 = vmatmul.f32.gmra.mxu0 %v1186
  %v1984 = vpop.f32.mrf.mxu0
  %v1985 = vadd.f32 %v1872, %v1984
  %1986 = vmatmul.f32.gmra.mxu0 %v1188
  %v1987 = vpop.f32.mrf.mxu0
  %v1988 = vadd.f32 %v1875, %v1987
  %1989 = vmatmul.f32.gmra.mxu0 %v1190
  %v1990 = vpop.f32.mrf.mxu0
  %v1991 = vadd.f32 %v1878, %v1990
  %1992 = vmatmul.f32.gmra.mxu0 %v1192
  %v1993 = vpop.f32.mrf.mxu0
  %v1994 = vadd.f32 %v1881, %v1993
  %1995 = vmatmul.f32.gmra.mxu0 %v1194
  %v1996 = vpop.f32.mrf.mxu0
  %v1997 = vadd.f32 %v1884, %v1996
  %1998 = vmatmul.f32.gmra.mxu0 %v1196
  %v1999 = vpop.f32.mrf.mxu0
  %v2000 = vadd.f32 %v1887, %v1999
  %2001 = vmatmul.f32.gmra.mxu0 %v1198
  %v2002 = vpop.f32.mrf.mxu0
  %v2003 = vadd.f32 %v1890, %v2002
  %2004 = vmatmul.f32.gmra.mxu0 %v1200
  %v2005 = vpop.f32.mrf.mxu0
  %v2006 = vadd.f32 %v1893, %v2005
  %2007 = vmatmul.f32.gmra.mxu0 %v1202
  %v2008 = vpop.f32.mrf.mxu0
  %v2009 = vadd.f32 %v1896, %v2008
  %2010 = vmatmul.f32.gmra.mxu0 %v1204
  %v2011 = vpop.f32.mrf.mxu0
  %v2012 = vadd.f32 %v1899, %v2011
  %2013 = vmatmul.f32.gmra.mxu0 %v1206
  %v2014 = vpop.f32.mrf.mxu0
  %v2015 = vadd.f32 %v1902, %v2014
  %2016 = vmatmul.f32.gmra.mxu0 %v1208
  %v2017 = vpop.f32.mrf.mxu0
  %v2018 = vadd.f32 %v1905, %v2017
  %2019 = vmatmul.f32.gmra.mxu0 %v1210
  %v2020 = vpop.f32.mrf.mxu0
  %v2021 = vadd.f32 %v1908, %v2020
  %2022 = vmatmul.f32.gmra.mxu0 %v1212
  %v2023 = vpop.f32.mrf.mxu0
  %v2024 = vadd.f32 %v1911, %v2023
  %2025 = vmatmul.f32.gmra.mxu0 %v1214
  %v2026 = vpop.f32.mrf.mxu0
  %v2027 = vadd.f32 %v1914, %v2026
  %2028 = vmatmul.f32.gmra.mxu0 %v1216
  %v2029 = vpop.f32.mrf.mxu0
  %v2030 = vadd.f32 %v1917, %v2029
  %2031 = vmatmul.f32.gmra.mxu0 %v1218
  %v2032 = vpop.f32.mrf.mxu0
  %v2033 = vadd.f32 %v1920, %v2032
  %2034 = vdwg.mxu0
  %2035 = vmatpush.msra.mxu0 %v1282
  %2036 = vmatpush.msra.mxu0 %v1278
  %2037 = vmatpush.msra.mxu0 %v1274
  %2038 = vmatpush.msra.mxu0 %v1270
  %2039 = vmatpush.msra.mxu0 %v1266
  %2040 = vmatpush.msra.mxu0 %v1262
  %2041 = vmatpush.msra.mxu0 %v1258
  %2042 = vmatpush.msra.mxu0 %v1254
  %2043 = vmatpush.msra.mxu0 %v1250
  %2044 = vmatpush.msra.mxu0 %v1246
  %2045 = vmatpush.msra.mxu0 %v1242
  %2046 = vmatpush.msra.mxu0 %v1238
  %2047 = vmatpush.msra.mxu0 %v1234
  %2048 = vmatpush.msra.mxu0 %v1230
  %2049 = vmatpush.msra.mxu0 %v1226
  %2050 = vmatpush.msra.mxu0 %v1222
  %2051 = vmatmul.f32.gmra.mxu0 %v1155
  %v2052 = vpop.f32.mrf.mxu0
  %v2053 = vadd.f32 %v1352, %v2052
  %2054 = vmatmul.f32.gmra.mxu0 %v1157
  %v2055 = vpop.f32.mrf.mxu0
  %v2056 = vadd.f32 %v1352, %v2055
  %2057 = vmatmul.f32.gmra.mxu0 %v1159
  %v2058 = vpop.f32.mrf.mxu0
  %v2059 = vadd.f32 %v1352, %v2058
  %2060 = vmatmul.f32.gmra.mxu0 %v1161
  %v2061 = vpop.f32.mrf.mxu0
  %v2062 = vadd.f32 %v1352, %v2061
  %2063 = vmatmul.f32.gmra.mxu0 %v1163
  %v2064 = vpop.f32.mrf.mxu0
  %v2065 = vadd.f32 %v1352, %v2064
  %2066 = vmatmul.f32.gmra.mxu0 %v1165
  %v2067 = vpop.f32.mrf.mxu0
  %v2068 = vadd.f32 %v1352, %v2067
  %2069 = vmatmul.f32.gmra.mxu0 %v1167
  %v2070 = vpop.f32.mrf.mxu0
  %v2071 = vadd.f32 %v1352, %v2070
  %2072 = vmatmul.f32.gmra.mxu0 %v1169
  %v2073 = vpop.f32.mrf.mxu0
  %v2074 = vadd.f32 %v1352, %v2073
  %2075 = vmatmul.f32.gmra.mxu0 %v1171
  %v2076 = vpop.f32.mrf.mxu0
  %v2077 = vadd.f32 %v1352, %v2076
  %2078 = vmatmul.f32.gmra.mxu0 %v1173
  %v2079 = vpop.f32.mrf.mxu0
  %v2080 = vadd.f32 %v1352, %v2079
  %2081 = vmatmul.f32.gmra.mxu0 %v1175
  %v2082 = vpop.f32.mrf.mxu0
  %v2083 = vadd.f32 %v1352, %v2082
  %2084 = vmatmul.f32.gmra.mxu0 %v1177
  %v2085 = vpop.f32.mrf.mxu0
  %v2086 = vadd.f32 %v1352, %v2085
  %2087 = vmatmul.f32.gmra.mxu0 %v1179
  %v2088 = vpop.f32.mrf.mxu0
  %v2089 = vadd.f32 %v1352, %v2088
  %2090 = vmatmul.f32.gmra.mxu0 %v1181
  %v2091 = vpop.f32.mrf.mxu0
  %v2092 = vadd.f32 %v1352, %v2091
  %2093 = vmatmul.f32.gmra.mxu0 %v1183
  %v2094 = vpop.f32.mrf.mxu0
  %v2095 = vadd.f32 %v1352, %v2094
  %2096 = vmatmul.f32.gmra.mxu0 %v1185
  %v2097 = vpop.f32.mrf.mxu0
  %v2098 = vadd.f32 %v1352, %v2097
  %2099 = vmatmul.f32.gmra.mxu0 %v1187
  %v2100 = vpop.f32.mrf.mxu0
  %v2101 = vadd.f32 %v1352, %v2100
  %2102 = vmatmul.f32.gmra.mxu0 %v1189
  %v2103 = vpop.f32.mrf.mxu0
  %v2104 = vadd.f32 %v1352, %v2103
  %2105 = vmatmul.f32.gmra.mxu0 %v1191
  %v2106 = vpop.f32.mrf.mxu0
  %v2107 = vadd.f32 %v1352, %v2106
  %2108 = vmatmul.f32.gmra.mxu0 %v1193
  %v2109 = vpop.f32.mrf.mxu0
  %v2110 = vadd.f32 %v1352, %v2109
  %2111 = vmatmul.f32.gmra.mxu0 %v1195
  %v2112 = vpop.f32.mrf.mxu0
  %v2113 = vadd.f32 %v1352, %v2112
  %2114 = vmatmul.f32.gmra.mxu0 %v1197
  %v2115 = vpop.f32.mrf.mxu0
  %v2116 = vadd.f32 %v1352, %v2115
  %2117 = vmatmul.f32.gmra.mxu0 %v1199
  %v2118 = vpop.f32.mrf.mxu0
  %v2119 = vadd.f32 %v1352, %v2118
  %2120 = vmatmul.f32.gmra.mxu0 %v1201
  %v2121 = vpop.f32.mrf.mxu0
  %v2122 = vadd.f32 %v1352, %v2121
  %2123 = vmatmul.f32.gmra.mxu0 %v1203
  %v2124 = vpop.f32.mrf.mxu0
  %v2125 = vadd.f32 %v1352, %v2124
  %2126 = vmatmul.f32.gmra.mxu0 %v1205
  %v2127 = vpop.f32.mrf.mxu0
  %v2128 = vadd.f32 %v1352, %v2127
  %2129 = vmatmul.f32.gmra.mxu0 %v1207
  %v2130 = vpop.f32.mrf.mxu0
  %v2131 = vadd.f32 %v1352, %v2130
  %2132 = vmatmul.f32.gmra.mxu0 %v1209
  %v2133 = vpop.f32.mrf.mxu0
  %v2134 = vadd.f32 %v1352, %v2133
  %2135 = vmatmul.f32.gmra.mxu0 %v1211
  %v2136 = vpop.f32.mrf.mxu0
  %v2137 = vadd.f32 %v1352, %v2136
  %2138 = vmatmul.f32.gmra.mxu0 %v1213
  %v2139 = vpop.f32.mrf.mxu0
  %v2140 = vadd.f32 %v1352, %v2139
  %2141 = vmatmul.f32.gmra.mxu0 %v1215
  %v2142 = vpop.f32.mrf.mxu0
  %v2143 = vadd.f32 %v1352, %v2142
  %2144 = vmatmul.f32.gmra.mxu0 %v1217
  %v2145 = vpop.f32.mrf.mxu0
  %v2146 = vadd.f32 %v1352, %v2145
  %2147 = vdwg.mxu0
  %2148 = vmatpush.msra.mxu0 %v1346
  %2149 = vmatpush.msra.mxu0 %v1342
  %2150 = vmatpush.msra.mxu0 %v1338
  %2151 = vmatpush.msra.mxu0 %v1334
  %2152 = vmatpush.msra.mxu0 %v1330
  %2153 = vmatpush.msra.mxu0 %v1326
  %2154 = vmatpush.msra.mxu0 %v1322
  %2155 = vmatpush.msra.mxu0 %v1318
  %2156 = vmatpush.msra.mxu0 %v1314
  %2157 = vmatpush.msra.mxu0 %v1310
  %2158 = vmatpush.msra.mxu0 %v1306
  %2159 = vmatpush.msra.mxu0 %v1302
  %2160 = vmatpush.msra.mxu0 %v1298
  %2161 = vmatpush.msra.mxu0 %v1294
  %2162 = vmatpush.msra.mxu0 %v1290
  %2163 = vmatpush.msra.mxu0 %v1286
  %2164 = vmatmul.f32.gmra.mxu0 %v1156
  %v2165 = vpop.f32.mrf.mxu0
  %v2166 = vadd.f32 %v2053, %v2165
  %2167 = vmatmul.f32.gmra.mxu0 %v1158
  %v2168 = vpop.f32.mrf.mxu0
  %v2169 = vadd.f32 %v2056, %v2168
  %2170 = vmatmul.f32.gmra.mxu0 %v1160
  %v2171 = vpop.f32.mrf.mxu0
  %v2172 = vadd.f32 %v2059, %v2171
  %2173 = vmatmul.f32.gmra.mxu0 %v1162
  %v2174 = vpop.f32.mrf.mxu0
  %v2175 = vadd.f32 %v2062, %v2174
  %2176 = vmatmul.f32.gmra.mxu0 %v1164
  %v2177 = vpop.f32.mrf.mxu0
  %v2178 = vadd.f32 %v2065, %v2177
  %2179 = vmatmul.f32.gmra.mxu0 %v1166
  %v2180 = vpop.f32.mrf.mxu0
  %v2181 = vadd.f32 %v2068, %v2180
  %2182 = vmatmul.f32.gmra.mxu0 %v1168
  %v2183 = vpop.f32.mrf.mxu0
  %v2184 = vadd.f32 %v2071, %v2183
  %2185 = vmatmul.f32.gmra.mxu0 %v1170
  %v2186 = vpop.f32.mrf.mxu0
  %v2187 = vadd.f32 %v2074, %v2186
  %2188 = vmatmul.f32.gmra.mxu0 %v1172
  %v2189 = vpop.f32.mrf.mxu0
  %v2190 = vadd.f32 %v2077, %v2189
  %2191 = vmatmul.f32.gmra.mxu0 %v1174
  %v2192 = vpop.f32.mrf.mxu0
  %v2193 = vadd.f32 %v2080, %v2192
  %2194 = vmatmul.f32.gmra.mxu0 %v1176
  %v2195 = vpop.f32.mrf.mxu0
  %v2196 = vadd.f32 %v2083, %v2195
  %2197 = vmatmul.f32.gmra.mxu0 %v1178
  %v2198 = vpop.f32.mrf.mxu0
  %v2199 = vadd.f32 %v2086, %v2198
  %2200 = vmatmul.f32.gmra.mxu0 %v1180
  %v2201 = vpop.f32.mrf.mxu0
  %v2202 = vadd.f32 %v2089, %v2201
  %2203 = vmatmul.f32.gmra.mxu0 %v1182
  %v2204 = vpop.f32.mrf.mxu0
  %v2205 = vadd.f32 %v2092, %v2204
  %2206 = vmatmul.f32.gmra.mxu0 %v1184
  %v2207 = vpop.f32.mrf.mxu0
  %v2208 = vadd.f32 %v2095, %v2207
  %2209 = vmatmul.f32.gmra.mxu0 %v1186
  %v2210 = vpop.f32.mrf.mxu0
  %v2211 = vadd.f32 %v2098, %v2210
  %2212 = vmatmul.f32.gmra.mxu0 %v1188
  %v2213 = vpop.f32.mrf.mxu0
  %v2214 = vadd.f32 %v2101, %v2213
  %2215 = vmatmul.f32.gmra.mxu0 %v1190
  %v2216 = vpop.f32.mrf.mxu0
  %v2217 = vadd.f32 %v2104, %v2216
  %2218 = vmatmul.f32.gmra.mxu0 %v1192
  %v2219 = vpop.f32.mrf.mxu0
  %v2220 = vadd.f32 %v2107, %v2219
  %2221 = vmatmul.f32.gmra.mxu0 %v1194
  %v2222 = vpop.f32.mrf.mxu0
  %v2223 = vadd.f32 %v2110, %v2222
  %2224 = vmatmul.f32.gmra.mxu0 %v1196
  %v2225 = vpop.f32.mrf.mxu0
  %v2226 = vadd.f32 %v2113, %v2225
  %2227 = vmatmul.f32.gmra.mxu0 %v1198
  %v2228 = vpop.f32.mrf.mxu0
  %v2229 = vadd.f32 %v2116, %v2228
  %2230 = vmatmul.f32.gmra.mxu0 %v1200
  %v2231 = vpop.f32.mrf.mxu0
  %v2232 = vadd.f32 %v2119, %v2231
  %2233 = vmatmul.f32.gmra.mxu0 %v1202
  %v2234 = vpop.f32.mrf.mxu0
  %v2235 = vadd.f32 %v2122, %v2234
  %2236 = vmatmul.f32.gmra.mxu0 %v1204
  %v2237 = vpop.f32.mrf.mxu0
  %v2238 = vadd.f32 %v2125, %v2237
  %2239 = vmatmul.f32.gmra.mxu0 %v1206
  %v2240 = vpop.f32.mrf.mxu0
  %v2241 = vadd.f32 %v2128, %v2240
  %2242 = vmatmul.f32.gmra.mxu0 %v1208
  %v2243 = vpop.f32.mrf.mxu0
  %v2244 = vadd.f32 %v2131, %v2243
  %2245 = vmatmul.f32.gmra.mxu0 %v1210
  %v2246 = vpop.f32.mrf.mxu0
  %v2247 = vadd.f32 %v2134, %v2246
  %2248 = vmatmul.f32.gmra.mxu0 %v1212
  %v2249 = vpop.f32.mrf.mxu0
  %v2250 = vadd.f32 %v2137, %v2249
  %2251 = vmatmul.f32.gmra.mxu0 %v1214
  %v2252 = vpop.f32.mrf.mxu0
  %v2253 = vadd.f32 %v2140, %v2252
  %2254 = vmatmul.f32.gmra.mxu0 %v1216
  %v2255 = vpop.f32.mrf.mxu0
  %v2256 = vadd.f32 %v2143, %v2255
  %2257 = vmatmul.f32.gmra.mxu0 %v1218
  %v2258 = vpop.f32.mrf.mxu0
  %v2259 = vadd.f32 %v2146, %v2258
  %2260 = vdwg.mxu0
  %v2261 = vtanh.pop %v1488
  %v2262 = vtanh.pop %v1714
  %v2263 = vtanh.pop %v1940
  %v2264 = vtanh.pop %v2166
  %v2265 = vtanh.pop %v1491
  %v2266 = vtanh.pop %v1717
  %v2267 = vtanh.pop %v1943
  %v2268 = vtanh.pop %v2169
  %v2269 = vtanh.pop %v1494
  %v2270 = vtanh.pop %v1720
  %v2271 = vtanh.pop %v1946
  %v2272 = vtanh.pop %v2172
  %v2273 = vtanh.pop %v1497
  %v2274 = vtanh.pop %v1723
  %v2275 = vtanh.pop %v1949
  %v2276 = vtanh.pop %v2175
  %v2277 = vtanh.pop %v1500
  %v2278 = vtanh.pop %v1726
  %v2279 = vtanh.pop %v1952
  %v2280 = vtanh.pop %v2178
  %v2281 = vtanh.pop %v1503
  %v2282 = vtanh.pop %v1729
  %v2283 = vtanh.pop %v1955
  %v2284 = vtanh.pop %v2181
  %v2285 = vtanh.pop %v1506
  %v2286 = vtanh.pop %v1732
  %v2287 = vtanh.pop %v1958
  %v2288 = vtanh.pop %v2184
  %v2289 = vtanh.pop %v1509
  %v2290 = vtanh.pop %v1735
  %v2291 = vtanh.pop %v1961
  %v2292 = vtanh.pop %v2187
  %v2293 = vtanh.pop %v1512
  %v2294 = vtanh.pop %v1738
  %v2295 = vtanh.pop %v1964
  %v2296 = vtanh.pop %v2190
  %v2297 = vtanh.pop %v1515
  %v2298 = vtanh.pop %v1741
  %v2299 = vtanh.pop %v1967
  %v2300 = vtanh.pop %v2193
  %v2301 = vtanh.pop %v1518
  %v2302 = vtanh.pop %v1744
  %v2303 = vtanh.pop %v1970
  %v2304 = vtanh.pop %v2196
  %v2305 = vtanh.pop %v1521
  %v2306 = vtanh.pop %v1747
  %v2307 = vtanh.pop %v1973
  %v2308 = vtanh.pop %v2199
  %v2309 = vtanh.pop %v1524
  %v2310 = vtanh.pop %v1750
  %v2311 = vtanh.pop %v1976
  %v2312 = vtanh.pop %v2202
  %v2313 = vtanh.pop %v1527
  %v2314 = vtanh.pop %v1753
  %v2315 = vtanh.pop %v1979
  %v2316 = vtanh.pop %v2205
  %v2317 = vtanh.pop %v1530
  %v2318 = vtanh.pop %v1756
  %v2319 = vtanh.pop %v1982
  %v2320 = vtanh.pop %v2208
  %v2321 = vtanh.pop %v1533
  %v2322 = vtanh.pop %v1759
  %v2323 = vtanh.pop %v1985
  %v2324 = vtanh.pop %v2211
  %v2325 = vtanh.pop %v1536
  %v2326 = vtanh.pop %v1762
  %v2327 = vtanh.pop %v1988
  %v2328 = vtanh.pop %v2214
  %v2329 = vtanh.pop %v1539
  %v2330 = vtanh.pop %v1765
  %v2331 = vtanh.pop %v1991
  %v2332 = vtanh.pop %v2217
  %v2333 = vtanh.pop %v1542
  %v2334 = vtanh.pop %v1768
  %v2335 = vtanh.pop %v1994
  %v2336 = vtanh.pop %v2220
  %v2337 = vtanh.pop %v1545
  %v2338 = vtanh.pop %v1771
  %v2339 = vtanh.pop %v1997
  %v2340 = vtanh.pop %v2223
  %v2341 = vtanh.pop %v1548
  %v2342 = vtanh.pop %v1774
  %v2343 = vtanh.pop %v2000
  %v2344 = vtanh.pop %v2226
  %v2345 = vtanh.pop %v1551
  %v2346 = vtanh.pop %v1777
  %v2347 = vtanh.pop %v2003
  %v2348 = vtanh.pop %v2229
  %v2349 = vtanh.pop %v1554
  %v2350 = vtanh.pop %v1780
  %v2351 = vtanh.pop %v2006
  %v2352 = vtanh.pop %v2232
  %v2353 = vtanh.pop %v1557
  %v2354 = vtanh.pop %v1783
  %v2355 = vtanh.pop %v2009
  %v2356 = vtanh.pop %v2235
  %v2357 = vtanh.pop %v1560
  %v2358 = vtanh.pop %v1786
  %v2359 = vtanh.pop %v2012
  %v2360 = vtanh.pop %v2238
  %v2361 = vtanh.pop %v1563
  %v2362 = vtanh.pop %v1789
  %v2363 = vtanh.pop %v2015
  %v2364 = vtanh.pop %v2241
  %v2365 = vtanh.pop %v1566
  %v2366 = vtanh.pop %v1792
  %v2367 = vtanh.pop %v2018
  %v2368 = vtanh.pop %v2244
  %v2369 = vtanh.pop %v1569
  %v2370 = vtanh.pop %v1795
  %v2371 = vtanh.pop %v2021
  %v2372 = vtanh.pop %v2247
  %v2373 = vtanh.pop %v1572
  %v2374 = vtanh.pop %v1798
  %v2375 = vtanh.pop %v2024
  %v2376 = vtanh.pop %v2250
  %v2377 = vtanh.pop %v1575
  %v2378 = vtanh.pop %v1801
  %v2379 = vtanh.pop %v2027
  %v2380 = vtanh.pop %v2253
  %v2381 = vtanh.pop %v1578
  %v2382 = vtanh.pop %v1804
  %v2383 = vtanh.pop %v2030
  %v2384 = vtanh.pop %v2256
  %v2385 = vtanh.pop %v1581
  %v2386 = vtanh.pop %v1807
  %v2387 = vtanh.pop %v2033
  %v2388 = vtanh.pop %v2259
  %2389 = vst [vmem:[%s7] sm:$0xff] %v2261
  %2390 = vst [vmem:[%s7 + $0x8] sm:$0xff] %v2262
  %2391 = vst [vmem:[%s7 + $0x10] sm:$0xff] %v2263
  %2392 = vst [vmem:[%s7 + $0x18] sm:$0xff] %v2264
  %2393 = vst [vmem:[%s7 + $0x20] sm:$0xff] %v2265
  %2394 = vst [vmem:[%s7 + $0x28] sm:$0xff] %v2266
  %2395 = vst [vmem:[%s7 + $0x30] sm:$0xff] %v2267
  %2396 = vst [vmem:[%s7 + $0x38] sm:$0xff] %v2268
  %2397 = vst [vmem:[%s7 + $0x40] sm:$0xff] %v2269
  %2398 = vst [vmem:[%s7 + $0x48] sm:$0xff] %v2270
  %2399 = vst [vmem:[%s7 + $0x50] sm:$0xff] %v2271
  %2400 = vst [vmem:[%s7 + $0x58] sm:$0xff] %v2272
  %2401 = vst [vmem:[%s7 + $0x60] sm:$0xff] %v2273
  %2402 = vst [vmem:[%s7 + $0x68] sm:$0xff] %v2274
  %2403 = vst [vmem:[%s7 + $0x70] sm:$0xff] %v2275
  %2404 = vst [vmem:[%s7 + $0x78] sm:$0xff] %v2276
  %2405 = vst [vmem:[%s7 + $0x80] sm:$0xff] %v2277
  %2406 = vst [vmem:[%s7 + $0x88] sm:$0xff] %v2278
  %2407 = vst [vmem:[%s7 + $0x90] sm:$0xff] %v2279
  %2408 = vst [vmem:[%s7 + $0x98] sm:$0xff] %v2280
  %2409 = vst [vmem:[%s7 + $0xa0] sm:$0xff] %v2281
  %2410 = vst [vmem:[%s7 + $0xa8] sm:$0xff] %v2282
  %2411 = vst [vmem:[%s7 + $0xb0] sm:$0xff] %v2283
  %2412 = vst [vmem:[%s7 + $0xb8] sm:$0xff] %v2284
  %2413 = vst [vmem:[%s7 + $0xc0] sm:$0xff] %v2285
  %2414 = vst [vmem:[%s7 + $0xc8] sm:$0xff] %v2286
  %2415 = vst [vmem:[%s7 + $0xd0] sm:$0xff] %v2287
  %2416 = vst [vmem:[%s7 + $0xd8] sm:$0xff] %v2288
  %2417 = vst [vmem:[%s7 + $0xe0] sm:$0xff] %v2289
  %2418 = vst [vmem:[%s7 + $0xe8] sm:$0xff] %v2290
  %2419 = vst [vmem:[%s7 + $0xf0] sm:$0xff] %v2291
  %2420 = vst [vmem:[%s7 + $0xf8] sm:$0xff] %v2292
  %2421 = vst [vmem:[%s7 + $0x100] sm:$0xff] %v2293
  %2422 = vst [vmem:[%s7 + $0x108] sm:$0xff] %v2294
  %2423 = vst [vmem:[%s7 + $0x110] sm:$0xff] %v2295
  %2424 = vst [vmem:[%s7 + $0x118] sm:$0xff] %v2296
  %2425 = vst [vmem:[%s7 + $0x120] sm:$0xff] %v2297
  %2426 = vst [vmem:[%s7 + $0x128] sm:$0xff] %v2298
  %2427 = vst [vmem:[%s7 + $0x130] sm:$0xff] %v2299
  %2428 = vst [vmem:[%s7 + $0x138] sm:$0xff] %v2300
  %2429 = vst [vmem:[%s7 + $0x140] sm:$0xff] %v2301
  %2430 = vst [vmem:[%s7 + $0x148] sm:$0xff] %v2302
  %2431 = vst [vmem:[%s7 + $0x150] sm:$0xff] %v2303
  %2432 = vst [vmem:[%s7 + $0x158] sm:$0xff] %v2304
  %2433 = vst [vmem:[%s7 + $0x160] sm:$0xff] %v2305
  %2434 = vst [vmem:[%s7 + $0x168] sm:$0xff] %v2306
  %2435 = vst [vmem:[%s7 + $0x170] sm:$0xff] %v2307
  %2436 = vst [vmem:[%s7 + $0x178] sm:$0xff] %v2308
  %2437 = vst [vmem:[%s7 + $0x180] sm:$0xff] %v2309
  %2438 = vst [vmem:[%s7 + $0x188] sm:$0xff] %v2310
  %2439 = vst [vmem:[%s7 + $0x190] sm:$0xff] %v2311
  %2440 = vst [vmem:[%s7 + $0x198] sm:$0xff] %v2312
  %2441 = vst [vmem:[%s7 + $0x1a0] sm:$0xff] %v2313
  %2442 = vst [vmem:[%s7 + $0x1a8] sm:$0xff] %v2314
  %2443 = vst [vmem:[%s7 + $0x1b0] sm:$0xff] %v2315
  %2444 = vst [vmem:[%s7 + $0x1b8] sm:$0xff] %v2316
  %2445 = vst [vmem:[%s7 + $0x1c0] sm:$0xff] %v2317
  %2446 = vst [vmem:[%s7 + $0x1c8] sm:$0xff] %v2318
  %2447 = vst [vmem:[%s7 + $0x1d0] sm:$0xff] %v2319
  %2448 = vst [vmem:[%s7 + $0x1d8] sm:$0xff] %v2320
  %2449 = vst [vmem:[%s7 + $0x1e0] sm:$0xff] %v2321
  %2450 = vst [vmem:[%s7 + $0x1e8] sm:$0xff] %v2322
  %2451 = vst [vmem:[%s7 + $0x1f0] sm:$0xff] %v2323
  %2452 = vst [vmem:[%s7 + $0x1f8] sm:$0xff] %v2324
  %2453 = vst [vmem:[%s7 + $0x200] sm:$0xff] %v2325
  %2454 = vst [vmem:[%s7 + $0x208] sm:$0xff] %v2326
  %2455 = vst [vmem:[%s7 + $0x210] sm:$0xff] %v2327
  %2456 = vst [vmem:[%s7 + $0x218] sm:$0xff] %v2328
  %2457 = vst [vmem:[%s7 + $0x220] sm:$0xff] %v2329
  %2458 = vst [vmem:[%s7 + $0x228] sm:$0xff] %v2330
  %2459 = vst [vmem:[%s7 + $0x230] sm:$0xff] %v2331
  %2460 = vst [vmem:[%s7 + $0x238] sm:$0xff] %v2332
  %2461 = vst [vmem:[%s7 + $0x240] sm:$0xff] %v2333
  %2462 = vst [vmem:[%s7 + $0x248] sm:$0xff] %v2334
  %2463 = vst [vmem:[%s7 + $0x250] sm:$0xff] %v2335
  %2464 = vst [vmem:[%s7 + $0x258] sm:$0xff] %v2336
  %2465 = vst [vmem:[%s7 + $0x260] sm:$0xff] %v2337
  %2466 = vst [vmem:[%s7 + $0x268] sm:$0xff] %v2338
  %2467 = vst [vmem:[%s7 + $0x270] sm:$0xff] %v2339
  %2468 = vst [vmem:[%s7 + $0x278] sm:$0xff] %v2340
  %2469 = vst [vmem:[%s7 + $0x280] sm:$0xff] %v2341
  %2470 = vst [vmem:[%s7 + $0x288] sm:$0xff] %v2342
  %2471 = vst [vmem:[%s7 + $0x290] sm:$0xff] %v2343
  %2472 = vst [vmem:[%s7 + $0x298] sm:$0xff] %v2344
  %2473 = vst [vmem:[%s7 + $0x2a0] sm:$0xff] %v2345
  %2474 = vst [vmem:[%s7 + $0x2a8] sm:$0xff] %v2346
  %2475 = vst [vmem:[%s7 + $0x2b0] sm:$0xff] %v2347
  %2476 = vst [vmem:[%s7 + $0x2b8] sm:$0xff] %v2348
  %2477 = vst [vmem:[%s7 + $0x2c0] sm:$0xff] %v2349
  %2478 = vst [vmem:[%s7 + $0x2c8] sm:$0xff] %v2350
  %2479 = vst [vmem:[%s7 + $0x2d0] sm:$0xff] %v2351
  %2480 = vst [vmem:[%s7 + $0x2d8] sm:$0xff] %v2352
  %2481 = vst [vmem:[%s7 + $0x2e0] sm:$0xff] %v2353
  %2482 = vst [vmem:[%s7 + $0x2e8] sm:$0xff] %v2354
  %2483 = vst [vmem:[%s7 + $0x2f0] sm:$0xff] %v2355
  %2484 = vst [vmem:[%s7 + $0x2f8] sm:$0xff] %v2356
  %2485 = vst [vmem:[%s7 + $0x300] sm:$0xff] %v2357
  %2486 = vst [vmem:[%s7 + $0x308] sm:$0xff] %v2358
  %2487 = vst [vmem:[%s7 + $0x310] sm:$0xff] %v2359
  %2488 = vst [vmem:[%s7 + $0x318] sm:$0xff] %v2360
  %2489 = vst [vmem:[%s7 + $0x320] sm:$0xff] %v2361
  %2490 = vst [vmem:[%s7 + $0x328] sm:$0xff] %v2362
  %2491 = vst [vmem:[%s7 + $0x330] sm:$0xff] %v2363
  %2492 = vst [vmem:[%s7 + $0x338] sm:$0xff] %v2364
  %2493 = vst [vmem:[%s7 + $0x340] sm:$0xff] %v2365
  %2494 = vst [vmem:[%s7 + $0x348] sm:$0xff] %v2366
  %2495 = vst [vmem:[%s7 + $0x350] sm:$0xff] %v2367
  %2496 = vst [vmem:[%s7 + $0x358] sm:$0xff] %v2368
  %2497 = vst [vmem:[%s7 + $0x360] sm:$0xff] %v2369
  %2498 = vst [vmem:[%s7 + $0x368] sm:$0xff] %v2370
  %2499 = vst [vmem:[%s7 + $0x370] sm:$0xff] %v2371
  %2500 = vst [vmem:[%s7 + $0x378] sm:$0xff] %v2372
  %2501 = vst [vmem:[%s7 + $0x380] sm:$0xff] %v2373
  %2502 = vst [vmem:[%s7 + $0x388] sm:$0xff] %v2374
  %2503 = vst [vmem:[%s7 + $0x390] sm:$0xff] %v2375
  %2504 = vst [vmem:[%s7 + $0x398] sm:$0xff] %v2376
  %2505 = vst [vmem:[%s7 + $0x3a0] sm:$0xff] %v2377
  %2506 = vst [vmem:[%s7 + $0x3a8] sm:$0xff] %v2378
  %2507 = vst [vmem:[%s7 + $0x3b0] sm:$0xff] %v2379
  %2508 = vst [vmem:[%s7 + $0x3b8] sm:$0xff] %v2380
  %2509 = vst [vmem:[%s7 + $0x3c0] sm:$0xff] %v2381
  %2510 = vst [vmem:[%s7 + $0x3c8] sm:$0xff] %v2382
  %2511 = vst [vmem:[%s7 + $0x3d0] sm:$0xff] %v2383
  %2512 = vst [vmem:[%s7 + $0x3d8] sm:$0xff] %v2384
  %2513 = vst [vmem:[%s7 + $0x3e0] sm:$0xff] %v2385
  %2514 = vst [vmem:[%s7 + $0x3e8] sm:$0xff] %v2386
  %2515 = vst [vmem:[%s7 + $0x3f0] sm:$0xff] %v2387
  %2516 = vst [vmem:[%s7 + $0x3f8] sm:$0xff] %v2388
  // Predicated region
  $region26: #{blip_retrieval_forward.4} parent=0 // pred_check
    _
  $region27: #{blip_retrieval_forward.4} parent=0 // pred_check_branch
    %2518 = sbr.rel (0) target = $region29
  $region28: #{blip_retrieval_forward.4} parent=0 // pred_region
    _
  $region29: #{blip_retrieval_forward.4} parent=0 // pred_fallthru
    _
  // Predicated region
  $region30: #{blip_retrieval_forward.4} parent=0 // pred_check
    _
  $region31: #{blip_retrieval_forward.4} parent=0 // pred_check_branch
    %2520 = sbr.rel (0) target = $region33
  $region32: #{blip_retrieval_forward.4} parent=0 // pred_region
    _
  $region33: #{blip_retrieval_forward.4} parent=0 // pred_fallthru
    _
  // Predicated region
  $region34: #{blip_retrieval_forward.4} parent=0 // pred_check
    _
  $region35: #{blip_retrieval_forward.4} parent=0 // pred_check_branch
    %2522 = sbr.rel (0) target = $region37
  $region36: #{blip_retrieval_forward.4} parent=0 // pred_region
    _
  $region37: #{blip_retrieval_forward.4} parent=0 // pred_fallthru
    _
  // Predicated region
  $region38: #{blip_retrieval_forward.4} parent=0 // pred_check
    _
  $region39: #{blip_retrieval_forward.4} parent=0 // pred_check_branch
    %2524 = sbr.rel (0) target = $region41
  $region40: #{blip_retrieval_forward.4} parent=0 // pred_region
    _
  $region41: #{blip_retrieval_forward.4} parent=0 // pred_fallthru
    _

// kernel: blip_retrieval_forward.5
$region0: #{blip_retrieval_forward.5}
  #allocation0 [shape = 'u32[]', space=smem, size = 0x4, offset = 0x4, fixed_abs, tag = 'smem constant byte address 0x4 - core index']
  #allocation1 [shape = 'u32[72,128]{1,0:T(1,128)}', space=vmem, size = 0x9000, scoped, tag = 'internal scratch']
  #allocation2 [shape = 'f32[1]{0:T(128)S(6)}', space=smem, size = 0x200, scoped, tag = 'scoped memory for blip_retrieval_forward.5']
  %s0 = inlined_call_operand.<no memory space> [shape: f32[1], index: 0, kind: input, shape index: {}]
  %s1 = inlined_call_operand.vmem [shape: f32[16,256], index: 1, kind: input, shape index: {}]
  %s2 = inlined_call_operand.vmem [shape: f32[16,256], index: 2, kind: input, shape index: {}]
  %s3 = inlined_call_operand.vmem [shape: f32[256,256], index: 3, kind: input, shape index: {}]
  %s4 = inlined_call_operand.vmem [shape: f32[1,256], index: 4, kind: input, shape index: {}]
  %s5 = inlined_call_operand.vmem [shape: f32[256,256], index: 5, kind: input, shape index: {}]
  %s6 = inlined_call_operand.vmem [shape: f32[1,256], index: 6, kind: input, shape index: {}]
  %s7 = inlined_call_operand.vmem [shape: f32[128,120], index: 7, kind: input, shape index: {}]
  %s8 = inlined_call_operand.vmem [shape: f32[128,120], index: 8, kind: input, shape index: {}]
  %s9 = inlined_call_operand.vmem [shape: f32[8,8], index: 9, kind: input, shape index: {}]
  %s10 = inlined_call_operand.vmem [shape: f32[8,120], index: 10, kind: input, shape index: {}]
  %s11 = inlined_call_operand.vmem [shape: f32[128,64], index: 11, kind: input, shape index: {}]
  %s12 = inlined_call_operand.vmem [shape: f32[1,64], index: 12, kind: input, shape index: {}]
  %s13 = inlined_call_operand.vmem [shape: f32[1,128], index: 13, kind: output, shape index: {0}]
  %s14 = inlined_call_operand.vmem [shape: f32[8,128], index: 14, kind: output, shape index: {1}]
  %s15 = inlined_call_operand.vmem [shape: f32[8,128], index: 15, kind: output, shape index: {2}]
  %16 = xla_tuple %s13, %s14, %s15
  %s17 = sld [smem:[#allocation0]]
  $region78: #{blip_retrieval_forward.5} parent=0
    _
  %s19 = ssub.s32 1, %s17
  %s20 = scalar_select 0, %s19, %s17
  %21 = sst [smem:[#allocation2]] %s0
  // Predicated region
  $region2: #{blip_retrieval_forward.5} parent=0 // pred_check
    _
  $region3: #{blip_retrieval_forward.5} parent=0 // pred_check_branch
    %23 = sbr.rel (0) target = $region5
  $region4: #{blip_retrieval_forward.5} parent=0 // pred_region
    _
  $region5: #{blip_retrieval_forward.5} parent=0 // pred_fallthru
    _
  // Predicated region
  $region6: #{blip_retrieval_forward.5} parent=0 // pred_check
    _
  $region7: #{blip_retrieval_forward.5} parent=0 // pred_check_branch
    %25 = sbr.rel (0) target = $region9
  $region8: #{blip_retrieval_forward.5} parent=0 // pred_region
    _
  $region9: #{blip_retrieval_forward.5} parent=0 // pred_fallthru
    _
  // Predicated region
  $region10: #{blip_retrieval_forward.5} parent=0 // pred_check
    _
  $region11: #{blip_retrieval_forward.5} parent=0 // pred_check_branch
    %27 = sbr.rel (0) target = $region13
  $region12: #{blip_retrieval_forward.5} parent=0 // pred_region
    _
  $region13: #{blip_retrieval_forward.5} parent=0 // pred_fallthru
    _
  // Predicated region
  $region14: #{blip_retrieval_forward.5} parent=0 // pred_check
    _
  $region15: #{blip_retrieval_forward.5} parent=0 // pred_check_branch
    %29 = sbr.rel (0) target = $region17
  $region16: #{blip_retrieval_forward.5} parent=0 // pred_region
    _
  $region17: #{blip_retrieval_forward.5} parent=0 // pred_fallthru
    _
  // Predicated region
  $region18: #{blip_retrieval_forward.5} parent=0 // pred_check
    _
  $region19: #{blip_retrieval_forward.5} parent=0 // pred_check_branch
    %31 = sbr.rel (0) target = $region21
  $region20: #{blip_retrieval_forward.5} parent=0 // pred_region
    _
  $region21: #{blip_retrieval_forward.5} parent=0 // pred_fallthru
    _
  // Predicated region
  $region22: #{blip_retrieval_forward.5} parent=0 // pred_check
    _
  $region23: #{blip_retrieval_forward.5} parent=0 // pred_check_branch
    %33 = sbr.rel (0) target = $region25
  $region24: #{blip_retrieval_forward.5} parent=0 // pred_region
    _
  $region25: #{blip_retrieval_forward.5} parent=0 // pred_fallthru
    _
  // Predicated region
  $region26: #{blip_retrieval_forward.5} parent=0 // pred_check
    _
  $region27: #{blip_retrieval_forward.5} parent=0 // pred_check_branch
    %35 = sbr.rel (0) target = $region29
  $region28: #{blip_retrieval_forward.5} parent=0 // pred_region
    _
  $region29: #{blip_retrieval_forward.5} parent=0 // pred_fallthru
    _
  // Predicated region
  $region30: #{blip_retrieval_forward.5} parent=0 // pred_check
    _
  $region31: #{blip_retrieval_forward.5} parent=0 // pred_check_branch
    %37 = sbr.rel (0) target = $region33
  $region32: #{blip_retrieval_forward.5} parent=0 // pred_region
    _
  $region33: #{blip_retrieval_forward.5} parent=0 // pred_fallthru
    _
  // Predicated region
  $region34: #{blip_retrieval_forward.5} parent=0 // pred_check
    _
  $region35: #{blip_retrieval_forward.5} parent=0 // pred_check_branch
    %39 = sbr.rel (0) target = $region37
  $region36: #{blip_retrieval_forward.5} parent=0 // pred_region
    _
  $region37: #{blip_retrieval_forward.5} parent=0 // pred_fallthru
    _
  // Predicated region
  $region38: #{blip_retrieval_forward.5} parent=0 // pred_check
    _
  $region39: #{blip_retrieval_forward.5} parent=0 // pred_check_branch
    %41 = sbr.rel (0) target = $region41
  $region40: #{blip_retrieval_forward.5} parent=0 // pred_region
    _
  $region41: #{blip_retrieval_forward.5} parent=0 // pred_fallthru
    _
  // Predicated region
  $region42: #{blip_retrieval_forward.5} parent=0 // pred_check
    _
  $region43: #{blip_retrieval_forward.5} parent=0 // pred_check_branch
    %43 = sbr.rel (0) target = $region45
  $region44: #{blip_retrieval_forward.5} parent=0 // pred_region
    _
  $region45: #{blip_retrieval_forward.5} parent=0 // pred_fallthru
    _
  // Predicated region
  $region46: #{blip_retrieval_forward.5} parent=0 // pred_check
    _
  $region47: #{blip_retrieval_forward.5} parent=0 // pred_check_branch
    %45 = sbr.rel (0) target = $region49
  $region48: #{blip_retrieval_forward.5} parent=0 // pred_region
    _
  $region49: #{blip_retrieval_forward.5} parent=0 // pred_fallthru
    _
  // Predicated region
  $region50: #{blip_retrieval_forward.5} parent=0 // pred_check
    _
  $region51: #{blip_retrieval_forward.5} parent=0 // pred_check_branch
    %47 = sbr.rel (0) target = $region53
  $region52: #{blip_retrieval_forward.5} parent=0 // pred_region
    _
  $region53: #{blip_retrieval_forward.5} parent=0 // pred_fallthru
    _
  %v48 = vld [vmem:[%s1] sm:$0xff]
  %v49 = vld [vmem:[%s1 + $0x8] sm:$0xff]
  %v50 = vld [vmem:[%s1 + $0x10] sm:$0xff]
  %v51 = vld [vmem:[%s1 + $0x18] sm:$0xff]
  %v52 = vld [vmem:[%s3] sm:$0xff]
  %v53 = vld [vmem:[%s3 + $0x8] sm:$0xff]
  %v54 = vld [vmem:[%s3 + $0x10] sm:$0xff]
  %v55 = vld [vmem:[%s3 + $0x18] sm:$0xff]
  %v56 = vld [vmem:[%s3 + $0x20] sm:$0xff]
  %v57 = vld [vmem:[%s3 + $0x28] sm:$0xff]
  %v58 = vld [vmem:[%s3 + $0x30] sm:$0xff]
  %v59 = vld [vmem:[%s3 + $0x38] sm:$0xff]
  %v60 = vld [vmem:[%s3 + $0x40] sm:$0xff]
  %v61 = vld [vmem:[%s3 + $0x48] sm:$0xff]
  %v62 = vld [vmem:[%s3 + $0x50] sm:$0xff]
  %v63 = vld [vmem:[%s3 + $0x58] sm:$0xff]
  %v64 = vld [vmem:[%s3 + $0x60] sm:$0xff]
  %v65 = vld [vmem:[%s3 + $0x68] sm:$0xff]
  %v66 = vld [vmem:[%s3 + $0x70] sm:$0xff]
  %v67 = vld [vmem:[%s3 + $0x78] sm:$0xff]
  %v68 = vld [vmem:[%s3 + $0x80] sm:$0xff]
  %v69 = vld [vmem:[%s3 + $0x88] sm:$0xff]
  %v70 = vld [vmem:[%s3 + $0x90] sm:$0xff]
  %v71 = vld [vmem:[%s3 + $0x98] sm:$0xff]
  %v72 = vld [vmem:[%s3 + $0xa0] sm:$0xff]
  %v73 = vld [vmem:[%s3 + $0xa8] sm:$0xff]
  %v74 = vld [vmem:[%s3 + $0xb0] sm:$0xff]
  %v75 = vld [vmem:[%s3 + $0xb8] sm:$0xff]
  %v76 = vld [vmem:[%s3 + $0xc0] sm:$0xff]
  %v77 = vld [vmem:[%s3 + $0xc8] sm:$0xff]
  %v78 = vld [vmem:[%s3 + $0xd0] sm:$0xff]
  %v79 = vld [vmem:[%s3 + $0xd8] sm:$0xff]
  %v80 = vld [vmem:[%s3 + $0xe0] sm:$0xff]
  %v81 = vld [vmem:[%s3 + $0xe8] sm:$0xff]
  %v82 = vld [vmem:[%s3 + $0xf0] sm:$0xff]
  %v83 = vld [vmem:[%s3 + $0xf8] sm:$0xff]
  %v84 = vld [vmem:[%s3 + $0x100] sm:$0xff]
  %v85 = vld [vmem:[%s3 + $0x108] sm:$0xff]
  %v86 = vld [vmem:[%s3 + $0x110] sm:$0xff]
  %v87 = vld [vmem:[%s3 + $0x118] sm:$0xff]
  %v88 = vld [vmem:[%s3 + $0x120] sm:$0xff]
  %v89 = vld [vmem:[%s3 + $0x128] sm:$0xff]
  %v90 = vld [vmem:[%s3 + $0x130] sm:$0xff]
  %v91 = vld [vmem:[%s3 + $0x138] sm:$0xff]
  %v92 = vld [vmem:[%s3 + $0x140] sm:$0xff]
  %v93 = vld [vmem:[%s3 + $0x148] sm:$0xff]
  %v94 = vld [vmem:[%s3 + $0x150] sm:$0xff]
  %v95 = vld [vmem:[%s3 + $0x158] sm:$0xff]
  %v96 = vld [vmem:[%s3 + $0x160] sm:$0xff]
  %v97 = vld [vmem:[%s3 + $0x168] sm:$0xff]
  %v98 = vld [vmem:[%s3 + $0x170] sm:$0xff]
  %v99 = vld [vmem:[%s3 + $0x178] sm:$0xff]
  %v100 = vld [vmem:[%s3 + $0x180] sm:$0xff]
  %v101 = vld [vmem:[%s3 + $0x188] sm:$0xff]
  %v102 = vld [vmem:[%s3 + $0x190] sm:$0xff]
  %v103 = vld [vmem:[%s3 + $0x198] sm:$0xff]
  %v104 = vld [vmem:[%s3 + $0x1a0] sm:$0xff]
  %v105 = vld [vmem:[%s3 + $0x1a8] sm:$0xff]
  %v106 = vld [vmem:[%s3 + $0x1b0] sm:$0xff]
  %v107 = vld [vmem:[%s3 + $0x1b8] sm:$0xff]
  %v108 = vld [vmem:[%s3 + $0x1c0] sm:$0xff]
  %v109 = vld [vmem:[%s3 + $0x1c8] sm:$0xff]
  %v110 = vld [vmem:[%s3 + $0x1d0] sm:$0xff]
  %v111 = vld [vmem:[%s3 + $0x1d8] sm:$0xff]
  %v112 = vld [vmem:[%s3 + $0x1e0] sm:$0xff]
  %v113 = vld [vmem:[%s3 + $0x1e8] sm:$0xff]
  %v114 = vld [vmem:[%s3 + $0x1f0] sm:$0xff]
  %v115 = vld [vmem:[%s3 + $0x1f8] sm:$0xff]
  %v116 = vld [vmem:[%s4] sm:$0x3]
  %v118 = vperm.slane %v116, 0
  %v119 = vperm.slane %v116, 1
  %122 = vmatpush.msra.mxu0 %v82
  %123 = vmatpush.msra.mxu0 %v80
  %124 = vmatpush.msra.mxu0 %v78
  %125 = vmatpush.msra.mxu0 %v76
  %126 = vmatpush.msra.mxu0 %v74
  %127 = vmatpush.msra.mxu0 %v72
  %128 = vmatpush.msra.mxu0 %v70
  %129 = vmatpush.msra.mxu0 %v68
  %130 = vmatpush.msra.mxu0 %v66
  %131 = vmatpush.msra.mxu0 %v64
  %132 = vmatpush.msra.mxu0 %v62
  %133 = vmatpush.msra.mxu0 %v60
  %134 = vmatpush.msra.mxu0 %v58
  %135 = vmatpush.msra.mxu0 %v56
  %136 = vmatpush.msra.mxu0 %v54
  %137 = vmatpush.msra.mxu0 %v52
  %138 = vmatmul.f32.gmra.mxu0 %v48
  %v139 = vpop.f32.mrf.mxu0
  %v140 = vadd.f32 %v118, %v139
  %141 = vmatmul.f32.gmra.mxu0 %v50
  %v142 = vpop.f32.mrf.mxu0
  %143 = vdwg.mxu0
  %144 = vmatpush.msra.mxu0 %v114
  %145 = vmatpush.msra.mxu0 %v112
  %146 = vmatpush.msra.mxu0 %v110
  %147 = vmatpush.msra.mxu0 %v108
  %148 = vmatpush.msra.mxu0 %v106
  %149 = vmatpush.msra.mxu0 %v104
  %150 = vmatpush.msra.mxu0 %v102
  %151 = vmatpush.msra.mxu0 %v100
  %152 = vmatpush.msra.mxu0 %v98
  %153 = vmatpush.msra.mxu0 %v96
  %154 = vmatpush.msra.mxu0 %v94
  %155 = vmatpush.msra.mxu0 %v92
  %156 = vmatpush.msra.mxu0 %v90
  %157 = vmatpush.msra.mxu0 %v88
  %158 = vmatpush.msra.mxu0 %v86
  %159 = vmatpush.msra.mxu0 %v84
  %160 = vmatmul.f32.gmra.mxu0 %v49
  %v161 = vpop.f32.mrf.mxu0
  %v162 = vadd.f32 %v140, %v161
  %163 = vmatmul.f32.gmra.mxu0 %v51
  %v164 = vpop.f32.mrf.mxu0
  %165 = vdwg.mxu0
  %166 = vmatpush.msra.mxu0 %v83
  %167 = vmatpush.msra.mxu0 %v81
  %168 = vmatpush.msra.mxu0 %v79
  %169 = vmatpush.msra.mxu0 %v77
  %170 = vmatpush.msra.mxu0 %v75
  %171 = vmatpush.msra.mxu0 %v73
  %172 = vmatpush.msra.mxu0 %v71
  %173 = vmatpush.msra.mxu0 %v69
  %174 = vmatpush.msra.mxu0 %v67
  %175 = vmatpush.msra.mxu0 %v65
  %176 = vmatpush.msra.mxu0 %v63
  %177 = vmatpush.msra.mxu0 %v61
  %178 = vmatpush.msra.mxu0 %v59
  %179 = vmatpush.msra.mxu0 %v57
  %180 = vmatpush.msra.mxu0 %v55
  %181 = vmatpush.msra.mxu0 %v53
  %182 = vmatmul.f32.gmra.mxu0 %v48
  %v183 = vpop.f32.mrf.mxu0
  %184 = vmatmul.f32.gmra.mxu0 %v50
  %v185 = vpop.f32.mrf.mxu0
  %v186 = vadd.f32 %v119, %v185
  %187 = vdwg.mxu0
  %188 = vmatpush.msra.mxu0 %v115
  %189 = vmatpush.msra.mxu0 %v113
  %190 = vmatpush.msra.mxu0 %v111
  %191 = vmatpush.msra.mxu0 %v109
  %192 = vmatpush.msra.mxu0 %v107
  %193 = vmatpush.msra.mxu0 %v105
  %194 = vmatpush.msra.mxu0 %v103
  %195 = vmatpush.msra.mxu0 %v101
  %196 = vmatpush.msra.mxu0 %v99
  %197 = vmatpush.msra.mxu0 %v97
  %198 = vmatpush.msra.mxu0 %v95
  %199 = vmatpush.msra.mxu0 %v93
  %200 = vmatpush.msra.mxu0 %v91
  %201 = vmatpush.msra.mxu0 %v89
  %202 = vmatpush.msra.mxu0 %v87
  %203 = vmatpush.msra.mxu0 %v85
  %204 = vmatmul.f32.gmra.mxu0 %v49
  %v205 = vpop.f32.mrf.mxu0
  %206 = vmatmul.f32.gmra.mxu0 %v51
  %v207 = vpop.f32.mrf.mxu0
  %v208 = vadd.f32 %v186, %v207
  %209 = vdwg.mxu0
  %v210 = vld [vmem:[%s2] sm:$0xff]
  %v211 = vld [vmem:[%s2 + $0x8] sm:$0xff]
  %v212 = vld [vmem:[%s2 + $0x10] sm:$0xff]
  %v213 = vld [vmem:[%s2 + $0x18] sm:$0xff]
  %v214 = vld [vmem:[%s5] sm:$0xff]
  %v215 = vld [vmem:[%s5 + $0x8] sm:$0xff]
  %v216 = vld [vmem:[%s5 + $0x10] sm:$0xff]
  %v217 = vld [vmem:[%s5 + $0x18] sm:$0xff]
  %v218 = vld [vmem:[%s5 + $0x20] sm:$0xff]
  %v219 = vld [vmem:[%s5 + $0x28] sm:$0xff]
  %v220 = vld [vmem:[%s5 + $0x30] sm:$0xff]
  %v221 = vld [vmem:[%s5 + $0x38] sm:$0xff]
  %v222 = vld [vmem:[%s5 + $0x40] sm:$0xff]
  %v223 = vld [vmem:[%s5 + $0x48] sm:$0xff]
  %v224 = vld [vmem:[%s5 + $0x50] sm:$0xff]
  %v225 = vld [vmem:[%s5 + $0x58] sm:$0xff]
  %v226 = vld [vmem:[%s5 + $0x60] sm:$0xff]
  %v227 = vld [vmem:[%s5 + $0x68] sm:$0xff]
  %v228 = vld [vmem:[%s5 + $0x70] sm:$0xff]
  %v229 = vld [vmem:[%s5 + $0x78] sm:$0xff]
  %v230 = vld [vmem:[%s5 + $0x80] sm:$0xff]
  %v231 = vld [vmem:[%s5 + $0x88] sm:$0xff]
  %v232 = vld [vmem:[%s5 + $0x90] sm:$0xff]
  %v233 = vld [vmem:[%s5 + $0x98] sm:$0xff]
  %v234 = vld [vmem:[%s5 + $0xa0] sm:$0xff]
  %v235 = vld [vmem:[%s5 + $0xa8] sm:$0xff]
  %v236 = vld [vmem:[%s5 + $0xb0] sm:$0xff]
  %v237 = vld [vmem:[%s5 + $0xb8] sm:$0xff]
  %v238 = vld [vmem:[%s5 + $0xc0] sm:$0xff]
  %v239 = vld [vmem:[%s5 + $0xc8] sm:$0xff]
  %v240 = vld [vmem:[%s5 + $0xd0] sm:$0xff]
  %v241 = vld [vmem:[%s5 + $0xd8] sm:$0xff]
  %v242 = vld [vmem:[%s5 + $0xe0] sm:$0xff]
  %v243 = vld [vmem:[%s5 + $0xe8] sm:$0xff]
  %v244 = vld [vmem:[%s5 + $0xf0] sm:$0xff]
  %v245 = vld [vmem:[%s5 + $0xf8] sm:$0xff]
  %v246 = vld [vmem:[%s5 + $0x100] sm:$0xff]
  %v247 = vld [vmem:[%s5 + $0x108] sm:$0xff]
  %v248 = vld [vmem:[%s5 + $0x110] sm:$0xff]
  %v249 = vld [vmem:[%s5 + $0x118] sm:$0xff]
  %v250 = vld [vmem:[%s5 + $0x120] sm:$0xff]
  %v251 = vld [vmem:[%s5 + $0x128] sm:$0xff]
  %v252 = vld [vmem:[%s5 + $0x130] sm:$0xff]
  %v253 = vld [vmem:[%s5 + $0x138] sm:$0xff]
  %v254 = vld [vmem:[%s5 + $0x140] sm:$0xff]
  %v255 = vld [vmem:[%s5 + $0x148] sm:$0xff]
  %v256 = vld [vmem:[%s5 + $0x150] sm:$0xff]
  %v257 = vld [vmem:[%s5 + $0x158] sm:$0xff]
  %v258 = vld [vmem:[%s5 + $0x160] sm:$0xff]
  %v259 = vld [vmem:[%s5 + $0x168] sm:$0xff]
  %v260 = vld [vmem:[%s5 + $0x170] sm:$0xff]
  %v261 = vld [vmem:[%s5 + $0x178] sm:$0xff]
  %v262 = vld [vmem:[%s5 + $0x180] sm:$0xff]
  %v263 = vld [vmem:[%s5 + $0x188] sm:$0xff]
  %v264 = vld [vmem:[%s5 + $0x190] sm:$0xff]
  %v265 = vld [vmem:[%s5 + $0x198] sm:$0xff]
  %v266 = vld [vmem:[%s5 + $0x1a0] sm:$0xff]
  %v267 = vld [vmem:[%s5 + $0x1a8] sm:$0xff]
  %v268 = vld [vmem:[%s5 + $0x1b0] sm:$0xff]
  %v269 = vld [vmem:[%s5 + $0x1b8] sm:$0xff]
  %v270 = vld [vmem:[%s5 + $0x1c0] sm:$0xff]
  %v271 = vld [vmem:[%s5 + $0x1c8] sm:$0xff]
  %v272 = vld [vmem:[%s5 + $0x1d0] sm:$0xff]
  %v273 = vld [vmem:[%s5 + $0x1d8] sm:$0xff]
  %v274 = vld [vmem:[%s5 + $0x1e0] sm:$0xff]
  %v275 = vld [vmem:[%s5 + $0x1e8] sm:$0xff]
  %v276 = vld [vmem:[%s5 + $0x1f0] sm:$0xff]
  %v277 = vld [vmem:[%s5 + $0x1f8] sm:$0xff]
  %v278 = vld [vmem:[%s6] sm:$0x3]
  %v280 = vperm.slane %v278, 0
  %v281 = vperm.slane %v278, 1
  %284 = vmatpush.msra.mxu0 %v244
  %285 = vmatpush.msra.mxu0 %v242
  %286 = vmatpush.msra.mxu0 %v240
  %287 = vmatpush.msra.mxu0 %v238
  %288 = vmatpush.msra.mxu0 %v236
  %289 = vmatpush.msra.mxu0 %v234
  %290 = vmatpush.msra.mxu0 %v232
  %291 = vmatpush.msra.mxu0 %v230
  %292 = vmatpush.msra.mxu0 %v228
  %293 = vmatpush.msra.mxu0 %v226
  %294 = vmatpush.msra.mxu0 %v224
  %295 = vmatpush.msra.mxu0 %v222
  %296 = vmatpush.msra.mxu0 %v220
  %297 = vmatpush.msra.mxu0 %v218
  %298 = vmatpush.msra.mxu0 %v216
  %299 = vmatpush.msra.mxu0 %v214
  %300 = vmatmul.f32.gmra.mxu0 %v210
  %v301 = vpop.f32.mrf.mxu0
  %v302 = vadd.f32 %v280, %v301
  %303 = vmatmul.f32.gmra.mxu0 %v212
  %v304 = vpop.f32.mrf.mxu0
  %305 = vdwg.mxu0
  %306 = vmatpush.msra.mxu0 %v276
  %307 = vmatpush.msra.mxu0 %v274
  %308 = vmatpush.msra.mxu0 %v272
  %309 = vmatpush.msra.mxu0 %v270
  %310 = vmatpush.msra.mxu0 %v268
  %311 = vmatpush.msra.mxu0 %v266
  %312 = vmatpush.msra.mxu0 %v264
  %313 = vmatpush.msra.mxu0 %v262
  %314 = vmatpush.msra.mxu0 %v260
  %315 = vmatpush.msra.mxu0 %v258
  %316 = vmatpush.msra.mxu0 %v256
  %317 = vmatpush.msra.mxu0 %v254
  %318 = vmatpush.msra.mxu0 %v252
  %319 = vmatpush.msra.mxu0 %v250
  %320 = vmatpush.msra.mxu0 %v248
  %321 = vmatpush.msra.mxu0 %v246
  %322 = vmatmul.f32.gmra.mxu0 %v211
  %v323 = vpop.f32.mrf.mxu0
  %v324 = vadd.f32 %v302, %v323
  %325 = vmatmul.f32.gmra.mxu0 %v213
  %v326 = vpop.f32.mrf.mxu0
  %327 = vdwg.mxu0
  %328 = vmatpush.msra.mxu0 %v245
  %329 = vmatpush.msra.mxu0 %v243
  %330 = vmatpush.msra.mxu0 %v241
  %331 = vmatpush.msra.mxu0 %v239
  %332 = vmatpush.msra.mxu0 %v237
  %333 = vmatpush.msra.mxu0 %v235
  %334 = vmatpush.msra.mxu0 %v233
  %335 = vmatpush.msra.mxu0 %v231
  %336 = vmatpush.msra.mxu0 %v229
  %337 = vmatpush.msra.mxu0 %v227
  %338 = vmatpush.msra.mxu0 %v225
  %339 = vmatpush.msra.mxu0 %v223
  %340 = vmatpush.msra.mxu0 %v221
  %341 = vmatpush.msra.mxu0 %v219
  %342 = vmatpush.msra.mxu0 %v217
  %343 = vmatpush.msra.mxu0 %v215
  %344 = vmatmul.f32.gmra.mxu0 %v210
  %v345 = vpop.f32.mrf.mxu0
  %346 = vmatmul.f32.gmra.mxu0 %v212
  %v347 = vpop.f32.mrf.mxu0
  %v348 = vadd.f32 %v281, %v347
  %349 = vdwg.mxu0
  %350 = vmatpush.msra.mxu0 %v277
  %351 = vmatpush.msra.mxu0 %v275
  %352 = vmatpush.msra.mxu0 %v273
  %353 = vmatpush.msra.mxu0 %v271
  %354 = vmatpush.msra.mxu0 %v269
  %355 = vmatpush.msra.mxu0 %v267
  %356 = vmatpush.msra.mxu0 %v265
  %357 = vmatpush.msra.mxu0 %v263
  %358 = vmatpush.msra.mxu0 %v261
  %359 = vmatpush.msra.mxu0 %v259
  %360 = vmatpush.msra.mxu0 %v257
  %361 = vmatpush.msra.mxu0 %v255
  %362 = vmatpush.msra.mxu0 %v253
  %363 = vmatpush.msra.mxu0 %v251
  %364 = vmatpush.msra.mxu0 %v249
  %365 = vmatpush.msra.mxu0 %v247
  %366 = vmatmul.f32.gmra.mxu0 %v211
  %v367 = vpop.f32.mrf.mxu0
  %368 = vmatmul.f32.gmra.mxu0 %v213
  %v369 = vpop.f32.mrf.mxu0
  %v370 = vadd.f32 %v348, %v369
  %371 = vdwg.mxu0
  %v372 = vmul.f32 %v162, %v162
  %373 = vadd.xlane.f32.xlu0 %v372
  %v374 = vpop.xlane.xlu0 %373
  %v375 = vrsqrt.pop %v374
  %v376 = vmul.f32 %v375, %v374
  %v377 = vmul.f32 %v376, %v375
  %v378 = vmul.f32 0.5, %v377
  %v379 = vsub.f32 1.5, %v378
  %v380 = vmul.f32 %v375, %v379
  %v381 = vmul.f32 %v374, %v380
  %vm382 = vcmp.eq.f32.partialorder %v374, inf
  %v383 = vsel %vm382, %v374, %v381
  %vm384 = vcmp.eq.f32.partialorder %v374, 0.0
  %v385 = vand.u32 %v374, 2147483648
  %v386 = vsel %vm384, %v385, %v383
  %v387 = vmax.f32 %v386, 1e-12
  %v388 = vrcp.pop %v387
  %v389 = vmul.f32 %v387, %v388
  %v390 = vsub.f32 1.0, %v389
  %v391 = vmul.f32 %v388, %v390
  %v392 = vadd.f32 %v388, %v391
  %vm393 = vweird.f32 %v387
  %vm394 = vweird.f32 %v388
  %vm395 = vmor %vm393, %vm394
  %v396 = vsel %vm395, %v388, %v392
  %v397 = vand.u32 2147483647, %v387
  %vm398 = vcmp.eq.f32.partialorder %v397, 8.507059e+37
  %v399 = vand.u32 %v387, 2147483648
  %v400 = vor.u32 1.1754944e-38, %v399
  %v401 = vsel %vm398, %v400, %v396
  %v402 = vmul.f32 %v162, %v401
  %v403 = vmul.f32 %v208, %v208
  %404 = vadd.xlane.f32.xlu0 %v403
  %v405 = vpop.xlane.xlu0 %404
  %v406 = vrsqrt.pop %v405
  %v407 = vmul.f32 %v406, %v405
  %v408 = vmul.f32 %v407, %v406
  %v409 = vmul.f32 0.5, %v408
  %v410 = vsub.f32 1.5, %v409
  %v411 = vmul.f32 %v406, %v410
  %v412 = vmul.f32 %v405, %v411
  %vm413 = vcmp.eq.f32.partialorder %v405, inf
  %v414 = vsel %vm413, %v405, %v412
  %vm415 = vcmp.eq.f32.partialorder %v405, 0.0
  %v416 = vand.u32 %v405, 2147483648
  %v417 = vsel %vm415, %v416, %v414
  %v418 = vmax.f32 %v417, 1e-12
  %v419 = vrcp.pop %v418
  %v420 = vmul.f32 %v418, %v419
  %v421 = vsub.f32 1.0, %v420
  %v422 = vmul.f32 %v419, %v421
  %v423 = vadd.f32 %v419, %v422
  %vm424 = vweird.f32 %v418
  %vm425 = vweird.f32 %v419
  %vm426 = vmor %vm424, %vm425
  %v427 = vsel %vm426, %v419, %v423
  %v428 = vand.u32 2147483647, %v418
  %vm429 = vcmp.eq.f32.partialorder %v428, 8.507059e+37
  %v430 = vand.u32 %v418, 2147483648
  %v431 = vor.u32 1.1754944e-38, %v430
  %v432 = vsel %vm429, %v431, %v427
  %v433 = vmul.f32 %v208, %v432
  %v434 = vmul.f32 %v324, %v324
  %435 = vadd.xlane.f32.xlu0 %v434
  %v436 = vpop.xlane.xlu0 %435
  %v437 = vrsqrt.pop %v436
  %v438 = vmul.f32 %v437, %v436
  %v439 = vmul.f32 %v438, %v437
  %v440 = vmul.f32 0.5, %v439
  %v441 = vsub.f32 1.5, %v440
  %v442 = vmul.f32 %v437, %v441
  %v443 = vmul.f32 %v436, %v442
  %vm444 = vcmp.eq.f32.partialorder %v436, inf
  %v445 = vsel %vm444, %v436, %v443
  %vm446 = vcmp.eq.f32.partialorder %v436, 0.0
  %v447 = vand.u32 %v436, 2147483648
  %v448 = vsel %vm446, %v447, %v445
  %v449 = vmax.f32 %v448, 1e-12
  %v450 = vrcp.pop %v449
  %v451 = vmul.f32 %v449, %v450
  %v452 = vsub.f32 1.0, %v451
  %v453 = vmul.f32 %v450, %v452
  %v454 = vadd.f32 %v450, %v453
  %vm455 = vweird.f32 %v449
  %vm456 = vweird.f32 %v450
  %vm457 = vmor %vm455, %vm456
  %v458 = vsel %vm457, %v450, %v454
  %v459 = vand.u32 2147483647, %v449
  %vm460 = vcmp.eq.f32.partialorder %v459, 8.507059e+37
  %v461 = vand.u32 %v449, 2147483648
  %v462 = vor.u32 1.1754944e-38, %v461
  %v463 = vsel %vm460, %v462, %v458
  %v464 = vmul.f32 %v324, %v463
  %v465 = vmul.f32 %v370, %v370
  %466 = vadd.xlane.f32.xlu0 %v465
  %v467 = vpop.xlane.xlu0 %466
  %v468 = vrsqrt.pop %v467
  %v469 = vmul.f32 %v468, %v467
  %v470 = vmul.f32 %v469, %v468
  %v471 = vmul.f32 0.5, %v470
  %v472 = vsub.f32 1.5, %v471
  %v473 = vmul.f32 %v468, %v472
  %v474 = vmul.f32 %v467, %v473
  %vm475 = vcmp.eq.f32.partialorder %v467, inf
  %v476 = vsel %vm475, %v467, %v474
  %vm477 = vcmp.eq.f32.partialorder %v467, 0.0
  %v478 = vand.u32 %v467, 2147483648
  %v479 = vsel %vm477, %v478, %v476
  %v480 = vmax.f32 %v479, 1e-12
  %v481 = vrcp.pop %v480
  %v482 = vmul.f32 %v480, %v481
  %v483 = vsub.f32 1.0, %v482
  %v484 = vmul.f32 %v481, %v483
  %v485 = vadd.f32 %v481, %v484
  %vm486 = vweird.f32 %v480
  %vm487 = vweird.f32 %v481
  %vm488 = vmor %vm486, %vm487
  %v489 = vsel %vm488, %v481, %v485
  %v490 = vand.u32 2147483647, %v480
  %vm491 = vcmp.eq.f32.partialorder %v490, 8.507059e+37
  %v492 = vand.u32 %v480, 2147483648
  %v493 = vor.u32 1.1754944e-38, %v492
  %v494 = vsel %vm491, %v493, %v489
  %v495 = vmul.f32 %v370, %v494
  %s496 = sld [smem:[#allocation2]]
  %v497 = vstv %s496
  %v498 = vrcp.pop %v497
  %v499 = vmul.f32 %v497, %v498
  %v500 = vsub.f32 1.0, %v499
  %v501 = vmul.f32 %v498, %v500
  %v502 = vadd.f32 %v498, %v501
  %vm503 = vweird.f32 %v497
  %vm504 = vweird.f32 %v498
  %vm505 = vmor %vm503, %vm504
  %v506 = vsel %vm505, %v498, %v502
  %v507 = vand.u32 2147483647, %v497
  %vm508 = vcmp.eq.f32.partialorder %v507, 8.507059e+37
  %v509 = vand.u32 %v497, 2147483648
  %v510 = vor.u32 1.1754944e-38, %v509
  %v511 = vsel %vm508, %v510, %v506
  %s512 = vtos %v511
  %513 = vmatpush.xpose.msra.mxu0 0.0
  %514 = vmatpush.xpose.msra.mxu0 0.0
  %515 = vmatpush.xpose.msra.mxu0 0.0
  %516 = vmatpush.xpose.msra.mxu0 0.0
  %517 = vmatpush.xpose.msra.mxu0 0.0
  %518 = vmatpush.xpose.msra.mxu0 0.0
  %519 = vmatpush.xpose.msra.mxu0 0.0
  %520 = vmatpush.xpose.msra.mxu0 0.0
  %521 = vmatpush.xpose.msra.mxu0 0.0
  %522 = vmatpush.xpose.msra.mxu0 0.0
  %523 = vmatpush.xpose.msra.mxu0 0.0
  %524 = vmatpush.xpose.msra.mxu0 0.0
  %525 = vmatpush.xpose.msra.mxu0 0.0
  %526 = vmatpush.xpose.msra.mxu0 0.0
  %527 = vmatpush.xpose.msra.mxu0 0.0
  %528 = vmatpush.xpose.msra.mxu0 %v495
  %529 = vmatmul.f32.gmra.mxu0 %v402
  %v530 = vpop.f32.mrf.mxu0
  %v531 = vadd.f32 0.0, %v530
  %532 = vdwg.mxu0
  %v533 = vstv %s512
  %v534 = vmul.f32 %v531, %v533
  %v535 = vld [vmem:[%s8] sm:$0xff]
  %v536 = vld [vmem:[%s8 + $0x8] sm:$0xff]
  %v537 = vld [vmem:[%s8 + $0x10] sm:$0xff]
  %v538 = vld [vmem:[%s8 + $0x18] sm:$0xff]
  %v539 = vld [vmem:[%s8 + $0x20] sm:$0xff]
  %v540 = vld [vmem:[%s8 + $0x28] sm:$0xff]
  %v541 = vld [vmem:[%s8 + $0x30] sm:$0xff]
  %v542 = vld [vmem:[%s8 + $0x38] sm:$0xff]
  %v543 = vld [vmem:[%s8 + $0x40] sm:$0xff]
  %v544 = vld [vmem:[%s8 + $0x48] sm:$0xff]
  %v545 = vld [vmem:[%s8 + $0x50] sm:$0xff]
  %v546 = vld [vmem:[%s8 + $0x58] sm:$0xff]
  %v547 = vld [vmem:[%s8 + $0x60] sm:$0xff]
  %v548 = vld [vmem:[%s8 + $0x68] sm:$0xff]
  %v549 = vld [vmem:[%s8 + $0x70] sm:$0xff]
  %v550 = vld [vmem:[%s8 + $0x78] sm:$0xff]
  %551 = vmatpush.msra.mxu0 %v550
  %552 = vmatpush.msra.mxu0 %v549
  %553 = vmatpush.msra.mxu0 %v548
  %554 = vmatpush.msra.mxu0 %v547
  %555 = vmatpush.msra.mxu0 %v546
  %556 = vmatpush.msra.mxu0 %v545
  %557 = vmatpush.msra.mxu0 %v544
  %558 = vmatpush.msra.mxu0 %v543
  %559 = vmatpush.msra.mxu0 %v542
  %560 = vmatpush.msra.mxu0 %v541
  %561 = vmatpush.msra.mxu0 %v540
  %562 = vmatpush.msra.mxu0 %v539
  %563 = vmatpush.msra.mxu0 %v538
  %564 = vmatpush.msra.mxu0 %v537
  %565 = vmatpush.msra.mxu0 %v536
  %566 = vmatpush.msra.mxu0 %v535
  %567 = vmatmul.f32.gmra.mxu0 %v402
  %v568 = vpop.f32.mrf.mxu0
  %v569 = vadd.f32 0.0, %v568
  %570 = vdwg.mxu0
  %v571 = vmul.f32 %v569, %v533
  %572 = vmatpush.xpose.msra.mxu0 0.0
  %573 = vmatpush.xpose.msra.mxu0 0.0
  %574 = vmatpush.xpose.msra.mxu0 0.0
  %575 = vmatpush.xpose.msra.mxu0 0.0
  %576 = vmatpush.xpose.msra.mxu0 0.0
  %577 = vmatpush.xpose.msra.mxu0 0.0
  %578 = vmatpush.xpose.msra.mxu0 0.0
  %579 = vmatpush.xpose.msra.mxu0 0.0
  %580 = vmatpush.xpose.msra.mxu0 0.0
  %581 = vmatpush.xpose.msra.mxu0 0.0
  %582 = vmatpush.xpose.msra.mxu0 0.0
  %583 = vmatpush.xpose.msra.mxu0 0.0
  %584 = vmatpush.xpose.msra.mxu0 0.0
  %585 = vmatpush.xpose.msra.mxu0 0.0
  %586 = vmatpush.xpose.msra.mxu0 0.0
  %587 = vmatpush.xpose.msra.mxu0 %v433
  %588 = vmatmul.f32.gmra.mxu0 %v464
  %v589 = vpop.f32.mrf.mxu0
  %v590 = vadd.f32 0.0, %v589
  %591 = vdwg.mxu0
  %v592 = vmul.f32 %v590, %v533
  %v593 = vld [vmem:[%s7] sm:$0xff]
  %v594 = vld [vmem:[%s7 + $0x8] sm:$0xff]
  %v595 = vld [vmem:[%s7 + $0x10] sm:$0xff]
  %v596 = vld [vmem:[%s7 + $0x18] sm:$0xff]
  %v597 = vld [vmem:[%s7 + $0x20] sm:$0xff]
  %v598 = vld [vmem:[%s7 + $0x28] sm:$0xff]
  %v599 = vld [vmem:[%s7 + $0x30] sm:$0xff]
  %v600 = vld [vmem:[%s7 + $0x38] sm:$0xff]
  %v601 = vld [vmem:[%s7 + $0x40] sm:$0xff]
  %v602 = vld [vmem:[%s7 + $0x48] sm:$0xff]
  %v603 = vld [vmem:[%s7 + $0x50] sm:$0xff]
  %v604 = vld [vmem:[%s7 + $0x58] sm:$0xff]
  %v605 = vld [vmem:[%s7 + $0x60] sm:$0xff]
  %v606 = vld [vmem:[%s7 + $0x68] sm:$0xff]
  %v607 = vld [vmem:[%s7 + $0x70] sm:$0xff]
  %v608 = vld [vmem:[%s7 + $0x78] sm:$0xff]
  %609 = vmatpush.msra.mxu0 %v608
  %610 = vmatpush.msra.mxu0 %v607
  %611 = vmatpush.msra.mxu0 %v606
  %612 = vmatpush.msra.mxu0 %v605
  %613 = vmatpush.msra.mxu0 %v604
  %614 = vmatpush.msra.mxu0 %v603
  %615 = vmatpush.msra.mxu0 %v602
  %616 = vmatpush.msra.mxu0 %v601
  %617 = vmatpush.msra.mxu0 %v600
  %618 = vmatpush.msra.mxu0 %v599
  %619 = vmatpush.msra.mxu0 %v598
  %620 = vmatpush.msra.mxu0 %v597
  %621 = vmatpush.msra.mxu0 %v596
  %622 = vmatpush.msra.mxu0 %v595
  %623 = vmatpush.msra.mxu0 %v594
  %624 = vmatpush.msra.mxu0 %v593
  %625 = vmatmul.f32.gmra.mxu0 %v464
  %v626 = vpop.f32.mrf.mxu0
  %v627 = vadd.f32 0.0, %v626
  %628 = vdwg.mxu0
  %v629 = vmul.f32 %v627, %v533
  %v630 = vld [vmem:[%s9] sm:$0xff]
  %v631 = vld [vmem:[%s10] sm:$0xff]
  %vm632 = vcmask 64512
  %v633 = vsel %vm632, %v534, -inf
  %634 = vmax.xlane.f32.xlu0 %v633
  %v635 = vpop.xlane.xlu0 %634
  %vm636 = vcmask 982016
  %v637 = vsel %vm636, %v571, -inf
  %638 = vmax.xlane.f32.xlu0 %v637
  %v639 = vpop.xlane.xlu0 %638
  %v640 = vmax.f32 %v635, %v639
  %v641 = vsub.f32 %v534, %v640
  %v642 = vsub.f32 %v571, %v640
  %v643 = vmul.f32 %v641, 1.442695
  %v644 = vpow.pop %v643
  %v645 = vsel %vm632, %v644, 0.0
  %646 = vadd.xlane.f32.xlu0 %v645
  %v647 = vpop.xlane.xlu0 %646
  %v648 = vmul.f32 %v642, 1.442695
  %v649 = vpow.pop %v648
  %v650 = vsel %vm636, %v649, 0.0
  %651 = vadd.xlane.f32.xlu0 %v650
  %v652 = vpop.xlane.xlu0 %651
  %v653 = vadd.f32 %v647, %v652
  %v654 = vlog2.pop %v653
  %v655 = vmul.f32 %v654, 0.6931472
  %v656 = vsub.f32 %v641, %v655
  %v657 = vmul.f32 %v656, %v630
  %v658 = vsel %vm632, %v657, 0.0
  %659 = vadd.xlane.f32.xlu0 %v658
  %v660 = vpop.xlane.xlu0 %659
  %v661 = vsub.f32 %v642, %v655
  %v662 = vmul.f32 %v661, %v631
  %v663 = vsel %vm636, %v662, 0.0
  %664 = vadd.xlane.f32.xlu0 %v663
  %v665 = vpop.xlane.xlu0 %664
  %v666 = vadd.f32 %v660, %v665
  %v667 = vsub.f32 0.0, %v666
  %v668 = vrot.slane %v667, 4
  %v669 = vadd.f32 %v667, %v668
  %v670 = vrot.slane %v669, 2
  %v671 = vadd.f32 %v669, %v670
  %v672 = vrot.slane %v671, 1
  %v673 = vadd.f32 %v671, %v672
  %v674 = vrcp.pop 8.0
  %v675 = vmul.f32 8.0, %v674
  %v676 = vsub.f32 1.0, %v675
  %v677 = vmul.f32 %v674, %v676
  %v678 = vadd.f32 %v674, %v677
  %vm679 = vweird.f32 %v674
  %v680 = vsel %vm679, %v674, %v678
  %v681 = vmul.f32 %v673, %v680
  %v682 = vsel %vm632, %v592, -inf
  %683 = vmax.xlane.f32.xlu0 %v682
  %v684 = vpop.xlane.xlu0 %683
  %v685 = vsel %vm636, %v629, -inf
  %686 = vmax.xlane.f32.xlu0 %v685
  %v687 = vpop.xlane.xlu0 %686
  %v688 = vmax.f32 %v684, %v687
  %v689 = vsub.f32 %v592, %v688
  %v690 = vsub.f32 %v629, %v688
  %v691 = vmul.f32 %v689, 1.442695
  %v692 = vpow.pop %v691
  %v693 = vsel %vm632, %v692, 0.0
  %694 = vadd.xlane.f32.xlu0 %v693
  %v695 = vpop.xlane.xlu0 %694
  %v696 = vmul.f32 %v690, 1.442695
  %v697 = vpow.pop %v696
  %v698 = vsel %vm636, %v697, 0.0
  %699 = vadd.xlane.f32.xlu0 %v698
  %v700 = vpop.xlane.xlu0 %699
  %v701 = vadd.f32 %v695, %v700
  %v702 = vlog2.pop %v701
  %v703 = vmul.f32 %v702, 0.6931472
  %v704 = vsub.f32 %v689, %v703
  %v705 = vmul.f32 %v704, %v630
  %v706 = vsel %vm632, %v705, 0.0
  %707 = vadd.xlane.f32.xlu0 %v706
  %v708 = vpop.xlane.xlu0 %707
  %v709 = vsub.f32 %v690, %v703
  %v710 = vmul.f32 %v709, %v631
  %v711 = vsel %vm636, %v710, 0.0
  %712 = vadd.xlane.f32.xlu0 %v711
  %v713 = vpop.xlane.xlu0 %712
  %v714 = vadd.f32 %v708, %v713
  %v715 = vsub.f32 0.0, %v714
  %v716 = vrot.slane %v715, 4
  %v717 = vadd.f32 %v715, %v716
  %v718 = vrot.slane %v717, 2
  %v719 = vadd.f32 %v717, %v718
  %v720 = vrot.slane %v719, 1
  %v721 = vadd.f32 %v719, %v720
  %v722 = vmul.f32 %v721, %v680
  %v723 = vadd.f32 %v681, %v722
  %v724 = vmul.f32 %v723, 0.5
  %v725 = vld [vmem:[%s11] sm:$0xff]
  %v726 = vld [vmem:[%s11 + $0x8] sm:$0xff]
  %v727 = vld [vmem:[%s11 + $0x10] sm:$0xff]
  %v728 = vld [vmem:[%s11 + $0x18] sm:$0xff]
  %v729 = vld [vmem:[%s11 + $0x20] sm:$0xff]
  %v730 = vld [vmem:[%s11 + $0x28] sm:$0xff]
  %v731 = vld [vmem:[%s11 + $0x30] sm:$0xff]
  %v732 = vld [vmem:[%s11 + $0x38] sm:$0xff]
  %v733 = vld [vmem:[%s11 + $0x40] sm:$0xff]
  %v734 = vld [vmem:[%s11 + $0x48] sm:$0xff]
  %v735 = vld [vmem:[%s11 + $0x50] sm:$0xff]
  %v736 = vld [vmem:[%s11 + $0x58] sm:$0xff]
  %v737 = vld [vmem:[%s11 + $0x60] sm:$0xff]
  %v738 = vld [vmem:[%s11 + $0x68] sm:$0xff]
  %v739 = vld [vmem:[%s11 + $0x70] sm:$0xff]
  %v740 = vld [vmem:[%s11 + $0x78] sm:$0xff]
  %v741 = vld [vmem:[%s12] sm:$0x1]
  %vm742 = vcmp.gt.f32.partialorder %v741, 0.0
  %743 = vmatpush.msra.mxu0 %v740
  %744 = vmatpush.msra.mxu0 %v739
  %745 = vmatpush.msra.mxu0 %v738
  %746 = vmatpush.msra.mxu0 %v737
  %747 = vmatpush.msra.mxu0 %v736
  %748 = vmatpush.msra.mxu0 %v735
  %749 = vmatpush.msra.mxu0 %v734
  %750 = vmatpush.msra.mxu0 %v733
  %751 = vmatpush.msra.mxu0 %v732
  %752 = vmatpush.msra.mxu0 %v731
  %753 = vmatpush.msra.mxu0 %v730
  %754 = vmatpush.msra.mxu0 %v729
  %755 = vmatpush.msra.mxu0 %v728
  %756 = vmatpush.msra.mxu0 %v727
  %757 = vmatpush.msra.mxu0 %v726
  %758 = vmatpush.msra.mxu0 %v725
  %759 = vmatmul.f32.gmra.mxu0 %v402
  %v760 = vpop.f32.mrf.mxu0
  %v761 = vadd.f32 0.0, %v760
  %762 = vdwg.mxu0
  %763 = vmatpush.msra.mxu0 %v740
  %764 = vmatpush.msra.mxu0 %v739
  %765 = vmatpush.msra.mxu0 %v738
  %766 = vmatpush.msra.mxu0 %v737
  %767 = vmatpush.msra.mxu0 %v736
  %768 = vmatpush.msra.mxu0 %v735
  %769 = vmatpush.msra.mxu0 %v734
  %770 = vmatpush.msra.mxu0 %v733
  %771 = vmatpush.msra.mxu0 %v732
  %772 = vmatpush.msra.mxu0 %v731
  %773 = vmatpush.msra.mxu0 %v730
  %774 = vmatpush.msra.mxu0 %v729
  %775 = vmatpush.msra.mxu0 %v728
  %776 = vmatpush.msra.mxu0 %v727
  %777 = vmatpush.msra.mxu0 %v726
  %778 = vmatpush.msra.mxu0 %v725
  %779 = vmatmul.f32.gmra.mxu0 %v464
  %v780 = vpop.f32.mrf.mxu0
  %v781 = vadd.f32 0.0, %v780
  %782 = vdwg.mxu0
  %vm783 = vcmp.lt.f32.partialorder %v761, 0.1
  %v784 = vsel %vm783, 0.0, 1.0
  %v786 = vperm.slane %v741, 0
  %v788 = vmul.f32 %v784, %v786
  %vm789 = vcmp.lt.f32.partialorder %v781, 0.1
  %v790 = vsel %vm789, 0.0, 1.0
  %v791 = vmul.f32 %v790, %v786
  %v792 = vsel %vm742, 1, 0
  %v793 = vperm.slane %v792, 0
  %vm794 = vcmp.eq.s32.totalorder %v793, 1
  %v795 = vsel %vm794, %v781, 1e+30
  %vm796 = vcmask 523264
  %v797 = vsel %vm796, %v795, inf
  %798 = vmin.xlane.f32.xlu0 %v797
  %v799 = vpop.xlane.xlu0 %798
  %v800 = vsel %vm794, %v781, -1e+30
  %v801 = vsel %vm796, %v800, -inf
  %802 = vmax.xlane.f32.xlu0 %v801
  %v803 = vpop.xlane.xlu0 %802
  %v804 = vsub.f32 %v781, %v799
  %v805 = vsub.f32 %v803, %v799
  %v806 = vmax.f32 %v805, 1e-12
  %v807 = vrcp.pop %v806
  %v808 = vmul.f32 %v806, %v807
  %v809 = vsub.f32 1.0, %v808
  %v810 = vmul.f32 %v807, %v809
  %v811 = vadd.f32 %v807, %v810
  %vm812 = vweird.f32 %v806
  %vm813 = vweird.f32 %v807
  %vm814 = vmor %vm812, %vm813
  %v815 = vsel %vm814, %v807, %v811
  %v816 = vand.u32 2147483647, %v806
  %vm817 = vcmp.eq.f32.partialorder %v816, 8.507059e+37
  %v818 = vand.u32 %v806, 2147483648
  %v819 = vor.u32 1.1754944e-38, %v818
  %v820 = vsel %vm817, %v819, %v815
  %v821 = vmul.f32 %v804, %v820
  %vm822 = vcmp.lt.f32.partialorder %v821, 0.1
  %v823 = vsel %vm822, 0.0, 1.0
  %v824 = vmul.f32 %v823, %v786
  %v825 = vsel %vm794, %v761, 1e+30
  %v826 = vsel %vm796, %v825, inf
  %827 = vmin.xlane.f32.xlu0 %v826
  %v828 = vpop.xlane.xlu0 %827
  %v829 = vsel %vm794, %v761, -1e+30
  %v830 = vsel %vm796, %v829, -inf
  %831 = vmax.xlane.f32.xlu0 %v830
  %v832 = vpop.xlane.xlu0 %831
  %v833 = vsub.f32 %v761, %v828
  %v834 = vsub.f32 %v832, %v828
  %v835 = vmax.f32 %v834, 1e-12
  %v836 = vrcp.pop %v835
  %v837 = vmul.f32 %v835, %v836
  %v838 = vsub.f32 1.0, %v837
  %v839 = vmul.f32 %v836, %v838
  %v840 = vadd.f32 %v836, %v839
  %vm841 = vweird.f32 %v835
  %vm842 = vweird.f32 %v836
  %vm843 = vmor %vm841, %vm842
  %v844 = vsel %vm843, %v836, %v840
  %v845 = vand.u32 2147483647, %v835
  %vm846 = vcmp.eq.f32.partialorder %v845, 8.507059e+37
  %v847 = vand.u32 %v835, 2147483648
  %v848 = vor.u32 1.1754944e-38, %v847
  %v849 = vsel %vm846, %v848, %v844
  %v850 = vmul.f32 %v833, %v849
  %vm851 = vcmp.lt.f32.partialorder %v850, 0.1
  %v852 = vsel %vm851, 0.0, 1.0
  %v853 = vmul.f32 %v852, %v786
  %v854 = vmul.f32 %v788, %v791
  %v855 = vsel %vm796, %v854, 0.0
  %856 = vadd.xlane.f32.xlu0 %v855
  %v857 = vpop.xlane.xlu0 %856
  %v858 = vsel %vm796, %v788, 0.0
  %859 = vadd.xlane.f32.xlu0 %v858
  %v860 = vpop.xlane.xlu0 %859
  %v861 = vsel %vm796, %v791, 0.0
  %862 = vadd.xlane.f32.xlu0 %v861
  %v863 = vpop.xlane.xlu0 %862
  %v864 = vadd.f32 %v860, %v863
  %v865 = vsub.f32 %v864, %v857
  %v866 = vadd.f32 %v865, 1e-08
  %v867 = vrcp.pop %v866
  %v868 = vmul.f32 %v866, %v867
  %v869 = vsub.f32 1.0, %v868
  %v870 = vmul.f32 %v867, %v869
  %v871 = vadd.f32 %v867, %v870
  %vm872 = vweird.f32 %v866
  %vm873 = vweird.f32 %v867
  %vm874 = vmor %vm872, %vm873
  %v875 = vsel %vm874, %v867, %v871
  %v876 = vand.u32 2147483647, %v866
  %vm877 = vcmp.eq.f32.partialorder %v876, 8.507059e+37
  %v878 = vand.u32 %v866, 2147483648
  %v879 = vor.u32 1.1754944e-38, %v878
  %v880 = vsel %vm877, %v879, %v875
  %v881 = vmul.f32 %v857, %v880
  %v882 = vrot.slane %v881, 4
  %v883 = vadd.f32 %v881, %v882
  %v884 = vrot.slane %v883, 2
  %v885 = vadd.f32 %v883, %v884
  %v886 = vrot.slane %v885, 1
  %v887 = vadd.f32 %v885, %v886
  %v888 = vmul.f32 %v887, %v680
  %v889 = vmul.f32 %v824, %v853
  %v890 = vsel %vm796, %v889, 0.0
  %891 = vadd.xlane.f32.xlu0 %v890
  %v892 = vpop.xlane.xlu0 %891
  %v893 = vsel %vm796, %v824, 0.0
  %894 = vadd.xlane.f32.xlu0 %v893
  %v895 = vpop.xlane.xlu0 %894
  %v896 = vsel %vm796, %v853, 0.0
  %897 = vadd.xlane.f32.xlu0 %v896
  %v898 = vpop.xlane.xlu0 %897
  %v899 = vadd.f32 %v895, %v898
  %v900 = vsub.f32 %v899, %v892
  %v901 = vadd.f32 %v900, 1e-08
  %v902 = vrcp.pop %v901
  %v903 = vmul.f32 %v901, %v902
  %v904 = vsub.f32 1.0, %v903
  %v905 = vmul.f32 %v902, %v904
  %v906 = vadd.f32 %v902, %v905
  %vm907 = vweird.f32 %v901
  %vm908 = vweird.f32 %v902
  %vm909 = vmor %vm907, %vm908
  %v910 = vsel %vm909, %v902, %v906
  %v911 = vand.u32 2147483647, %v901
  %vm912 = vcmp.eq.f32.partialorder %v911, 8.507059e+37
  %v913 = vand.u32 %v901, 2147483648
  %v914 = vor.u32 1.1754944e-38, %v913
  %v915 = vsel %vm912, %v914, %v910
  %v916 = vmul.f32 %v892, %v915
  %v917 = vrot.slane %v916, 4
  %v918 = vadd.f32 %v916, %v917
  %v919 = vrot.slane %v918, 2
  %v920 = vadd.f32 %v918, %v919
  %v921 = vrot.slane %v920, 1
  %v922 = vadd.f32 %v920, %v921
  %v923 = vmul.f32 %v922, %v680
  %v924 = vadd.f32 %v888, %v923
  %v925 = vmul.f32 %v924, 0.5
  %926 = vst [vmem:[%s14] sm:$0xff] %v433
  %927 = vst [vmem:[%s15] sm:$0xff] %v495
  %v928 = vlaneseq
  %v929 = vand.u32 %v928, 127
  %vm930 = vcmp.eq.s32.totalorder %v929, 0
  %v931 = vsel %vm930, %v724, 0.0
  %vm932 = vcmp.eq.s32.totalorder %v929, 1
  %v933 = vsel %vm932, %v925, 0.0
  %v934 = vadd.f32 %v931, %v933
  %935 = vst [vmem:[%s13] sm:$0x1] %v934
  // Predicated region
  $region54: #{blip_retrieval_forward.5} parent=0 // pred_check
    _
  $region55: #{blip_retrieval_forward.5} parent=0 // pred_check_branch
    %937 = sbr.rel (0) target = $region57
  $region56: #{blip_retrieval_forward.5} parent=0 // pred_region
    _
  $region57: #{blip_retrieval_forward.5} parent=0 // pred_fallthru
    _
  // Predicated region
  $region58: #{blip_retrieval_forward.5} parent=0 // pred_check
    _
  $region59: #{blip_retrieval_forward.5} parent=0 // pred_check_branch
    %939 = sbr.rel (0) target = $region61
  $region60: #{blip_retrieval_forward.5} parent=0 // pred_region
    _
  $region61: #{blip_retrieval_forward.5} parent=0 // pred_fallthru
    _
  // Predicated region
  $region62: #{blip_retrieval_forward.5} parent=0 // pred_check
    _
  $region63: #{blip_retrieval_forward.5} parent=0 // pred_check_branch
    %941 = sbr.rel (0) target = $region65
  $region64: #{blip_retrieval_forward.5} parent=0 // pred_region
    _
  $region65: #{blip_retrieval_forward.5} parent=0 // pred_fallthru
    _
  // Predicated region
  $region66: #{blip_retrieval_forward.5} parent=0 // pred_check
    _
  $region67: #{blip_retrieval_forward.5} parent=0 // pred_check_branch
    %943 = sbr.rel (0) target = $region69
  $region68: #{blip_retrieval_forward.5} parent=0 // pred_region
    _
  $region69: #{blip_retrieval_forward.5} parent=0 // pred_fallthru
    _
  // Predicated region
  $region70: #{blip_retrieval_forward.5} parent=0 // pred_check
    _
  $region71: #{blip_retrieval_forward.5} parent=0 // pred_check_branch
    %945 = sbr.rel (0) target = $region73
  $region72: #{blip_retrieval_forward.5} parent=0 // pred_region
    _
  $region73: #{blip_retrieval_forward.5} parent=0 // pred_fallthru
    _
  // Predicated region
  $region74: #{blip_retrieval_forward.5} parent=0 // pred_check
    _
  $region75: #{blip_retrieval_forward.5} parent=0 // pred_check_branch
    %947 = sbr.rel (0) target = $region77
  $region76: #{blip_retrieval_forward.5} parent=0 // pred_region
    _
  $region77: #{blip_retrieval_forward.5} parent=0 // pred_fallthru
    _

</llo_original>
